<compile_context>
chip_gen: v5e
topology: v5e:2x2
jax: 0.10.0
libtpu: 0.0.40
codegen_flags: <defaults>
</compile_context>

<pallas_src>
import functools

import jax
import jax.numpy as jnp
from jax.experimental import pallas as pl
from jax.experimental.pallas import tpu as pltpu


def _linear_leaky_kernel(x_ref, w_ref, b_ref, o_ref, *, negative_slope, tk):
    """One (i, j, k) grid step: o[i,j] += x[i, k-chunk] @ w[k-chunk, j]; epilogue fuses bias + leaky-ReLU."""
    k = pl.program_id(2)

    @pl.when(k == 0)
    def _():
        o_ref[...] = jnp.zeros_like(o_ref)

    k_start = pl.multiple_of(k * tk, tk)            # aligned dynamic slice into resident x row block
    x_chunk = x_ref[:, pl.ds(k_start, tk)]
    o_ref[...] += jnp.dot(x_chunk, w_ref[...], preferred_element_type=jnp.float32)

    @pl.when(k == pl.num_programs(2) - 1)
    def _():
        y = o_ref[...] + b_ref[...]                 # f32 bias, broadcast over rows
        o_ref[...] = jnp.where(y > 0, y, negative_slope * y).astype(o_ref.dtype)


def _is_v7x():
    try:
        kind = jax.devices()[0].device_kind.lower()
    except Exception:
        return False
    return ("v7" in kind) or ("7x" in kind)


def _pick_tiles(K, N, *, weight_budget_bytes, weight_itemsize, even_j):
    """Largest 128-aligned divisor tiles; weight double-buffer stays under budget.

    If even_j, prefer a tn whose j-step count (N // tn) is even so the 'parallel' j axis
    splits evenly across v7x's 2 TensorCores.
    """
    tn_divs = [t for t in range(128, N + 1, 128) if N % t == 0]
    cap = 3584
    cands = [t for t in tn_divs if t <= cap] or [min(tn_divs)]
    if even_j:
        even = [t for t in cands if (N // t) % 2 == 0]
        if even:
            cands = even
    tn = max(cands)

    max_tk = max(128, weight_budget_bytes // (2 * tn * weight_itemsize))
    tk_divs = [t for t in range(128, K + 1, 128) if K % t == 0]
    tk_c = [t for t in tk_divs if t <= max_tk] or [min(tk_divs)]
    tk = max(tk_c)
    return tk, tn


def linear_leaky_relu(x, w_t, b, *, negative_slope=0.2, weight_dtype=jnp.bfloat16):
    """x: (M, K) f32, w_t: (K, N) f32 (transposed Linear weight), b: (N,) f32.

    weight_dtype: streaming dtype for x and W on the MXU (bf16 default; f32 accumulation
    and f32 bias / leaky-ReLU epilogue). Pass None to stream full f32.
    """
    M, K = x.shape
    Kw, N = w_t.shape
    assert K == Kw and b.shape == (N,)
    assert K % 128 == 0 and N % 128 == 0, "K and N must be multiples of 128"

    out_dtype = jnp.float32

    if weight_dtype is not None:
        w_t = w_t.astype(weight_dtype)
        x = x.astype(weight_dtype)

    # Batch (sublane) tile: whole row block stays resident; pad M up to a multiple of 8.
    if M <= 128:
        tm = ((M + 7) // 8) * 8
    else:
        tm = 128
    Mp = ((M + tm - 1) // tm) * tm
    if Mp != M:
        x = jnp.pad(x, ((0, Mp - M), (0, 0)))

    v7x = _is_v7x()
    vmem_capacity = (64 << 20) if v7x else (128 << 20)
    weight_budget_bytes = (22 << 20) if v7x else (48 << 20)

    w_itemsize = jnp.dtype(w_t.dtype).itemsize
    x_itemsize = jnp.dtype(x.dtype).itemsize
    tk, tn = _pick_tiles(K, N,
                         weight_budget_bytes=weight_budget_bytes,
                         weight_itemsize=w_itemsize,
                         even_j=v7x)

    b2 = b.reshape(1, N).astype(jnp.float32)

    kernel = functools.partial(_linear_leaky_kernel,
                               negative_slope=negative_slope, tk=tk)

    # VMEM footprint: double-buffered resident x row block, weight tile, output tile, bias,
    # plus a modest compiler-scratch margin; clamp under the chip's physical VMEM.
    vmem_bytes = int(
        2 * tm * K * x_itemsize
        + 2 * tk * tn * w_itemsize
        + 2 * tm * tn * 4
        + 2 * tn * 4
        + (6 << 20)
    )
    vmem_bytes = min(vmem_bytes, vmem_capacity - (2 << 20))

    cost = pl.CostEstimate(
        flops=2 * Mp * K * N,
        transcendentals=0,
        bytes_accessed=int((Mp // tm) * K * N * w_itemsize
                           + Mp * K * x_itemsize
                           + Mp * N * 4
                           + N * 4),
    )

    out = pl.pallas_call(
        kernel,
        out_shape=jax.ShapeDtypeStruct((Mp, N), out_dtype),
        grid_spec=pltpu.PrefetchScalarGridSpec(
            num_scalar_prefetch=0,
            grid=(Mp // tm, N // tn, K // tk),
            in_specs=[
                pl.BlockSpec((tm, K), lambda i, j, k: (i, 0)),    # resident activation row block
                pl.BlockSpec((tk, tn), lambda i, j, k: (k, j)),   # streamed weight tile (HBM-bound)
                pl.BlockSpec((1, tn), lambda i, j, k: (0, j)),    # bias tile
            ],
            out_specs=pl.BlockSpec((tm, tn), lambda i, j, k: (i, j)),  # accumulated in place
        ),
        compiler_params=pltpu.CompilerParams(
            dimension_semantics=("parallel", "parallel", "arbitrary"),
            vmem_limit_bytes=vmem_bytes,
        ),
        cost_estimate=cost,
    )(x, w_t, b2)

    return out[:M]


if __name__ == "__main__":
    # Small shapes consistent with the module's structure (Linear + leaky ReLU).
    # Full module dims would be K=12544, N=25088; scaled down here for the demo.
    batch, K, N = 2, 1024, 2048

    key = jax.random.PRNGKey(0)
    kx, kw, kb = jax.random.split(key, 3)

    # Deterministic PyTorch-Linear-style init: uniform(-1/sqrt(K), 1/sqrt(K)).
    bound = 1.0 / (K ** 0.5)
    w = jax.random.uniform(kw, (N, K), jnp.float32, -bound, bound)   # (out, in) like torch
    b = jax.random.uniform(kb, (N,), jnp.float32, -bound, bound)
    x = jax.random.normal(kx, (batch, K), jnp.float32)

    w_t = jnp.asarray(w.T)  # (K, N) for the kernel

    out = linear_leaky_relu(x, w_t, b, negative_slope=0.2)
    out = jax.block_until_ready(out)
    assert out.shape == (batch, N)

    # Tight reference: same bf16 input rounding, f32 accumulation (what the kernel computes).
    xb = x.astype(jnp.bfloat16).astype(jnp.float32)
    wb = w.astype(jnp.bfloat16).astype(jnp.float32)
    y_bf = xb @ wb.T + b
    ref_bf = jnp.where(y_bf > 0, 0.2 * 0 + y_bf, 0.2 * y_bf)
    assert jnp.allclose(out, ref_bf, atol=2e-3, rtol=2e-3), \
        float(jnp.max(jnp.abs(out - ref_bf)))

    # Loose reference: the original full-f32 PyTorch semantics.
    y_f32 = x @ w.T + b
    ref_f32 = jnp.where(y_f32 > 0, y_f32, 0.2 * y_f32)
    assert jnp.allclose(out, ref_f32, atol=1e-1, rtol=1e-1), \
        float(jnp.max(jnp.abs(out - ref_f32)))

    print("KERNEL_OK")
</pallas_src>

<mosaic_0001>
module attributes {stable_mosaic.version = 11 : i64} {
  func.func @_linear_leaky_kernel(%arg0: i32, %arg1: i32, %arg2: i32, %arg3: memref<8x1024xbf16, #tpu.memory_space<vmem>>, %arg4: memref<1024x2048xbf16, #tpu.memory_space<vmem>>, %arg5: memref<1x2048xf32, #tpu.memory_space<vmem>>, %arg6: memref<8x2048xf32, #tpu.memory_space<vmem>>) attributes {dimension_semantics = [#tpu.dimension_semantics<parallel>, #tpu.dimension_semantics<parallel>, #tpu.dimension_semantics<arbitrary>], iteration_bounds = array<i64: 1, 1, 1>, scalar_prefetch = 0 : i64, scratch_operands = 0 : i64, tpu.core_type = #tpu.core_type<tc>, window_params = [{transform_indices = @transform_0, window_bounds = array<i64: 8, 1024>}, {transform_indices = @transform_1, window_bounds = array<i64: 1024, 2048>}, {transform_indices = @transform_2, window_bounds = array<i64: 1, 2048>}, {transform_indices = @transform_3, window_bounds = array<i64: 8, 2048>}]} {
    %c0_i32 = arith.constant 0 : i32
    %0 = arith.cmpi eq, %arg2, %c0_i32 : i32
    %1 = arith.extui %0 : i1 to i32
    %c0_i32_0 = arith.constant 0 : i32
    %2 = arith.cmpi ne, %1, %c0_i32_0 : i32
    scf.if %2 {
      %cst_9 = arith.constant 0.000000e+00 : f32
      %15 = vector.broadcast %cst_9 : f32 to vector<8x2048xf32>
      %c0_10 = arith.constant 0 : index
      %c0_11 = arith.constant 0 : index
      %16 = vector.load %arg6[%c0_10, %c0_11] : memref<8x2048xf32, #tpu.memory_space<vmem>>, vector<8x2048xf32>
      tpu.vector_store %arg6[%c0_10, %c0_11], %15 {strides = array<i32>} : memref<8x2048xf32, #tpu.memory_space<vmem>>, vector<8x2048xf32>,
    } else {
    }
    %c1024_i32 = arith.constant 1024 : i32
    %3 = arith.muli %arg2, %c1024_i32 : i32
    %4 = tpu.assume_multiple %3, 1024 : i32
    %c0 = arith.constant 0 : index
    %5 = arith.index_cast %4 : i32 to index
    %6 = vector.load %arg3[%c0, %5] : memref<8x1024xbf16, #tpu.memory_space<vmem>>, vector<8x1024xbf16>
    %c0_1 = arith.constant 0 : index
    %c0_2 = arith.constant 0 : index
    %7 = vector.load %arg6[%c0_1, %c0_2] : memref<8x2048xf32, #tpu.memory_space<vmem>>, vector<8x2048xf32>
    %c0_3 = arith.constant 0 : index
    %c0_4 = arith.constant 0 : index
    %8 = vector.load %arg4[%c0_3, %c0_4] : memref<1024x2048xbf16, #tpu.memory_space<vmem>>, vector<1024x2048xbf16>
    %cst = arith.constant dense<0.000000e+00> : vector<8x2048xf32>
    %9 = tpu.matmul %6, %8, %cst {dimension_numbers = #tpu.dot_dimension_numbers<[1], [0], [0], [1], [0, 0, 1, 1], [], []>} : vector<8x1024xbf16>, vector<1024x2048xbf16>, vector<8x2048xf32> -> vector<8x2048xf32>
    %10 = arith.addf %7, %9 : vector<8x2048xf32>
    %c0_5 = arith.constant 0 : index
    %c0_6 = arith.constant 0 : index
    %11 = vector.load %arg6[%c0_5, %c0_6] : memref<8x2048xf32, #tpu.memory_space<vmem>>, vector<8x2048xf32>
    tpu.vector_store %arg6[%c0_5, %c0_6], %10 {strides = array<i32>} : memref<8x2048xf32, #tpu.memory_space<vmem>>, vector<8x2048xf32>,
    %c0_i32_7 = arith.constant 0 : i32
    %12 = arith.cmpi eq, %arg2, %c0_i32_7 : i32
    %13 = arith.extui %12 : i1 to i32
    %c0_i32_8 = arith.constant 0 : i32
    %14 = arith.cmpi ne, %13, %c0_i32_8 : i32
    scf.if %14 {
      %c0_9 = arith.constant 0 : index
      %c0_10 = arith.constant 0 : index
      %15 = vector.load %arg6[%c0_9, %c0_10] : memref<8x2048xf32, #tpu.memory_space<vmem>>, vector<8x2048xf32>
      %c0_11 = arith.constant 0 : index
      %c0_12 = arith.constant 0 : index
      %16 = vector.load %arg5[%c0_11, %c0_12] : memref<1x2048xf32, #tpu.memory_space<vmem>>, vector<1x2048xf32>
      %17 = vector.broadcast %16 : vector<1x2048xf32> to vector<8x2048xf32>
      %18 = arith.addf %15, %17 : vector<8x2048xf32>
      %cst_13 = arith.constant 0.000000e+00 : f32
      %19 = vector.broadcast %cst_13 : f32 to vector<8x2048xf32>
      %20 = arith.cmpf ogt, %18, %19 : vector<8x2048xf32>
      %cst_14 = arith.constant 2.000000e-01 : f32
      %21 = vector.broadcast %cst_14 : f32 to vector<8x2048xf32>
      %22 = arith.mulf %21, %18 : vector<8x2048xf32>
      %23 = arith.select %20, %18, %22 : vector<8x2048xi1>, vector<8x2048xf32>
      %c0_15 = arith.constant 0 : index
      %c0_16 = arith.constant 0 : index
      %24 = vector.load %arg6[%c0_15, %c0_16] : memref<8x2048xf32, #tpu.memory_space<vmem>>, vector<8x2048xf32>
      tpu.vector_store %arg6[%c0_15, %c0_16], %23 {strides = array<i32>} : memref<8x2048xf32, #tpu.memory_space<vmem>>, vector<8x2048xf32>,
    } else {
    }
    return
  }
  func.func @transform_0(%arg0: i32, %arg1: i32, %arg2: i32) -> (i32, i32) {
    %c0_i32 = arith.constant 0 : i32
    %c0_i32_0 = arith.constant 0 : i32
    return %arg0, %c0_i32 : i32, i32
  }
  func.func @transform_1(%arg0: i32, %arg1: i32, %arg2: i32) -> (i32, i32) {
    %c0_i32 = arith.constant 0 : i32
    return %arg2, %arg1 : i32, i32
  }
  func.func @transform_2(%arg0: i32, %arg1: i32, %arg2: i32) -> (i32, i32) {
    %c0_i32 = arith.constant 0 : i32
    %c0_i32_0 = arith.constant 0 : i32
    return %c0_i32, %arg1 : i32, i32
  }
  func.func @transform_3(%arg0: i32, %arg1: i32, %arg2: i32) -> (i32, i32) {
    %c0_i32 = arith.constant 0 : i32
    return %arg0, %arg1 : i32, i32
  }
}

</mosaic_0001>

<llo_original>
// kernel: tpu_custom_call.1
$region0: #{tpu_custom_call.1}
  #allocation0 [shape = 'u32[]', space=smem, size = 0x4, offset = 0x4, fixed_abs, tag = 'smem constant byte address 0x4 - core index']
  #allocation1 [shape = 'u32[72,128]{1,0:T(1,128)}', space=vmem, size = 0x9000, scoped, tag = 'internal scratch']
  %s0 = inlined_call_operand.hbm [shape: bf16[8,1024], index: 0, kind: input, shape index: {}]
  %s1 = inlined_call_operand.hbm [shape: bf16[1024,2048], index: 1, kind: input, shape index: {}]
  %s2 = inlined_call_operand.hbm [shape: f32[1,2048], index: 2, kind: input, shape index: {}]
  %s3 = inlined_call_operand.hbm [shape: f32[8,2048], index: 3, kind: output, shape index: {}]
  %s4 = sld [smem:[#allocation0]]
  $region42: #{tpu_custom_call.1} parent=0
    _
  %s6 = ssub.s32 1, %s4
  %s7 = scalar_select 0, %s6, %s4
  $region1: #{tpu_custom_call.1} parent=0
    #allocation2 [shape = 'u8[16384]{0}', space=vmem, size = 0x4000, scoped, tag = 'input window, operand 0, single buffered']
    #allocation3 [shape = 's32[1]{0}', space=sflag, size = 0x4, scoped, tag = 'scoped memory for tpu_custom_call.1']
    #allocation4 [shape = 's32[1]{0}', space=sflag, size = 0x4, scoped, tag = 'scoped memory for tpu_custom_call.1']
    #allocation5 [shape = 'u8[4194304]{0}', space=vmem, size = 0x400000, scoped, tag = 'input window, operand 1, single buffered']
    #allocation6 [shape = 's32[1]{0}', space=sflag, size = 0x4, scoped, tag = 'scoped memory for tpu_custom_call.1']
    #allocation7 [shape = 'u8[8192]{0}', space=vmem, size = 0x2000, scoped, tag = 'input window, operand 2, single buffered']
    #allocation8 [shape = 'u8[65536]{0}', space=vmem, size = 0x10000, scoped, tag = 'output window, operand 0, single buffered']
    %8 = vsyncpa [#allocation3], 0
    %9 = vsyncpa [#allocation6], 0
    %10 = vsyncpa [#allocation4], 0
    // Predicated region
    $region2: #{tpu_custom_call.1} parent=1 // pred_check
      _
    $region3: #{tpu_custom_call.1} parent=1 // pred_check_branch
      %12 = sbr.rel (0) target = $region5
    $region4: #{tpu_custom_call.1} parent=1 // pred_region
      %14 = vsyncadd [#allocation3], 0
      %s16 = sshll.u32 %s0, 4
      %s17 = int_to_ptr.hbm [resolvable:$true] %s16
      %s18 = sshll.u32 [#allocation2], 4
      %s19 = int_to_ptr.vmem [resolvable:$true] %s18
      %21 = dma.hbm_to_vmem [thread:$0]  %s17, 512, %s19, [#allocation3]
    $region5: #{tpu_custom_call.1} parent=1 // pred_fallthru
      _
    // Predicated region
    $region6: #{tpu_custom_call.1} parent=1 // pred_check
      _
    $region7: #{tpu_custom_call.1} parent=1 // pred_check_branch
      %23 = sbr.rel (0) target = $region9
    $region8: #{tpu_custom_call.1} parent=1 // pred_region
      %25 = vsyncadd [#allocation6], 0
      %s26 = sshll.u32 %s1, 4
      %s27 = int_to_ptr.hbm [resolvable:$true] %s26
      %s28 = sshll.u32 [#allocation5], 4
      %s29 = int_to_ptr.vmem [resolvable:$true] %s28
      %34 = dma.hbm_to_vmem [thread:$0]  %s27, 131072, %s29, [#allocation6], 1024, 1024, 64
    $region9: #{tpu_custom_call.1} parent=1 // pred_fallthru
      _
    // Predicated region
    $region10: #{tpu_custom_call.1} parent=1 // pred_check
      _
    $region11: #{tpu_custom_call.1} parent=1 // pred_check_branch
      %36 = sbr.rel (0) target = $region13
    $region12: #{tpu_custom_call.1} parent=1 // pred_region
      %38 = vsyncadd [#allocation6], 0
      %s40 = sshll.u32 %s2, 4
      %s41 = int_to_ptr.hbm [resolvable:$true] %s40
      %s42 = sshll.u32 [#allocation7], 4
      %s43 = int_to_ptr.vmem [resolvable:$true] %s42
      %45 = dma.hbm_to_vmem [thread:$0]  %s41, 256, %s43, [#allocation6]
    $region13: #{tpu_custom_call.1} parent=1 // pred_fallthru
      _
    // Predicated region
    $region14: #{tpu_custom_call.1} parent=1 // pred_check
      _
    $region15: #{tpu_custom_call.1} parent=1 // pred_check_branch
      %47 = sbr.rel (0) target = $region17
    $region16: #{tpu_custom_call.1} parent=1 // pred_region
      %49 = dma.done [#allocation3], 512
    $region17: #{tpu_custom_call.1} parent=1 // pred_fallthru
      _
    // Predicated region
    $region18: #{tpu_custom_call.1} parent=1 // pred_check
      _
    $region19: #{tpu_custom_call.1} parent=1 // pred_check_branch
      %51 = sbr.rel (0) target = $region21
    $region20: #{tpu_custom_call.1} parent=1 // pred_region
      %53 = dma.done [#allocation6], 131072
    $region21: #{tpu_custom_call.1} parent=1 // pred_fallthru
      _
    // Predicated region
    $region22: #{tpu_custom_call.1} parent=1 // pred_check
      _
    $region23: #{tpu_custom_call.1} parent=1 // pred_check_branch
      %55 = sbr.rel (0) target = $region25
    $region24: #{tpu_custom_call.1} parent=1 // pred_region
      %57 = dma.done [#allocation6], 256
    $region25: #{tpu_custom_call.1} parent=1 // pred_fallthru
      _
    %p58 = scmp.eq.s32.totalorder 0, 0
    // Predicated region
    $region26: #{tpu_custom_call.1} parent=1 // pred_check
      %p59 = pneg %p58
    $region27: #{tpu_custom_call.1} parent=1 // pred_check_branch
      %61 = sbr.rel (%p59) target = $region29
    $region28: #{tpu_custom_call.1} parent=1 // pred_region
      %62 = vst [vmem:[#allocation8] sm:$0xff] 0.0
      %63 = vst [vmem:[#allocation8 + $0x8] sm:$0xff] 0.0
      %64 = vst [vmem:[#allocation8 + $0x10] sm:$0xff] 0.0
      %65 = vst [vmem:[#allocation8 + $0x18] sm:$0xff] 0.0
      %66 = vst [vmem:[#allocation8 + $0x20] sm:$0xff] 0.0
      %67 = vst [vmem:[#allocation8 + $0x28] sm:$0xff] 0.0
      %68 = vst [vmem:[#allocation8 + $0x30] sm:$0xff] 0.0
      %69 = vst [vmem:[#allocation8 + $0x38] sm:$0xff] 0.0
      %70 = vst [vmem:[#allocation8 + $0x40] sm:$0xff] 0.0
      %71 = vst [vmem:[#allocation8 + $0x48] sm:$0xff] 0.0
      %72 = vst [vmem:[#allocation8 + $0x50] sm:$0xff] 0.0
      %73 = vst [vmem:[#allocation8 + $0x58] sm:$0xff] 0.0
      %74 = vst [vmem:[#allocation8 + $0x60] sm:$0xff] 0.0
      %75 = vst [vmem:[#allocation8 + $0x68] sm:$0xff] 0.0
      %76 = vst [vmem:[#allocation8 + $0x70] sm:$0xff] 0.0
      %77 = vst [vmem:[#allocation8 + $0x78] sm:$0xff] 0.0
    $region29: #{tpu_custom_call.1} parent=1 // pred_fallthru
      _
    %s78 = smul.u32 0, 1024
    %s79 = sshra.s32 %s78, 7
    %s80 = sand.u32 %s78, 127
    %s81 = smul.addr %s79, 4
    %s82 = scalar_lea.vmem [#allocation2], %s81
    %v83 = vld [vmem:[%s82] sm:$0xff]
    %v84 = vld [vmem:[%s82 + $0x8] sm:$0xff]
    %v85 = vld [vmem:[%s82 + $0x10] sm:$0xff]
    %v86 = vld [vmem:[%s82 + $0x18] sm:$0xff]
    %v87 = vld [vmem:[#allocation8] sm:$0xff]
    %v88 = vld [vmem:[#allocation8 + $0x8] sm:$0xff]
    %v89 = vld [vmem:[#allocation8 + $0x10] sm:$0xff]
    %v90 = vld [vmem:[#allocation8 + $0x18] sm:$0xff]
    %v91 = vld [vmem:[#allocation8 + $0x20] sm:$0xff]
    %v92 = vld [vmem:[#allocation8 + $0x28] sm:$0xff]
    %v93 = vld [vmem:[#allocation8 + $0x30] sm:$0xff]
    %v94 = vld [vmem:[#allocation8 + $0x38] sm:$0xff]
    %v95 = vld [vmem:[#allocation8 + $0x40] sm:$0xff]
    %v96 = vld [vmem:[#allocation8 + $0x48] sm:$0xff]
    %v97 = vld [vmem:[#allocation8 + $0x50] sm:$0xff]
    %v98 = vld [vmem:[#allocation8 + $0x58] sm:$0xff]
    %v99 = vld [vmem:[#allocation8 + $0x60] sm:$0xff]
    %v100 = vld [vmem:[#allocation8 + $0x68] sm:$0xff]
    %v101 = vld [vmem:[#allocation8 + $0x70] sm:$0xff]
    %v102 = vld [vmem:[#allocation8 + $0x78] sm:$0xff]
    %v103 = vld [vmem:[#allocation5] sm:$0xff]
    %v104 = vld [vmem:[#allocation5 + $0x8] sm:$0xff]
    %v105 = vld [vmem:[#allocation5 + $0x10] sm:$0xff]
    %v106 = vld [vmem:[#allocation5 + $0x18] sm:$0xff]
    %v107 = vld [vmem:[#allocation5 + $0x20] sm:$0xff]
    %v108 = vld [vmem:[#allocation5 + $0x28] sm:$0xff]
    %v109 = vld [vmem:[#allocation5 + $0x30] sm:$0xff]
    %v110 = vld [vmem:[#allocation5 + $0x38] sm:$0xff]
    %v111 = vld [vmem:[#allocation5 + $0x40] sm:$0xff]
    %v112 = vld [vmem:[#allocation5 + $0x48] sm:$0xff]
    %v113 = vld [vmem:[#allocation5 + $0x50] sm:$0xff]
    %v114 = vld [vmem:[#allocation5 + $0x58] sm:$0xff]
    %v115 = vld [vmem:[#allocation5 + $0x60] sm:$0xff]
    %v116 = vld [vmem:[#allocation5 + $0x68] sm:$0xff]
    %v117 = vld [vmem:[#allocation5 + $0x70] sm:$0xff]
    %v118 = vld [vmem:[#allocation5 + $0x78] sm:$0xff]
    %v119 = vld [vmem:[#allocation5 + $0x80] sm:$0xff]
    %v120 = vld [vmem:[#allocation5 + $0x88] sm:$0xff]
    %v121 = vld [vmem:[#allocation5 + $0x90] sm:$0xff]
    %v122 = vld [vmem:[#allocation5 + $0x98] sm:$0xff]
    %v123 = vld [vmem:[#allocation5 + $0xa0] sm:$0xff]
    %v124 = vld [vmem:[#allocation5 + $0xa8] sm:$0xff]
    %v125 = vld [vmem:[#allocation5 + $0xb0] sm:$0xff]
    %v126 = vld [vmem:[#allocation5 + $0xb8] sm:$0xff]
    %v127 = vld [vmem:[#allocation5 + $0xc0] sm:$0xff]
    %v128 = vld [vmem:[#allocation5 + $0xc8] sm:$0xff]
    %v129 = vld [vmem:[#allocation5 + $0xd0] sm:$0xff]
    %v130 = vld [vmem:[#allocation5 + $0xd8] sm:$0xff]
    %v131 = vld [vmem:[#allocation5 + $0xe0] sm:$0xff]
    %v132 = vld [vmem:[#allocation5 + $0xe8] sm:$0xff]
    %v133 = vld [vmem:[#allocation5 + $0xf0] sm:$0xff]
    %v134 = vld [vmem:[#allocation5 + $0xf8] sm:$0xff]
    %v135 = vld [vmem:[#allocation5 + $0x100] sm:$0xff]
    %v136 = vld [vmem:[#allocation5 + $0x108] sm:$0xff]
    %v137 = vld [vmem:[#allocation5 + $0x110] sm:$0xff]
    %v138 = vld [vmem:[#allocation5 + $0x118] sm:$0xff]
    %v139 = vld [vmem:[#allocation5 + $0x120] sm:$0xff]
    %v140 = vld [vmem:[#allocation5 + $0x128] sm:$0xff]
    %v141 = vld [vmem:[#allocation5 + $0x130] sm:$0xff]
    %v142 = vld [vmem:[#allocation5 + $0x138] sm:$0xff]
    %v143 = vld [vmem:[#allocation5 + $0x140] sm:$0xff]
    %v144 = vld [vmem:[#allocation5 + $0x148] sm:$0xff]
    %v145 = vld [vmem:[#allocation5 + $0x150] sm:$0xff]
    %v146 = vld [vmem:[#allocation5 + $0x158] sm:$0xff]
    %v147 = vld [vmem:[#allocation5 + $0x160] sm:$0xff]
    %v148 = vld [vmem:[#allocation5 + $0x168] sm:$0xff]
    %v149 = vld [vmem:[#allocation5 + $0x170] sm:$0xff]
    %v150 = vld [vmem:[#allocation5 + $0x178] sm:$0xff]
    %v151 = vld [vmem:[#allocation5 + $0x180] sm:$0xff]
    %v152 = vld [vmem:[#allocation5 + $0x188] sm:$0xff]
    %v153 = vld [vmem:[#allocation5 + $0x190] sm:$0xff]
    %v154 = vld [vmem:[#allocation5 + $0x198] sm:$0xff]
    %v155 = vld [vmem:[#allocation5 + $0x1a0] sm:$0xff]
    %v156 = vld [vmem:[#allocation5 + $0x1a8] sm:$0xff]
    %v157 = vld [vmem:[#allocation5 + $0x1b0] sm:$0xff]
    %v158 = vld [vmem:[#allocation5 + $0x1b8] sm:$0xff]
    %v159 = vld [vmem:[#allocation5 + $0x1c0] sm:$0xff]
    %v160 = vld [vmem:[#allocation5 + $0x1c8] sm:$0xff]
    %v161 = vld [vmem:[#allocation5 + $0x1d0] sm:$0xff]
    %v162 = vld [vmem:[#allocation5 + $0x1d8] sm:$0xff]
    %v163 = vld [vmem:[#allocation5 + $0x1e0] sm:$0xff]
    %v164 = vld [vmem:[#allocation5 + $0x1e8] sm:$0xff]
    %v165 = vld [vmem:[#allocation5 + $0x1f0] sm:$0xff]
    %v166 = vld [vmem:[#allocation5 + $0x1f8] sm:$0xff]
    %v167 = vld [vmem:[#allocation5 + $0x200] sm:$0xff]
    %v168 = vld [vmem:[#allocation5 + $0x208] sm:$0xff]
    %v169 = vld [vmem:[#allocation5 + $0x210] sm:$0xff]
    %v170 = vld [vmem:[#allocation5 + $0x218] sm:$0xff]
    %v171 = vld [vmem:[#allocation5 + $0x220] sm:$0xff]
    %v172 = vld [vmem:[#allocation5 + $0x228] sm:$0xff]
    %v173 = vld [vmem:[#allocation5 + $0x230] sm:$0xff]
    %v174 = vld [vmem:[#allocation5 + $0x238] sm:$0xff]
    %v175 = vld [vmem:[#allocation5 + $0x240] sm:$0xff]
    %v176 = vld [vmem:[#allocation5 + $0x248] sm:$0xff]
    %v177 = vld [vmem:[#allocation5 + $0x250] sm:$0xff]
    %v178 = vld [vmem:[#allocation5 + $0x258] sm:$0xff]
    %v179 = vld [vmem:[#allocation5 + $0x260] sm:$0xff]
    %v180 = vld [vmem:[#allocation5 + $0x268] sm:$0xff]
    %v181 = vld [vmem:[#allocation5 + $0x270] sm:$0xff]
    %v182 = vld [vmem:[#allocation5 + $0x278] sm:$0xff]
    %v183 = vld [vmem:[#allocation5 + $0x280] sm:$0xff]
    %v184 = vld [vmem:[#allocation5 + $0x288] sm:$0xff]
    %v185 = vld [vmem:[#allocation5 + $0x290] sm:$0xff]
    %v186 = vld [vmem:[#allocation5 + $0x298] sm:$0xff]
    %v187 = vld [vmem:[#allocation5 + $0x2a0] sm:$0xff]
    %v188 = vld [vmem:[#allocation5 + $0x2a8] sm:$0xff]
    %v189 = vld [vmem:[#allocation5 + $0x2b0] sm:$0xff]
    %v190 = vld [vmem:[#allocation5 + $0x2b8] sm:$0xff]
    %v191 = vld [vmem:[#allocation5 + $0x2c0] sm:$0xff]
    %v192 = vld [vmem:[#allocation5 + $0x2c8] sm:$0xff]
    %v193 = vld [vmem:[#allocation5 + $0x2d0] sm:$0xff]
    %v194 = vld [vmem:[#allocation5 + $0x2d8] sm:$0xff]
    %v195 = vld [vmem:[#allocation5 + $0x2e0] sm:$0xff]
    %v196 = vld [vmem:[#allocation5 + $0x2e8] sm:$0xff]
    %v197 = vld [vmem:[#allocation5 + $0x2f0] sm:$0xff]
    %v198 = vld [vmem:[#allocation5 + $0x2f8] sm:$0xff]
    %v199 = vld [vmem:[#allocation5 + $0x300] sm:$0xff]
    %v200 = vld [vmem:[#allocation5 + $0x308] sm:$0xff]
    %v201 = vld [vmem:[#allocation5 + $0x310] sm:$0xff]
    %v202 = vld [vmem:[#allocation5 + $0x318] sm:$0xff]
    %v203 = vld [vmem:[#allocation5 + $0x320] sm:$0xff]
    %v204 = vld [vmem:[#allocation5 + $0x328] sm:$0xff]
    %v205 = vld [vmem:[#allocation5 + $0x330] sm:$0xff]
    %v206 = vld [vmem:[#allocation5 + $0x338] sm:$0xff]
    %v207 = vld [vmem:[#allocation5 + $0x340] sm:$0xff]
    %v208 = vld [vmem:[#allocation5 + $0x348] sm:$0xff]
    %v209 = vld [vmem:[#allocation5 + $0x350] sm:$0xff]
    %v210 = vld [vmem:[#allocation5 + $0x358] sm:$0xff]
    %v211 = vld [vmem:[#allocation5 + $0x360] sm:$0xff]
    %v212 = vld [vmem:[#allocation5 + $0x368] sm:$0xff]
    %v213 = vld [vmem:[#allocation5 + $0x370] sm:$0xff]
    %v214 = vld [vmem:[#allocation5 + $0x378] sm:$0xff]
    %v215 = vld [vmem:[#allocation5 + $0x380] sm:$0xff]
    %v216 = vld [vmem:[#allocation5 + $0x388] sm:$0xff]
    %v217 = vld [vmem:[#allocation5 + $0x390] sm:$0xff]
    %v218 = vld [vmem:[#allocation5 + $0x398] sm:$0xff]
    %v219 = vld [vmem:[#allocation5 + $0x3a0] sm:$0xff]
    %v220 = vld [vmem:[#allocation5 + $0x3a8] sm:$0xff]
    %v221 = vld [vmem:[#allocation5 + $0x3b0] sm:$0xff]
    %v222 = vld [vmem:[#allocation5 + $0x3b8] sm:$0xff]
    %v223 = vld [vmem:[#allocation5 + $0x3c0] sm:$0xff]
    %v224 = vld [vmem:[#allocation5 + $0x3c8] sm:$0xff]
    %v225 = vld [vmem:[#allocation5 + $0x3d0] sm:$0xff]
    %v226 = vld [vmem:[#allocation5 + $0x3d8] sm:$0xff]
    %v227 = vld [vmem:[#allocation5 + $0x3e0] sm:$0xff]
    %v228 = vld [vmem:[#allocation5 + $0x3e8] sm:$0xff]
    %v229 = vld [vmem:[#allocation5 + $0x3f0] sm:$0xff]
    %v230 = vld [vmem:[#allocation5 + $0x3f8] sm:$0xff]
    %v231 = vld [vmem:[#allocation5 + $0x400] sm:$0xff]
    %v232 = vld [vmem:[#allocation5 + $0x408] sm:$0xff]
    %v233 = vld [vmem:[#allocation5 + $0x410] sm:$0xff]
    %v234 = vld [vmem:[#allocation5 + $0x418] sm:$0xff]
    %v235 = vld [vmem:[#allocation5 + $0x420] sm:$0xff]
    %v236 = vld [vmem:[#allocation5 + $0x428] sm:$0xff]
    %v237 = vld [vmem:[#allocation5 + $0x430] sm:$0xff]
    %v238 = vld [vmem:[#allocation5 + $0x438] sm:$0xff]
    %v239 = vld [vmem:[#allocation5 + $0x440] sm:$0xff]
    %v240 = vld [vmem:[#allocation5 + $0x448] sm:$0xff]
    %v241 = vld [vmem:[#allocation5 + $0x450] sm:$0xff]
    %v242 = vld [vmem:[#allocation5 + $0x458] sm:$0xff]
    %v243 = vld [vmem:[#allocation5 + $0x460] sm:$0xff]
    %v244 = vld [vmem:[#allocation5 + $0x468] sm:$0xff]
    %v245 = vld [vmem:[#allocation5 + $0x470] sm:$0xff]
    %v246 = vld [vmem:[#allocation5 + $0x478] sm:$0xff]
    %v247 = vld [vmem:[#allocation5 + $0x480] sm:$0xff]
    %v248 = vld [vmem:[#allocation5 + $0x488] sm:$0xff]
    %v249 = vld [vmem:[#allocation5 + $0x490] sm:$0xff]
    %v250 = vld [vmem:[#allocation5 + $0x498] sm:$0xff]
    %v251 = vld [vmem:[#allocation5 + $0x4a0] sm:$0xff]
    %v252 = vld [vmem:[#allocation5 + $0x4a8] sm:$0xff]
    %v253 = vld [vmem:[#allocation5 + $0x4b0] sm:$0xff]
    %v254 = vld [vmem:[#allocation5 + $0x4b8] sm:$0xff]
    %v255 = vld [vmem:[#allocation5 + $0x4c0] sm:$0xff]
    %v256 = vld [vmem:[#allocation5 + $0x4c8] sm:$0xff]
    %v257 = vld [vmem:[#allocation5 + $0x4d0] sm:$0xff]
    %v258 = vld [vmem:[#allocation5 + $0x4d8] sm:$0xff]
    %v259 = vld [vmem:[#allocation5 + $0x4e0] sm:$0xff]
    %v260 = vld [vmem:[#allocation5 + $0x4e8] sm:$0xff]
    %v261 = vld [vmem:[#allocation5 + $0x4f0] sm:$0xff]
    %v262 = vld [vmem:[#allocation5 + $0x4f8] sm:$0xff]
    %v263 = vld [vmem:[#allocation5 + $0x500] sm:$0xff]
    %v264 = vld [vmem:[#allocation5 + $0x508] sm:$0xff]
    %v265 = vld [vmem:[#allocation5 + $0x510] sm:$0xff]
    %v266 = vld [vmem:[#allocation5 + $0x518] sm:$0xff]
    %v267 = vld [vmem:[#allocation5 + $0x520] sm:$0xff]
    %v268 = vld [vmem:[#allocation5 + $0x528] sm:$0xff]
    %v269 = vld [vmem:[#allocation5 + $0x530] sm:$0xff]
    %v270 = vld [vmem:[#allocation5 + $0x538] sm:$0xff]
    %v271 = vld [vmem:[#allocation5 + $0x540] sm:$0xff]
    %v272 = vld [vmem:[#allocation5 + $0x548] sm:$0xff]
    %v273 = vld [vmem:[#allocation5 + $0x550] sm:$0xff]
    %v274 = vld [vmem:[#allocation5 + $0x558] sm:$0xff]
    %v275 = vld [vmem:[#allocation5 + $0x560] sm:$0xff]
    %v276 = vld [vmem:[#allocation5 + $0x568] sm:$0xff]
    %v277 = vld [vmem:[#allocation5 + $0x570] sm:$0xff]
    %v278 = vld [vmem:[#allocation5 + $0x578] sm:$0xff]
    %v279 = vld [vmem:[#allocation5 + $0x580] sm:$0xff]
    %v280 = vld [vmem:[#allocation5 + $0x588] sm:$0xff]
    %v281 = vld [vmem:[#allocation5 + $0x590] sm:$0xff]
    %v282 = vld [vmem:[#allocation5 + $0x598] sm:$0xff]
    %v283 = vld [vmem:[#allocation5 + $0x5a0] sm:$0xff]
    %v284 = vld [vmem:[#allocation5 + $0x5a8] sm:$0xff]
    %v285 = vld [vmem:[#allocation5 + $0x5b0] sm:$0xff]
    %v286 = vld [vmem:[#allocation5 + $0x5b8] sm:$0xff]
    %v287 = vld [vmem:[#allocation5 + $0x5c0] sm:$0xff]
    %v288 = vld [vmem:[#allocation5 + $0x5c8] sm:$0xff]
    %v289 = vld [vmem:[#allocation5 + $0x5d0] sm:$0xff]
    %v290 = vld [vmem:[#allocation5 + $0x5d8] sm:$0xff]
    %v291 = vld [vmem:[#allocation5 + $0x5e0] sm:$0xff]
    %v292 = vld [vmem:[#allocation5 + $0x5e8] sm:$0xff]
    %v293 = vld [vmem:[#allocation5 + $0x5f0] sm:$0xff]
    %v294 = vld [vmem:[#allocation5 + $0x5f8] sm:$0xff]
    %v295 = vld [vmem:[#allocation5 + $0x600] sm:$0xff]
    %v296 = vld [vmem:[#allocation5 + $0x608] sm:$0xff]
    %v297 = vld [vmem:[#allocation5 + $0x610] sm:$0xff]
    %v298 = vld [vmem:[#allocation5 + $0x618] sm:$0xff]
    %v299 = vld [vmem:[#allocation5 + $0x620] sm:$0xff]
    %v300 = vld [vmem:[#allocation5 + $0x628] sm:$0xff]
    %v301 = vld [vmem:[#allocation5 + $0x630] sm:$0xff]
    %v302 = vld [vmem:[#allocation5 + $0x638] sm:$0xff]
    %v303 = vld [vmem:[#allocation5 + $0x640] sm:$0xff]
    %v304 = vld [vmem:[#allocation5 + $0x648] sm:$0xff]
    %v305 = vld [vmem:[#allocation5 + $0x650] sm:$0xff]
    %v306 = vld [vmem:[#allocation5 + $0x658] sm:$0xff]
    %v307 = vld [vmem:[#allocation5 + $0x660] sm:$0xff]
    %v308 = vld [vmem:[#allocation5 + $0x668] sm:$0xff]
    %v309 = vld [vmem:[#allocation5 + $0x670] sm:$0xff]
    %v310 = vld [vmem:[#allocation5 + $0x678] sm:$0xff]
    %v311 = vld [vmem:[#allocation5 + $0x680] sm:$0xff]
    %v312 = vld [vmem:[#allocation5 + $0x688] sm:$0xff]
    %v313 = vld [vmem:[#allocation5 + $0x690] sm:$0xff]
    %v314 = vld [vmem:[#allocation5 + $0x698] sm:$0xff]
    %v315 = vld [vmem:[#allocation5 + $0x6a0] sm:$0xff]
    %v316 = vld [vmem:[#allocation5 + $0x6a8] sm:$0xff]
    %v317 = vld [vmem:[#allocation5 + $0x6b0] sm:$0xff]
    %v318 = vld [vmem:[#allocation5 + $0x6b8] sm:$0xff]
    %v319 = vld [vmem:[#allocation5 + $0x6c0] sm:$0xff]
    %v320 = vld [vmem:[#allocation5 + $0x6c8] sm:$0xff]
    %v321 = vld [vmem:[#allocation5 + $0x6d0] sm:$0xff]
    %v322 = vld [vmem:[#allocation5 + $0x6d8] sm:$0xff]
    %v323 = vld [vmem:[#allocation5 + $0x6e0] sm:$0xff]
    %v324 = vld [vmem:[#allocation5 + $0x6e8] sm:$0xff]
    %v325 = vld [vmem:[#allocation5 + $0x6f0] sm:$0xff]
    %v326 = vld [vmem:[#allocation5 + $0x6f8] sm:$0xff]
    %v327 = vld [vmem:[#allocation5 + $0x700] sm:$0xff]
    %v328 = vld [vmem:[#allocation5 + $0x708] sm:$0xff]
    %v329 = vld [vmem:[#allocation5 + $0x710] sm:$0xff]
    %v330 = vld [vmem:[#allocation5 + $0x718] sm:$0xff]
    %v331 = vld [vmem:[#allocation5 + $0x720] sm:$0xff]
    %v332 = vld [vmem:[#allocation5 + $0x728] sm:$0xff]
    %v333 = vld [vmem:[#allocation5 + $0x730] sm:$0xff]
    %v334 = vld [vmem:[#allocation5 + $0x738] sm:$0xff]
    %v335 = vld [vmem:[#allocation5 + $0x740] sm:$0xff]
    %v336 = vld [vmem:[#allocation5 + $0x748] sm:$0xff]
    %v337 = vld [vmem:[#allocation5 + $0x750] sm:$0xff]
    %v338 = vld [vmem:[#allocation5 + $0x758] sm:$0xff]
    %v339 = vld [vmem:[#allocation5 + $0x760] sm:$0xff]
    %v340 = vld [vmem:[#allocation5 + $0x768] sm:$0xff]
    %v341 = vld [vmem:[#allocation5 + $0x770] sm:$0xff]
    %v342 = vld [vmem:[#allocation5 + $0x778] sm:$0xff]
    %v343 = vld [vmem:[#allocation5 + $0x780] sm:$0xff]
    %v344 = vld [vmem:[#allocation5 + $0x788] sm:$0xff]
    %v345 = vld [vmem:[#allocation5 + $0x790] sm:$0xff]
    %v346 = vld [vmem:[#allocation5 + $0x798] sm:$0xff]
    %v347 = vld [vmem:[#allocation5 + $0x7a0] sm:$0xff]
    %v348 = vld [vmem:[#allocation5 + $0x7a8] sm:$0xff]
    %v349 = vld [vmem:[#allocation5 + $0x7b0] sm:$0xff]
    %v350 = vld [vmem:[#allocation5 + $0x7b8] sm:$0xff]
    %v351 = vld [vmem:[#allocation5 + $0x7c0] sm:$0xff]
    %v352 = vld [vmem:[#allocation5 + $0x7c8] sm:$0xff]
    %v353 = vld [vmem:[#allocation5 + $0x7d0] sm:$0xff]
    %v354 = vld [vmem:[#allocation5 + $0x7d8] sm:$0xff]
    %v355 = vld [vmem:[#allocation5 + $0x7e0] sm:$0xff]
    %v356 = vld [vmem:[#allocation5 + $0x7e8] sm:$0xff]
    %v357 = vld [vmem:[#allocation5 + $0x7f0] sm:$0xff]
    %v358 = vld [vmem:[#allocation5 + $0x7f8] sm:$0xff]
    %v359 = vld [vmem:[#allocation5 + $0x800] sm:$0xff]
    %v360 = vld [vmem:[#allocation5 + $0x808] sm:$0xff]
    %v361 = vld [vmem:[#allocation5 + $0x810] sm:$0xff]
    %v362 = vld [vmem:[#allocation5 + $0x818] sm:$0xff]
    %v363 = vld [vmem:[#allocation5 + $0x820] sm:$0xff]
    %v364 = vld [vmem:[#allocation5 + $0x828] sm:$0xff]
    %v365 = vld [vmem:[#allocation5 + $0x830] sm:$0xff]
    %v366 = vld [vmem:[#allocation5 + $0x838] sm:$0xff]
    %v367 = vld [vmem:[#allocation5 + $0x840] sm:$0xff]
    %v368 = vld [vmem:[#allocation5 + $0x848] sm:$0xff]
    %v369 = vld [vmem:[#allocation5 + $0x850] sm:$0xff]
    %v370 = vld [vmem:[#allocation5 + $0x858] sm:$0xff]
    %v371 = vld [vmem:[#allocation5 + $0x860] sm:$0xff]
    %v372 = vld [vmem:[#allocation5 + $0x868] sm:$0xff]
    %v373 = vld [vmem:[#allocation5 + $0x870] sm:$0xff]
    %v374 = vld [vmem:[#allocation5 + $0x878] sm:$0xff]
    %v375 = vld [vmem:[#allocation5 + $0x880] sm:$0xff]
    %v376 = vld [vmem:[#allocation5 + $0x888] sm:$0xff]
    %v377 = vld [vmem:[#allocation5 + $0x890] sm:$0xff]
    %v378 = vld [vmem:[#allocation5 + $0x898] sm:$0xff]
    %v379 = vld [vmem:[#allocation5 + $0x8a0] sm:$0xff]
    %v380 = vld [vmem:[#allocation5 + $0x8a8] sm:$0xff]
    %v381 = vld [vmem:[#allocation5 + $0x8b0] sm:$0xff]
    %v382 = vld [vmem:[#allocation5 + $0x8b8] sm:$0xff]
    %v383 = vld [vmem:[#allocation5 + $0x8c0] sm:$0xff]
    %v384 = vld [vmem:[#allocation5 + $0x8c8] sm:$0xff]
    %v385 = vld [vmem:[#allocation5 + $0x8d0] sm:$0xff]
    %v386 = vld [vmem:[#allocation5 + $0x8d8] sm:$0xff]
    %v387 = vld [vmem:[#allocation5 + $0x8e0] sm:$0xff]
    %v388 = vld [vmem:[#allocation5 + $0x8e8] sm:$0xff]
    %v389 = vld [vmem:[#allocation5 + $0x8f0] sm:$0xff]
    %v390 = vld [vmem:[#allocation5 + $0x8f8] sm:$0xff]
    %v391 = vld [vmem:[#allocation5 + $0x900] sm:$0xff]
    %v392 = vld [vmem:[#allocation5 + $0x908] sm:$0xff]
    %v393 = vld [vmem:[#allocation5 + $0x910] sm:$0xff]
    %v394 = vld [vmem:[#allocation5 + $0x918] sm:$0xff]
    %v395 = vld [vmem:[#allocation5 + $0x920] sm:$0xff]
    %v396 = vld [vmem:[#allocation5 + $0x928] sm:$0xff]
    %v397 = vld [vmem:[#allocation5 + $0x930] sm:$0xff]
    %v398 = vld [vmem:[#allocation5 + $0x938] sm:$0xff]
    %v399 = vld [vmem:[#allocation5 + $0x940] sm:$0xff]
    %v400 = vld [vmem:[#allocation5 + $0x948] sm:$0xff]
    %v401 = vld [vmem:[#allocation5 + $0x950] sm:$0xff]
    %v402 = vld [vmem:[#allocation5 + $0x958] sm:$0xff]
    %v403 = vld [vmem:[#allocation5 + $0x960] sm:$0xff]
    %v404 = vld [vmem:[#allocation5 + $0x968] sm:$0xff]
    %v405 = vld [vmem:[#allocation5 + $0x970] sm:$0xff]
    %v406 = vld [vmem:[#allocation5 + $0x978] sm:$0xff]
    %v407 = vld [vmem:[#allocation5 + $0x980] sm:$0xff]
    %v408 = vld [vmem:[#allocation5 + $0x988] sm:$0xff]
    %v409 = vld [vmem:[#allocation5 + $0x990] sm:$0xff]
    %v410 = vld [vmem:[#allocation5 + $0x998] sm:$0xff]
    %v411 = vld [vmem:[#allocation5 + $0x9a0] sm:$0xff]
    %v412 = vld [vmem:[#allocation5 + $0x9a8] sm:$0xff]
    %v413 = vld [vmem:[#allocation5 + $0x9b0] sm:$0xff]
    %v414 = vld [vmem:[#allocation5 + $0x9b8] sm:$0xff]
    %v415 = vld [vmem:[#allocation5 + $0x9c0] sm:$0xff]
    %v416 = vld [vmem:[#allocation5 + $0x9c8] sm:$0xff]
    %v417 = vld [vmem:[#allocation5 + $0x9d0] sm:$0xff]
    %v418 = vld [vmem:[#allocation5 + $0x9d8] sm:$0xff]
    %v419 = vld [vmem:[#allocation5 + $0x9e0] sm:$0xff]
    %v420 = vld [vmem:[#allocation5 + $0x9e8] sm:$0xff]
    %v421 = vld [vmem:[#allocation5 + $0x9f0] sm:$0xff]
    %v422 = vld [vmem:[#allocation5 + $0x9f8] sm:$0xff]
    %v423 = vld [vmem:[#allocation5 + $0xa00] sm:$0xff]
    %v424 = vld [vmem:[#allocation5 + $0xa08] sm:$0xff]
    %v425 = vld [vmem:[#allocation5 + $0xa10] sm:$0xff]
    %v426 = vld [vmem:[#allocation5 + $0xa18] sm:$0xff]
    %v427 = vld [vmem:[#allocation5 + $0xa20] sm:$0xff]
    %v428 = vld [vmem:[#allocation5 + $0xa28] sm:$0xff]
    %v429 = vld [vmem:[#allocation5 + $0xa30] sm:$0xff]
    %v430 = vld [vmem:[#allocation5 + $0xa38] sm:$0xff]
    %v431 = vld [vmem:[#allocation5 + $0xa40] sm:$0xff]
    %v432 = vld [vmem:[#allocation5 + $0xa48] sm:$0xff]
    %v433 = vld [vmem:[#allocation5 + $0xa50] sm:$0xff]
    %v434 = vld [vmem:[#allocation5 + $0xa58] sm:$0xff]
    %v435 = vld [vmem:[#allocation5 + $0xa60] sm:$0xff]
    %v436 = vld [vmem:[#allocation5 + $0xa68] sm:$0xff]
    %v437 = vld [vmem:[#allocation5 + $0xa70] sm:$0xff]
    %v438 = vld [vmem:[#allocation5 + $0xa78] sm:$0xff]
    %v439 = vld [vmem:[#allocation5 + $0xa80] sm:$0xff]
    %v440 = vld [vmem:[#allocation5 + $0xa88] sm:$0xff]
    %v441 = vld [vmem:[#allocation5 + $0xa90] sm:$0xff]
    %v442 = vld [vmem:[#allocation5 + $0xa98] sm:$0xff]
    %v443 = vld [vmem:[#allocation5 + $0xaa0] sm:$0xff]
    %v444 = vld [vmem:[#allocation5 + $0xaa8] sm:$0xff]
    %v445 = vld [vmem:[#allocation5 + $0xab0] sm:$0xff]
    %v446 = vld [vmem:[#allocation5 + $0xab8] sm:$0xff]
    %v447 = vld [vmem:[#allocation5 + $0xac0] sm:$0xff]
    %v448 = vld [vmem:[#allocation5 + $0xac8] sm:$0xff]
    %v449 = vld [vmem:[#allocation5 + $0xad0] sm:$0xff]
    %v450 = vld [vmem:[#allocation5 + $0xad8] sm:$0xff]
    %v451 = vld [vmem:[#allocation5 + $0xae0] sm:$0xff]
    %v452 = vld [vmem:[#allocation5 + $0xae8] sm:$0xff]
    %v453 = vld [vmem:[#allocation5 + $0xaf0] sm:$0xff]
    %v454 = vld [vmem:[#allocation5 + $0xaf8] sm:$0xff]
    %v455 = vld [vmem:[#allocation5 + $0xb00] sm:$0xff]
    %v456 = vld [vmem:[#allocation5 + $0xb08] sm:$0xff]
    %v457 = vld [vmem:[#allocation5 + $0xb10] sm:$0xff]
    %v458 = vld [vmem:[#allocation5 + $0xb18] sm:$0xff]
    %v459 = vld [vmem:[#allocation5 + $0xb20] sm:$0xff]
    %v460 = vld [vmem:[#allocation5 + $0xb28] sm:$0xff]
    %v461 = vld [vmem:[#allocation5 + $0xb30] sm:$0xff]
    %v462 = vld [vmem:[#allocation5 + $0xb38] sm:$0xff]
    %v463 = vld [vmem:[#allocation5 + $0xb40] sm:$0xff]
    %v464 = vld [vmem:[#allocation5 + $0xb48] sm:$0xff]
    %v465 = vld [vmem:[#allocation5 + $0xb50] sm:$0xff]
    %v466 = vld [vmem:[#allocation5 + $0xb58] sm:$0xff]
    %v467 = vld [vmem:[#allocation5 + $0xb60] sm:$0xff]
    %v468 = vld [vmem:[#allocation5 + $0xb68] sm:$0xff]
    %v469 = vld [vmem:[#allocation5 + $0xb70] sm:$0xff]
    %v470 = vld [vmem:[#allocation5 + $0xb78] sm:$0xff]
    %v471 = vld [vmem:[#allocation5 + $0xb80] sm:$0xff]
    %v472 = vld [vmem:[#allocation5 + $0xb88] sm:$0xff]
    %v473 = vld [vmem:[#allocation5 + $0xb90] sm:$0xff]
    %v474 = vld [vmem:[#allocation5 + $0xb98] sm:$0xff]
    %v475 = vld [vmem:[#allocation5 + $0xba0] sm:$0xff]
    %v476 = vld [vmem:[#allocation5 + $0xba8] sm:$0xff]
    %v477 = vld [vmem:[#allocation5 + $0xbb0] sm:$0xff]
    %v478 = vld [vmem:[#allocation5 + $0xbb8] sm:$0xff]
    %v479 = vld [vmem:[#allocation5 + $0xbc0] sm:$0xff]
    %v480 = vld [vmem:[#allocation5 + $0xbc8] sm:$0xff]
    %v481 = vld [vmem:[#allocation5 + $0xbd0] sm:$0xff]
    %v482 = vld [vmem:[#allocation5 + $0xbd8] sm:$0xff]
    %v483 = vld [vmem:[#allocation5 + $0xbe0] sm:$0xff]
    %v484 = vld [vmem:[#allocation5 + $0xbe8] sm:$0xff]
    %v485 = vld [vmem:[#allocation5 + $0xbf0] sm:$0xff]
    %v486 = vld [vmem:[#allocation5 + $0xbf8] sm:$0xff]
    %v487 = vld [vmem:[#allocation5 + $0xc00] sm:$0xff]
    %v488 = vld [vmem:[#allocation5 + $0xc08] sm:$0xff]
    %v489 = vld [vmem:[#allocation5 + $0xc10] sm:$0xff]
    %v490 = vld [vmem:[#allocation5 + $0xc18] sm:$0xff]
    %v491 = vld [vmem:[#allocation5 + $0xc20] sm:$0xff]
    %v492 = vld [vmem:[#allocation5 + $0xc28] sm:$0xff]
    %v493 = vld [vmem:[#allocation5 + $0xc30] sm:$0xff]
    %v494 = vld [vmem:[#allocation5 + $0xc38] sm:$0xff]
    %v495 = vld [vmem:[#allocation5 + $0xc40] sm:$0xff]
    %v496 = vld [vmem:[#allocation5 + $0xc48] sm:$0xff]
    %v497 = vld [vmem:[#allocation5 + $0xc50] sm:$0xff]
    %v498 = vld [vmem:[#allocation5 + $0xc58] sm:$0xff]
    %v499 = vld [vmem:[#allocation5 + $0xc60] sm:$0xff]
    %v500 = vld [vmem:[#allocation5 + $0xc68] sm:$0xff]
    %v501 = vld [vmem:[#allocation5 + $0xc70] sm:$0xff]
    %v502 = vld [vmem:[#allocation5 + $0xc78] sm:$0xff]
    %v503 = vld [vmem:[#allocation5 + $0xc80] sm:$0xff]
    %v504 = vld [vmem:[#allocation5 + $0xc88] sm:$0xff]
    %v505 = vld [vmem:[#allocation5 + $0xc90] sm:$0xff]
    %v506 = vld [vmem:[#allocation5 + $0xc98] sm:$0xff]
    %v507 = vld [vmem:[#allocation5 + $0xca0] sm:$0xff]
    %v508 = vld [vmem:[#allocation5 + $0xca8] sm:$0xff]
    %v509 = vld [vmem:[#allocation5 + $0xcb0] sm:$0xff]
    %v510 = vld [vmem:[#allocation5 + $0xcb8] sm:$0xff]
    %v511 = vld [vmem:[#allocation5 + $0xcc0] sm:$0xff]
    %v512 = vld [vmem:[#allocation5 + $0xcc8] sm:$0xff]
    %v513 = vld [vmem:[#allocation5 + $0xcd0] sm:$0xff]
    %v514 = vld [vmem:[#allocation5 + $0xcd8] sm:$0xff]
    %v515 = vld [vmem:[#allocation5 + $0xce0] sm:$0xff]
    %v516 = vld [vmem:[#allocation5 + $0xce8] sm:$0xff]
    %v517 = vld [vmem:[#allocation5 + $0xcf0] sm:$0xff]
    %v518 = vld [vmem:[#allocation5 + $0xcf8] sm:$0xff]
    %v519 = vld [vmem:[#allocation5 + $0xd00] sm:$0xff]
    %v520 = vld [vmem:[#allocation5 + $0xd08] sm:$0xff]
    %v521 = vld [vmem:[#allocation5 + $0xd10] sm:$0xff]
    %v522 = vld [vmem:[#allocation5 + $0xd18] sm:$0xff]
    %v523 = vld [vmem:[#allocation5 + $0xd20] sm:$0xff]
    %v524 = vld [vmem:[#allocation5 + $0xd28] sm:$0xff]
    %v525 = vld [vmem:[#allocation5 + $0xd30] sm:$0xff]
    %v526 = vld [vmem:[#allocation5 + $0xd38] sm:$0xff]
    %v527 = vld [vmem:[#allocation5 + $0xd40] sm:$0xff]
    %v528 = vld [vmem:[#allocation5 + $0xd48] sm:$0xff]
    %v529 = vld [vmem:[#allocation5 + $0xd50] sm:$0xff]
    %v530 = vld [vmem:[#allocation5 + $0xd58] sm:$0xff]
    %v531 = vld [vmem:[#allocation5 + $0xd60] sm:$0xff]
    %v532 = vld [vmem:[#allocation5 + $0xd68] sm:$0xff]
    %v533 = vld [vmem:[#allocation5 + $0xd70] sm:$0xff]
    %v534 = vld [vmem:[#allocation5 + $0xd78] sm:$0xff]
    %v535 = vld [vmem:[#allocation5 + $0xd80] sm:$0xff]
    %v536 = vld [vmem:[#allocation5 + $0xd88] sm:$0xff]
    %v537 = vld [vmem:[#allocation5 + $0xd90] sm:$0xff]
    %v538 = vld [vmem:[#allocation5 + $0xd98] sm:$0xff]
    %v539 = vld [vmem:[#allocation5 + $0xda0] sm:$0xff]
    %v540 = vld [vmem:[#allocation5 + $0xda8] sm:$0xff]
    %v541 = vld [vmem:[#allocation5 + $0xdb0] sm:$0xff]
    %v542 = vld [vmem:[#allocation5 + $0xdb8] sm:$0xff]
    %v543 = vld [vmem:[#allocation5 + $0xdc0] sm:$0xff]
    %v544 = vld [vmem:[#allocation5 + $0xdc8] sm:$0xff]
    %v545 = vld [vmem:[#allocation5 + $0xdd0] sm:$0xff]
    %v546 = vld [vmem:[#allocation5 + $0xdd8] sm:$0xff]
    %v547 = vld [vmem:[#allocation5 + $0xde0] sm:$0xff]
    %v548 = vld [vmem:[#allocation5 + $0xde8] sm:$0xff]
    %v549 = vld [vmem:[#allocation5 + $0xdf0] sm:$0xff]
    %v550 = vld [vmem:[#allocation5 + $0xdf8] sm:$0xff]
    %v551 = vld [vmem:[#allocation5 + $0xe00] sm:$0xff]
    %v552 = vld [vmem:[#allocation5 + $0xe08] sm:$0xff]
    %v553 = vld [vmem:[#allocation5 + $0xe10] sm:$0xff]
    %v554 = vld [vmem:[#allocation5 + $0xe18] sm:$0xff]
    %v555 = vld [vmem:[#allocation5 + $0xe20] sm:$0xff]
    %v556 = vld [vmem:[#allocation5 + $0xe28] sm:$0xff]
    %v557 = vld [vmem:[#allocation5 + $0xe30] sm:$0xff]
    %v558 = vld [vmem:[#allocation5 + $0xe38] sm:$0xff]
    %v559 = vld [vmem:[#allocation5 + $0xe40] sm:$0xff]
    %v560 = vld [vmem:[#allocation5 + $0xe48] sm:$0xff]
    %v561 = vld [vmem:[#allocation5 + $0xe50] sm:$0xff]
    %v562 = vld [vmem:[#allocation5 + $0xe58] sm:$0xff]
    %v563 = vld [vmem:[#allocation5 + $0xe60] sm:$0xff]
    %v564 = vld [vmem:[#allocation5 + $0xe68] sm:$0xff]
    %v565 = vld [vmem:[#allocation5 + $0xe70] sm:$0xff]
    %v566 = vld [vmem:[#allocation5 + $0xe78] sm:$0xff]
    %v567 = vld [vmem:[#allocation5 + $0xe80] sm:$0xff]
    %v568 = vld [vmem:[#allocation5 + $0xe88] sm:$0xff]
    %v569 = vld [vmem:[#allocation5 + $0xe90] sm:$0xff]
    %v570 = vld [vmem:[#allocation5 + $0xe98] sm:$0xff]
    %v571 = vld [vmem:[#allocation5 + $0xea0] sm:$0xff]
    %v572 = vld [vmem:[#allocation5 + $0xea8] sm:$0xff]
    %v573 = vld [vmem:[#allocation5 + $0xeb0] sm:$0xff]
    %v574 = vld [vmem:[#allocation5 + $0xeb8] sm:$0xff]
    %v575 = vld [vmem:[#allocation5 + $0xec0] sm:$0xff]
    %v576 = vld [vmem:[#allocation5 + $0xec8] sm:$0xff]
    %v577 = vld [vmem:[#allocation5 + $0xed0] sm:$0xff]
    %v578 = vld [vmem:[#allocation5 + $0xed8] sm:$0xff]
    %v579 = vld [vmem:[#allocation5 + $0xee0] sm:$0xff]
    %v580 = vld [vmem:[#allocation5 + $0xee8] sm:$0xff]
    %v581 = vld [vmem:[#allocation5 + $0xef0] sm:$0xff]
    %v582 = vld [vmem:[#allocation5 + $0xef8] sm:$0xff]
    %v583 = vld [vmem:[#allocation5 + $0xf00] sm:$0xff]
    %v584 = vld [vmem:[#allocation5 + $0xf08] sm:$0xff]
    %v585 = vld [vmem:[#allocation5 + $0xf10] sm:$0xff]
    %v586 = vld [vmem:[#allocation5 + $0xf18] sm:$0xff]
    %v587 = vld [vmem:[#allocation5 + $0xf20] sm:$0xff]
    %v588 = vld [vmem:[#allocation5 + $0xf28] sm:$0xff]
    %v589 = vld [vmem:[#allocation5 + $0xf30] sm:$0xff]
    %v590 = vld [vmem:[#allocation5 + $0xf38] sm:$0xff]
    %v591 = vld [vmem:[#allocation5 + $0xf40] sm:$0xff]
    %v592 = vld [vmem:[#allocation5 + $0xf48] sm:$0xff]
    %v593 = vld [vmem:[#allocation5 + $0xf50] sm:$0xff]
    %v594 = vld [vmem:[#allocation5 + $0xf58] sm:$0xff]
    %v595 = vld [vmem:[#allocation5 + $0xf60] sm:$0xff]
    %v596 = vld [vmem:[#allocation5 + $0xf68] sm:$0xff]
    %v597 = vld [vmem:[#allocation5 + $0xf70] sm:$0xff]
    %v598 = vld [vmem:[#allocation5 + $0xf78] sm:$0xff]
    %v599 = vld [vmem:[#allocation5 + $0xf80] sm:$0xff]
    %v600 = vld [vmem:[#allocation5 + $0xf88] sm:$0xff]
    %v601 = vld [vmem:[#allocation5 + $0xf90] sm:$0xff]
    %v602 = vld [vmem:[#allocation5 + $0xf98] sm:$0xff]
    %v603 = vld [vmem:[#allocation5 + $0xfa0] sm:$0xff]
    %v604 = vld [vmem:[#allocation5 + $0xfa8] sm:$0xff]
    %v605 = vld [vmem:[#allocation5 + $0xfb0] sm:$0xff]
    %v606 = vld [vmem:[#allocation5 + $0xfb8] sm:$0xff]
    %v607 = vld [vmem:[#allocation5 + $0xfc0] sm:$0xff]
    %v608 = vld [vmem:[#allocation5 + $0xfc8] sm:$0xff]
    %v609 = vld [vmem:[#allocation5 + $0xfd0] sm:$0xff]
    %v610 = vld [vmem:[#allocation5 + $0xfd8] sm:$0xff]
    %v611 = vld [vmem:[#allocation5 + $0xfe0] sm:$0xff]
    %v612 = vld [vmem:[#allocation5 + $0xfe8] sm:$0xff]
    %v613 = vld [vmem:[#allocation5 + $0xff0] sm:$0xff]
    %v614 = vld [vmem:[#allocation5 + $0xff8] sm:$0xff]
    %v615 = vld [vmem:[#allocation5 + $0x1000] sm:$0xff]
    %v616 = vld [vmem:[#allocation5 + $0x1008] sm:$0xff]
    %v617 = vld [vmem:[#allocation5 + $0x1010] sm:$0xff]
    %v618 = vld [vmem:[#allocation5 + $0x1018] sm:$0xff]
    %v619 = vld [vmem:[#allocation5 + $0x1020] sm:$0xff]
    %v620 = vld [vmem:[#allocation5 + $0x1028] sm:$0xff]
    %v621 = vld [vmem:[#allocation5 + $0x1030] sm:$0xff]
    %v622 = vld [vmem:[#allocation5 + $0x1038] sm:$0xff]
    %v623 = vld [vmem:[#allocation5 + $0x1040] sm:$0xff]
    %v624 = vld [vmem:[#allocation5 + $0x1048] sm:$0xff]
    %v625 = vld [vmem:[#allocation5 + $0x1050] sm:$0xff]
    %v626 = vld [vmem:[#allocation5 + $0x1058] sm:$0xff]
    %v627 = vld [vmem:[#allocation5 + $0x1060] sm:$0xff]
    %v628 = vld [vmem:[#allocation5 + $0x1068] sm:$0xff]
    %v629 = vld [vmem:[#allocation5 + $0x1070] sm:$0xff]
    %v630 = vld [vmem:[#allocation5 + $0x1078] sm:$0xff]
    %v631 = vld [vmem:[#allocation5 + $0x1080] sm:$0xff]
    %v632 = vld [vmem:[#allocation5 + $0x1088] sm:$0xff]
    %v633 = vld [vmem:[#allocation5 + $0x1090] sm:$0xff]
    %v634 = vld [vmem:[#allocation5 + $0x1098] sm:$0xff]
    %v635 = vld [vmem:[#allocation5 + $0x10a0] sm:$0xff]
    %v636 = vld [vmem:[#allocation5 + $0x10a8] sm:$0xff]
    %v637 = vld [vmem:[#allocation5 + $0x10b0] sm:$0xff]
    %v638 = vld [vmem:[#allocation5 + $0x10b8] sm:$0xff]
    %v639 = vld [vmem:[#allocation5 + $0x10c0] sm:$0xff]
    %v640 = vld [vmem:[#allocation5 + $0x10c8] sm:$0xff]
    %v641 = vld [vmem:[#allocation5 + $0x10d0] sm:$0xff]
    %v642 = vld [vmem:[#allocation5 + $0x10d8] sm:$0xff]
    %v643 = vld [vmem:[#allocation5 + $0x10e0] sm:$0xff]
    %v644 = vld [vmem:[#allocation5 + $0x10e8] sm:$0xff]
    %v645 = vld [vmem:[#allocation5 + $0x10f0] sm:$0xff]
    %v646 = vld [vmem:[#allocation5 + $0x10f8] sm:$0xff]
    %v647 = vld [vmem:[#allocation5 + $0x1100] sm:$0xff]
    %v648 = vld [vmem:[#allocation5 + $0x1108] sm:$0xff]
    %v649 = vld [vmem:[#allocation5 + $0x1110] sm:$0xff]
    %v650 = vld [vmem:[#allocation5 + $0x1118] sm:$0xff]
    %v651 = vld [vmem:[#allocation5 + $0x1120] sm:$0xff]
    %v652 = vld [vmem:[#allocation5 + $0x1128] sm:$0xff]
    %v653 = vld [vmem:[#allocation5 + $0x1130] sm:$0xff]
    %v654 = vld [vmem:[#allocation5 + $0x1138] sm:$0xff]
    %v655 = vld [vmem:[#allocation5 + $0x1140] sm:$0xff]
    %v656 = vld [vmem:[#allocation5 + $0x1148] sm:$0xff]
    %v657 = vld [vmem:[#allocation5 + $0x1150] sm:$0xff]
    %v658 = vld [vmem:[#allocation5 + $0x1158] sm:$0xff]
    %v659 = vld [vmem:[#allocation5 + $0x1160] sm:$0xff]
    %v660 = vld [vmem:[#allocation5 + $0x1168] sm:$0xff]
    %v661 = vld [vmem:[#allocation5 + $0x1170] sm:$0xff]
    %v662 = vld [vmem:[#allocation5 + $0x1178] sm:$0xff]
    %v663 = vld [vmem:[#allocation5 + $0x1180] sm:$0xff]
    %v664 = vld [vmem:[#allocation5 + $0x1188] sm:$0xff]
    %v665 = vld [vmem:[#allocation5 + $0x1190] sm:$0xff]
    %v666 = vld [vmem:[#allocation5 + $0x1198] sm:$0xff]
    %v667 = vld [vmem:[#allocation5 + $0x11a0] sm:$0xff]
    %v668 = vld [vmem:[#allocation5 + $0x11a8] sm:$0xff]
    %v669 = vld [vmem:[#allocation5 + $0x11b0] sm:$0xff]
    %v670 = vld [vmem:[#allocation5 + $0x11b8] sm:$0xff]
    %v671 = vld [vmem:[#allocation5 + $0x11c0] sm:$0xff]
    %v672 = vld [vmem:[#allocation5 + $0x11c8] sm:$0xff]
    %v673 = vld [vmem:[#allocation5 + $0x11d0] sm:$0xff]
    %v674 = vld [vmem:[#allocation5 + $0x11d8] sm:$0xff]
    %v675 = vld [vmem:[#allocation5 + $0x11e0] sm:$0xff]
    %v676 = vld [vmem:[#allocation5 + $0x11e8] sm:$0xff]
    %v677 = vld [vmem:[#allocation5 + $0x11f0] sm:$0xff]
    %v678 = vld [vmem:[#allocation5 + $0x11f8] sm:$0xff]
    %v679 = vld [vmem:[#allocation5 + $0x1200] sm:$0xff]
    %v680 = vld [vmem:[#allocation5 + $0x1208] sm:$0xff]
    %v681 = vld [vmem:[#allocation5 + $0x1210] sm:$0xff]
    %v682 = vld [vmem:[#allocation5 + $0x1218] sm:$0xff]
    %v683 = vld [vmem:[#allocation5 + $0x1220] sm:$0xff]
    %v684 = vld [vmem:[#allocation5 + $0x1228] sm:$0xff]
    %v685 = vld [vmem:[#allocation5 + $0x1230] sm:$0xff]
    %v686 = vld [vmem:[#allocation5 + $0x1238] sm:$0xff]
    %v687 = vld [vmem:[#allocation5 + $0x1240] sm:$0xff]
    %v688 = vld [vmem:[#allocation5 + $0x1248] sm:$0xff]
    %v689 = vld [vmem:[#allocation5 + $0x1250] sm:$0xff]
    %v690 = vld [vmem:[#allocation5 + $0x1258] sm:$0xff]
    %v691 = vld [vmem:[#allocation5 + $0x1260] sm:$0xff]
    %v692 = vld [vmem:[#allocation5 + $0x1268] sm:$0xff]
    %v693 = vld [vmem:[#allocation5 + $0x1270] sm:$0xff]
    %v694 = vld [vmem:[#allocation5 + $0x1278] sm:$0xff]
    %v695 = vld [vmem:[#allocation5 + $0x1280] sm:$0xff]
    %v696 = vld [vmem:[#allocation5 + $0x1288] sm:$0xff]
    %v697 = vld [vmem:[#allocation5 + $0x1290] sm:$0xff]
    %v698 = vld [vmem:[#allocation5 + $0x1298] sm:$0xff]
    %v699 = vld [vmem:[#allocation5 + $0x12a0] sm:$0xff]
    %v700 = vld [vmem:[#allocation5 + $0x12a8] sm:$0xff]
    %v701 = vld [vmem:[#allocation5 + $0x12b0] sm:$0xff]
    %v702 = vld [vmem:[#allocation5 + $0x12b8] sm:$0xff]
    %v703 = vld [vmem:[#allocation5 + $0x12c0] sm:$0xff]
    %v704 = vld [vmem:[#allocation5 + $0x12c8] sm:$0xff]
    %v705 = vld [vmem:[#allocation5 + $0x12d0] sm:$0xff]
    %v706 = vld [vmem:[#allocation5 + $0x12d8] sm:$0xff]
    %v707 = vld [vmem:[#allocation5 + $0x12e0] sm:$0xff]
    %v708 = vld [vmem:[#allocation5 + $0x12e8] sm:$0xff]
    %v709 = vld [vmem:[#allocation5 + $0x12f0] sm:$0xff]
    %v710 = vld [vmem:[#allocation5 + $0x12f8] sm:$0xff]
    %v711 = vld [vmem:[#allocation5 + $0x1300] sm:$0xff]
    %v712 = vld [vmem:[#allocation5 + $0x1308] sm:$0xff]
    %v713 = vld [vmem:[#allocation5 + $0x1310] sm:$0xff]
    %v714 = vld [vmem:[#allocation5 + $0x1318] sm:$0xff]
    %v715 = vld [vmem:[#allocation5 + $0x1320] sm:$0xff]
    %v716 = vld [vmem:[#allocation5 + $0x1328] sm:$0xff]
    %v717 = vld [vmem:[#allocation5 + $0x1330] sm:$0xff]
    %v718 = vld [vmem:[#allocation5 + $0x1338] sm:$0xff]
    %v719 = vld [vmem:[#allocation5 + $0x1340] sm:$0xff]
    %v720 = vld [vmem:[#allocation5 + $0x1348] sm:$0xff]
    %v721 = vld [vmem:[#allocation5 + $0x1350] sm:$0xff]
    %v722 = vld [vmem:[#allocation5 + $0x1358] sm:$0xff]
    %v723 = vld [vmem:[#allocation5 + $0x1360] sm:$0xff]
    %v724 = vld [vmem:[#allocation5 + $0x1368] sm:$0xff]
    %v725 = vld [vmem:[#allocation5 + $0x1370] sm:$0xff]
    %v726 = vld [vmem:[#allocation5 + $0x1378] sm:$0xff]
    %v727 = vld [vmem:[#allocation5 + $0x1380] sm:$0xff]
    %v728 = vld [vmem:[#allocation5 + $0x1388] sm:$0xff]
    %v729 = vld [vmem:[#allocation5 + $0x1390] sm:$0xff]
    %v730 = vld [vmem:[#allocation5 + $0x1398] sm:$0xff]
    %v731 = vld [vmem:[#allocation5 + $0x13a0] sm:$0xff]
    %v732 = vld [vmem:[#allocation5 + $0x13a8] sm:$0xff]
    %v733 = vld [vmem:[#allocation5 + $0x13b0] sm:$0xff]
    %v734 = vld [vmem:[#allocation5 + $0x13b8] sm:$0xff]
    %v735 = vld [vmem:[#allocation5 + $0x13c0] sm:$0xff]
    %v736 = vld [vmem:[#allocation5 + $0x13c8] sm:$0xff]
    %v737 = vld [vmem:[#allocation5 + $0x13d0] sm:$0xff]
    %v738 = vld [vmem:[#allocation5 + $0x13d8] sm:$0xff]
    %v739 = vld [vmem:[#allocation5 + $0x13e0] sm:$0xff]
    %v740 = vld [vmem:[#allocation5 + $0x13e8] sm:$0xff]
    %v741 = vld [vmem:[#allocation5 + $0x13f0] sm:$0xff]
    %v742 = vld [vmem:[#allocation5 + $0x13f8] sm:$0xff]
    %v743 = vld [vmem:[#allocation5 + $0x1400] sm:$0xff]
    %v744 = vld [vmem:[#allocation5 + $0x1408] sm:$0xff]
    %v745 = vld [vmem:[#allocation5 + $0x1410] sm:$0xff]
    %v746 = vld [vmem:[#allocation5 + $0x1418] sm:$0xff]
    %v747 = vld [vmem:[#allocation5 + $0x1420] sm:$0xff]
    %v748 = vld [vmem:[#allocation5 + $0x1428] sm:$0xff]
    %v749 = vld [vmem:[#allocation5 + $0x1430] sm:$0xff]
    %v750 = vld [vmem:[#allocation5 + $0x1438] sm:$0xff]
    %v751 = vld [vmem:[#allocation5 + $0x1440] sm:$0xff]
    %v752 = vld [vmem:[#allocation5 + $0x1448] sm:$0xff]
    %v753 = vld [vmem:[#allocation5 + $0x1450] sm:$0xff]
    %v754 = vld [vmem:[#allocation5 + $0x1458] sm:$0xff]
    %v755 = vld [vmem:[#allocation5 + $0x1460] sm:$0xff]
    %v756 = vld [vmem:[#allocation5 + $0x1468] sm:$0xff]
    %v757 = vld [vmem:[#allocation5 + $0x1470] sm:$0xff]
    %v758 = vld [vmem:[#allocation5 + $0x1478] sm:$0xff]
    %v759 = vld [vmem:[#allocation5 + $0x1480] sm:$0xff]
    %v760 = vld [vmem:[#allocation5 + $0x1488] sm:$0xff]
    %v761 = vld [vmem:[#allocation5 + $0x1490] sm:$0xff]
    %v762 = vld [vmem:[#allocation5 + $0x1498] sm:$0xff]
    %v763 = vld [vmem:[#allocation5 + $0x14a0] sm:$0xff]
    %v764 = vld [vmem:[#allocation5 + $0x14a8] sm:$0xff]
    %v765 = vld [vmem:[#allocation5 + $0x14b0] sm:$0xff]
    %v766 = vld [vmem:[#allocation5 + $0x14b8] sm:$0xff]
    %v767 = vld [vmem:[#allocation5 + $0x14c0] sm:$0xff]
    %v768 = vld [vmem:[#allocation5 + $0x14c8] sm:$0xff]
    %v769 = vld [vmem:[#allocation5 + $0x14d0] sm:$0xff]
    %v770 = vld [vmem:[#allocation5 + $0x14d8] sm:$0xff]
    %v771 = vld [vmem:[#allocation5 + $0x14e0] sm:$0xff]
    %v772 = vld [vmem:[#allocation5 + $0x14e8] sm:$0xff]
    %v773 = vld [vmem:[#allocation5 + $0x14f0] sm:$0xff]
    %v774 = vld [vmem:[#allocation5 + $0x14f8] sm:$0xff]
    %v775 = vld [vmem:[#allocation5 + $0x1500] sm:$0xff]
    %v776 = vld [vmem:[#allocation5 + $0x1508] sm:$0xff]
    %v777 = vld [vmem:[#allocation5 + $0x1510] sm:$0xff]
    %v778 = vld [vmem:[#allocation5 + $0x1518] sm:$0xff]
    %v779 = vld [vmem:[#allocation5 + $0x1520] sm:$0xff]
    %v780 = vld [vmem:[#allocation5 + $0x1528] sm:$0xff]
    %v781 = vld [vmem:[#allocation5 + $0x1530] sm:$0xff]
    %v782 = vld [vmem:[#allocation5 + $0x1538] sm:$0xff]
    %v783 = vld [vmem:[#allocation5 + $0x1540] sm:$0xff]
    %v784 = vld [vmem:[#allocation5 + $0x1548] sm:$0xff]
    %v785 = vld [vmem:[#allocation5 + $0x1550] sm:$0xff]
    %v786 = vld [vmem:[#allocation5 + $0x1558] sm:$0xff]
    %v787 = vld [vmem:[#allocation5 + $0x1560] sm:$0xff]
    %v788 = vld [vmem:[#allocation5 + $0x1568] sm:$0xff]
    %v789 = vld [vmem:[#allocation5 + $0x1570] sm:$0xff]
    %v790 = vld [vmem:[#allocation5 + $0x1578] sm:$0xff]
    %v791 = vld [vmem:[#allocation5 + $0x1580] sm:$0xff]
    %v792 = vld [vmem:[#allocation5 + $0x1588] sm:$0xff]
    %v793 = vld [vmem:[#allocation5 + $0x1590] sm:$0xff]
    %v794 = vld [vmem:[#allocation5 + $0x1598] sm:$0xff]
    %v795 = vld [vmem:[#allocation5 + $0x15a0] sm:$0xff]
    %v796 = vld [vmem:[#allocation5 + $0x15a8] sm:$0xff]
    %v797 = vld [vmem:[#allocation5 + $0x15b0] sm:$0xff]
    %v798 = vld [vmem:[#allocation5 + $0x15b8] sm:$0xff]
    %v799 = vld [vmem:[#allocation5 + $0x15c0] sm:$0xff]
    %v800 = vld [vmem:[#allocation5 + $0x15c8] sm:$0xff]
    %v801 = vld [vmem:[#allocation5 + $0x15d0] sm:$0xff]
    %v802 = vld [vmem:[#allocation5 + $0x15d8] sm:$0xff]
    %v803 = vld [vmem:[#allocation5 + $0x15e0] sm:$0xff]
    %v804 = vld [vmem:[#allocation5 + $0x15e8] sm:$0xff]
    %v805 = vld [vmem:[#allocation5 + $0x15f0] sm:$0xff]
    %v806 = vld [vmem:[#allocation5 + $0x15f8] sm:$0xff]
    %v807 = vld [vmem:[#allocation5 + $0x1600] sm:$0xff]
    %v808 = vld [vmem:[#allocation5 + $0x1608] sm:$0xff]
    %v809 = vld [vmem:[#allocation5 + $0x1610] sm:$0xff]
    %v810 = vld [vmem:[#allocation5 + $0x1618] sm:$0xff]
    %v811 = vld [vmem:[#allocation5 + $0x1620] sm:$0xff]
    %v812 = vld [vmem:[#allocation5 + $0x1628] sm:$0xff]
    %v813 = vld [vmem:[#allocation5 + $0x1630] sm:$0xff]
    %v814 = vld [vmem:[#allocation5 + $0x1638] sm:$0xff]
    %v815 = vld [vmem:[#allocation5 + $0x1640] sm:$0xff]
    %v816 = vld [vmem:[#allocation5 + $0x1648] sm:$0xff]
    %v817 = vld [vmem:[#allocation5 + $0x1650] sm:$0xff]
    %v818 = vld [vmem:[#allocation5 + $0x1658] sm:$0xff]
    %v819 = vld [vmem:[#allocation5 + $0x1660] sm:$0xff]
    %v820 = vld [vmem:[#allocation5 + $0x1668] sm:$0xff]
    %v821 = vld [vmem:[#allocation5 + $0x1670] sm:$0xff]
    %v822 = vld [vmem:[#allocation5 + $0x1678] sm:$0xff]
    %v823 = vld [vmem:[#allocation5 + $0x1680] sm:$0xff]
    %v824 = vld [vmem:[#allocation5 + $0x1688] sm:$0xff]
    %v825 = vld [vmem:[#allocation5 + $0x1690] sm:$0xff]
    %v826 = vld [vmem:[#allocation5 + $0x1698] sm:$0xff]
    %v827 = vld [vmem:[#allocation5 + $0x16a0] sm:$0xff]
    %v828 = vld [vmem:[#allocation5 + $0x16a8] sm:$0xff]
    %v829 = vld [vmem:[#allocation5 + $0x16b0] sm:$0xff]
    %v830 = vld [vmem:[#allocation5 + $0x16b8] sm:$0xff]
    %v831 = vld [vmem:[#allocation5 + $0x16c0] sm:$0xff]
    %v832 = vld [vmem:[#allocation5 + $0x16c8] sm:$0xff]
    %v833 = vld [vmem:[#allocation5 + $0x16d0] sm:$0xff]
    %v834 = vld [vmem:[#allocation5 + $0x16d8] sm:$0xff]
    %v835 = vld [vmem:[#allocation5 + $0x16e0] sm:$0xff]
    %v836 = vld [vmem:[#allocation5 + $0x16e8] sm:$0xff]
    %v837 = vld [vmem:[#allocation5 + $0x16f0] sm:$0xff]
    %v838 = vld [vmem:[#allocation5 + $0x16f8] sm:$0xff]
    %v839 = vld [vmem:[#allocation5 + $0x1700] sm:$0xff]
    %v840 = vld [vmem:[#allocation5 + $0x1708] sm:$0xff]
    %v841 = vld [vmem:[#allocation5 + $0x1710] sm:$0xff]
    %v842 = vld [vmem:[#allocation5 + $0x1718] sm:$0xff]
    %v843 = vld [vmem:[#allocation5 + $0x1720] sm:$0xff]
    %v844 = vld [vmem:[#allocation5 + $0x1728] sm:$0xff]
    %v845 = vld [vmem:[#allocation5 + $0x1730] sm:$0xff]
    %v846 = vld [vmem:[#allocation5 + $0x1738] sm:$0xff]
    %v847 = vld [vmem:[#allocation5 + $0x1740] sm:$0xff]
    %v848 = vld [vmem:[#allocation5 + $0x1748] sm:$0xff]
    %v849 = vld [vmem:[#allocation5 + $0x1750] sm:$0xff]
    %v850 = vld [vmem:[#allocation5 + $0x1758] sm:$0xff]
    %v851 = vld [vmem:[#allocation5 + $0x1760] sm:$0xff]
    %v852 = vld [vmem:[#allocation5 + $0x1768] sm:$0xff]
    %v853 = vld [vmem:[#allocation5 + $0x1770] sm:$0xff]
    %v854 = vld [vmem:[#allocation5 + $0x1778] sm:$0xff]
    %v855 = vld [vmem:[#allocation5 + $0x1780] sm:$0xff]
    %v856 = vld [vmem:[#allocation5 + $0x1788] sm:$0xff]
    %v857 = vld [vmem:[#allocation5 + $0x1790] sm:$0xff]
    %v858 = vld [vmem:[#allocation5 + $0x1798] sm:$0xff]
    %v859 = vld [vmem:[#allocation5 + $0x17a0] sm:$0xff]
    %v860 = vld [vmem:[#allocation5 + $0x17a8] sm:$0xff]
    %v861 = vld [vmem:[#allocation5 + $0x17b0] sm:$0xff]
    %v862 = vld [vmem:[#allocation5 + $0x17b8] sm:$0xff]
    %v863 = vld [vmem:[#allocation5 + $0x17c0] sm:$0xff]
    %v864 = vld [vmem:[#allocation5 + $0x17c8] sm:$0xff]
    %v865 = vld [vmem:[#allocation5 + $0x17d0] sm:$0xff]
    %v866 = vld [vmem:[#allocation5 + $0x17d8] sm:$0xff]
    %v867 = vld [vmem:[#allocation5 + $0x17e0] sm:$0xff]
    %v868 = vld [vmem:[#allocation5 + $0x17e8] sm:$0xff]
    %v869 = vld [vmem:[#allocation5 + $0x17f0] sm:$0xff]
    %v870 = vld [vmem:[#allocation5 + $0x17f8] sm:$0xff]
    %v871 = vld [vmem:[#allocation5 + $0x1800] sm:$0xff]
    %v872 = vld [vmem:[#allocation5 + $0x1808] sm:$0xff]
    %v873 = vld [vmem:[#allocation5 + $0x1810] sm:$0xff]
    %v874 = vld [vmem:[#allocation5 + $0x1818] sm:$0xff]
    %v875 = vld [vmem:[#allocation5 + $0x1820] sm:$0xff]
    %v876 = vld [vmem:[#allocation5 + $0x1828] sm:$0xff]
    %v877 = vld [vmem:[#allocation5 + $0x1830] sm:$0xff]
    %v878 = vld [vmem:[#allocation5 + $0x1838] sm:$0xff]
    %v879 = vld [vmem:[#allocation5 + $0x1840] sm:$0xff]
    %v880 = vld [vmem:[#allocation5 + $0x1848] sm:$0xff]
    %v881 = vld [vmem:[#allocation5 + $0x1850] sm:$0xff]
    %v882 = vld [vmem:[#allocation5 + $0x1858] sm:$0xff]
    %v883 = vld [vmem:[#allocation5 + $0x1860] sm:$0xff]
    %v884 = vld [vmem:[#allocation5 + $0x1868] sm:$0xff]
    %v885 = vld [vmem:[#allocation5 + $0x1870] sm:$0xff]
    %v886 = vld [vmem:[#allocation5 + $0x1878] sm:$0xff]
    %v887 = vld [vmem:[#allocation5 + $0x1880] sm:$0xff]
    %v888 = vld [vmem:[#allocation5 + $0x1888] sm:$0xff]
    %v889 = vld [vmem:[#allocation5 + $0x1890] sm:$0xff]
    %v890 = vld [vmem:[#allocation5 + $0x1898] sm:$0xff]
    %v891 = vld [vmem:[#allocation5 + $0x18a0] sm:$0xff]
    %v892 = vld [vmem:[#allocation5 + $0x18a8] sm:$0xff]
    %v893 = vld [vmem:[#allocation5 + $0x18b0] sm:$0xff]
    %v894 = vld [vmem:[#allocation5 + $0x18b8] sm:$0xff]
    %v895 = vld [vmem:[#allocation5 + $0x18c0] sm:$0xff]
    %v896 = vld [vmem:[#allocation5 + $0x18c8] sm:$0xff]
    %v897 = vld [vmem:[#allocation5 + $0x18d0] sm:$0xff]
    %v898 = vld [vmem:[#allocation5 + $0x18d8] sm:$0xff]
    %v899 = vld [vmem:[#allocation5 + $0x18e0] sm:$0xff]
    %v900 = vld [vmem:[#allocation5 + $0x18e8] sm:$0xff]
    %v901 = vld [vmem:[#allocation5 + $0x18f0] sm:$0xff]
    %v902 = vld [vmem:[#allocation5 + $0x18f8] sm:$0xff]
    %v903 = vld [vmem:[#allocation5 + $0x1900] sm:$0xff]
    %v904 = vld [vmem:[#allocation5 + $0x1908] sm:$0xff]
    %v905 = vld [vmem:[#allocation5 + $0x1910] sm:$0xff]
    %v906 = vld [vmem:[#allocation5 + $0x1918] sm:$0xff]
    %v907 = vld [vmem:[#allocation5 + $0x1920] sm:$0xff]
    %v908 = vld [vmem:[#allocation5 + $0x1928] sm:$0xff]
    %v909 = vld [vmem:[#allocation5 + $0x1930] sm:$0xff]
    %v910 = vld [vmem:[#allocation5 + $0x1938] sm:$0xff]
    %v911 = vld [vmem:[#allocation5 + $0x1940] sm:$0xff]
    %v912 = vld [vmem:[#allocation5 + $0x1948] sm:$0xff]
    %v913 = vld [vmem:[#allocation5 + $0x1950] sm:$0xff]
    %v914 = vld [vmem:[#allocation5 + $0x1958] sm:$0xff]
    %v915 = vld [vmem:[#allocation5 + $0x1960] sm:$0xff]
    %v916 = vld [vmem:[#allocation5 + $0x1968] sm:$0xff]
    %v917 = vld [vmem:[#allocation5 + $0x1970] sm:$0xff]
    %v918 = vld [vmem:[#allocation5 + $0x1978] sm:$0xff]
    %v919 = vld [vmem:[#allocation5 + $0x1980] sm:$0xff]
    %v920 = vld [vmem:[#allocation5 + $0x1988] sm:$0xff]
    %v921 = vld [vmem:[#allocation5 + $0x1990] sm:$0xff]
    %v922 = vld [vmem:[#allocation5 + $0x1998] sm:$0xff]
    %v923 = vld [vmem:[#allocation5 + $0x19a0] sm:$0xff]
    %v924 = vld [vmem:[#allocation5 + $0x19a8] sm:$0xff]
    %v925 = vld [vmem:[#allocation5 + $0x19b0] sm:$0xff]
    %v926 = vld [vmem:[#allocation5 + $0x19b8] sm:$0xff]
    %v927 = vld [vmem:[#allocation5 + $0x19c0] sm:$0xff]
    %v928 = vld [vmem:[#allocation5 + $0x19c8] sm:$0xff]
    %v929 = vld [vmem:[#allocation5 + $0x19d0] sm:$0xff]
    %v930 = vld [vmem:[#allocation5 + $0x19d8] sm:$0xff]
    %v931 = vld [vmem:[#allocation5 + $0x19e0] sm:$0xff]
    %v932 = vld [vmem:[#allocation5 + $0x19e8] sm:$0xff]
    %v933 = vld [vmem:[#allocation5 + $0x19f0] sm:$0xff]
    %v934 = vld [vmem:[#allocation5 + $0x19f8] sm:$0xff]
    %v935 = vld [vmem:[#allocation5 + $0x1a00] sm:$0xff]
    %v936 = vld [vmem:[#allocation5 + $0x1a08] sm:$0xff]
    %v937 = vld [vmem:[#allocation5 + $0x1a10] sm:$0xff]
    %v938 = vld [vmem:[#allocation5 + $0x1a18] sm:$0xff]
    %v939 = vld [vmem:[#allocation5 + $0x1a20] sm:$0xff]
    %v940 = vld [vmem:[#allocation5 + $0x1a28] sm:$0xff]
    %v941 = vld [vmem:[#allocation5 + $0x1a30] sm:$0xff]
    %v942 = vld [vmem:[#allocation5 + $0x1a38] sm:$0xff]
    %v943 = vld [vmem:[#allocation5 + $0x1a40] sm:$0xff]
    %v944 = vld [vmem:[#allocation5 + $0x1a48] sm:$0xff]
    %v945 = vld [vmem:[#allocation5 + $0x1a50] sm:$0xff]
    %v946 = vld [vmem:[#allocation5 + $0x1a58] sm:$0xff]
    %v947 = vld [vmem:[#allocation5 + $0x1a60] sm:$0xff]
    %v948 = vld [vmem:[#allocation5 + $0x1a68] sm:$0xff]
    %v949 = vld [vmem:[#allocation5 + $0x1a70] sm:$0xff]
    %v950 = vld [vmem:[#allocation5 + $0x1a78] sm:$0xff]
    %v951 = vld [vmem:[#allocation5 + $0x1a80] sm:$0xff]
    %v952 = vld [vmem:[#allocation5 + $0x1a88] sm:$0xff]
    %v953 = vld [vmem:[#allocation5 + $0x1a90] sm:$0xff]
    %v954 = vld [vmem:[#allocation5 + $0x1a98] sm:$0xff]
    %v955 = vld [vmem:[#allocation5 + $0x1aa0] sm:$0xff]
    %v956 = vld [vmem:[#allocation5 + $0x1aa8] sm:$0xff]
    %v957 = vld [vmem:[#allocation5 + $0x1ab0] sm:$0xff]
    %v958 = vld [vmem:[#allocation5 + $0x1ab8] sm:$0xff]
    %v959 = vld [vmem:[#allocation5 + $0x1ac0] sm:$0xff]
    %v960 = vld [vmem:[#allocation5 + $0x1ac8] sm:$0xff]
    %v961 = vld [vmem:[#allocation5 + $0x1ad0] sm:$0xff]
    %v962 = vld [vmem:[#allocation5 + $0x1ad8] sm:$0xff]
    %v963 = vld [vmem:[#allocation5 + $0x1ae0] sm:$0xff]
    %v964 = vld [vmem:[#allocation5 + $0x1ae8] sm:$0xff]
    %v965 = vld [vmem:[#allocation5 + $0x1af0] sm:$0xff]
    %v966 = vld [vmem:[#allocation5 + $0x1af8] sm:$0xff]
    %v967 = vld [vmem:[#allocation5 + $0x1b00] sm:$0xff]
    %v968 = vld [vmem:[#allocation5 + $0x1b08] sm:$0xff]
    %v969 = vld [vmem:[#allocation5 + $0x1b10] sm:$0xff]
    %v970 = vld [vmem:[#allocation5 + $0x1b18] sm:$0xff]
    %v971 = vld [vmem:[#allocation5 + $0x1b20] sm:$0xff]
    %v972 = vld [vmem:[#allocation5 + $0x1b28] sm:$0xff]
    %v973 = vld [vmem:[#allocation5 + $0x1b30] sm:$0xff]
    %v974 = vld [vmem:[#allocation5 + $0x1b38] sm:$0xff]
    %v975 = vld [vmem:[#allocation5 + $0x1b40] sm:$0xff]
    %v976 = vld [vmem:[#allocation5 + $0x1b48] sm:$0xff]
    %v977 = vld [vmem:[#allocation5 + $0x1b50] sm:$0xff]
    %v978 = vld [vmem:[#allocation5 + $0x1b58] sm:$0xff]
    %v979 = vld [vmem:[#allocation5 + $0x1b60] sm:$0xff]
    %v980 = vld [vmem:[#allocation5 + $0x1b68] sm:$0xff]
    %v981 = vld [vmem:[#allocation5 + $0x1b70] sm:$0xff]
    %v982 = vld [vmem:[#allocation5 + $0x1b78] sm:$0xff]
    %v983 = vld [vmem:[#allocation5 + $0x1b80] sm:$0xff]
    %v984 = vld [vmem:[#allocation5 + $0x1b88] sm:$0xff]
    %v985 = vld [vmem:[#allocation5 + $0x1b90] sm:$0xff]
    %v986 = vld [vmem:[#allocation5 + $0x1b98] sm:$0xff]
    %v987 = vld [vmem:[#allocation5 + $0x1ba0] sm:$0xff]
    %v988 = vld [vmem:[#allocation5 + $0x1ba8] sm:$0xff]
    %v989 = vld [vmem:[#allocation5 + $0x1bb0] sm:$0xff]
    %v990 = vld [vmem:[#allocation5 + $0x1bb8] sm:$0xff]
    %v991 = vld [vmem:[#allocation5 + $0x1bc0] sm:$0xff]
    %v992 = vld [vmem:[#allocation5 + $0x1bc8] sm:$0xff]
    %v993 = vld [vmem:[#allocation5 + $0x1bd0] sm:$0xff]
    %v994 = vld [vmem:[#allocation5 + $0x1bd8] sm:$0xff]
    %v995 = vld [vmem:[#allocation5 + $0x1be0] sm:$0xff]
    %v996 = vld [vmem:[#allocation5 + $0x1be8] sm:$0xff]
    %v997 = vld [vmem:[#allocation5 + $0x1bf0] sm:$0xff]
    %v998 = vld [vmem:[#allocation5 + $0x1bf8] sm:$0xff]
    %v999 = vld [vmem:[#allocation5 + $0x1c00] sm:$0xff]
    %v1000 = vld [vmem:[#allocation5 + $0x1c08] sm:$0xff]
    %v1001 = vld [vmem:[#allocation5 + $0x1c10] sm:$0xff]
    %v1002 = vld [vmem:[#allocation5 + $0x1c18] sm:$0xff]
    %v1003 = vld [vmem:[#allocation5 + $0x1c20] sm:$0xff]
    %v1004 = vld [vmem:[#allocation5 + $0x1c28] sm:$0xff]
    %v1005 = vld [vmem:[#allocation5 + $0x1c30] sm:$0xff]
    %v1006 = vld [vmem:[#allocation5 + $0x1c38] sm:$0xff]
    %v1007 = vld [vmem:[#allocation5 + $0x1c40] sm:$0xff]
    %v1008 = vld [vmem:[#allocation5 + $0x1c48] sm:$0xff]
    %v1009 = vld [vmem:[#allocation5 + $0x1c50] sm:$0xff]
    %v1010 = vld [vmem:[#allocation5 + $0x1c58] sm:$0xff]
    %v1011 = vld [vmem:[#allocation5 + $0x1c60] sm:$0xff]
    %v1012 = vld [vmem:[#allocation5 + $0x1c68] sm:$0xff]
    %v1013 = vld [vmem:[#allocation5 + $0x1c70] sm:$0xff]
    %v1014 = vld [vmem:[#allocation5 + $0x1c78] sm:$0xff]
    %v1015 = vld [vmem:[#allocation5 + $0x1c80] sm:$0xff]
    %v1016 = vld [vmem:[#allocation5 + $0x1c88] sm:$0xff]
    %v1017 = vld [vmem:[#allocation5 + $0x1c90] sm:$0xff]
    %v1018 = vld [vmem:[#allocation5 + $0x1c98] sm:$0xff]
    %v1019 = vld [vmem:[#allocation5 + $0x1ca0] sm:$0xff]
    %v1020 = vld [vmem:[#allocation5 + $0x1ca8] sm:$0xff]
    %v1021 = vld [vmem:[#allocation5 + $0x1cb0] sm:$0xff]
    %v1022 = vld [vmem:[#allocation5 + $0x1cb8] sm:$0xff]
    %v1023 = vld [vmem:[#allocation5 + $0x1cc0] sm:$0xff]
    %v1024 = vld [vmem:[#allocation5 + $0x1cc8] sm:$0xff]
    %v1025 = vld [vmem:[#allocation5 + $0x1cd0] sm:$0xff]
    %v1026 = vld [vmem:[#allocation5 + $0x1cd8] sm:$0xff]
    %v1027 = vld [vmem:[#allocation5 + $0x1ce0] sm:$0xff]
    %v1028 = vld [vmem:[#allocation5 + $0x1ce8] sm:$0xff]
    %v1029 = vld [vmem:[#allocation5 + $0x1cf0] sm:$0xff]
    %v1030 = vld [vmem:[#allocation5 + $0x1cf8] sm:$0xff]
    %v1031 = vld [vmem:[#allocation5 + $0x1d00] sm:$0xff]
    %v1032 = vld [vmem:[#allocation5 + $0x1d08] sm:$0xff]
    %v1033 = vld [vmem:[#allocation5 + $0x1d10] sm:$0xff]
    %v1034 = vld [vmem:[#allocation5 + $0x1d18] sm:$0xff]
    %v1035 = vld [vmem:[#allocation5 + $0x1d20] sm:$0xff]
    %v1036 = vld [vmem:[#allocation5 + $0x1d28] sm:$0xff]
    %v1037 = vld [vmem:[#allocation5 + $0x1d30] sm:$0xff]
    %v1038 = vld [vmem:[#allocation5 + $0x1d38] sm:$0xff]
    %v1039 = vld [vmem:[#allocation5 + $0x1d40] sm:$0xff]
    %v1040 = vld [vmem:[#allocation5 + $0x1d48] sm:$0xff]
    %v1041 = vld [vmem:[#allocation5 + $0x1d50] sm:$0xff]
    %v1042 = vld [vmem:[#allocation5 + $0x1d58] sm:$0xff]
    %v1043 = vld [vmem:[#allocation5 + $0x1d60] sm:$0xff]
    %v1044 = vld [vmem:[#allocation5 + $0x1d68] sm:$0xff]
    %v1045 = vld [vmem:[#allocation5 + $0x1d70] sm:$0xff]
    %v1046 = vld [vmem:[#allocation5 + $0x1d78] sm:$0xff]
    %v1047 = vld [vmem:[#allocation5 + $0x1d80] sm:$0xff]
    %v1048 = vld [vmem:[#allocation5 + $0x1d88] sm:$0xff]
    %v1049 = vld [vmem:[#allocation5 + $0x1d90] sm:$0xff]
    %v1050 = vld [vmem:[#allocation5 + $0x1d98] sm:$0xff]
    %v1051 = vld [vmem:[#allocation5 + $0x1da0] sm:$0xff]
    %v1052 = vld [vmem:[#allocation5 + $0x1da8] sm:$0xff]
    %v1053 = vld [vmem:[#allocation5 + $0x1db0] sm:$0xff]
    %v1054 = vld [vmem:[#allocation5 + $0x1db8] sm:$0xff]
    %v1055 = vld [vmem:[#allocation5 + $0x1dc0] sm:$0xff]
    %v1056 = vld [vmem:[#allocation5 + $0x1dc8] sm:$0xff]
    %v1057 = vld [vmem:[#allocation5 + $0x1dd0] sm:$0xff]
    %v1058 = vld [vmem:[#allocation5 + $0x1dd8] sm:$0xff]
    %v1059 = vld [vmem:[#allocation5 + $0x1de0] sm:$0xff]
    %v1060 = vld [vmem:[#allocation5 + $0x1de8] sm:$0xff]
    %v1061 = vld [vmem:[#allocation5 + $0x1df0] sm:$0xff]
    %v1062 = vld [vmem:[#allocation5 + $0x1df8] sm:$0xff]
    %v1063 = vld [vmem:[#allocation5 + $0x1e00] sm:$0xff]
    %v1064 = vld [vmem:[#allocation5 + $0x1e08] sm:$0xff]
    %v1065 = vld [vmem:[#allocation5 + $0x1e10] sm:$0xff]
    %v1066 = vld [vmem:[#allocation5 + $0x1e18] sm:$0xff]
    %v1067 = vld [vmem:[#allocation5 + $0x1e20] sm:$0xff]
    %v1068 = vld [vmem:[#allocation5 + $0x1e28] sm:$0xff]
    %v1069 = vld [vmem:[#allocation5 + $0x1e30] sm:$0xff]
    %v1070 = vld [vmem:[#allocation5 + $0x1e38] sm:$0xff]
    %v1071 = vld [vmem:[#allocation5 + $0x1e40] sm:$0xff]
    %v1072 = vld [vmem:[#allocation5 + $0x1e48] sm:$0xff]
    %v1073 = vld [vmem:[#allocation5 + $0x1e50] sm:$0xff]
    %v1074 = vld [vmem:[#allocation5 + $0x1e58] sm:$0xff]
    %v1075 = vld [vmem:[#allocation5 + $0x1e60] sm:$0xff]
    %v1076 = vld [vmem:[#allocation5 + $0x1e68] sm:$0xff]
    %v1077 = vld [vmem:[#allocation5 + $0x1e70] sm:$0xff]
    %v1078 = vld [vmem:[#allocation5 + $0x1e78] sm:$0xff]
    %v1079 = vld [vmem:[#allocation5 + $0x1e80] sm:$0xff]
    %v1080 = vld [vmem:[#allocation5 + $0x1e88] sm:$0xff]
    %v1081 = vld [vmem:[#allocation5 + $0x1e90] sm:$0xff]
    %v1082 = vld [vmem:[#allocation5 + $0x1e98] sm:$0xff]
    %v1083 = vld [vmem:[#allocation5 + $0x1ea0] sm:$0xff]
    %v1084 = vld [vmem:[#allocation5 + $0x1ea8] sm:$0xff]
    %v1085 = vld [vmem:[#allocation5 + $0x1eb0] sm:$0xff]
    %v1086 = vld [vmem:[#allocation5 + $0x1eb8] sm:$0xff]
    %v1087 = vld [vmem:[#allocation5 + $0x1ec0] sm:$0xff]
    %v1088 = vld [vmem:[#allocation5 + $0x1ec8] sm:$0xff]
    %v1089 = vld [vmem:[#allocation5 + $0x1ed0] sm:$0xff]
    %v1090 = vld [vmem:[#allocation5 + $0x1ed8] sm:$0xff]
    %v1091 = vld [vmem:[#allocation5 + $0x1ee0] sm:$0xff]
    %v1092 = vld [vmem:[#allocation5 + $0x1ee8] sm:$0xff]
    %v1093 = vld [vmem:[#allocation5 + $0x1ef0] sm:$0xff]
    %v1094 = vld [vmem:[#allocation5 + $0x1ef8] sm:$0xff]
    %v1095 = vld [vmem:[#allocation5 + $0x1f00] sm:$0xff]
    %v1096 = vld [vmem:[#allocation5 + $0x1f08] sm:$0xff]
    %v1097 = vld [vmem:[#allocation5 + $0x1f10] sm:$0xff]
    %v1098 = vld [vmem:[#allocation5 + $0x1f18] sm:$0xff]
    %v1099 = vld [vmem:[#allocation5 + $0x1f20] sm:$0xff]
    %v1100 = vld [vmem:[#allocation5 + $0x1f28] sm:$0xff]
    %v1101 = vld [vmem:[#allocation5 + $0x1f30] sm:$0xff]
    %v1102 = vld [vmem:[#allocation5 + $0x1f38] sm:$0xff]
    %v1103 = vld [vmem:[#allocation5 + $0x1f40] sm:$0xff]
    %v1104 = vld [vmem:[#allocation5 + $0x1f48] sm:$0xff]
    %v1105 = vld [vmem:[#allocation5 + $0x1f50] sm:$0xff]
    %v1106 = vld [vmem:[#allocation5 + $0x1f58] sm:$0xff]
    %v1107 = vld [vmem:[#allocation5 + $0x1f60] sm:$0xff]
    %v1108 = vld [vmem:[#allocation5 + $0x1f68] sm:$0xff]
    %v1109 = vld [vmem:[#allocation5 + $0x1f70] sm:$0xff]
    %v1110 = vld [vmem:[#allocation5 + $0x1f78] sm:$0xff]
    %v1111 = vld [vmem:[#allocation5 + $0x1f80] sm:$0xff]
    %v1112 = vld [vmem:[#allocation5 + $0x1f88] sm:$0xff]
    %v1113 = vld [vmem:[#allocation5 + $0x1f90] sm:$0xff]
    %v1114 = vld [vmem:[#allocation5 + $0x1f98] sm:$0xff]
    %v1115 = vld [vmem:[#allocation5 + $0x1fa0] sm:$0xff]
    %v1116 = vld [vmem:[#allocation5 + $0x1fa8] sm:$0xff]
    %v1117 = vld [vmem:[#allocation5 + $0x1fb0] sm:$0xff]
    %v1118 = vld [vmem:[#allocation5 + $0x1fb8] sm:$0xff]
    %v1119 = vld [vmem:[#allocation5 + $0x1fc0] sm:$0xff]
    %v1120 = vld [vmem:[#allocation5 + $0x1fc8] sm:$0xff]
    %v1121 = vld [vmem:[#allocation5 + $0x1fd0] sm:$0xff]
    %v1122 = vld [vmem:[#allocation5 + $0x1fd8] sm:$0xff]
    %v1123 = vld [vmem:[#allocation5 + $0x1fe0] sm:$0xff]
    %v1124 = vld [vmem:[#allocation5 + $0x1fe8] sm:$0xff]
    %v1125 = vld [vmem:[#allocation5 + $0x1ff0] sm:$0xff]
    %v1126 = vld [vmem:[#allocation5 + $0x1ff8] sm:$0xff]
    %v1131 = vunpack.c.l.b16 %v83
    %v1132 = vunpack.c.h.b16 %v83
    %v1133 = vunpack.c.l.b16 %v84
    %v1134 = vunpack.c.h.b16 %v84
    %v1135 = vunpack.c.l.b16 %v85
    %v1136 = vunpack.c.h.b16 %v85
    %v1137 = vunpack.c.l.b16 %v86
    %v1138 = vunpack.c.h.b16 %v86
    %v1139 = vpack.c.b16 %v1131, %v1131
    %v1140 = vpack.c.b16 %v1132, %v1132
    %v1141 = vpack.c.b16 %v1133, %v1133
    %v1142 = vpack.c.b16 %v1134, %v1134
    %v1143 = vpack.c.b16 %v1135, %v1135
    %v1144 = vpack.c.b16 %v1136, %v1136
    %v1145 = vpack.c.b16 %v1137, %v1137
    %v1146 = vpack.c.b16 %v1138, %v1138
    %v2179 = vunpack.c.l.b16 %v103
    %v2180 = vunpack.c.h.b16 %v103
    %v2181 = vunpack.c.l.b16 %v104
    %v2182 = vunpack.c.h.b16 %v104
    %v2183 = vunpack.c.l.b16 %v105
    %v2184 = vunpack.c.h.b16 %v105
    %v2185 = vunpack.c.l.b16 %v106
    %v2186 = vunpack.c.h.b16 %v106
    %v2187 = vunpack.c.l.b16 %v107
    %v2188 = vunpack.c.h.b16 %v107
    %v2189 = vunpack.c.l.b16 %v108
    %v2190 = vunpack.c.h.b16 %v108
    %v2191 = vunpack.c.l.b16 %v109
    %v2192 = vunpack.c.h.b16 %v109
    %v2193 = vunpack.c.l.b16 %v110
    %v2194 = vunpack.c.h.b16 %v110
    %v2195 = vunpack.c.l.b16 %v111
    %v2196 = vunpack.c.h.b16 %v111
    %v2197 = vunpack.c.l.b16 %v112
    %v2198 = vunpack.c.h.b16 %v112
    %v2199 = vunpack.c.l.b16 %v113
    %v2200 = vunpack.c.h.b16 %v113
    %v2201 = vunpack.c.l.b16 %v114
    %v2202 = vunpack.c.h.b16 %v114
    %v2203 = vunpack.c.l.b16 %v115
    %v2204 = vunpack.c.h.b16 %v115
    %v2205 = vunpack.c.l.b16 %v116
    %v2206 = vunpack.c.h.b16 %v116
    %v2207 = vunpack.c.l.b16 %v117
    %v2208 = vunpack.c.h.b16 %v117
    %v2209 = vunpack.c.l.b16 %v118
    %v2210 = vunpack.c.h.b16 %v118
    %v2211 = vunpack.c.l.b16 %v119
    %v2212 = vunpack.c.h.b16 %v119
    %v2213 = vunpack.c.l.b16 %v120
    %v2214 = vunpack.c.h.b16 %v120
    %v2215 = vunpack.c.l.b16 %v121
    %v2216 = vunpack.c.h.b16 %v121
    %v2217 = vunpack.c.l.b16 %v122
    %v2218 = vunpack.c.h.b16 %v122
    %v2219 = vunpack.c.l.b16 %v123
    %v2220 = vunpack.c.h.b16 %v123
    %v2221 = vunpack.c.l.b16 %v124
    %v2222 = vunpack.c.h.b16 %v124
    %v2223 = vunpack.c.l.b16 %v125
    %v2224 = vunpack.c.h.b16 %v125
    %v2225 = vunpack.c.l.b16 %v126
    %v2226 = vunpack.c.h.b16 %v126
    %v2227 = vunpack.c.l.b16 %v127
    %v2228 = vunpack.c.h.b16 %v127
    %v2229 = vunpack.c.l.b16 %v128
    %v2230 = vunpack.c.h.b16 %v128
    %v2231 = vunpack.c.l.b16 %v129
    %v2232 = vunpack.c.h.b16 %v129
    %v2233 = vunpack.c.l.b16 %v130
    %v2234 = vunpack.c.h.b16 %v130
    %v2235 = vunpack.c.l.b16 %v131
    %v2236 = vunpack.c.h.b16 %v131
    %v2237 = vunpack.c.l.b16 %v132
    %v2238 = vunpack.c.h.b16 %v132
    %v2239 = vunpack.c.l.b16 %v133
    %v2240 = vunpack.c.h.b16 %v133
    %v2241 = vunpack.c.l.b16 %v134
    %v2242 = vunpack.c.h.b16 %v134
    %v2243 = vunpack.c.l.b16 %v135
    %v2244 = vunpack.c.h.b16 %v135
    %v2245 = vunpack.c.l.b16 %v136
    %v2246 = vunpack.c.h.b16 %v136
    %v2247 = vunpack.c.l.b16 %v137
    %v2248 = vunpack.c.h.b16 %v137
    %v2249 = vunpack.c.l.b16 %v138
    %v2250 = vunpack.c.h.b16 %v138
    %v2251 = vunpack.c.l.b16 %v139
    %v2252 = vunpack.c.h.b16 %v139
    %v2253 = vunpack.c.l.b16 %v140
    %v2254 = vunpack.c.h.b16 %v140
    %v2255 = vunpack.c.l.b16 %v141
    %v2256 = vunpack.c.h.b16 %v141
    %v2257 = vunpack.c.l.b16 %v142
    %v2258 = vunpack.c.h.b16 %v142
    %v2259 = vunpack.c.l.b16 %v143
    %v2260 = vunpack.c.h.b16 %v143
    %v2261 = vunpack.c.l.b16 %v144
    %v2262 = vunpack.c.h.b16 %v144
    %v2263 = vunpack.c.l.b16 %v145
    %v2264 = vunpack.c.h.b16 %v145
    %v2265 = vunpack.c.l.b16 %v146
    %v2266 = vunpack.c.h.b16 %v146
    %v2267 = vunpack.c.l.b16 %v147
    %v2268 = vunpack.c.h.b16 %v147
    %v2269 = vunpack.c.l.b16 %v148
    %v2270 = vunpack.c.h.b16 %v148
    %v2271 = vunpack.c.l.b16 %v149
    %v2272 = vunpack.c.h.b16 %v149
    %v2273 = vunpack.c.l.b16 %v150
    %v2274 = vunpack.c.h.b16 %v150
    %v2275 = vunpack.c.l.b16 %v151
    %v2276 = vunpack.c.h.b16 %v151
    %v2277 = vunpack.c.l.b16 %v152
    %v2278 = vunpack.c.h.b16 %v152
    %v2279 = vunpack.c.l.b16 %v153
    %v2280 = vunpack.c.h.b16 %v153
    %v2281 = vunpack.c.l.b16 %v154
    %v2282 = vunpack.c.h.b16 %v154
    %v2283 = vunpack.c.l.b16 %v155
    %v2284 = vunpack.c.h.b16 %v155
    %v2285 = vunpack.c.l.b16 %v156
    %v2286 = vunpack.c.h.b16 %v156
    %v2287 = vunpack.c.l.b16 %v157
    %v2288 = vunpack.c.h.b16 %v157
    %v2289 = vunpack.c.l.b16 %v158
    %v2290 = vunpack.c.h.b16 %v158
    %v2291 = vunpack.c.l.b16 %v159
    %v2292 = vunpack.c.h.b16 %v159
    %v2293 = vunpack.c.l.b16 %v160
    %v2294 = vunpack.c.h.b16 %v160
    %v2295 = vunpack.c.l.b16 %v161
    %v2296 = vunpack.c.h.b16 %v161
    %v2297 = vunpack.c.l.b16 %v162
    %v2298 = vunpack.c.h.b16 %v162
    %v2299 = vunpack.c.l.b16 %v163
    %v2300 = vunpack.c.h.b16 %v163
    %v2301 = vunpack.c.l.b16 %v164
    %v2302 = vunpack.c.h.b16 %v164
    %v2303 = vunpack.c.l.b16 %v165
    %v2304 = vunpack.c.h.b16 %v165
    %v2305 = vunpack.c.l.b16 %v166
    %v2306 = vunpack.c.h.b16 %v166
    %v2307 = vunpack.c.l.b16 %v167
    %v2308 = vunpack.c.h.b16 %v167
    %v2309 = vunpack.c.l.b16 %v168
    %v2310 = vunpack.c.h.b16 %v168
    %v2311 = vunpack.c.l.b16 %v169
    %v2312 = vunpack.c.h.b16 %v169
    %v2313 = vunpack.c.l.b16 %v170
    %v2314 = vunpack.c.h.b16 %v170
    %v2315 = vunpack.c.l.b16 %v171
    %v2316 = vunpack.c.h.b16 %v171
    %v2317 = vunpack.c.l.b16 %v172
    %v2318 = vunpack.c.h.b16 %v172
    %v2319 = vunpack.c.l.b16 %v173
    %v2320 = vunpack.c.h.b16 %v173
    %v2321 = vunpack.c.l.b16 %v174
    %v2322 = vunpack.c.h.b16 %v174
    %v2323 = vunpack.c.l.b16 %v175
    %v2324 = vunpack.c.h.b16 %v175
    %v2325 = vunpack.c.l.b16 %v176
    %v2326 = vunpack.c.h.b16 %v176
    %v2327 = vunpack.c.l.b16 %v177
    %v2328 = vunpack.c.h.b16 %v177
    %v2329 = vunpack.c.l.b16 %v178
    %v2330 = vunpack.c.h.b16 %v178
    %v2331 = vunpack.c.l.b16 %v179
    %v2332 = vunpack.c.h.b16 %v179
    %v2333 = vunpack.c.l.b16 %v180
    %v2334 = vunpack.c.h.b16 %v180
    %v2335 = vunpack.c.l.b16 %v181
    %v2336 = vunpack.c.h.b16 %v181
    %v2337 = vunpack.c.l.b16 %v182
    %v2338 = vunpack.c.h.b16 %v182
    %v2339 = vunpack.c.l.b16 %v183
    %v2340 = vunpack.c.h.b16 %v183
    %v2341 = vunpack.c.l.b16 %v184
    %v2342 = vunpack.c.h.b16 %v184
    %v2343 = vunpack.c.l.b16 %v185
    %v2344 = vunpack.c.h.b16 %v185
    %v2345 = vunpack.c.l.b16 %v186
    %v2346 = vunpack.c.h.b16 %v186
    %v2347 = vunpack.c.l.b16 %v187
    %v2348 = vunpack.c.h.b16 %v187
    %v2349 = vunpack.c.l.b16 %v188
    %v2350 = vunpack.c.h.b16 %v188
    %v2351 = vunpack.c.l.b16 %v189
    %v2352 = vunpack.c.h.b16 %v189
    %v2353 = vunpack.c.l.b16 %v190
    %v2354 = vunpack.c.h.b16 %v190
    %v2355 = vunpack.c.l.b16 %v191
    %v2356 = vunpack.c.h.b16 %v191
    %v2357 = vunpack.c.l.b16 %v192
    %v2358 = vunpack.c.h.b16 %v192
    %v2359 = vunpack.c.l.b16 %v193
    %v2360 = vunpack.c.h.b16 %v193
    %v2361 = vunpack.c.l.b16 %v194
    %v2362 = vunpack.c.h.b16 %v194
    %v2363 = vunpack.c.l.b16 %v195
    %v2364 = vunpack.c.h.b16 %v195
    %v2365 = vunpack.c.l.b16 %v196
    %v2366 = vunpack.c.h.b16 %v196
    %v2367 = vunpack.c.l.b16 %v197
    %v2368 = vunpack.c.h.b16 %v197
    %v2369 = vunpack.c.l.b16 %v198
    %v2370 = vunpack.c.h.b16 %v198
    %v2371 = vunpack.c.l.b16 %v199
    %v2372 = vunpack.c.h.b16 %v199
    %v2373 = vunpack.c.l.b16 %v200
    %v2374 = vunpack.c.h.b16 %v200
    %v2375 = vunpack.c.l.b16 %v201
    %v2376 = vunpack.c.h.b16 %v201
    %v2377 = vunpack.c.l.b16 %v202
    %v2378 = vunpack.c.h.b16 %v202
    %v2379 = vunpack.c.l.b16 %v203
    %v2380 = vunpack.c.h.b16 %v203
    %v2381 = vunpack.c.l.b16 %v204
    %v2382 = vunpack.c.h.b16 %v204
    %v2383 = vunpack.c.l.b16 %v205
    %v2384 = vunpack.c.h.b16 %v205
    %v2385 = vunpack.c.l.b16 %v206
    %v2386 = vunpack.c.h.b16 %v206
    %v2387 = vunpack.c.l.b16 %v207
    %v2388 = vunpack.c.h.b16 %v207
    %v2389 = vunpack.c.l.b16 %v208
    %v2390 = vunpack.c.h.b16 %v208
    %v2391 = vunpack.c.l.b16 %v209
    %v2392 = vunpack.c.h.b16 %v209
    %v2393 = vunpack.c.l.b16 %v210
    %v2394 = vunpack.c.h.b16 %v210
    %v2395 = vunpack.c.l.b16 %v211
    %v2396 = vunpack.c.h.b16 %v211
    %v2397 = vunpack.c.l.b16 %v212
    %v2398 = vunpack.c.h.b16 %v212
    %v2399 = vunpack.c.l.b16 %v213
    %v2400 = vunpack.c.h.b16 %v213
    %v2401 = vunpack.c.l.b16 %v214
    %v2402 = vunpack.c.h.b16 %v214
    %v2403 = vunpack.c.l.b16 %v215
    %v2404 = vunpack.c.h.b16 %v215
    %v2405 = vunpack.c.l.b16 %v216
    %v2406 = vunpack.c.h.b16 %v216
    %v2407 = vunpack.c.l.b16 %v217
    %v2408 = vunpack.c.h.b16 %v217
    %v2409 = vunpack.c.l.b16 %v218
    %v2410 = vunpack.c.h.b16 %v218
    %v2411 = vunpack.c.l.b16 %v219
    %v2412 = vunpack.c.h.b16 %v219
    %v2413 = vunpack.c.l.b16 %v220
    %v2414 = vunpack.c.h.b16 %v220
    %v2415 = vunpack.c.l.b16 %v221
    %v2416 = vunpack.c.h.b16 %v221
    %v2417 = vunpack.c.l.b16 %v222
    %v2418 = vunpack.c.h.b16 %v222
    %v2419 = vunpack.c.l.b16 %v223
    %v2420 = vunpack.c.h.b16 %v223
    %v2421 = vunpack.c.l.b16 %v224
    %v2422 = vunpack.c.h.b16 %v224
    %v2423 = vunpack.c.l.b16 %v225
    %v2424 = vunpack.c.h.b16 %v225
    %v2425 = vunpack.c.l.b16 %v226
    %v2426 = vunpack.c.h.b16 %v226
    %v2427 = vunpack.c.l.b16 %v227
    %v2428 = vunpack.c.h.b16 %v227
    %v2429 = vunpack.c.l.b16 %v228
    %v2430 = vunpack.c.h.b16 %v228
    %v2431 = vunpack.c.l.b16 %v229
    %v2432 = vunpack.c.h.b16 %v229
    %v2433 = vunpack.c.l.b16 %v230
    %v2434 = vunpack.c.h.b16 %v230
    %v2435 = vunpack.c.l.b16 %v231
    %v2436 = vunpack.c.h.b16 %v231
    %v2437 = vunpack.c.l.b16 %v232
    %v2438 = vunpack.c.h.b16 %v232
    %v2439 = vunpack.c.l.b16 %v233
    %v2440 = vunpack.c.h.b16 %v233
    %v2441 = vunpack.c.l.b16 %v234
    %v2442 = vunpack.c.h.b16 %v234
    %v2443 = vunpack.c.l.b16 %v235
    %v2444 = vunpack.c.h.b16 %v235
    %v2445 = vunpack.c.l.b16 %v236
    %v2446 = vunpack.c.h.b16 %v236
    %v2447 = vunpack.c.l.b16 %v237
    %v2448 = vunpack.c.h.b16 %v237
    %v2449 = vunpack.c.l.b16 %v238
    %v2450 = vunpack.c.h.b16 %v238
    %v2451 = vunpack.c.l.b16 %v239
    %v2452 = vunpack.c.h.b16 %v239
    %v2453 = vunpack.c.l.b16 %v240
    %v2454 = vunpack.c.h.b16 %v240
    %v2455 = vunpack.c.l.b16 %v241
    %v2456 = vunpack.c.h.b16 %v241
    %v2457 = vunpack.c.l.b16 %v242
    %v2458 = vunpack.c.h.b16 %v242
    %v2459 = vunpack.c.l.b16 %v243
    %v2460 = vunpack.c.h.b16 %v243
    %v2461 = vunpack.c.l.b16 %v244
    %v2462 = vunpack.c.h.b16 %v244
    %v2463 = vunpack.c.l.b16 %v245
    %v2464 = vunpack.c.h.b16 %v245
    %v2465 = vunpack.c.l.b16 %v246
    %v2466 = vunpack.c.h.b16 %v246
    %v2467 = vunpack.c.l.b16 %v247
    %v2468 = vunpack.c.h.b16 %v247
    %v2469 = vunpack.c.l.b16 %v248
    %v2470 = vunpack.c.h.b16 %v248
    %v2471 = vunpack.c.l.b16 %v249
    %v2472 = vunpack.c.h.b16 %v249
    %v2473 = vunpack.c.l.b16 %v250
    %v2474 = vunpack.c.h.b16 %v250
    %v2475 = vunpack.c.l.b16 %v251
    %v2476 = vunpack.c.h.b16 %v251
    %v2477 = vunpack.c.l.b16 %v252
    %v2478 = vunpack.c.h.b16 %v252
    %v2479 = vunpack.c.l.b16 %v253
    %v2480 = vunpack.c.h.b16 %v253
    %v2481 = vunpack.c.l.b16 %v254
    %v2482 = vunpack.c.h.b16 %v254
    %v2483 = vunpack.c.l.b16 %v255
    %v2484 = vunpack.c.h.b16 %v255
    %v2485 = vunpack.c.l.b16 %v256
    %v2486 = vunpack.c.h.b16 %v256
    %v2487 = vunpack.c.l.b16 %v257
    %v2488 = vunpack.c.h.b16 %v257
    %v2489 = vunpack.c.l.b16 %v258
    %v2490 = vunpack.c.h.b16 %v258
    %v2491 = vunpack.c.l.b16 %v259
    %v2492 = vunpack.c.h.b16 %v259
    %v2493 = vunpack.c.l.b16 %v260
    %v2494 = vunpack.c.h.b16 %v260
    %v2495 = vunpack.c.l.b16 %v261
    %v2496 = vunpack.c.h.b16 %v261
    %v2497 = vunpack.c.l.b16 %v262
    %v2498 = vunpack.c.h.b16 %v262
    %v2499 = vunpack.c.l.b16 %v263
    %v2500 = vunpack.c.h.b16 %v263
    %v2501 = vunpack.c.l.b16 %v264
    %v2502 = vunpack.c.h.b16 %v264
    %v2503 = vunpack.c.l.b16 %v265
    %v2504 = vunpack.c.h.b16 %v265
    %v2505 = vunpack.c.l.b16 %v266
    %v2506 = vunpack.c.h.b16 %v266
    %v2507 = vunpack.c.l.b16 %v267
    %v2508 = vunpack.c.h.b16 %v267
    %v2509 = vunpack.c.l.b16 %v268
    %v2510 = vunpack.c.h.b16 %v268
    %v2511 = vunpack.c.l.b16 %v269
    %v2512 = vunpack.c.h.b16 %v269
    %v2513 = vunpack.c.l.b16 %v270
    %v2514 = vunpack.c.h.b16 %v270
    %v2515 = vunpack.c.l.b16 %v271
    %v2516 = vunpack.c.h.b16 %v271
    %v2517 = vunpack.c.l.b16 %v272
    %v2518 = vunpack.c.h.b16 %v272
    %v2519 = vunpack.c.l.b16 %v273
    %v2520 = vunpack.c.h.b16 %v273
    %v2521 = vunpack.c.l.b16 %v274
    %v2522 = vunpack.c.h.b16 %v274
    %v2523 = vunpack.c.l.b16 %v275
    %v2524 = vunpack.c.h.b16 %v275
    %v2525 = vunpack.c.l.b16 %v276
    %v2526 = vunpack.c.h.b16 %v276
    %v2527 = vunpack.c.l.b16 %v277
    %v2528 = vunpack.c.h.b16 %v277
    %v2529 = vunpack.c.l.b16 %v278
    %v2530 = vunpack.c.h.b16 %v278
    %v2531 = vunpack.c.l.b16 %v279
    %v2532 = vunpack.c.h.b16 %v279
    %v2533 = vunpack.c.l.b16 %v280
    %v2534 = vunpack.c.h.b16 %v280
    %v2535 = vunpack.c.l.b16 %v281
    %v2536 = vunpack.c.h.b16 %v281
    %v2537 = vunpack.c.l.b16 %v282
    %v2538 = vunpack.c.h.b16 %v282
    %v2539 = vunpack.c.l.b16 %v283
    %v2540 = vunpack.c.h.b16 %v283
    %v2541 = vunpack.c.l.b16 %v284
    %v2542 = vunpack.c.h.b16 %v284
    %v2543 = vunpack.c.l.b16 %v285
    %v2544 = vunpack.c.h.b16 %v285
    %v2545 = vunpack.c.l.b16 %v286
    %v2546 = vunpack.c.h.b16 %v286
    %v2547 = vunpack.c.l.b16 %v287
    %v2548 = vunpack.c.h.b16 %v287
    %v2549 = vunpack.c.l.b16 %v288
    %v2550 = vunpack.c.h.b16 %v288
    %v2551 = vunpack.c.l.b16 %v289
    %v2552 = vunpack.c.h.b16 %v289
    %v2553 = vunpack.c.l.b16 %v290
    %v2554 = vunpack.c.h.b16 %v290
    %v2555 = vunpack.c.l.b16 %v291
    %v2556 = vunpack.c.h.b16 %v291
    %v2557 = vunpack.c.l.b16 %v292
    %v2558 = vunpack.c.h.b16 %v292
    %v2559 = vunpack.c.l.b16 %v293
    %v2560 = vunpack.c.h.b16 %v293
    %v2561 = vunpack.c.l.b16 %v294
    %v2562 = vunpack.c.h.b16 %v294
    %v2563 = vunpack.c.l.b16 %v295
    %v2564 = vunpack.c.h.b16 %v295
    %v2565 = vunpack.c.l.b16 %v296
    %v2566 = vunpack.c.h.b16 %v296
    %v2567 = vunpack.c.l.b16 %v297
    %v2568 = vunpack.c.h.b16 %v297
    %v2569 = vunpack.c.l.b16 %v298
    %v2570 = vunpack.c.h.b16 %v298
    %v2571 = vunpack.c.l.b16 %v299
    %v2572 = vunpack.c.h.b16 %v299
    %v2573 = vunpack.c.l.b16 %v300
    %v2574 = vunpack.c.h.b16 %v300
    %v2575 = vunpack.c.l.b16 %v301
    %v2576 = vunpack.c.h.b16 %v301
    %v2577 = vunpack.c.l.b16 %v302
    %v2578 = vunpack.c.h.b16 %v302
    %v2579 = vunpack.c.l.b16 %v303
    %v2580 = vunpack.c.h.b16 %v303
    %v2581 = vunpack.c.l.b16 %v304
    %v2582 = vunpack.c.h.b16 %v304
    %v2583 = vunpack.c.l.b16 %v305
    %v2584 = vunpack.c.h.b16 %v305
    %v2585 = vunpack.c.l.b16 %v306
    %v2586 = vunpack.c.h.b16 %v306
    %v2587 = vunpack.c.l.b16 %v307
    %v2588 = vunpack.c.h.b16 %v307
    %v2589 = vunpack.c.l.b16 %v308
    %v2590 = vunpack.c.h.b16 %v308
    %v2591 = vunpack.c.l.b16 %v309
    %v2592 = vunpack.c.h.b16 %v309
    %v2593 = vunpack.c.l.b16 %v310
    %v2594 = vunpack.c.h.b16 %v310
    %v2595 = vunpack.c.l.b16 %v311
    %v2596 = vunpack.c.h.b16 %v311
    %v2597 = vunpack.c.l.b16 %v312
    %v2598 = vunpack.c.h.b16 %v312
    %v2599 = vunpack.c.l.b16 %v313
    %v2600 = vunpack.c.h.b16 %v313
    %v2601 = vunpack.c.l.b16 %v314
    %v2602 = vunpack.c.h.b16 %v314
    %v2603 = vunpack.c.l.b16 %v315
    %v2604 = vunpack.c.h.b16 %v315
    %v2605 = vunpack.c.l.b16 %v316
    %v2606 = vunpack.c.h.b16 %v316
    %v2607 = vunpack.c.l.b16 %v317
    %v2608 = vunpack.c.h.b16 %v317
    %v2609 = vunpack.c.l.b16 %v318
    %v2610 = vunpack.c.h.b16 %v318
    %v2611 = vunpack.c.l.b16 %v319
    %v2612 = vunpack.c.h.b16 %v319
    %v2613 = vunpack.c.l.b16 %v320
    %v2614 = vunpack.c.h.b16 %v320
    %v2615 = vunpack.c.l.b16 %v321
    %v2616 = vunpack.c.h.b16 %v321
    %v2617 = vunpack.c.l.b16 %v322
    %v2618 = vunpack.c.h.b16 %v322
    %v2619 = vunpack.c.l.b16 %v323
    %v2620 = vunpack.c.h.b16 %v323
    %v2621 = vunpack.c.l.b16 %v324
    %v2622 = vunpack.c.h.b16 %v324
    %v2623 = vunpack.c.l.b16 %v325
    %v2624 = vunpack.c.h.b16 %v325
    %v2625 = vunpack.c.l.b16 %v326
    %v2626 = vunpack.c.h.b16 %v326
    %v2627 = vunpack.c.l.b16 %v327
    %v2628 = vunpack.c.h.b16 %v327
    %v2629 = vunpack.c.l.b16 %v328
    %v2630 = vunpack.c.h.b16 %v328
    %v2631 = vunpack.c.l.b16 %v329
    %v2632 = vunpack.c.h.b16 %v329
    %v2633 = vunpack.c.l.b16 %v330
    %v2634 = vunpack.c.h.b16 %v330
    %v2635 = vunpack.c.l.b16 %v331
    %v2636 = vunpack.c.h.b16 %v331
    %v2637 = vunpack.c.l.b16 %v332
    %v2638 = vunpack.c.h.b16 %v332
    %v2639 = vunpack.c.l.b16 %v333
    %v2640 = vunpack.c.h.b16 %v333
    %v2641 = vunpack.c.l.b16 %v334
    %v2642 = vunpack.c.h.b16 %v334
    %v2643 = vunpack.c.l.b16 %v335
    %v2644 = vunpack.c.h.b16 %v335
    %v2645 = vunpack.c.l.b16 %v336
    %v2646 = vunpack.c.h.b16 %v336
    %v2647 = vunpack.c.l.b16 %v337
    %v2648 = vunpack.c.h.b16 %v337
    %v2649 = vunpack.c.l.b16 %v338
    %v2650 = vunpack.c.h.b16 %v338
    %v2651 = vunpack.c.l.b16 %v339
    %v2652 = vunpack.c.h.b16 %v339
    %v2653 = vunpack.c.l.b16 %v340
    %v2654 = vunpack.c.h.b16 %v340
    %v2655 = vunpack.c.l.b16 %v341
    %v2656 = vunpack.c.h.b16 %v341
    %v2657 = vunpack.c.l.b16 %v342
    %v2658 = vunpack.c.h.b16 %v342
    %v2659 = vunpack.c.l.b16 %v343
    %v2660 = vunpack.c.h.b16 %v343
    %v2661 = vunpack.c.l.b16 %v344
    %v2662 = vunpack.c.h.b16 %v344
    %v2663 = vunpack.c.l.b16 %v345
    %v2664 = vunpack.c.h.b16 %v345
    %v2665 = vunpack.c.l.b16 %v346
    %v2666 = vunpack.c.h.b16 %v346
    %v2667 = vunpack.c.l.b16 %v347
    %v2668 = vunpack.c.h.b16 %v347
    %v2669 = vunpack.c.l.b16 %v348
    %v2670 = vunpack.c.h.b16 %v348
    %v2671 = vunpack.c.l.b16 %v349
    %v2672 = vunpack.c.h.b16 %v349
    %v2673 = vunpack.c.l.b16 %v350
    %v2674 = vunpack.c.h.b16 %v350
    %v2675 = vunpack.c.l.b16 %v351
    %v2676 = vunpack.c.h.b16 %v351
    %v2677 = vunpack.c.l.b16 %v352
    %v2678 = vunpack.c.h.b16 %v352
    %v2679 = vunpack.c.l.b16 %v353
    %v2680 = vunpack.c.h.b16 %v353
    %v2681 = vunpack.c.l.b16 %v354
    %v2682 = vunpack.c.h.b16 %v354
    %v2683 = vunpack.c.l.b16 %v355
    %v2684 = vunpack.c.h.b16 %v355
    %v2685 = vunpack.c.l.b16 %v356
    %v2686 = vunpack.c.h.b16 %v356
    %v2687 = vunpack.c.l.b16 %v357
    %v2688 = vunpack.c.h.b16 %v357
    %v2689 = vunpack.c.l.b16 %v358
    %v2690 = vunpack.c.h.b16 %v358
    %v2691 = vunpack.c.l.b16 %v359
    %v2692 = vunpack.c.h.b16 %v359
    %v2693 = vunpack.c.l.b16 %v360
    %v2694 = vunpack.c.h.b16 %v360
    %v2695 = vunpack.c.l.b16 %v361
    %v2696 = vunpack.c.h.b16 %v361
    %v2697 = vunpack.c.l.b16 %v362
    %v2698 = vunpack.c.h.b16 %v362
    %v2699 = vunpack.c.l.b16 %v363
    %v2700 = vunpack.c.h.b16 %v363
    %v2701 = vunpack.c.l.b16 %v364
    %v2702 = vunpack.c.h.b16 %v364
    %v2703 = vunpack.c.l.b16 %v365
    %v2704 = vunpack.c.h.b16 %v365
    %v2705 = vunpack.c.l.b16 %v366
    %v2706 = vunpack.c.h.b16 %v366
    %v2707 = vunpack.c.l.b16 %v367
    %v2708 = vunpack.c.h.b16 %v367
    %v2709 = vunpack.c.l.b16 %v368
    %v2710 = vunpack.c.h.b16 %v368
    %v2711 = vunpack.c.l.b16 %v369
    %v2712 = vunpack.c.h.b16 %v369
    %v2713 = vunpack.c.l.b16 %v370
    %v2714 = vunpack.c.h.b16 %v370
    %v2715 = vunpack.c.l.b16 %v371
    %v2716 = vunpack.c.h.b16 %v371
    %v2717 = vunpack.c.l.b16 %v372
    %v2718 = vunpack.c.h.b16 %v372
    %v2719 = vunpack.c.l.b16 %v373
    %v2720 = vunpack.c.h.b16 %v373
    %v2721 = vunpack.c.l.b16 %v374
    %v2722 = vunpack.c.h.b16 %v374
    %v2723 = vunpack.c.l.b16 %v375
    %v2724 = vunpack.c.h.b16 %v375
    %v2725 = vunpack.c.l.b16 %v376
    %v2726 = vunpack.c.h.b16 %v376
    %v2727 = vunpack.c.l.b16 %v377
    %v2728 = vunpack.c.h.b16 %v377
    %v2729 = vunpack.c.l.b16 %v378
    %v2730 = vunpack.c.h.b16 %v378
    %v2731 = vunpack.c.l.b16 %v379
    %v2732 = vunpack.c.h.b16 %v379
    %v2733 = vunpack.c.l.b16 %v380
    %v2734 = vunpack.c.h.b16 %v380
    %v2735 = vunpack.c.l.b16 %v381
    %v2736 = vunpack.c.h.b16 %v381
    %v2737 = vunpack.c.l.b16 %v382
    %v2738 = vunpack.c.h.b16 %v382
    %v2739 = vunpack.c.l.b16 %v383
    %v2740 = vunpack.c.h.b16 %v383
    %v2741 = vunpack.c.l.b16 %v384
    %v2742 = vunpack.c.h.b16 %v384
    %v2743 = vunpack.c.l.b16 %v385
    %v2744 = vunpack.c.h.b16 %v385
    %v2745 = vunpack.c.l.b16 %v386
    %v2746 = vunpack.c.h.b16 %v386
    %v2747 = vunpack.c.l.b16 %v387
    %v2748 = vunpack.c.h.b16 %v387
    %v2749 = vunpack.c.l.b16 %v388
    %v2750 = vunpack.c.h.b16 %v388
    %v2751 = vunpack.c.l.b16 %v389
    %v2752 = vunpack.c.h.b16 %v389
    %v2753 = vunpack.c.l.b16 %v390
    %v2754 = vunpack.c.h.b16 %v390
    %v2755 = vunpack.c.l.b16 %v391
    %v2756 = vunpack.c.h.b16 %v391
    %v2757 = vunpack.c.l.b16 %v392
    %v2758 = vunpack.c.h.b16 %v392
    %v2759 = vunpack.c.l.b16 %v393
    %v2760 = vunpack.c.h.b16 %v393
    %v2761 = vunpack.c.l.b16 %v394
    %v2762 = vunpack.c.h.b16 %v394
    %v2763 = vunpack.c.l.b16 %v395
    %v2764 = vunpack.c.h.b16 %v395
    %v2765 = vunpack.c.l.b16 %v396
    %v2766 = vunpack.c.h.b16 %v396
    %v2767 = vunpack.c.l.b16 %v397
    %v2768 = vunpack.c.h.b16 %v397
    %v2769 = vunpack.c.l.b16 %v398
    %v2770 = vunpack.c.h.b16 %v398
    %v2771 = vunpack.c.l.b16 %v399
    %v2772 = vunpack.c.h.b16 %v399
    %v2773 = vunpack.c.l.b16 %v400
    %v2774 = vunpack.c.h.b16 %v400
    %v2775 = vunpack.c.l.b16 %v401
    %v2776 = vunpack.c.h.b16 %v401
    %v2777 = vunpack.c.l.b16 %v402
    %v2778 = vunpack.c.h.b16 %v402
    %v2779 = vunpack.c.l.b16 %v403
    %v2780 = vunpack.c.h.b16 %v403
    %v2781 = vunpack.c.l.b16 %v404
    %v2782 = vunpack.c.h.b16 %v404
    %v2783 = vunpack.c.l.b16 %v405
    %v2784 = vunpack.c.h.b16 %v405
    %v2785 = vunpack.c.l.b16 %v406
    %v2786 = vunpack.c.h.b16 %v406
    %v2787 = vunpack.c.l.b16 %v407
    %v2788 = vunpack.c.h.b16 %v407
    %v2789 = vunpack.c.l.b16 %v408
    %v2790 = vunpack.c.h.b16 %v408
    %v2791 = vunpack.c.l.b16 %v409
    %v2792 = vunpack.c.h.b16 %v409
    %v2793 = vunpack.c.l.b16 %v410
    %v2794 = vunpack.c.h.b16 %v410
    %v2795 = vunpack.c.l.b16 %v411
    %v2796 = vunpack.c.h.b16 %v411
    %v2797 = vunpack.c.l.b16 %v412
    %v2798 = vunpack.c.h.b16 %v412
    %v2799 = vunpack.c.l.b16 %v413
    %v2800 = vunpack.c.h.b16 %v413
    %v2801 = vunpack.c.l.b16 %v414
    %v2802 = vunpack.c.h.b16 %v414
    %v2803 = vunpack.c.l.b16 %v415
    %v2804 = vunpack.c.h.b16 %v415
    %v2805 = vunpack.c.l.b16 %v416
    %v2806 = vunpack.c.h.b16 %v416
    %v2807 = vunpack.c.l.b16 %v417
    %v2808 = vunpack.c.h.b16 %v417
    %v2809 = vunpack.c.l.b16 %v418
    %v2810 = vunpack.c.h.b16 %v418
    %v2811 = vunpack.c.l.b16 %v419
    %v2812 = vunpack.c.h.b16 %v419
    %v2813 = vunpack.c.l.b16 %v420
    %v2814 = vunpack.c.h.b16 %v420
    %v2815 = vunpack.c.l.b16 %v421
    %v2816 = vunpack.c.h.b16 %v421
    %v2817 = vunpack.c.l.b16 %v422
    %v2818 = vunpack.c.h.b16 %v422
    %v2819 = vunpack.c.l.b16 %v423
    %v2820 = vunpack.c.h.b16 %v423
    %v2821 = vunpack.c.l.b16 %v424
    %v2822 = vunpack.c.h.b16 %v424
    %v2823 = vunpack.c.l.b16 %v425
    %v2824 = vunpack.c.h.b16 %v425
    %v2825 = vunpack.c.l.b16 %v426
    %v2826 = vunpack.c.h.b16 %v426
    %v2827 = vunpack.c.l.b16 %v427
    %v2828 = vunpack.c.h.b16 %v427
    %v2829 = vunpack.c.l.b16 %v428
    %v2830 = vunpack.c.h.b16 %v428
    %v2831 = vunpack.c.l.b16 %v429
    %v2832 = vunpack.c.h.b16 %v429
    %v2833 = vunpack.c.l.b16 %v430
    %v2834 = vunpack.c.h.b16 %v430
    %v2835 = vunpack.c.l.b16 %v431
    %v2836 = vunpack.c.h.b16 %v431
    %v2837 = vunpack.c.l.b16 %v432
    %v2838 = vunpack.c.h.b16 %v432
    %v2839 = vunpack.c.l.b16 %v433
    %v2840 = vunpack.c.h.b16 %v433
    %v2841 = vunpack.c.l.b16 %v434
    %v2842 = vunpack.c.h.b16 %v434
    %v2843 = vunpack.c.l.b16 %v435
    %v2844 = vunpack.c.h.b16 %v435
    %v2845 = vunpack.c.l.b16 %v436
    %v2846 = vunpack.c.h.b16 %v436
    %v2847 = vunpack.c.l.b16 %v437
    %v2848 = vunpack.c.h.b16 %v437
    %v2849 = vunpack.c.l.b16 %v438
    %v2850 = vunpack.c.h.b16 %v438
    %v2851 = vunpack.c.l.b16 %v439
    %v2852 = vunpack.c.h.b16 %v439
    %v2853 = vunpack.c.l.b16 %v440
    %v2854 = vunpack.c.h.b16 %v440
    %v2855 = vunpack.c.l.b16 %v441
    %v2856 = vunpack.c.h.b16 %v441
    %v2857 = vunpack.c.l.b16 %v442
    %v2858 = vunpack.c.h.b16 %v442
    %v2859 = vunpack.c.l.b16 %v443
    %v2860 = vunpack.c.h.b16 %v443
    %v2861 = vunpack.c.l.b16 %v444
    %v2862 = vunpack.c.h.b16 %v444
    %v2863 = vunpack.c.l.b16 %v445
    %v2864 = vunpack.c.h.b16 %v445
    %v2865 = vunpack.c.l.b16 %v446
    %v2866 = vunpack.c.h.b16 %v446
    %v2867 = vunpack.c.l.b16 %v447
    %v2868 = vunpack.c.h.b16 %v447
    %v2869 = vunpack.c.l.b16 %v448
    %v2870 = vunpack.c.h.b16 %v448
    %v2871 = vunpack.c.l.b16 %v449
    %v2872 = vunpack.c.h.b16 %v449
    %v2873 = vunpack.c.l.b16 %v450
    %v2874 = vunpack.c.h.b16 %v450
    %v2875 = vunpack.c.l.b16 %v451
    %v2876 = vunpack.c.h.b16 %v451
    %v2877 = vunpack.c.l.b16 %v452
    %v2878 = vunpack.c.h.b16 %v452
    %v2879 = vunpack.c.l.b16 %v453
    %v2880 = vunpack.c.h.b16 %v453
    %v2881 = vunpack.c.l.b16 %v454
    %v2882 = vunpack.c.h.b16 %v454
    %v2883 = vunpack.c.l.b16 %v455
    %v2884 = vunpack.c.h.b16 %v455
    %v2885 = vunpack.c.l.b16 %v456
    %v2886 = vunpack.c.h.b16 %v456
    %v2887 = vunpack.c.l.b16 %v457
    %v2888 = vunpack.c.h.b16 %v457
    %v2889 = vunpack.c.l.b16 %v458
    %v2890 = vunpack.c.h.b16 %v458
    %v2891 = vunpack.c.l.b16 %v459
    %v2892 = vunpack.c.h.b16 %v459
    %v2893 = vunpack.c.l.b16 %v460
    %v2894 = vunpack.c.h.b16 %v460
    %v2895 = vunpack.c.l.b16 %v461
    %v2896 = vunpack.c.h.b16 %v461
    %v2897 = vunpack.c.l.b16 %v462
    %v2898 = vunpack.c.h.b16 %v462
    %v2899 = vunpack.c.l.b16 %v463
    %v2900 = vunpack.c.h.b16 %v463
    %v2901 = vunpack.c.l.b16 %v464
    %v2902 = vunpack.c.h.b16 %v464
    %v2903 = vunpack.c.l.b16 %v465
    %v2904 = vunpack.c.h.b16 %v465
    %v2905 = vunpack.c.l.b16 %v466
    %v2906 = vunpack.c.h.b16 %v466
    %v2907 = vunpack.c.l.b16 %v467
    %v2908 = vunpack.c.h.b16 %v467
    %v2909 = vunpack.c.l.b16 %v468
    %v2910 = vunpack.c.h.b16 %v468
    %v2911 = vunpack.c.l.b16 %v469
    %v2912 = vunpack.c.h.b16 %v469
    %v2913 = vunpack.c.l.b16 %v470
    %v2914 = vunpack.c.h.b16 %v470
    %v2915 = vunpack.c.l.b16 %v471
    %v2916 = vunpack.c.h.b16 %v471
    %v2917 = vunpack.c.l.b16 %v472
    %v2918 = vunpack.c.h.b16 %v472
    %v2919 = vunpack.c.l.b16 %v473
    %v2920 = vunpack.c.h.b16 %v473
    %v2921 = vunpack.c.l.b16 %v474
    %v2922 = vunpack.c.h.b16 %v474
    %v2923 = vunpack.c.l.b16 %v475
    %v2924 = vunpack.c.h.b16 %v475
    %v2925 = vunpack.c.l.b16 %v476
    %v2926 = vunpack.c.h.b16 %v476
    %v2927 = vunpack.c.l.b16 %v477
    %v2928 = vunpack.c.h.b16 %v477
    %v2929 = vunpack.c.l.b16 %v478
    %v2930 = vunpack.c.h.b16 %v478
    %v2931 = vunpack.c.l.b16 %v479
    %v2932 = vunpack.c.h.b16 %v479
    %v2933 = vunpack.c.l.b16 %v480
    %v2934 = vunpack.c.h.b16 %v480
    %v2935 = vunpack.c.l.b16 %v481
    %v2936 = vunpack.c.h.b16 %v481
    %v2937 = vunpack.c.l.b16 %v482
    %v2938 = vunpack.c.h.b16 %v482
    %v2939 = vunpack.c.l.b16 %v483
    %v2940 = vunpack.c.h.b16 %v483
    %v2941 = vunpack.c.l.b16 %v484
    %v2942 = vunpack.c.h.b16 %v484
    %v2943 = vunpack.c.l.b16 %v485
    %v2944 = vunpack.c.h.b16 %v485
    %v2945 = vunpack.c.l.b16 %v486
    %v2946 = vunpack.c.h.b16 %v486
    %v2947 = vunpack.c.l.b16 %v487
    %v2948 = vunpack.c.h.b16 %v487
    %v2949 = vunpack.c.l.b16 %v488
    %v2950 = vunpack.c.h.b16 %v488
    %v2951 = vunpack.c.l.b16 %v489
    %v2952 = vunpack.c.h.b16 %v489
    %v2953 = vunpack.c.l.b16 %v490
    %v2954 = vunpack.c.h.b16 %v490
    %v2955 = vunpack.c.l.b16 %v491
    %v2956 = vunpack.c.h.b16 %v491
    %v2957 = vunpack.c.l.b16 %v492
    %v2958 = vunpack.c.h.b16 %v492
    %v2959 = vunpack.c.l.b16 %v493
    %v2960 = vunpack.c.h.b16 %v493
    %v2961 = vunpack.c.l.b16 %v494
    %v2962 = vunpack.c.h.b16 %v494
    %v2963 = vunpack.c.l.b16 %v495
    %v2964 = vunpack.c.h.b16 %v495
    %v2965 = vunpack.c.l.b16 %v496
    %v2966 = vunpack.c.h.b16 %v496
    %v2967 = vunpack.c.l.b16 %v497
    %v2968 = vunpack.c.h.b16 %v497
    %v2969 = vunpack.c.l.b16 %v498
    %v2970 = vunpack.c.h.b16 %v498
    %v2971 = vunpack.c.l.b16 %v499
    %v2972 = vunpack.c.h.b16 %v499
    %v2973 = vunpack.c.l.b16 %v500
    %v2974 = vunpack.c.h.b16 %v500
    %v2975 = vunpack.c.l.b16 %v501
    %v2976 = vunpack.c.h.b16 %v501
    %v2977 = vunpack.c.l.b16 %v502
    %v2978 = vunpack.c.h.b16 %v502
    %v2979 = vunpack.c.l.b16 %v503
    %v2980 = vunpack.c.h.b16 %v503
    %v2981 = vunpack.c.l.b16 %v504
    %v2982 = vunpack.c.h.b16 %v504
    %v2983 = vunpack.c.l.b16 %v505
    %v2984 = vunpack.c.h.b16 %v505
    %v2985 = vunpack.c.l.b16 %v506
    %v2986 = vunpack.c.h.b16 %v506
    %v2987 = vunpack.c.l.b16 %v507
    %v2988 = vunpack.c.h.b16 %v507
    %v2989 = vunpack.c.l.b16 %v508
    %v2990 = vunpack.c.h.b16 %v508
    %v2991 = vunpack.c.l.b16 %v509
    %v2992 = vunpack.c.h.b16 %v509
    %v2993 = vunpack.c.l.b16 %v510
    %v2994 = vunpack.c.h.b16 %v510
    %v2995 = vunpack.c.l.b16 %v511
    %v2996 = vunpack.c.h.b16 %v511
    %v2997 = vunpack.c.l.b16 %v512
    %v2998 = vunpack.c.h.b16 %v512
    %v2999 = vunpack.c.l.b16 %v513
    %v3000 = vunpack.c.h.b16 %v513
    %v3001 = vunpack.c.l.b16 %v514
    %v3002 = vunpack.c.h.b16 %v514
    %v3003 = vunpack.c.l.b16 %v515
    %v3004 = vunpack.c.h.b16 %v515
    %v3005 = vunpack.c.l.b16 %v516
    %v3006 = vunpack.c.h.b16 %v516
    %v3007 = vunpack.c.l.b16 %v517
    %v3008 = vunpack.c.h.b16 %v517
    %v3009 = vunpack.c.l.b16 %v518
    %v3010 = vunpack.c.h.b16 %v518
    %v3011 = vunpack.c.l.b16 %v519
    %v3012 = vunpack.c.h.b16 %v519
    %v3013 = vunpack.c.l.b16 %v520
    %v3014 = vunpack.c.h.b16 %v520
    %v3015 = vunpack.c.l.b16 %v521
    %v3016 = vunpack.c.h.b16 %v521
    %v3017 = vunpack.c.l.b16 %v522
    %v3018 = vunpack.c.h.b16 %v522
    %v3019 = vunpack.c.l.b16 %v523
    %v3020 = vunpack.c.h.b16 %v523
    %v3021 = vunpack.c.l.b16 %v524
    %v3022 = vunpack.c.h.b16 %v524
    %v3023 = vunpack.c.l.b16 %v525
    %v3024 = vunpack.c.h.b16 %v525
    %v3025 = vunpack.c.l.b16 %v526
    %v3026 = vunpack.c.h.b16 %v526
    %v3027 = vunpack.c.l.b16 %v527
    %v3028 = vunpack.c.h.b16 %v527
    %v3029 = vunpack.c.l.b16 %v528
    %v3030 = vunpack.c.h.b16 %v528
    %v3031 = vunpack.c.l.b16 %v529
    %v3032 = vunpack.c.h.b16 %v529
    %v3033 = vunpack.c.l.b16 %v530
    %v3034 = vunpack.c.h.b16 %v530
    %v3035 = vunpack.c.l.b16 %v531
    %v3036 = vunpack.c.h.b16 %v531
    %v3037 = vunpack.c.l.b16 %v532
    %v3038 = vunpack.c.h.b16 %v532
    %v3039 = vunpack.c.l.b16 %v533
    %v3040 = vunpack.c.h.b16 %v533
    %v3041 = vunpack.c.l.b16 %v534
    %v3042 = vunpack.c.h.b16 %v534
    %v3043 = vunpack.c.l.b16 %v535
    %v3044 = vunpack.c.h.b16 %v535
    %v3045 = vunpack.c.l.b16 %v536
    %v3046 = vunpack.c.h.b16 %v536
    %v3047 = vunpack.c.l.b16 %v537
    %v3048 = vunpack.c.h.b16 %v537
    %v3049 = vunpack.c.l.b16 %v538
    %v3050 = vunpack.c.h.b16 %v538
    %v3051 = vunpack.c.l.b16 %v539
    %v3052 = vunpack.c.h.b16 %v539
    %v3053 = vunpack.c.l.b16 %v540
    %v3054 = vunpack.c.h.b16 %v540
    %v3055 = vunpack.c.l.b16 %v541
    %v3056 = vunpack.c.h.b16 %v541
    %v3057 = vunpack.c.l.b16 %v542
    %v3058 = vunpack.c.h.b16 %v542
    %v3059 = vunpack.c.l.b16 %v543
    %v3060 = vunpack.c.h.b16 %v543
    %v3061 = vunpack.c.l.b16 %v544
    %v3062 = vunpack.c.h.b16 %v544
    %v3063 = vunpack.c.l.b16 %v545
    %v3064 = vunpack.c.h.b16 %v545
    %v3065 = vunpack.c.l.b16 %v546
    %v3066 = vunpack.c.h.b16 %v546
    %v3067 = vunpack.c.l.b16 %v547
    %v3068 = vunpack.c.h.b16 %v547
    %v3069 = vunpack.c.l.b16 %v548
    %v3070 = vunpack.c.h.b16 %v548
    %v3071 = vunpack.c.l.b16 %v549
    %v3072 = vunpack.c.h.b16 %v549
    %v3073 = vunpack.c.l.b16 %v550
    %v3074 = vunpack.c.h.b16 %v550
    %v3075 = vunpack.c.l.b16 %v551
    %v3076 = vunpack.c.h.b16 %v551
    %v3077 = vunpack.c.l.b16 %v552
    %v3078 = vunpack.c.h.b16 %v552
    %v3079 = vunpack.c.l.b16 %v553
    %v3080 = vunpack.c.h.b16 %v553
    %v3081 = vunpack.c.l.b16 %v554
    %v3082 = vunpack.c.h.b16 %v554
    %v3083 = vunpack.c.l.b16 %v555
    %v3084 = vunpack.c.h.b16 %v555
    %v3085 = vunpack.c.l.b16 %v556
    %v3086 = vunpack.c.h.b16 %v556
    %v3087 = vunpack.c.l.b16 %v557
    %v3088 = vunpack.c.h.b16 %v557
    %v3089 = vunpack.c.l.b16 %v558
    %v3090 = vunpack.c.h.b16 %v558
    %v3091 = vunpack.c.l.b16 %v559
    %v3092 = vunpack.c.h.b16 %v559
    %v3093 = vunpack.c.l.b16 %v560
    %v3094 = vunpack.c.h.b16 %v560
    %v3095 = vunpack.c.l.b16 %v561
    %v3096 = vunpack.c.h.b16 %v561
    %v3097 = vunpack.c.l.b16 %v562
    %v3098 = vunpack.c.h.b16 %v562
    %v3099 = vunpack.c.l.b16 %v563
    %v3100 = vunpack.c.h.b16 %v563
    %v3101 = vunpack.c.l.b16 %v564
    %v3102 = vunpack.c.h.b16 %v564
    %v3103 = vunpack.c.l.b16 %v565
    %v3104 = vunpack.c.h.b16 %v565
    %v3105 = vunpack.c.l.b16 %v566
    %v3106 = vunpack.c.h.b16 %v566
    %v3107 = vunpack.c.l.b16 %v567
    %v3108 = vunpack.c.h.b16 %v567
    %v3109 = vunpack.c.l.b16 %v568
    %v3110 = vunpack.c.h.b16 %v568
    %v3111 = vunpack.c.l.b16 %v569
    %v3112 = vunpack.c.h.b16 %v569
    %v3113 = vunpack.c.l.b16 %v570
    %v3114 = vunpack.c.h.b16 %v570
    %v3115 = vunpack.c.l.b16 %v571
    %v3116 = vunpack.c.h.b16 %v571
    %v3117 = vunpack.c.l.b16 %v572
    %v3118 = vunpack.c.h.b16 %v572
    %v3119 = vunpack.c.l.b16 %v573
    %v3120 = vunpack.c.h.b16 %v573
    %v3121 = vunpack.c.l.b16 %v574
    %v3122 = vunpack.c.h.b16 %v574
    %v3123 = vunpack.c.l.b16 %v575
    %v3124 = vunpack.c.h.b16 %v575
    %v3125 = vunpack.c.l.b16 %v576
    %v3126 = vunpack.c.h.b16 %v576
    %v3127 = vunpack.c.l.b16 %v577
    %v3128 = vunpack.c.h.b16 %v577
    %v3129 = vunpack.c.l.b16 %v578
    %v3130 = vunpack.c.h.b16 %v578
    %v3131 = vunpack.c.l.b16 %v579
    %v3132 = vunpack.c.h.b16 %v579
    %v3133 = vunpack.c.l.b16 %v580
    %v3134 = vunpack.c.h.b16 %v580
    %v3135 = vunpack.c.l.b16 %v581
    %v3136 = vunpack.c.h.b16 %v581
    %v3137 = vunpack.c.l.b16 %v582
    %v3138 = vunpack.c.h.b16 %v582
    %v3139 = vunpack.c.l.b16 %v583
    %v3140 = vunpack.c.h.b16 %v583
    %v3141 = vunpack.c.l.b16 %v584
    %v3142 = vunpack.c.h.b16 %v584
    %v3143 = vunpack.c.l.b16 %v585
    %v3144 = vunpack.c.h.b16 %v585
    %v3145 = vunpack.c.l.b16 %v586
    %v3146 = vunpack.c.h.b16 %v586
    %v3147 = vunpack.c.l.b16 %v587
    %v3148 = vunpack.c.h.b16 %v587
    %v3149 = vunpack.c.l.b16 %v588
    %v3150 = vunpack.c.h.b16 %v588
    %v3151 = vunpack.c.l.b16 %v589
    %v3152 = vunpack.c.h.b16 %v589
    %v3153 = vunpack.c.l.b16 %v590
    %v3154 = vunpack.c.h.b16 %v590
    %v3155 = vunpack.c.l.b16 %v591
    %v3156 = vunpack.c.h.b16 %v591
    %v3157 = vunpack.c.l.b16 %v592
    %v3158 = vunpack.c.h.b16 %v592
    %v3159 = vunpack.c.l.b16 %v593
    %v3160 = vunpack.c.h.b16 %v593
    %v3161 = vunpack.c.l.b16 %v594
    %v3162 = vunpack.c.h.b16 %v594
    %v3163 = vunpack.c.l.b16 %v595
    %v3164 = vunpack.c.h.b16 %v595
    %v3165 = vunpack.c.l.b16 %v596
    %v3166 = vunpack.c.h.b16 %v596
    %v3167 = vunpack.c.l.b16 %v597
    %v3168 = vunpack.c.h.b16 %v597
    %v3169 = vunpack.c.l.b16 %v598
    %v3170 = vunpack.c.h.b16 %v598
    %v3171 = vunpack.c.l.b16 %v599
    %v3172 = vunpack.c.h.b16 %v599
    %v3173 = vunpack.c.l.b16 %v600
    %v3174 = vunpack.c.h.b16 %v600
    %v3175 = vunpack.c.l.b16 %v601
    %v3176 = vunpack.c.h.b16 %v601
    %v3177 = vunpack.c.l.b16 %v602
    %v3178 = vunpack.c.h.b16 %v602
    %v3179 = vunpack.c.l.b16 %v603
    %v3180 = vunpack.c.h.b16 %v603
    %v3181 = vunpack.c.l.b16 %v604
    %v3182 = vunpack.c.h.b16 %v604
    %v3183 = vunpack.c.l.b16 %v605
    %v3184 = vunpack.c.h.b16 %v605
    %v3185 = vunpack.c.l.b16 %v606
    %v3186 = vunpack.c.h.b16 %v606
    %v3187 = vunpack.c.l.b16 %v607
    %v3188 = vunpack.c.h.b16 %v607
    %v3189 = vunpack.c.l.b16 %v608
    %v3190 = vunpack.c.h.b16 %v608
    %v3191 = vunpack.c.l.b16 %v609
    %v3192 = vunpack.c.h.b16 %v609
    %v3193 = vunpack.c.l.b16 %v610
    %v3194 = vunpack.c.h.b16 %v610
    %v3195 = vunpack.c.l.b16 %v611
    %v3196 = vunpack.c.h.b16 %v611
    %v3197 = vunpack.c.l.b16 %v612
    %v3198 = vunpack.c.h.b16 %v612
    %v3199 = vunpack.c.l.b16 %v613
    %v3200 = vunpack.c.h.b16 %v613
    %v3201 = vunpack.c.l.b16 %v614
    %v3202 = vunpack.c.h.b16 %v614
    %v3203 = vunpack.c.l.b16 %v615
    %v3204 = vunpack.c.h.b16 %v615
    %v3205 = vunpack.c.l.b16 %v616
    %v3206 = vunpack.c.h.b16 %v616
    %v3207 = vunpack.c.l.b16 %v617
    %v3208 = vunpack.c.h.b16 %v617
    %v3209 = vunpack.c.l.b16 %v618
    %v3210 = vunpack.c.h.b16 %v618
    %v3211 = vunpack.c.l.b16 %v619
    %v3212 = vunpack.c.h.b16 %v619
    %v3213 = vunpack.c.l.b16 %v620
    %v3214 = vunpack.c.h.b16 %v620
    %v3215 = vunpack.c.l.b16 %v621
    %v3216 = vunpack.c.h.b16 %v621
    %v3217 = vunpack.c.l.b16 %v622
    %v3218 = vunpack.c.h.b16 %v622
    %v3219 = vunpack.c.l.b16 %v623
    %v3220 = vunpack.c.h.b16 %v623
    %v3221 = vunpack.c.l.b16 %v624
    %v3222 = vunpack.c.h.b16 %v624
    %v3223 = vunpack.c.l.b16 %v625
    %v3224 = vunpack.c.h.b16 %v625
    %v3225 = vunpack.c.l.b16 %v626
    %v3226 = vunpack.c.h.b16 %v626
    %v3227 = vunpack.c.l.b16 %v627
    %v3228 = vunpack.c.h.b16 %v627
    %v3229 = vunpack.c.l.b16 %v628
    %v3230 = vunpack.c.h.b16 %v628
    %v3231 = vunpack.c.l.b16 %v629
    %v3232 = vunpack.c.h.b16 %v629
    %v3233 = vunpack.c.l.b16 %v630
    %v3234 = vunpack.c.h.b16 %v630
    %v3235 = vunpack.c.l.b16 %v631
    %v3236 = vunpack.c.h.b16 %v631
    %v3237 = vunpack.c.l.b16 %v632
    %v3238 = vunpack.c.h.b16 %v632
    %v3239 = vunpack.c.l.b16 %v633
    %v3240 = vunpack.c.h.b16 %v633
    %v3241 = vunpack.c.l.b16 %v634
    %v3242 = vunpack.c.h.b16 %v634
    %v3243 = vunpack.c.l.b16 %v635
    %v3244 = vunpack.c.h.b16 %v635
    %v3245 = vunpack.c.l.b16 %v636
    %v3246 = vunpack.c.h.b16 %v636
    %v3247 = vunpack.c.l.b16 %v637
    %v3248 = vunpack.c.h.b16 %v637
    %v3249 = vunpack.c.l.b16 %v638
    %v3250 = vunpack.c.h.b16 %v638
    %v3251 = vunpack.c.l.b16 %v639
    %v3252 = vunpack.c.h.b16 %v639
    %v3253 = vunpack.c.l.b16 %v640
    %v3254 = vunpack.c.h.b16 %v640
    %v3255 = vunpack.c.l.b16 %v641
    %v3256 = vunpack.c.h.b16 %v641
    %v3257 = vunpack.c.l.b16 %v642
    %v3258 = vunpack.c.h.b16 %v642
    %v3259 = vunpack.c.l.b16 %v643
    %v3260 = vunpack.c.h.b16 %v643
    %v3261 = vunpack.c.l.b16 %v644
    %v3262 = vunpack.c.h.b16 %v644
    %v3263 = vunpack.c.l.b16 %v645
    %v3264 = vunpack.c.h.b16 %v645
    %v3265 = vunpack.c.l.b16 %v646
    %v3266 = vunpack.c.h.b16 %v646
    %v3267 = vunpack.c.l.b16 %v647
    %v3268 = vunpack.c.h.b16 %v647
    %v3269 = vunpack.c.l.b16 %v648
    %v3270 = vunpack.c.h.b16 %v648
    %v3271 = vunpack.c.l.b16 %v649
    %v3272 = vunpack.c.h.b16 %v649
    %v3273 = vunpack.c.l.b16 %v650
    %v3274 = vunpack.c.h.b16 %v650
    %v3275 = vunpack.c.l.b16 %v651
    %v3276 = vunpack.c.h.b16 %v651
    %v3277 = vunpack.c.l.b16 %v652
    %v3278 = vunpack.c.h.b16 %v652
    %v3279 = vunpack.c.l.b16 %v653
    %v3280 = vunpack.c.h.b16 %v653
    %v3281 = vunpack.c.l.b16 %v654
    %v3282 = vunpack.c.h.b16 %v654
    %v3283 = vunpack.c.l.b16 %v655
    %v3284 = vunpack.c.h.b16 %v655
    %v3285 = vunpack.c.l.b16 %v656
    %v3286 = vunpack.c.h.b16 %v656
    %v3287 = vunpack.c.l.b16 %v657
    %v3288 = vunpack.c.h.b16 %v657
    %v3289 = vunpack.c.l.b16 %v658
    %v3290 = vunpack.c.h.b16 %v658
    %v3291 = vunpack.c.l.b16 %v659
    %v3292 = vunpack.c.h.b16 %v659
    %v3293 = vunpack.c.l.b16 %v660
    %v3294 = vunpack.c.h.b16 %v660
    %v3295 = vunpack.c.l.b16 %v661
    %v3296 = vunpack.c.h.b16 %v661
    %v3297 = vunpack.c.l.b16 %v662
    %v3298 = vunpack.c.h.b16 %v662
    %v3299 = vunpack.c.l.b16 %v663
    %v3300 = vunpack.c.h.b16 %v663
    %v3301 = vunpack.c.l.b16 %v664
    %v3302 = vunpack.c.h.b16 %v664
    %v3303 = vunpack.c.l.b16 %v665
    %v3304 = vunpack.c.h.b16 %v665
    %v3305 = vunpack.c.l.b16 %v666
    %v3306 = vunpack.c.h.b16 %v666
    %v3307 = vunpack.c.l.b16 %v667
    %v3308 = vunpack.c.h.b16 %v667
    %v3309 = vunpack.c.l.b16 %v668
    %v3310 = vunpack.c.h.b16 %v668
    %v3311 = vunpack.c.l.b16 %v669
    %v3312 = vunpack.c.h.b16 %v669
    %v3313 = vunpack.c.l.b16 %v670
    %v3314 = vunpack.c.h.b16 %v670
    %v3315 = vunpack.c.l.b16 %v671
    %v3316 = vunpack.c.h.b16 %v671
    %v3317 = vunpack.c.l.b16 %v672
    %v3318 = vunpack.c.h.b16 %v672
    %v3319 = vunpack.c.l.b16 %v673
    %v3320 = vunpack.c.h.b16 %v673
    %v3321 = vunpack.c.l.b16 %v674
    %v3322 = vunpack.c.h.b16 %v674
    %v3323 = vunpack.c.l.b16 %v675
    %v3324 = vunpack.c.h.b16 %v675
    %v3325 = vunpack.c.l.b16 %v676
    %v3326 = vunpack.c.h.b16 %v676
    %v3327 = vunpack.c.l.b16 %v677
    %v3328 = vunpack.c.h.b16 %v677
    %v3329 = vunpack.c.l.b16 %v678
    %v3330 = vunpack.c.h.b16 %v678
    %v3331 = vunpack.c.l.b16 %v679
    %v3332 = vunpack.c.h.b16 %v679
    %v3333 = vunpack.c.l.b16 %v680
    %v3334 = vunpack.c.h.b16 %v680
    %v3335 = vunpack.c.l.b16 %v681
    %v3336 = vunpack.c.h.b16 %v681
    %v3337 = vunpack.c.l.b16 %v682
    %v3338 = vunpack.c.h.b16 %v682
    %v3339 = vunpack.c.l.b16 %v683
    %v3340 = vunpack.c.h.b16 %v683
    %v3341 = vunpack.c.l.b16 %v684
    %v3342 = vunpack.c.h.b16 %v684
    %v3343 = vunpack.c.l.b16 %v685
    %v3344 = vunpack.c.h.b16 %v685
    %v3345 = vunpack.c.l.b16 %v686
    %v3346 = vunpack.c.h.b16 %v686
    %v3347 = vunpack.c.l.b16 %v687
    %v3348 = vunpack.c.h.b16 %v687
    %v3349 = vunpack.c.l.b16 %v688
    %v3350 = vunpack.c.h.b16 %v688
    %v3351 = vunpack.c.l.b16 %v689
    %v3352 = vunpack.c.h.b16 %v689
    %v3353 = vunpack.c.l.b16 %v690
    %v3354 = vunpack.c.h.b16 %v690
    %v3355 = vunpack.c.l.b16 %v691
    %v3356 = vunpack.c.h.b16 %v691
    %v3357 = vunpack.c.l.b16 %v692
    %v3358 = vunpack.c.h.b16 %v692
    %v3359 = vunpack.c.l.b16 %v693
    %v3360 = vunpack.c.h.b16 %v693
    %v3361 = vunpack.c.l.b16 %v694
    %v3362 = vunpack.c.h.b16 %v694
    %v3363 = vunpack.c.l.b16 %v695
    %v3364 = vunpack.c.h.b16 %v695
    %v3365 = vunpack.c.l.b16 %v696
    %v3366 = vunpack.c.h.b16 %v696
    %v3367 = vunpack.c.l.b16 %v697
    %v3368 = vunpack.c.h.b16 %v697
    %v3369 = vunpack.c.l.b16 %v698
    %v3370 = vunpack.c.h.b16 %v698
    %v3371 = vunpack.c.l.b16 %v699
    %v3372 = vunpack.c.h.b16 %v699
    %v3373 = vunpack.c.l.b16 %v700
    %v3374 = vunpack.c.h.b16 %v700
    %v3375 = vunpack.c.l.b16 %v701
    %v3376 = vunpack.c.h.b16 %v701
    %v3377 = vunpack.c.l.b16 %v702
    %v3378 = vunpack.c.h.b16 %v702
    %v3379 = vunpack.c.l.b16 %v703
    %v3380 = vunpack.c.h.b16 %v703
    %v3381 = vunpack.c.l.b16 %v704
    %v3382 = vunpack.c.h.b16 %v704
    %v3383 = vunpack.c.l.b16 %v705
    %v3384 = vunpack.c.h.b16 %v705
    %v3385 = vunpack.c.l.b16 %v706
    %v3386 = vunpack.c.h.b16 %v706
    %v3387 = vunpack.c.l.b16 %v707
    %v3388 = vunpack.c.h.b16 %v707
    %v3389 = vunpack.c.l.b16 %v708
    %v3390 = vunpack.c.h.b16 %v708
    %v3391 = vunpack.c.l.b16 %v709
    %v3392 = vunpack.c.h.b16 %v709
    %v3393 = vunpack.c.l.b16 %v710
    %v3394 = vunpack.c.h.b16 %v710
    %v3395 = vunpack.c.l.b16 %v711
    %v3396 = vunpack.c.h.b16 %v711
    %v3397 = vunpack.c.l.b16 %v712
    %v3398 = vunpack.c.h.b16 %v712
    %v3399 = vunpack.c.l.b16 %v713
    %v3400 = vunpack.c.h.b16 %v713
    %v3401 = vunpack.c.l.b16 %v714
    %v3402 = vunpack.c.h.b16 %v714
    %v3403 = vunpack.c.l.b16 %v715
    %v3404 = vunpack.c.h.b16 %v715
    %v3405 = vunpack.c.l.b16 %v716
    %v3406 = vunpack.c.h.b16 %v716
    %v3407 = vunpack.c.l.b16 %v717
    %v3408 = vunpack.c.h.b16 %v717
    %v3409 = vunpack.c.l.b16 %v718
    %v3410 = vunpack.c.h.b16 %v718
    %v3411 = vunpack.c.l.b16 %v719
    %v3412 = vunpack.c.h.b16 %v719
    %v3413 = vunpack.c.l.b16 %v720
    %v3414 = vunpack.c.h.b16 %v720
    %v3415 = vunpack.c.l.b16 %v721
    %v3416 = vunpack.c.h.b16 %v721
    %v3417 = vunpack.c.l.b16 %v722
    %v3418 = vunpack.c.h.b16 %v722
    %v3419 = vunpack.c.l.b16 %v723
    %v3420 = vunpack.c.h.b16 %v723
    %v3421 = vunpack.c.l.b16 %v724
    %v3422 = vunpack.c.h.b16 %v724
    %v3423 = vunpack.c.l.b16 %v725
    %v3424 = vunpack.c.h.b16 %v725
    %v3425 = vunpack.c.l.b16 %v726
    %v3426 = vunpack.c.h.b16 %v726
    %v3427 = vunpack.c.l.b16 %v727
    %v3428 = vunpack.c.h.b16 %v727
    %v3429 = vunpack.c.l.b16 %v728
    %v3430 = vunpack.c.h.b16 %v728
    %v3431 = vunpack.c.l.b16 %v729
    %v3432 = vunpack.c.h.b16 %v729
    %v3433 = vunpack.c.l.b16 %v730
    %v3434 = vunpack.c.h.b16 %v730
    %v3435 = vunpack.c.l.b16 %v731
    %v3436 = vunpack.c.h.b16 %v731
    %v3437 = vunpack.c.l.b16 %v732
    %v3438 = vunpack.c.h.b16 %v732
    %v3439 = vunpack.c.l.b16 %v733
    %v3440 = vunpack.c.h.b16 %v733
    %v3441 = vunpack.c.l.b16 %v734
    %v3442 = vunpack.c.h.b16 %v734
    %v3443 = vunpack.c.l.b16 %v735
    %v3444 = vunpack.c.h.b16 %v735
    %v3445 = vunpack.c.l.b16 %v736
    %v3446 = vunpack.c.h.b16 %v736
    %v3447 = vunpack.c.l.b16 %v737
    %v3448 = vunpack.c.h.b16 %v737
    %v3449 = vunpack.c.l.b16 %v738
    %v3450 = vunpack.c.h.b16 %v738
    %v3451 = vunpack.c.l.b16 %v739
    %v3452 = vunpack.c.h.b16 %v739
    %v3453 = vunpack.c.l.b16 %v740
    %v3454 = vunpack.c.h.b16 %v740
    %v3455 = vunpack.c.l.b16 %v741
    %v3456 = vunpack.c.h.b16 %v741
    %v3457 = vunpack.c.l.b16 %v742
    %v3458 = vunpack.c.h.b16 %v742
    %v3459 = vunpack.c.l.b16 %v743
    %v3460 = vunpack.c.h.b16 %v743
    %v3461 = vunpack.c.l.b16 %v744
    %v3462 = vunpack.c.h.b16 %v744
    %v3463 = vunpack.c.l.b16 %v745
    %v3464 = vunpack.c.h.b16 %v745
    %v3465 = vunpack.c.l.b16 %v746
    %v3466 = vunpack.c.h.b16 %v746
    %v3467 = vunpack.c.l.b16 %v747
    %v3468 = vunpack.c.h.b16 %v747
    %v3469 = vunpack.c.l.b16 %v748
    %v3470 = vunpack.c.h.b16 %v748
    %v3471 = vunpack.c.l.b16 %v749
    %v3472 = vunpack.c.h.b16 %v749
    %v3473 = vunpack.c.l.b16 %v750
    %v3474 = vunpack.c.h.b16 %v750
    %v3475 = vunpack.c.l.b16 %v751
    %v3476 = vunpack.c.h.b16 %v751
    %v3477 = vunpack.c.l.b16 %v752
    %v3478 = vunpack.c.h.b16 %v752
    %v3479 = vunpack.c.l.b16 %v753
    %v3480 = vunpack.c.h.b16 %v753
    %v3481 = vunpack.c.l.b16 %v754
    %v3482 = vunpack.c.h.b16 %v754
    %v3483 = vunpack.c.l.b16 %v755
    %v3484 = vunpack.c.h.b16 %v755
    %v3485 = vunpack.c.l.b16 %v756
    %v3486 = vunpack.c.h.b16 %v756
    %v3487 = vunpack.c.l.b16 %v757
    %v3488 = vunpack.c.h.b16 %v757
    %v3489 = vunpack.c.l.b16 %v758
    %v3490 = vunpack.c.h.b16 %v758
    %v3491 = vunpack.c.l.b16 %v759
    %v3492 = vunpack.c.h.b16 %v759
    %v3493 = vunpack.c.l.b16 %v760
    %v3494 = vunpack.c.h.b16 %v760
    %v3495 = vunpack.c.l.b16 %v761
    %v3496 = vunpack.c.h.b16 %v761
    %v3497 = vunpack.c.l.b16 %v762
    %v3498 = vunpack.c.h.b16 %v762
    %v3499 = vunpack.c.l.b16 %v763
    %v3500 = vunpack.c.h.b16 %v763
    %v3501 = vunpack.c.l.b16 %v764
    %v3502 = vunpack.c.h.b16 %v764
    %v3503 = vunpack.c.l.b16 %v765
    %v3504 = vunpack.c.h.b16 %v765
    %v3505 = vunpack.c.l.b16 %v766
    %v3506 = vunpack.c.h.b16 %v766
    %v3507 = vunpack.c.l.b16 %v767
    %v3508 = vunpack.c.h.b16 %v767
    %v3509 = vunpack.c.l.b16 %v768
    %v3510 = vunpack.c.h.b16 %v768
    %v3511 = vunpack.c.l.b16 %v769
    %v3512 = vunpack.c.h.b16 %v769
    %v3513 = vunpack.c.l.b16 %v770
    %v3514 = vunpack.c.h.b16 %v770
    %v3515 = vunpack.c.l.b16 %v771
    %v3516 = vunpack.c.h.b16 %v771
    %v3517 = vunpack.c.l.b16 %v772
    %v3518 = vunpack.c.h.b16 %v772
    %v3519 = vunpack.c.l.b16 %v773
    %v3520 = vunpack.c.h.b16 %v773
    %v3521 = vunpack.c.l.b16 %v774
    %v3522 = vunpack.c.h.b16 %v774
    %v3523 = vunpack.c.l.b16 %v775
    %v3524 = vunpack.c.h.b16 %v775
    %v3525 = vunpack.c.l.b16 %v776
    %v3526 = vunpack.c.h.b16 %v776
    %v3527 = vunpack.c.l.b16 %v777
    %v3528 = vunpack.c.h.b16 %v777
    %v3529 = vunpack.c.l.b16 %v778
    %v3530 = vunpack.c.h.b16 %v778
    %v3531 = vunpack.c.l.b16 %v779
    %v3532 = vunpack.c.h.b16 %v779
    %v3533 = vunpack.c.l.b16 %v780
    %v3534 = vunpack.c.h.b16 %v780
    %v3535 = vunpack.c.l.b16 %v781
    %v3536 = vunpack.c.h.b16 %v781
    %v3537 = vunpack.c.l.b16 %v782
    %v3538 = vunpack.c.h.b16 %v782
    %v3539 = vunpack.c.l.b16 %v783
    %v3540 = vunpack.c.h.b16 %v783
    %v3541 = vunpack.c.l.b16 %v784
    %v3542 = vunpack.c.h.b16 %v784
    %v3543 = vunpack.c.l.b16 %v785
    %v3544 = vunpack.c.h.b16 %v785
    %v3545 = vunpack.c.l.b16 %v786
    %v3546 = vunpack.c.h.b16 %v786
    %v3547 = vunpack.c.l.b16 %v787
    %v3548 = vunpack.c.h.b16 %v787
    %v3549 = vunpack.c.l.b16 %v788
    %v3550 = vunpack.c.h.b16 %v788
    %v3551 = vunpack.c.l.b16 %v789
    %v3552 = vunpack.c.h.b16 %v789
    %v3553 = vunpack.c.l.b16 %v790
    %v3554 = vunpack.c.h.b16 %v790
    %v3555 = vunpack.c.l.b16 %v791
    %v3556 = vunpack.c.h.b16 %v791
    %v3557 = vunpack.c.l.b16 %v792
    %v3558 = vunpack.c.h.b16 %v792
    %v3559 = vunpack.c.l.b16 %v793
    %v3560 = vunpack.c.h.b16 %v793
    %v3561 = vunpack.c.l.b16 %v794
    %v3562 = vunpack.c.h.b16 %v794
    %v3563 = vunpack.c.l.b16 %v795
    %v3564 = vunpack.c.h.b16 %v795
    %v3565 = vunpack.c.l.b16 %v796
    %v3566 = vunpack.c.h.b16 %v796
    %v3567 = vunpack.c.l.b16 %v797
    %v3568 = vunpack.c.h.b16 %v797
    %v3569 = vunpack.c.l.b16 %v798
    %v3570 = vunpack.c.h.b16 %v798
    %v3571 = vunpack.c.l.b16 %v799
    %v3572 = vunpack.c.h.b16 %v799
    %v3573 = vunpack.c.l.b16 %v800
    %v3574 = vunpack.c.h.b16 %v800
    %v3575 = vunpack.c.l.b16 %v801
    %v3576 = vunpack.c.h.b16 %v801
    %v3577 = vunpack.c.l.b16 %v802
    %v3578 = vunpack.c.h.b16 %v802
    %v3579 = vunpack.c.l.b16 %v803
    %v3580 = vunpack.c.h.b16 %v803
    %v3581 = vunpack.c.l.b16 %v804
    %v3582 = vunpack.c.h.b16 %v804
    %v3583 = vunpack.c.l.b16 %v805
    %v3584 = vunpack.c.h.b16 %v805
    %v3585 = vunpack.c.l.b16 %v806
    %v3586 = vunpack.c.h.b16 %v806
    %v3587 = vunpack.c.l.b16 %v807
    %v3588 = vunpack.c.h.b16 %v807
    %v3589 = vunpack.c.l.b16 %v808
    %v3590 = vunpack.c.h.b16 %v808
    %v3591 = vunpack.c.l.b16 %v809
    %v3592 = vunpack.c.h.b16 %v809
    %v3593 = vunpack.c.l.b16 %v810
    %v3594 = vunpack.c.h.b16 %v810
    %v3595 = vunpack.c.l.b16 %v811
    %v3596 = vunpack.c.h.b16 %v811
    %v3597 = vunpack.c.l.b16 %v812
    %v3598 = vunpack.c.h.b16 %v812
    %v3599 = vunpack.c.l.b16 %v813
    %v3600 = vunpack.c.h.b16 %v813
    %v3601 = vunpack.c.l.b16 %v814
    %v3602 = vunpack.c.h.b16 %v814
    %v3603 = vunpack.c.l.b16 %v815
    %v3604 = vunpack.c.h.b16 %v815
    %v3605 = vunpack.c.l.b16 %v816
    %v3606 = vunpack.c.h.b16 %v816
    %v3607 = vunpack.c.l.b16 %v817
    %v3608 = vunpack.c.h.b16 %v817
    %v3609 = vunpack.c.l.b16 %v818
    %v3610 = vunpack.c.h.b16 %v818
    %v3611 = vunpack.c.l.b16 %v819
    %v3612 = vunpack.c.h.b16 %v819
    %v3613 = vunpack.c.l.b16 %v820
    %v3614 = vunpack.c.h.b16 %v820
    %v3615 = vunpack.c.l.b16 %v821
    %v3616 = vunpack.c.h.b16 %v821
    %v3617 = vunpack.c.l.b16 %v822
    %v3618 = vunpack.c.h.b16 %v822
    %v3619 = vunpack.c.l.b16 %v823
    %v3620 = vunpack.c.h.b16 %v823
    %v3621 = vunpack.c.l.b16 %v824
    %v3622 = vunpack.c.h.b16 %v824
    %v3623 = vunpack.c.l.b16 %v825
    %v3624 = vunpack.c.h.b16 %v825
    %v3625 = vunpack.c.l.b16 %v826
    %v3626 = vunpack.c.h.b16 %v826
    %v3627 = vunpack.c.l.b16 %v827
    %v3628 = vunpack.c.h.b16 %v827
    %v3629 = vunpack.c.l.b16 %v828
    %v3630 = vunpack.c.h.b16 %v828
    %v3631 = vunpack.c.l.b16 %v829
    %v3632 = vunpack.c.h.b16 %v829
    %v3633 = vunpack.c.l.b16 %v830
    %v3634 = vunpack.c.h.b16 %v830
    %v3635 = vunpack.c.l.b16 %v831
    %v3636 = vunpack.c.h.b16 %v831
    %v3637 = vunpack.c.l.b16 %v832
    %v3638 = vunpack.c.h.b16 %v832
    %v3639 = vunpack.c.l.b16 %v833
    %v3640 = vunpack.c.h.b16 %v833
    %v3641 = vunpack.c.l.b16 %v834
    %v3642 = vunpack.c.h.b16 %v834
    %v3643 = vunpack.c.l.b16 %v835
    %v3644 = vunpack.c.h.b16 %v835
    %v3645 = vunpack.c.l.b16 %v836
    %v3646 = vunpack.c.h.b16 %v836
    %v3647 = vunpack.c.l.b16 %v837
    %v3648 = vunpack.c.h.b16 %v837
    %v3649 = vunpack.c.l.b16 %v838
    %v3650 = vunpack.c.h.b16 %v838
    %v3651 = vunpack.c.l.b16 %v839
    %v3652 = vunpack.c.h.b16 %v839
    %v3653 = vunpack.c.l.b16 %v840
    %v3654 = vunpack.c.h.b16 %v840
    %v3655 = vunpack.c.l.b16 %v841
    %v3656 = vunpack.c.h.b16 %v841
    %v3657 = vunpack.c.l.b16 %v842
    %v3658 = vunpack.c.h.b16 %v842
    %v3659 = vunpack.c.l.b16 %v843
    %v3660 = vunpack.c.h.b16 %v843
    %v3661 = vunpack.c.l.b16 %v844
    %v3662 = vunpack.c.h.b16 %v844
    %v3663 = vunpack.c.l.b16 %v845
    %v3664 = vunpack.c.h.b16 %v845
    %v3665 = vunpack.c.l.b16 %v846
    %v3666 = vunpack.c.h.b16 %v846
    %v3667 = vunpack.c.l.b16 %v847
    %v3668 = vunpack.c.h.b16 %v847
    %v3669 = vunpack.c.l.b16 %v848
    %v3670 = vunpack.c.h.b16 %v848
    %v3671 = vunpack.c.l.b16 %v849
    %v3672 = vunpack.c.h.b16 %v849
    %v3673 = vunpack.c.l.b16 %v850
    %v3674 = vunpack.c.h.b16 %v850
    %v3675 = vunpack.c.l.b16 %v851
    %v3676 = vunpack.c.h.b16 %v851
    %v3677 = vunpack.c.l.b16 %v852
    %v3678 = vunpack.c.h.b16 %v852
    %v3679 = vunpack.c.l.b16 %v853
    %v3680 = vunpack.c.h.b16 %v853
    %v3681 = vunpack.c.l.b16 %v854
    %v3682 = vunpack.c.h.b16 %v854
    %v3683 = vunpack.c.l.b16 %v855
    %v3684 = vunpack.c.h.b16 %v855
    %v3685 = vunpack.c.l.b16 %v856
    %v3686 = vunpack.c.h.b16 %v856
    %v3687 = vunpack.c.l.b16 %v857
    %v3688 = vunpack.c.h.b16 %v857
    %v3689 = vunpack.c.l.b16 %v858
    %v3690 = vunpack.c.h.b16 %v858
    %v3691 = vunpack.c.l.b16 %v859
    %v3692 = vunpack.c.h.b16 %v859
    %v3693 = vunpack.c.l.b16 %v860
    %v3694 = vunpack.c.h.b16 %v860
    %v3695 = vunpack.c.l.b16 %v861
    %v3696 = vunpack.c.h.b16 %v861
    %v3697 = vunpack.c.l.b16 %v862
    %v3698 = vunpack.c.h.b16 %v862
    %v3699 = vunpack.c.l.b16 %v863
    %v3700 = vunpack.c.h.b16 %v863
    %v3701 = vunpack.c.l.b16 %v864
    %v3702 = vunpack.c.h.b16 %v864
    %v3703 = vunpack.c.l.b16 %v865
    %v3704 = vunpack.c.h.b16 %v865
    %v3705 = vunpack.c.l.b16 %v866
    %v3706 = vunpack.c.h.b16 %v866
    %v3707 = vunpack.c.l.b16 %v867
    %v3708 = vunpack.c.h.b16 %v867
    %v3709 = vunpack.c.l.b16 %v868
    %v3710 = vunpack.c.h.b16 %v868
    %v3711 = vunpack.c.l.b16 %v869
    %v3712 = vunpack.c.h.b16 %v869
    %v3713 = vunpack.c.l.b16 %v870
    %v3714 = vunpack.c.h.b16 %v870
    %v3715 = vunpack.c.l.b16 %v871
    %v3716 = vunpack.c.h.b16 %v871
    %v3717 = vunpack.c.l.b16 %v872
    %v3718 = vunpack.c.h.b16 %v872
    %v3719 = vunpack.c.l.b16 %v873
    %v3720 = vunpack.c.h.b16 %v873
    %v3721 = vunpack.c.l.b16 %v874
    %v3722 = vunpack.c.h.b16 %v874
    %v3723 = vunpack.c.l.b16 %v875
    %v3724 = vunpack.c.h.b16 %v875
    %v3725 = vunpack.c.l.b16 %v876
    %v3726 = vunpack.c.h.b16 %v876
    %v3727 = vunpack.c.l.b16 %v877
    %v3728 = vunpack.c.h.b16 %v877
    %v3729 = vunpack.c.l.b16 %v878
    %v3730 = vunpack.c.h.b16 %v878
    %v3731 = vunpack.c.l.b16 %v879
    %v3732 = vunpack.c.h.b16 %v879
    %v3733 = vunpack.c.l.b16 %v880
    %v3734 = vunpack.c.h.b16 %v880
    %v3735 = vunpack.c.l.b16 %v881
    %v3736 = vunpack.c.h.b16 %v881
    %v3737 = vunpack.c.l.b16 %v882
    %v3738 = vunpack.c.h.b16 %v882
    %v3739 = vunpack.c.l.b16 %v883
    %v3740 = vunpack.c.h.b16 %v883
    %v3741 = vunpack.c.l.b16 %v884
    %v3742 = vunpack.c.h.b16 %v884
    %v3743 = vunpack.c.l.b16 %v885
    %v3744 = vunpack.c.h.b16 %v885
    %v3745 = vunpack.c.l.b16 %v886
    %v3746 = vunpack.c.h.b16 %v886
    %v3747 = vunpack.c.l.b16 %v887
    %v3748 = vunpack.c.h.b16 %v887
    %v3749 = vunpack.c.l.b16 %v888
    %v3750 = vunpack.c.h.b16 %v888
    %v3751 = vunpack.c.l.b16 %v889
    %v3752 = vunpack.c.h.b16 %v889
    %v3753 = vunpack.c.l.b16 %v890
    %v3754 = vunpack.c.h.b16 %v890
    %v3755 = vunpack.c.l.b16 %v891
    %v3756 = vunpack.c.h.b16 %v891
    %v3757 = vunpack.c.l.b16 %v892
    %v3758 = vunpack.c.h.b16 %v892
    %v3759 = vunpack.c.l.b16 %v893
    %v3760 = vunpack.c.h.b16 %v893
    %v3761 = vunpack.c.l.b16 %v894
    %v3762 = vunpack.c.h.b16 %v894
    %v3763 = vunpack.c.l.b16 %v895
    %v3764 = vunpack.c.h.b16 %v895
    %v3765 = vunpack.c.l.b16 %v896
    %v3766 = vunpack.c.h.b16 %v896
    %v3767 = vunpack.c.l.b16 %v897
    %v3768 = vunpack.c.h.b16 %v897
    %v3769 = vunpack.c.l.b16 %v898
    %v3770 = vunpack.c.h.b16 %v898
    %v3771 = vunpack.c.l.b16 %v899
    %v3772 = vunpack.c.h.b16 %v899
    %v3773 = vunpack.c.l.b16 %v900
    %v3774 = vunpack.c.h.b16 %v900
    %v3775 = vunpack.c.l.b16 %v901
    %v3776 = vunpack.c.h.b16 %v901
    %v3777 = vunpack.c.l.b16 %v902
    %v3778 = vunpack.c.h.b16 %v902
    %v3779 = vunpack.c.l.b16 %v903
    %v3780 = vunpack.c.h.b16 %v903
    %v3781 = vunpack.c.l.b16 %v904
    %v3782 = vunpack.c.h.b16 %v904
    %v3783 = vunpack.c.l.b16 %v905
    %v3784 = vunpack.c.h.b16 %v905
    %v3785 = vunpack.c.l.b16 %v906
    %v3786 = vunpack.c.h.b16 %v906
    %v3787 = vunpack.c.l.b16 %v907
    %v3788 = vunpack.c.h.b16 %v907
    %v3789 = vunpack.c.l.b16 %v908
    %v3790 = vunpack.c.h.b16 %v908
    %v3791 = vunpack.c.l.b16 %v909
    %v3792 = vunpack.c.h.b16 %v909
    %v3793 = vunpack.c.l.b16 %v910
    %v3794 = vunpack.c.h.b16 %v910
    %v3795 = vunpack.c.l.b16 %v911
    %v3796 = vunpack.c.h.b16 %v911
    %v3797 = vunpack.c.l.b16 %v912
    %v3798 = vunpack.c.h.b16 %v912
    %v3799 = vunpack.c.l.b16 %v913
    %v3800 = vunpack.c.h.b16 %v913
    %v3801 = vunpack.c.l.b16 %v914
    %v3802 = vunpack.c.h.b16 %v914
    %v3803 = vunpack.c.l.b16 %v915
    %v3804 = vunpack.c.h.b16 %v915
    %v3805 = vunpack.c.l.b16 %v916
    %v3806 = vunpack.c.h.b16 %v916
    %v3807 = vunpack.c.l.b16 %v917
    %v3808 = vunpack.c.h.b16 %v917
    %v3809 = vunpack.c.l.b16 %v918
    %v3810 = vunpack.c.h.b16 %v918
    %v3811 = vunpack.c.l.b16 %v919
    %v3812 = vunpack.c.h.b16 %v919
    %v3813 = vunpack.c.l.b16 %v920
    %v3814 = vunpack.c.h.b16 %v920
    %v3815 = vunpack.c.l.b16 %v921
    %v3816 = vunpack.c.h.b16 %v921
    %v3817 = vunpack.c.l.b16 %v922
    %v3818 = vunpack.c.h.b16 %v922
    %v3819 = vunpack.c.l.b16 %v923
    %v3820 = vunpack.c.h.b16 %v923
    %v3821 = vunpack.c.l.b16 %v924
    %v3822 = vunpack.c.h.b16 %v924
    %v3823 = vunpack.c.l.b16 %v925
    %v3824 = vunpack.c.h.b16 %v925
    %v3825 = vunpack.c.l.b16 %v926
    %v3826 = vunpack.c.h.b16 %v926
    %v3827 = vunpack.c.l.b16 %v927
    %v3828 = vunpack.c.h.b16 %v927
    %v3829 = vunpack.c.l.b16 %v928
    %v3830 = vunpack.c.h.b16 %v928
    %v3831 = vunpack.c.l.b16 %v929
    %v3832 = vunpack.c.h.b16 %v929
    %v3833 = vunpack.c.l.b16 %v930
    %v3834 = vunpack.c.h.b16 %v930
    %v3835 = vunpack.c.l.b16 %v931
    %v3836 = vunpack.c.h.b16 %v931
    %v3837 = vunpack.c.l.b16 %v932
    %v3838 = vunpack.c.h.b16 %v932
    %v3839 = vunpack.c.l.b16 %v933
    %v3840 = vunpack.c.h.b16 %v933
    %v3841 = vunpack.c.l.b16 %v934
    %v3842 = vunpack.c.h.b16 %v934
    %v3843 = vunpack.c.l.b16 %v935
    %v3844 = vunpack.c.h.b16 %v935
    %v3845 = vunpack.c.l.b16 %v936
    %v3846 = vunpack.c.h.b16 %v936
    %v3847 = vunpack.c.l.b16 %v937
    %v3848 = vunpack.c.h.b16 %v937
    %v3849 = vunpack.c.l.b16 %v938
    %v3850 = vunpack.c.h.b16 %v938
    %v3851 = vunpack.c.l.b16 %v939
    %v3852 = vunpack.c.h.b16 %v939
    %v3853 = vunpack.c.l.b16 %v940
    %v3854 = vunpack.c.h.b16 %v940
    %v3855 = vunpack.c.l.b16 %v941
    %v3856 = vunpack.c.h.b16 %v941
    %v3857 = vunpack.c.l.b16 %v942
    %v3858 = vunpack.c.h.b16 %v942
    %v3859 = vunpack.c.l.b16 %v943
    %v3860 = vunpack.c.h.b16 %v943
    %v3861 = vunpack.c.l.b16 %v944
    %v3862 = vunpack.c.h.b16 %v944
    %v3863 = vunpack.c.l.b16 %v945
    %v3864 = vunpack.c.h.b16 %v945
    %v3865 = vunpack.c.l.b16 %v946
    %v3866 = vunpack.c.h.b16 %v946
    %v3867 = vunpack.c.l.b16 %v947
    %v3868 = vunpack.c.h.b16 %v947
    %v3869 = vunpack.c.l.b16 %v948
    %v3870 = vunpack.c.h.b16 %v948
    %v3871 = vunpack.c.l.b16 %v949
    %v3872 = vunpack.c.h.b16 %v949
    %v3873 = vunpack.c.l.b16 %v950
    %v3874 = vunpack.c.h.b16 %v950
    %v3875 = vunpack.c.l.b16 %v951
    %v3876 = vunpack.c.h.b16 %v951
    %v3877 = vunpack.c.l.b16 %v952
    %v3878 = vunpack.c.h.b16 %v952
    %v3879 = vunpack.c.l.b16 %v953
    %v3880 = vunpack.c.h.b16 %v953
    %v3881 = vunpack.c.l.b16 %v954
    %v3882 = vunpack.c.h.b16 %v954
    %v3883 = vunpack.c.l.b16 %v955
    %v3884 = vunpack.c.h.b16 %v955
    %v3885 = vunpack.c.l.b16 %v956
    %v3886 = vunpack.c.h.b16 %v956
    %v3887 = vunpack.c.l.b16 %v957
    %v3888 = vunpack.c.h.b16 %v957
    %v3889 = vunpack.c.l.b16 %v958
    %v3890 = vunpack.c.h.b16 %v958
    %v3891 = vunpack.c.l.b16 %v959
    %v3892 = vunpack.c.h.b16 %v959
    %v3893 = vunpack.c.l.b16 %v960
    %v3894 = vunpack.c.h.b16 %v960
    %v3895 = vunpack.c.l.b16 %v961
    %v3896 = vunpack.c.h.b16 %v961
    %v3897 = vunpack.c.l.b16 %v962
    %v3898 = vunpack.c.h.b16 %v962
    %v3899 = vunpack.c.l.b16 %v963
    %v3900 = vunpack.c.h.b16 %v963
    %v3901 = vunpack.c.l.b16 %v964
    %v3902 = vunpack.c.h.b16 %v964
    %v3903 = vunpack.c.l.b16 %v965
    %v3904 = vunpack.c.h.b16 %v965
    %v3905 = vunpack.c.l.b16 %v966
    %v3906 = vunpack.c.h.b16 %v966
    %v3907 = vunpack.c.l.b16 %v967
    %v3908 = vunpack.c.h.b16 %v967
    %v3909 = vunpack.c.l.b16 %v968
    %v3910 = vunpack.c.h.b16 %v968
    %v3911 = vunpack.c.l.b16 %v969
    %v3912 = vunpack.c.h.b16 %v969
    %v3913 = vunpack.c.l.b16 %v970
    %v3914 = vunpack.c.h.b16 %v970
    %v3915 = vunpack.c.l.b16 %v971
    %v3916 = vunpack.c.h.b16 %v971
    %v3917 = vunpack.c.l.b16 %v972
    %v3918 = vunpack.c.h.b16 %v972
    %v3919 = vunpack.c.l.b16 %v973
    %v3920 = vunpack.c.h.b16 %v973
    %v3921 = vunpack.c.l.b16 %v974
    %v3922 = vunpack.c.h.b16 %v974
    %v3923 = vunpack.c.l.b16 %v975
    %v3924 = vunpack.c.h.b16 %v975
    %v3925 = vunpack.c.l.b16 %v976
    %v3926 = vunpack.c.h.b16 %v976
    %v3927 = vunpack.c.l.b16 %v977
    %v3928 = vunpack.c.h.b16 %v977
    %v3929 = vunpack.c.l.b16 %v978
    %v3930 = vunpack.c.h.b16 %v978
    %v3931 = vunpack.c.l.b16 %v979
    %v3932 = vunpack.c.h.b16 %v979
    %v3933 = vunpack.c.l.b16 %v980
    %v3934 = vunpack.c.h.b16 %v980
    %v3935 = vunpack.c.l.b16 %v981
    %v3936 = vunpack.c.h.b16 %v981
    %v3937 = vunpack.c.l.b16 %v982
    %v3938 = vunpack.c.h.b16 %v982
    %v3939 = vunpack.c.l.b16 %v983
    %v3940 = vunpack.c.h.b16 %v983
    %v3941 = vunpack.c.l.b16 %v984
    %v3942 = vunpack.c.h.b16 %v984
    %v3943 = vunpack.c.l.b16 %v985
    %v3944 = vunpack.c.h.b16 %v985
    %v3945 = vunpack.c.l.b16 %v986
    %v3946 = vunpack.c.h.b16 %v986
    %v3947 = vunpack.c.l.b16 %v987
    %v3948 = vunpack.c.h.b16 %v987
    %v3949 = vunpack.c.l.b16 %v988
    %v3950 = vunpack.c.h.b16 %v988
    %v3951 = vunpack.c.l.b16 %v989
    %v3952 = vunpack.c.h.b16 %v989
    %v3953 = vunpack.c.l.b16 %v990
    %v3954 = vunpack.c.h.b16 %v990
    %v3955 = vunpack.c.l.b16 %v991
    %v3956 = vunpack.c.h.b16 %v991
    %v3957 = vunpack.c.l.b16 %v992
    %v3958 = vunpack.c.h.b16 %v992
    %v3959 = vunpack.c.l.b16 %v993
    %v3960 = vunpack.c.h.b16 %v993
    %v3961 = vunpack.c.l.b16 %v994
    %v3962 = vunpack.c.h.b16 %v994
    %v3963 = vunpack.c.l.b16 %v995
    %v3964 = vunpack.c.h.b16 %v995
    %v3965 = vunpack.c.l.b16 %v996
    %v3966 = vunpack.c.h.b16 %v996
    %v3967 = vunpack.c.l.b16 %v997
    %v3968 = vunpack.c.h.b16 %v997
    %v3969 = vunpack.c.l.b16 %v998
    %v3970 = vunpack.c.h.b16 %v998
    %v3971 = vunpack.c.l.b16 %v999
    %v3972 = vunpack.c.h.b16 %v999
    %v3973 = vunpack.c.l.b16 %v1000
    %v3974 = vunpack.c.h.b16 %v1000
    %v3975 = vunpack.c.l.b16 %v1001
    %v3976 = vunpack.c.h.b16 %v1001
    %v3977 = vunpack.c.l.b16 %v1002
    %v3978 = vunpack.c.h.b16 %v1002
    %v3979 = vunpack.c.l.b16 %v1003
    %v3980 = vunpack.c.h.b16 %v1003
    %v3981 = vunpack.c.l.b16 %v1004
    %v3982 = vunpack.c.h.b16 %v1004
    %v3983 = vunpack.c.l.b16 %v1005
    %v3984 = vunpack.c.h.b16 %v1005
    %v3985 = vunpack.c.l.b16 %v1006
    %v3986 = vunpack.c.h.b16 %v1006
    %v3987 = vunpack.c.l.b16 %v1007
    %v3988 = vunpack.c.h.b16 %v1007
    %v3989 = vunpack.c.l.b16 %v1008
    %v3990 = vunpack.c.h.b16 %v1008
    %v3991 = vunpack.c.l.b16 %v1009
    %v3992 = vunpack.c.h.b16 %v1009
    %v3993 = vunpack.c.l.b16 %v1010
    %v3994 = vunpack.c.h.b16 %v1010
    %v3995 = vunpack.c.l.b16 %v1011
    %v3996 = vunpack.c.h.b16 %v1011
    %v3997 = vunpack.c.l.b16 %v1012
    %v3998 = vunpack.c.h.b16 %v1012
    %v3999 = vunpack.c.l.b16 %v1013
    %v4000 = vunpack.c.h.b16 %v1013
    %v4001 = vunpack.c.l.b16 %v1014
    %v4002 = vunpack.c.h.b16 %v1014
    %v4003 = vunpack.c.l.b16 %v1015
    %v4004 = vunpack.c.h.b16 %v1015
    %v4005 = vunpack.c.l.b16 %v1016
    %v4006 = vunpack.c.h.b16 %v1016
    %v4007 = vunpack.c.l.b16 %v1017
    %v4008 = vunpack.c.h.b16 %v1017
    %v4009 = vunpack.c.l.b16 %v1018
    %v4010 = vunpack.c.h.b16 %v1018
    %v4011 = vunpack.c.l.b16 %v1019
    %v4012 = vunpack.c.h.b16 %v1019
    %v4013 = vunpack.c.l.b16 %v1020
    %v4014 = vunpack.c.h.b16 %v1020
    %v4015 = vunpack.c.l.b16 %v1021
    %v4016 = vunpack.c.h.b16 %v1021
    %v4017 = vunpack.c.l.b16 %v1022
    %v4018 = vunpack.c.h.b16 %v1022
    %v4019 = vunpack.c.l.b16 %v1023
    %v4020 = vunpack.c.h.b16 %v1023
    %v4021 = vunpack.c.l.b16 %v1024
    %v4022 = vunpack.c.h.b16 %v1024
    %v4023 = vunpack.c.l.b16 %v1025
    %v4024 = vunpack.c.h.b16 %v1025
    %v4025 = vunpack.c.l.b16 %v1026
    %v4026 = vunpack.c.h.b16 %v1026
    %v4027 = vunpack.c.l.b16 %v1027
    %v4028 = vunpack.c.h.b16 %v1027
    %v4029 = vunpack.c.l.b16 %v1028
    %v4030 = vunpack.c.h.b16 %v1028
    %v4031 = vunpack.c.l.b16 %v1029
    %v4032 = vunpack.c.h.b16 %v1029
    %v4033 = vunpack.c.l.b16 %v1030
    %v4034 = vunpack.c.h.b16 %v1030
    %v4035 = vunpack.c.l.b16 %v1031
    %v4036 = vunpack.c.h.b16 %v1031
    %v4037 = vunpack.c.l.b16 %v1032
    %v4038 = vunpack.c.h.b16 %v1032
    %v4039 = vunpack.c.l.b16 %v1033
    %v4040 = vunpack.c.h.b16 %v1033
    %v4041 = vunpack.c.l.b16 %v1034
    %v4042 = vunpack.c.h.b16 %v1034
    %v4043 = vunpack.c.l.b16 %v1035
    %v4044 = vunpack.c.h.b16 %v1035
    %v4045 = vunpack.c.l.b16 %v1036
    %v4046 = vunpack.c.h.b16 %v1036
    %v4047 = vunpack.c.l.b16 %v1037
    %v4048 = vunpack.c.h.b16 %v1037
    %v4049 = vunpack.c.l.b16 %v1038
    %v4050 = vunpack.c.h.b16 %v1038
    %v4051 = vunpack.c.l.b16 %v1039
    %v4052 = vunpack.c.h.b16 %v1039
    %v4053 = vunpack.c.l.b16 %v1040
    %v4054 = vunpack.c.h.b16 %v1040
    %v4055 = vunpack.c.l.b16 %v1041
    %v4056 = vunpack.c.h.b16 %v1041
    %v4057 = vunpack.c.l.b16 %v1042
    %v4058 = vunpack.c.h.b16 %v1042
    %v4059 = vunpack.c.l.b16 %v1043
    %v4060 = vunpack.c.h.b16 %v1043
    %v4061 = vunpack.c.l.b16 %v1044
    %v4062 = vunpack.c.h.b16 %v1044
    %v4063 = vunpack.c.l.b16 %v1045
    %v4064 = vunpack.c.h.b16 %v1045
    %v4065 = vunpack.c.l.b16 %v1046
    %v4066 = vunpack.c.h.b16 %v1046
    %v4067 = vunpack.c.l.b16 %v1047
    %v4068 = vunpack.c.h.b16 %v1047
    %v4069 = vunpack.c.l.b16 %v1048
    %v4070 = vunpack.c.h.b16 %v1048
    %v4071 = vunpack.c.l.b16 %v1049
    %v4072 = vunpack.c.h.b16 %v1049
    %v4073 = vunpack.c.l.b16 %v1050
    %v4074 = vunpack.c.h.b16 %v1050
    %v4075 = vunpack.c.l.b16 %v1051
    %v4076 = vunpack.c.h.b16 %v1051
    %v4077 = vunpack.c.l.b16 %v1052
    %v4078 = vunpack.c.h.b16 %v1052
    %v4079 = vunpack.c.l.b16 %v1053
    %v4080 = vunpack.c.h.b16 %v1053
    %v4081 = vunpack.c.l.b16 %v1054
    %v4082 = vunpack.c.h.b16 %v1054
    %v4083 = vunpack.c.l.b16 %v1055
    %v4084 = vunpack.c.h.b16 %v1055
    %v4085 = vunpack.c.l.b16 %v1056
    %v4086 = vunpack.c.h.b16 %v1056
    %v4087 = vunpack.c.l.b16 %v1057
    %v4088 = vunpack.c.h.b16 %v1057
    %v4089 = vunpack.c.l.b16 %v1058
    %v4090 = vunpack.c.h.b16 %v1058
    %v4091 = vunpack.c.l.b16 %v1059
    %v4092 = vunpack.c.h.b16 %v1059
    %v4093 = vunpack.c.l.b16 %v1060
    %v4094 = vunpack.c.h.b16 %v1060
    %v4095 = vunpack.c.l.b16 %v1061
    %v4096 = vunpack.c.h.b16 %v1061
    %v4097 = vunpack.c.l.b16 %v1062
    %v4098 = vunpack.c.h.b16 %v1062
    %v4099 = vunpack.c.l.b16 %v1063
    %v4100 = vunpack.c.h.b16 %v1063
    %v4101 = vunpack.c.l.b16 %v1064
    %v4102 = vunpack.c.h.b16 %v1064
    %v4103 = vunpack.c.l.b16 %v1065
    %v4104 = vunpack.c.h.b16 %v1065
    %v4105 = vunpack.c.l.b16 %v1066
    %v4106 = vunpack.c.h.b16 %v1066
    %v4107 = vunpack.c.l.b16 %v1067
    %v4108 = vunpack.c.h.b16 %v1067
    %v4109 = vunpack.c.l.b16 %v1068
    %v4110 = vunpack.c.h.b16 %v1068
    %v4111 = vunpack.c.l.b16 %v1069
    %v4112 = vunpack.c.h.b16 %v1069
    %v4113 = vunpack.c.l.b16 %v1070
    %v4114 = vunpack.c.h.b16 %v1070
    %v4115 = vunpack.c.l.b16 %v1071
    %v4116 = vunpack.c.h.b16 %v1071
    %v4117 = vunpack.c.l.b16 %v1072
    %v4118 = vunpack.c.h.b16 %v1072
    %v4119 = vunpack.c.l.b16 %v1073
    %v4120 = vunpack.c.h.b16 %v1073
    %v4121 = vunpack.c.l.b16 %v1074
    %v4122 = vunpack.c.h.b16 %v1074
    %v4123 = vunpack.c.l.b16 %v1075
    %v4124 = vunpack.c.h.b16 %v1075
    %v4125 = vunpack.c.l.b16 %v1076
    %v4126 = vunpack.c.h.b16 %v1076
    %v4127 = vunpack.c.l.b16 %v1077
    %v4128 = vunpack.c.h.b16 %v1077
    %v4129 = vunpack.c.l.b16 %v1078
    %v4130 = vunpack.c.h.b16 %v1078
    %v4131 = vunpack.c.l.b16 %v1079
    %v4132 = vunpack.c.h.b16 %v1079
    %v4133 = vunpack.c.l.b16 %v1080
    %v4134 = vunpack.c.h.b16 %v1080
    %v4135 = vunpack.c.l.b16 %v1081
    %v4136 = vunpack.c.h.b16 %v1081
    %v4137 = vunpack.c.l.b16 %v1082
    %v4138 = vunpack.c.h.b16 %v1082
    %v4139 = vunpack.c.l.b16 %v1083
    %v4140 = vunpack.c.h.b16 %v1083
    %v4141 = vunpack.c.l.b16 %v1084
    %v4142 = vunpack.c.h.b16 %v1084
    %v4143 = vunpack.c.l.b16 %v1085
    %v4144 = vunpack.c.h.b16 %v1085
    %v4145 = vunpack.c.l.b16 %v1086
    %v4146 = vunpack.c.h.b16 %v1086
    %v4147 = vunpack.c.l.b16 %v1087
    %v4148 = vunpack.c.h.b16 %v1087
    %v4149 = vunpack.c.l.b16 %v1088
    %v4150 = vunpack.c.h.b16 %v1088
    %v4151 = vunpack.c.l.b16 %v1089
    %v4152 = vunpack.c.h.b16 %v1089
    %v4153 = vunpack.c.l.b16 %v1090
    %v4154 = vunpack.c.h.b16 %v1090
    %v4155 = vunpack.c.l.b16 %v1091
    %v4156 = vunpack.c.h.b16 %v1091
    %v4157 = vunpack.c.l.b16 %v1092
    %v4158 = vunpack.c.h.b16 %v1092
    %v4159 = vunpack.c.l.b16 %v1093
    %v4160 = vunpack.c.h.b16 %v1093
    %v4161 = vunpack.c.l.b16 %v1094
    %v4162 = vunpack.c.h.b16 %v1094
    %v4163 = vunpack.c.l.b16 %v1095
    %v4164 = vunpack.c.h.b16 %v1095
    %v4165 = vunpack.c.l.b16 %v1096
    %v4166 = vunpack.c.h.b16 %v1096
    %v4167 = vunpack.c.l.b16 %v1097
    %v4168 = vunpack.c.h.b16 %v1097
    %v4169 = vunpack.c.l.b16 %v1098
    %v4170 = vunpack.c.h.b16 %v1098
    %v4171 = vunpack.c.l.b16 %v1099
    %v4172 = vunpack.c.h.b16 %v1099
    %v4173 = vunpack.c.l.b16 %v1100
    %v4174 = vunpack.c.h.b16 %v1100
    %v4175 = vunpack.c.l.b16 %v1101
    %v4176 = vunpack.c.h.b16 %v1101
    %v4177 = vunpack.c.l.b16 %v1102
    %v4178 = vunpack.c.h.b16 %v1102
    %v4179 = vunpack.c.l.b16 %v1103
    %v4180 = vunpack.c.h.b16 %v1103
    %v4181 = vunpack.c.l.b16 %v1104
    %v4182 = vunpack.c.h.b16 %v1104
    %v4183 = vunpack.c.l.b16 %v1105
    %v4184 = vunpack.c.h.b16 %v1105
    %v4185 = vunpack.c.l.b16 %v1106
    %v4186 = vunpack.c.h.b16 %v1106
    %v4187 = vunpack.c.l.b16 %v1107
    %v4188 = vunpack.c.h.b16 %v1107
    %v4189 = vunpack.c.l.b16 %v1108
    %v4190 = vunpack.c.h.b16 %v1108
    %v4191 = vunpack.c.l.b16 %v1109
    %v4192 = vunpack.c.h.b16 %v1109
    %v4193 = vunpack.c.l.b16 %v1110
    %v4194 = vunpack.c.h.b16 %v1110
    %v4195 = vunpack.c.l.b16 %v1111
    %v4196 = vunpack.c.h.b16 %v1111
    %v4197 = vunpack.c.l.b16 %v1112
    %v4198 = vunpack.c.h.b16 %v1112
    %v4199 = vunpack.c.l.b16 %v1113
    %v4200 = vunpack.c.h.b16 %v1113
    %v4201 = vunpack.c.l.b16 %v1114
    %v4202 = vunpack.c.h.b16 %v1114
    %v4203 = vunpack.c.l.b16 %v1115
    %v4204 = vunpack.c.h.b16 %v1115
    %v4205 = vunpack.c.l.b16 %v1116
    %v4206 = vunpack.c.h.b16 %v1116
    %v4207 = vunpack.c.l.b16 %v1117
    %v4208 = vunpack.c.h.b16 %v1117
    %v4209 = vunpack.c.l.b16 %v1118
    %v4210 = vunpack.c.h.b16 %v1118
    %v4211 = vunpack.c.l.b16 %v1119
    %v4212 = vunpack.c.h.b16 %v1119
    %v4213 = vunpack.c.l.b16 %v1120
    %v4214 = vunpack.c.h.b16 %v1120
    %v4215 = vunpack.c.l.b16 %v1121
    %v4216 = vunpack.c.h.b16 %v1121
    %v4217 = vunpack.c.l.b16 %v1122
    %v4218 = vunpack.c.h.b16 %v1122
    %v4219 = vunpack.c.l.b16 %v1123
    %v4220 = vunpack.c.h.b16 %v1123
    %v4221 = vunpack.c.l.b16 %v1124
    %v4222 = vunpack.c.h.b16 %v1124
    %v4223 = vunpack.c.l.b16 %v1125
    %v4224 = vunpack.c.h.b16 %v1125
    %v4225 = vunpack.c.l.b16 %v1126
    %v4226 = vunpack.c.h.b16 %v1126
    %v4227 = vpack.c.b16 %v2195, %v2179
    %v4228 = vpack.c.b16 %v2196, %v2180
    %v4229 = vpack.c.b16 %v2197, %v2181
    %v4230 = vpack.c.b16 %v2198, %v2182
    %v4231 = vpack.c.b16 %v2199, %v2183
    %v4232 = vpack.c.b16 %v2200, %v2184
    %v4233 = vpack.c.b16 %v2201, %v2185
    %v4234 = vpack.c.b16 %v2202, %v2186
    %v4235 = vpack.c.b16 %v2203, %v2187
    %v4236 = vpack.c.b16 %v2204, %v2188
    %v4237 = vpack.c.b16 %v2205, %v2189
    %v4238 = vpack.c.b16 %v2206, %v2190
    %v4239 = vpack.c.b16 %v2207, %v2191
    %v4240 = vpack.c.b16 %v2208, %v2192
    %v4241 = vpack.c.b16 %v2209, %v2193
    %v4242 = vpack.c.b16 %v2210, %v2194
    %v4243 = vpack.c.b16 %v2227, %v2211
    %v4244 = vpack.c.b16 %v2228, %v2212
    %v4245 = vpack.c.b16 %v2229, %v2213
    %v4246 = vpack.c.b16 %v2230, %v2214
    %v4247 = vpack.c.b16 %v2231, %v2215
    %v4248 = vpack.c.b16 %v2232, %v2216
    %v4249 = vpack.c.b16 %v2233, %v2217
    %v4250 = vpack.c.b16 %v2234, %v2218
    %v4251 = vpack.c.b16 %v2235, %v2219
    %v4252 = vpack.c.b16 %v2236, %v2220
    %v4253 = vpack.c.b16 %v2237, %v2221
    %v4254 = vpack.c.b16 %v2238, %v2222
    %v4255 = vpack.c.b16 %v2239, %v2223
    %v4256 = vpack.c.b16 %v2240, %v2224
    %v4257 = vpack.c.b16 %v2241, %v2225
    %v4258 = vpack.c.b16 %v2242, %v2226
    %v4259 = vpack.c.b16 %v2259, %v2243
    %v4260 = vpack.c.b16 %v2260, %v2244
    %v4261 = vpack.c.b16 %v2261, %v2245
    %v4262 = vpack.c.b16 %v2262, %v2246
    %v4263 = vpack.c.b16 %v2263, %v2247
    %v4264 = vpack.c.b16 %v2264, %v2248
    %v4265 = vpack.c.b16 %v2265, %v2249
    %v4266 = vpack.c.b16 %v2266, %v2250
    %v4267 = vpack.c.b16 %v2267, %v2251
    %v4268 = vpack.c.b16 %v2268, %v2252
    %v4269 = vpack.c.b16 %v2269, %v2253
    %v4270 = vpack.c.b16 %v2270, %v2254
    %v4271 = vpack.c.b16 %v2271, %v2255
    %v4272 = vpack.c.b16 %v2272, %v2256
    %v4273 = vpack.c.b16 %v2273, %v2257
    %v4274 = vpack.c.b16 %v2274, %v2258
    %v4275 = vpack.c.b16 %v2291, %v2275
    %v4276 = vpack.c.b16 %v2292, %v2276
    %v4277 = vpack.c.b16 %v2293, %v2277
    %v4278 = vpack.c.b16 %v2294, %v2278
    %v4279 = vpack.c.b16 %v2295, %v2279
    %v4280 = vpack.c.b16 %v2296, %v2280
    %v4281 = vpack.c.b16 %v2297, %v2281
    %v4282 = vpack.c.b16 %v2298, %v2282
    %v4283 = vpack.c.b16 %v2299, %v2283
    %v4284 = vpack.c.b16 %v2300, %v2284
    %v4285 = vpack.c.b16 %v2301, %v2285
    %v4286 = vpack.c.b16 %v2302, %v2286
    %v4287 = vpack.c.b16 %v2303, %v2287
    %v4288 = vpack.c.b16 %v2304, %v2288
    %v4289 = vpack.c.b16 %v2305, %v2289
    %v4290 = vpack.c.b16 %v2306, %v2290
    %v4291 = vpack.c.b16 %v2323, %v2307
    %v4292 = vpack.c.b16 %v2324, %v2308
    %v4293 = vpack.c.b16 %v2325, %v2309
    %v4294 = vpack.c.b16 %v2326, %v2310
    %v4295 = vpack.c.b16 %v2327, %v2311
    %v4296 = vpack.c.b16 %v2328, %v2312
    %v4297 = vpack.c.b16 %v2329, %v2313
    %v4298 = vpack.c.b16 %v2330, %v2314
    %v4299 = vpack.c.b16 %v2331, %v2315
    %v4300 = vpack.c.b16 %v2332, %v2316
    %v4301 = vpack.c.b16 %v2333, %v2317
    %v4302 = vpack.c.b16 %v2334, %v2318
    %v4303 = vpack.c.b16 %v2335, %v2319
    %v4304 = vpack.c.b16 %v2336, %v2320
    %v4305 = vpack.c.b16 %v2337, %v2321
    %v4306 = vpack.c.b16 %v2338, %v2322
    %v4307 = vpack.c.b16 %v2355, %v2339
    %v4308 = vpack.c.b16 %v2356, %v2340
    %v4309 = vpack.c.b16 %v2357, %v2341
    %v4310 = vpack.c.b16 %v2358, %v2342
    %v4311 = vpack.c.b16 %v2359, %v2343
    %v4312 = vpack.c.b16 %v2360, %v2344
    %v4313 = vpack.c.b16 %v2361, %v2345
    %v4314 = vpack.c.b16 %v2362, %v2346
    %v4315 = vpack.c.b16 %v2363, %v2347
    %v4316 = vpack.c.b16 %v2364, %v2348
    %v4317 = vpack.c.b16 %v2365, %v2349
    %v4318 = vpack.c.b16 %v2366, %v2350
    %v4319 = vpack.c.b16 %v2367, %v2351
    %v4320 = vpack.c.b16 %v2368, %v2352
    %v4321 = vpack.c.b16 %v2369, %v2353
    %v4322 = vpack.c.b16 %v2370, %v2354
    %v4323 = vpack.c.b16 %v2387, %v2371
    %v4324 = vpack.c.b16 %v2388, %v2372
    %v4325 = vpack.c.b16 %v2389, %v2373
    %v4326 = vpack.c.b16 %v2390, %v2374
    %v4327 = vpack.c.b16 %v2391, %v2375
    %v4328 = vpack.c.b16 %v2392, %v2376
    %v4329 = vpack.c.b16 %v2393, %v2377
    %v4330 = vpack.c.b16 %v2394, %v2378
    %v4331 = vpack.c.b16 %v2395, %v2379
    %v4332 = vpack.c.b16 %v2396, %v2380
    %v4333 = vpack.c.b16 %v2397, %v2381
    %v4334 = vpack.c.b16 %v2398, %v2382
    %v4335 = vpack.c.b16 %v2399, %v2383
    %v4336 = vpack.c.b16 %v2400, %v2384
    %v4337 = vpack.c.b16 %v2401, %v2385
    %v4338 = vpack.c.b16 %v2402, %v2386
    %v4339 = vpack.c.b16 %v2419, %v2403
    %v4340 = vpack.c.b16 %v2420, %v2404
    %v4341 = vpack.c.b16 %v2421, %v2405
    %v4342 = vpack.c.b16 %v2422, %v2406
    %v4343 = vpack.c.b16 %v2423, %v2407
    %v4344 = vpack.c.b16 %v2424, %v2408
    %v4345 = vpack.c.b16 %v2425, %v2409
    %v4346 = vpack.c.b16 %v2426, %v2410
    %v4347 = vpack.c.b16 %v2427, %v2411
    %v4348 = vpack.c.b16 %v2428, %v2412
    %v4349 = vpack.c.b16 %v2429, %v2413
    %v4350 = vpack.c.b16 %v2430, %v2414
    %v4351 = vpack.c.b16 %v2431, %v2415
    %v4352 = vpack.c.b16 %v2432, %v2416
    %v4353 = vpack.c.b16 %v2433, %v2417
    %v4354 = vpack.c.b16 %v2434, %v2418
    %v4355 = vpack.c.b16 %v2451, %v2435
    %v4356 = vpack.c.b16 %v2452, %v2436
    %v4357 = vpack.c.b16 %v2453, %v2437
    %v4358 = vpack.c.b16 %v2454, %v2438
    %v4359 = vpack.c.b16 %v2455, %v2439
    %v4360 = vpack.c.b16 %v2456, %v2440
    %v4361 = vpack.c.b16 %v2457, %v2441
    %v4362 = vpack.c.b16 %v2458, %v2442
    %v4363 = vpack.c.b16 %v2459, %v2443
    %v4364 = vpack.c.b16 %v2460, %v2444
    %v4365 = vpack.c.b16 %v2461, %v2445
    %v4366 = vpack.c.b16 %v2462, %v2446
    %v4367 = vpack.c.b16 %v2463, %v2447
    %v4368 = vpack.c.b16 %v2464, %v2448
    %v4369 = vpack.c.b16 %v2465, %v2449
    %v4370 = vpack.c.b16 %v2466, %v2450
    %v4371 = vpack.c.b16 %v2483, %v2467
    %v4372 = vpack.c.b16 %v2484, %v2468
    %v4373 = vpack.c.b16 %v2485, %v2469
    %v4374 = vpack.c.b16 %v2486, %v2470
    %v4375 = vpack.c.b16 %v2487, %v2471
    %v4376 = vpack.c.b16 %v2488, %v2472
    %v4377 = vpack.c.b16 %v2489, %v2473
    %v4378 = vpack.c.b16 %v2490, %v2474
    %v4379 = vpack.c.b16 %v2491, %v2475
    %v4380 = vpack.c.b16 %v2492, %v2476
    %v4381 = vpack.c.b16 %v2493, %v2477
    %v4382 = vpack.c.b16 %v2494, %v2478
    %v4383 = vpack.c.b16 %v2495, %v2479
    %v4384 = vpack.c.b16 %v2496, %v2480
    %v4385 = vpack.c.b16 %v2497, %v2481
    %v4386 = vpack.c.b16 %v2498, %v2482
    %v4387 = vpack.c.b16 %v2515, %v2499
    %v4388 = vpack.c.b16 %v2516, %v2500
    %v4389 = vpack.c.b16 %v2517, %v2501
    %v4390 = vpack.c.b16 %v2518, %v2502
    %v4391 = vpack.c.b16 %v2519, %v2503
    %v4392 = vpack.c.b16 %v2520, %v2504
    %v4393 = vpack.c.b16 %v2521, %v2505
    %v4394 = vpack.c.b16 %v2522, %v2506
    %v4395 = vpack.c.b16 %v2523, %v2507
    %v4396 = vpack.c.b16 %v2524, %v2508
    %v4397 = vpack.c.b16 %v2525, %v2509
    %v4398 = vpack.c.b16 %v2526, %v2510
    %v4399 = vpack.c.b16 %v2527, %v2511
    %v4400 = vpack.c.b16 %v2528, %v2512
    %v4401 = vpack.c.b16 %v2529, %v2513
    %v4402 = vpack.c.b16 %v2530, %v2514
    %v4403 = vpack.c.b16 %v2547, %v2531
    %v4404 = vpack.c.b16 %v2548, %v2532
    %v4405 = vpack.c.b16 %v2549, %v2533
    %v4406 = vpack.c.b16 %v2550, %v2534
    %v4407 = vpack.c.b16 %v2551, %v2535
    %v4408 = vpack.c.b16 %v2552, %v2536
    %v4409 = vpack.c.b16 %v2553, %v2537
    %v4410 = vpack.c.b16 %v2554, %v2538
    %v4411 = vpack.c.b16 %v2555, %v2539
    %v4412 = vpack.c.b16 %v2556, %v2540
    %v4413 = vpack.c.b16 %v2557, %v2541
    %v4414 = vpack.c.b16 %v2558, %v2542
    %v4415 = vpack.c.b16 %v2559, %v2543
    %v4416 = vpack.c.b16 %v2560, %v2544
    %v4417 = vpack.c.b16 %v2561, %v2545
    %v4418 = vpack.c.b16 %v2562, %v2546
    %v4419 = vpack.c.b16 %v2579, %v2563
    %v4420 = vpack.c.b16 %v2580, %v2564
    %v4421 = vpack.c.b16 %v2581, %v2565
    %v4422 = vpack.c.b16 %v2582, %v2566
    %v4423 = vpack.c.b16 %v2583, %v2567
    %v4424 = vpack.c.b16 %v2584, %v2568
    %v4425 = vpack.c.b16 %v2585, %v2569
    %v4426 = vpack.c.b16 %v2586, %v2570
    %v4427 = vpack.c.b16 %v2587, %v2571
    %v4428 = vpack.c.b16 %v2588, %v2572
    %v4429 = vpack.c.b16 %v2589, %v2573
    %v4430 = vpack.c.b16 %v2590, %v2574
    %v4431 = vpack.c.b16 %v2591, %v2575
    %v4432 = vpack.c.b16 %v2592, %v2576
    %v4433 = vpack.c.b16 %v2593, %v2577
    %v4434 = vpack.c.b16 %v2594, %v2578
    %v4435 = vpack.c.b16 %v2611, %v2595
    %v4436 = vpack.c.b16 %v2612, %v2596
    %v4437 = vpack.c.b16 %v2613, %v2597
    %v4438 = vpack.c.b16 %v2614, %v2598
    %v4439 = vpack.c.b16 %v2615, %v2599
    %v4440 = vpack.c.b16 %v2616, %v2600
    %v4441 = vpack.c.b16 %v2617, %v2601
    %v4442 = vpack.c.b16 %v2618, %v2602
    %v4443 = vpack.c.b16 %v2619, %v2603
    %v4444 = vpack.c.b16 %v2620, %v2604
    %v4445 = vpack.c.b16 %v2621, %v2605
    %v4446 = vpack.c.b16 %v2622, %v2606
    %v4447 = vpack.c.b16 %v2623, %v2607
    %v4448 = vpack.c.b16 %v2624, %v2608
    %v4449 = vpack.c.b16 %v2625, %v2609
    %v4450 = vpack.c.b16 %v2626, %v2610
    %v4451 = vpack.c.b16 %v2643, %v2627
    %v4452 = vpack.c.b16 %v2644, %v2628
    %v4453 = vpack.c.b16 %v2645, %v2629
    %v4454 = vpack.c.b16 %v2646, %v2630
    %v4455 = vpack.c.b16 %v2647, %v2631
    %v4456 = vpack.c.b16 %v2648, %v2632
    %v4457 = vpack.c.b16 %v2649, %v2633
    %v4458 = vpack.c.b16 %v2650, %v2634
    %v4459 = vpack.c.b16 %v2651, %v2635
    %v4460 = vpack.c.b16 %v2652, %v2636
    %v4461 = vpack.c.b16 %v2653, %v2637
    %v4462 = vpack.c.b16 %v2654, %v2638
    %v4463 = vpack.c.b16 %v2655, %v2639
    %v4464 = vpack.c.b16 %v2656, %v2640
    %v4465 = vpack.c.b16 %v2657, %v2641
    %v4466 = vpack.c.b16 %v2658, %v2642
    %v4467 = vpack.c.b16 %v2675, %v2659
    %v4468 = vpack.c.b16 %v2676, %v2660
    %v4469 = vpack.c.b16 %v2677, %v2661
    %v4470 = vpack.c.b16 %v2678, %v2662
    %v4471 = vpack.c.b16 %v2679, %v2663
    %v4472 = vpack.c.b16 %v2680, %v2664
    %v4473 = vpack.c.b16 %v2681, %v2665
    %v4474 = vpack.c.b16 %v2682, %v2666
    %v4475 = vpack.c.b16 %v2683, %v2667
    %v4476 = vpack.c.b16 %v2684, %v2668
    %v4477 = vpack.c.b16 %v2685, %v2669
    %v4478 = vpack.c.b16 %v2686, %v2670
    %v4479 = vpack.c.b16 %v2687, %v2671
    %v4480 = vpack.c.b16 %v2688, %v2672
    %v4481 = vpack.c.b16 %v2689, %v2673
    %v4482 = vpack.c.b16 %v2690, %v2674
    %v4483 = vpack.c.b16 %v2707, %v2691
    %v4484 = vpack.c.b16 %v2708, %v2692
    %v4485 = vpack.c.b16 %v2709, %v2693
    %v4486 = vpack.c.b16 %v2710, %v2694
    %v4487 = vpack.c.b16 %v2711, %v2695
    %v4488 = vpack.c.b16 %v2712, %v2696
    %v4489 = vpack.c.b16 %v2713, %v2697
    %v4490 = vpack.c.b16 %v2714, %v2698
    %v4491 = vpack.c.b16 %v2715, %v2699
    %v4492 = vpack.c.b16 %v2716, %v2700
    %v4493 = vpack.c.b16 %v2717, %v2701
    %v4494 = vpack.c.b16 %v2718, %v2702
    %v4495 = vpack.c.b16 %v2719, %v2703
    %v4496 = vpack.c.b16 %v2720, %v2704
    %v4497 = vpack.c.b16 %v2721, %v2705
    %v4498 = vpack.c.b16 %v2722, %v2706
    %v4499 = vpack.c.b16 %v2739, %v2723
    %v4500 = vpack.c.b16 %v2740, %v2724
    %v4501 = vpack.c.b16 %v2741, %v2725
    %v4502 = vpack.c.b16 %v2742, %v2726
    %v4503 = vpack.c.b16 %v2743, %v2727
    %v4504 = vpack.c.b16 %v2744, %v2728
    %v4505 = vpack.c.b16 %v2745, %v2729
    %v4506 = vpack.c.b16 %v2746, %v2730
    %v4507 = vpack.c.b16 %v2747, %v2731
    %v4508 = vpack.c.b16 %v2748, %v2732
    %v4509 = vpack.c.b16 %v2749, %v2733
    %v4510 = vpack.c.b16 %v2750, %v2734
    %v4511 = vpack.c.b16 %v2751, %v2735
    %v4512 = vpack.c.b16 %v2752, %v2736
    %v4513 = vpack.c.b16 %v2753, %v2737
    %v4514 = vpack.c.b16 %v2754, %v2738
    %v4515 = vpack.c.b16 %v2771, %v2755
    %v4516 = vpack.c.b16 %v2772, %v2756
    %v4517 = vpack.c.b16 %v2773, %v2757
    %v4518 = vpack.c.b16 %v2774, %v2758
    %v4519 = vpack.c.b16 %v2775, %v2759
    %v4520 = vpack.c.b16 %v2776, %v2760
    %v4521 = vpack.c.b16 %v2777, %v2761
    %v4522 = vpack.c.b16 %v2778, %v2762
    %v4523 = vpack.c.b16 %v2779, %v2763
    %v4524 = vpack.c.b16 %v2780, %v2764
    %v4525 = vpack.c.b16 %v2781, %v2765
    %v4526 = vpack.c.b16 %v2782, %v2766
    %v4527 = vpack.c.b16 %v2783, %v2767
    %v4528 = vpack.c.b16 %v2784, %v2768
    %v4529 = vpack.c.b16 %v2785, %v2769
    %v4530 = vpack.c.b16 %v2786, %v2770
    %v4531 = vpack.c.b16 %v2803, %v2787
    %v4532 = vpack.c.b16 %v2804, %v2788
    %v4533 = vpack.c.b16 %v2805, %v2789
    %v4534 = vpack.c.b16 %v2806, %v2790
    %v4535 = vpack.c.b16 %v2807, %v2791
    %v4536 = vpack.c.b16 %v2808, %v2792
    %v4537 = vpack.c.b16 %v2809, %v2793
    %v4538 = vpack.c.b16 %v2810, %v2794
    %v4539 = vpack.c.b16 %v2811, %v2795
    %v4540 = vpack.c.b16 %v2812, %v2796
    %v4541 = vpack.c.b16 %v2813, %v2797
    %v4542 = vpack.c.b16 %v2814, %v2798
    %v4543 = vpack.c.b16 %v2815, %v2799
    %v4544 = vpack.c.b16 %v2816, %v2800
    %v4545 = vpack.c.b16 %v2817, %v2801
    %v4546 = vpack.c.b16 %v2818, %v2802
    %v4547 = vpack.c.b16 %v2835, %v2819
    %v4548 = vpack.c.b16 %v2836, %v2820
    %v4549 = vpack.c.b16 %v2837, %v2821
    %v4550 = vpack.c.b16 %v2838, %v2822
    %v4551 = vpack.c.b16 %v2839, %v2823
    %v4552 = vpack.c.b16 %v2840, %v2824
    %v4553 = vpack.c.b16 %v2841, %v2825
    %v4554 = vpack.c.b16 %v2842, %v2826
    %v4555 = vpack.c.b16 %v2843, %v2827
    %v4556 = vpack.c.b16 %v2844, %v2828
    %v4557 = vpack.c.b16 %v2845, %v2829
    %v4558 = vpack.c.b16 %v2846, %v2830
    %v4559 = vpack.c.b16 %v2847, %v2831
    %v4560 = vpack.c.b16 %v2848, %v2832
    %v4561 = vpack.c.b16 %v2849, %v2833
    %v4562 = vpack.c.b16 %v2850, %v2834
    %v4563 = vpack.c.b16 %v2867, %v2851
    %v4564 = vpack.c.b16 %v2868, %v2852
    %v4565 = vpack.c.b16 %v2869, %v2853
    %v4566 = vpack.c.b16 %v2870, %v2854
    %v4567 = vpack.c.b16 %v2871, %v2855
    %v4568 = vpack.c.b16 %v2872, %v2856
    %v4569 = vpack.c.b16 %v2873, %v2857
    %v4570 = vpack.c.b16 %v2874, %v2858
    %v4571 = vpack.c.b16 %v2875, %v2859
    %v4572 = vpack.c.b16 %v2876, %v2860
    %v4573 = vpack.c.b16 %v2877, %v2861
    %v4574 = vpack.c.b16 %v2878, %v2862
    %v4575 = vpack.c.b16 %v2879, %v2863
    %v4576 = vpack.c.b16 %v2880, %v2864
    %v4577 = vpack.c.b16 %v2881, %v2865
    %v4578 = vpack.c.b16 %v2882, %v2866
    %v4579 = vpack.c.b16 %v2899, %v2883
    %v4580 = vpack.c.b16 %v2900, %v2884
    %v4581 = vpack.c.b16 %v2901, %v2885
    %v4582 = vpack.c.b16 %v2902, %v2886
    %v4583 = vpack.c.b16 %v2903, %v2887
    %v4584 = vpack.c.b16 %v2904, %v2888
    %v4585 = vpack.c.b16 %v2905, %v2889
    %v4586 = vpack.c.b16 %v2906, %v2890
    %v4587 = vpack.c.b16 %v2907, %v2891
    %v4588 = vpack.c.b16 %v2908, %v2892
    %v4589 = vpack.c.b16 %v2909, %v2893
    %v4590 = vpack.c.b16 %v2910, %v2894
    %v4591 = vpack.c.b16 %v2911, %v2895
    %v4592 = vpack.c.b16 %v2912, %v2896
    %v4593 = vpack.c.b16 %v2913, %v2897
    %v4594 = vpack.c.b16 %v2914, %v2898
    %v4595 = vpack.c.b16 %v2931, %v2915
    %v4596 = vpack.c.b16 %v2932, %v2916
    %v4597 = vpack.c.b16 %v2933, %v2917
    %v4598 = vpack.c.b16 %v2934, %v2918
    %v4599 = vpack.c.b16 %v2935, %v2919
    %v4600 = vpack.c.b16 %v2936, %v2920
    %v4601 = vpack.c.b16 %v2937, %v2921
    %v4602 = vpack.c.b16 %v2938, %v2922
    %v4603 = vpack.c.b16 %v2939, %v2923
    %v4604 = vpack.c.b16 %v2940, %v2924
    %v4605 = vpack.c.b16 %v2941, %v2925
    %v4606 = vpack.c.b16 %v2942, %v2926
    %v4607 = vpack.c.b16 %v2943, %v2927
    %v4608 = vpack.c.b16 %v2944, %v2928
    %v4609 = vpack.c.b16 %v2945, %v2929
    %v4610 = vpack.c.b16 %v2946, %v2930
    %v4611 = vpack.c.b16 %v2963, %v2947
    %v4612 = vpack.c.b16 %v2964, %v2948
    %v4613 = vpack.c.b16 %v2965, %v2949
    %v4614 = vpack.c.b16 %v2966, %v2950
    %v4615 = vpack.c.b16 %v2967, %v2951
    %v4616 = vpack.c.b16 %v2968, %v2952
    %v4617 = vpack.c.b16 %v2969, %v2953
    %v4618 = vpack.c.b16 %v2970, %v2954
    %v4619 = vpack.c.b16 %v2971, %v2955
    %v4620 = vpack.c.b16 %v2972, %v2956
    %v4621 = vpack.c.b16 %v2973, %v2957
    %v4622 = vpack.c.b16 %v2974, %v2958
    %v4623 = vpack.c.b16 %v2975, %v2959
    %v4624 = vpack.c.b16 %v2976, %v2960
    %v4625 = vpack.c.b16 %v2977, %v2961
    %v4626 = vpack.c.b16 %v2978, %v2962
    %v4627 = vpack.c.b16 %v2995, %v2979
    %v4628 = vpack.c.b16 %v2996, %v2980
    %v4629 = vpack.c.b16 %v2997, %v2981
    %v4630 = vpack.c.b16 %v2998, %v2982
    %v4631 = vpack.c.b16 %v2999, %v2983
    %v4632 = vpack.c.b16 %v3000, %v2984
    %v4633 = vpack.c.b16 %v3001, %v2985
    %v4634 = vpack.c.b16 %v3002, %v2986
    %v4635 = vpack.c.b16 %v3003, %v2987
    %v4636 = vpack.c.b16 %v3004, %v2988
    %v4637 = vpack.c.b16 %v3005, %v2989
    %v4638 = vpack.c.b16 %v3006, %v2990
    %v4639 = vpack.c.b16 %v3007, %v2991
    %v4640 = vpack.c.b16 %v3008, %v2992
    %v4641 = vpack.c.b16 %v3009, %v2993
    %v4642 = vpack.c.b16 %v3010, %v2994
    %v4643 = vpack.c.b16 %v3027, %v3011
    %v4644 = vpack.c.b16 %v3028, %v3012
    %v4645 = vpack.c.b16 %v3029, %v3013
    %v4646 = vpack.c.b16 %v3030, %v3014
    %v4647 = vpack.c.b16 %v3031, %v3015
    %v4648 = vpack.c.b16 %v3032, %v3016
    %v4649 = vpack.c.b16 %v3033, %v3017
    %v4650 = vpack.c.b16 %v3034, %v3018
    %v4651 = vpack.c.b16 %v3035, %v3019
    %v4652 = vpack.c.b16 %v3036, %v3020
    %v4653 = vpack.c.b16 %v3037, %v3021
    %v4654 = vpack.c.b16 %v3038, %v3022
    %v4655 = vpack.c.b16 %v3039, %v3023
    %v4656 = vpack.c.b16 %v3040, %v3024
    %v4657 = vpack.c.b16 %v3041, %v3025
    %v4658 = vpack.c.b16 %v3042, %v3026
    %v4659 = vpack.c.b16 %v3059, %v3043
    %v4660 = vpack.c.b16 %v3060, %v3044
    %v4661 = vpack.c.b16 %v3061, %v3045
    %v4662 = vpack.c.b16 %v3062, %v3046
    %v4663 = vpack.c.b16 %v3063, %v3047
    %v4664 = vpack.c.b16 %v3064, %v3048
    %v4665 = vpack.c.b16 %v3065, %v3049
    %v4666 = vpack.c.b16 %v3066, %v3050
    %v4667 = vpack.c.b16 %v3067, %v3051
    %v4668 = vpack.c.b16 %v3068, %v3052
    %v4669 = vpack.c.b16 %v3069, %v3053
    %v4670 = vpack.c.b16 %v3070, %v3054
    %v4671 = vpack.c.b16 %v3071, %v3055
    %v4672 = vpack.c.b16 %v3072, %v3056
    %v4673 = vpack.c.b16 %v3073, %v3057
    %v4674 = vpack.c.b16 %v3074, %v3058
    %v4675 = vpack.c.b16 %v3091, %v3075
    %v4676 = vpack.c.b16 %v3092, %v3076
    %v4677 = vpack.c.b16 %v3093, %v3077
    %v4678 = vpack.c.b16 %v3094, %v3078
    %v4679 = vpack.c.b16 %v3095, %v3079
    %v4680 = vpack.c.b16 %v3096, %v3080
    %v4681 = vpack.c.b16 %v3097, %v3081
    %v4682 = vpack.c.b16 %v3098, %v3082
    %v4683 = vpack.c.b16 %v3099, %v3083
    %v4684 = vpack.c.b16 %v3100, %v3084
    %v4685 = vpack.c.b16 %v3101, %v3085
    %v4686 = vpack.c.b16 %v3102, %v3086
    %v4687 = vpack.c.b16 %v3103, %v3087
    %v4688 = vpack.c.b16 %v3104, %v3088
    %v4689 = vpack.c.b16 %v3105, %v3089
    %v4690 = vpack.c.b16 %v3106, %v3090
    %v4691 = vpack.c.b16 %v3123, %v3107
    %v4692 = vpack.c.b16 %v3124, %v3108
    %v4693 = vpack.c.b16 %v3125, %v3109
    %v4694 = vpack.c.b16 %v3126, %v3110
    %v4695 = vpack.c.b16 %v3127, %v3111
    %v4696 = vpack.c.b16 %v3128, %v3112
    %v4697 = vpack.c.b16 %v3129, %v3113
    %v4698 = vpack.c.b16 %v3130, %v3114
    %v4699 = vpack.c.b16 %v3131, %v3115
    %v4700 = vpack.c.b16 %v3132, %v3116
    %v4701 = vpack.c.b16 %v3133, %v3117
    %v4702 = vpack.c.b16 %v3134, %v3118
    %v4703 = vpack.c.b16 %v3135, %v3119
    %v4704 = vpack.c.b16 %v3136, %v3120
    %v4705 = vpack.c.b16 %v3137, %v3121
    %v4706 = vpack.c.b16 %v3138, %v3122
    %v4707 = vpack.c.b16 %v3155, %v3139
    %v4708 = vpack.c.b16 %v3156, %v3140
    %v4709 = vpack.c.b16 %v3157, %v3141
    %v4710 = vpack.c.b16 %v3158, %v3142
    %v4711 = vpack.c.b16 %v3159, %v3143
    %v4712 = vpack.c.b16 %v3160, %v3144
    %v4713 = vpack.c.b16 %v3161, %v3145
    %v4714 = vpack.c.b16 %v3162, %v3146
    %v4715 = vpack.c.b16 %v3163, %v3147
    %v4716 = vpack.c.b16 %v3164, %v3148
    %v4717 = vpack.c.b16 %v3165, %v3149
    %v4718 = vpack.c.b16 %v3166, %v3150
    %v4719 = vpack.c.b16 %v3167, %v3151
    %v4720 = vpack.c.b16 %v3168, %v3152
    %v4721 = vpack.c.b16 %v3169, %v3153
    %v4722 = vpack.c.b16 %v3170, %v3154
    %v4723 = vpack.c.b16 %v3187, %v3171
    %v4724 = vpack.c.b16 %v3188, %v3172
    %v4725 = vpack.c.b16 %v3189, %v3173
    %v4726 = vpack.c.b16 %v3190, %v3174
    %v4727 = vpack.c.b16 %v3191, %v3175
    %v4728 = vpack.c.b16 %v3192, %v3176
    %v4729 = vpack.c.b16 %v3193, %v3177
    %v4730 = vpack.c.b16 %v3194, %v3178
    %v4731 = vpack.c.b16 %v3195, %v3179
    %v4732 = vpack.c.b16 %v3196, %v3180
    %v4733 = vpack.c.b16 %v3197, %v3181
    %v4734 = vpack.c.b16 %v3198, %v3182
    %v4735 = vpack.c.b16 %v3199, %v3183
    %v4736 = vpack.c.b16 %v3200, %v3184
    %v4737 = vpack.c.b16 %v3201, %v3185
    %v4738 = vpack.c.b16 %v3202, %v3186
    %v4739 = vpack.c.b16 %v3219, %v3203
    %v4740 = vpack.c.b16 %v3220, %v3204
    %v4741 = vpack.c.b16 %v3221, %v3205
    %v4742 = vpack.c.b16 %v3222, %v3206
    %v4743 = vpack.c.b16 %v3223, %v3207
    %v4744 = vpack.c.b16 %v3224, %v3208
    %v4745 = vpack.c.b16 %v3225, %v3209
    %v4746 = vpack.c.b16 %v3226, %v3210
    %v4747 = vpack.c.b16 %v3227, %v3211
    %v4748 = vpack.c.b16 %v3228, %v3212
    %v4749 = vpack.c.b16 %v3229, %v3213
    %v4750 = vpack.c.b16 %v3230, %v3214
    %v4751 = vpack.c.b16 %v3231, %v3215
    %v4752 = vpack.c.b16 %v3232, %v3216
    %v4753 = vpack.c.b16 %v3233, %v3217
    %v4754 = vpack.c.b16 %v3234, %v3218
    %v4755 = vpack.c.b16 %v3251, %v3235
    %v4756 = vpack.c.b16 %v3252, %v3236
    %v4757 = vpack.c.b16 %v3253, %v3237
    %v4758 = vpack.c.b16 %v3254, %v3238
    %v4759 = vpack.c.b16 %v3255, %v3239
    %v4760 = vpack.c.b16 %v3256, %v3240
    %v4761 = vpack.c.b16 %v3257, %v3241
    %v4762 = vpack.c.b16 %v3258, %v3242
    %v4763 = vpack.c.b16 %v3259, %v3243
    %v4764 = vpack.c.b16 %v3260, %v3244
    %v4765 = vpack.c.b16 %v3261, %v3245
    %v4766 = vpack.c.b16 %v3262, %v3246
    %v4767 = vpack.c.b16 %v3263, %v3247
    %v4768 = vpack.c.b16 %v3264, %v3248
    %v4769 = vpack.c.b16 %v3265, %v3249
    %v4770 = vpack.c.b16 %v3266, %v3250
    %v4771 = vpack.c.b16 %v3283, %v3267
    %v4772 = vpack.c.b16 %v3284, %v3268
    %v4773 = vpack.c.b16 %v3285, %v3269
    %v4774 = vpack.c.b16 %v3286, %v3270
    %v4775 = vpack.c.b16 %v3287, %v3271
    %v4776 = vpack.c.b16 %v3288, %v3272
    %v4777 = vpack.c.b16 %v3289, %v3273
    %v4778 = vpack.c.b16 %v3290, %v3274
    %v4779 = vpack.c.b16 %v3291, %v3275
    %v4780 = vpack.c.b16 %v3292, %v3276
    %v4781 = vpack.c.b16 %v3293, %v3277
    %v4782 = vpack.c.b16 %v3294, %v3278
    %v4783 = vpack.c.b16 %v3295, %v3279
    %v4784 = vpack.c.b16 %v3296, %v3280
    %v4785 = vpack.c.b16 %v3297, %v3281
    %v4786 = vpack.c.b16 %v3298, %v3282
    %v4787 = vpack.c.b16 %v3315, %v3299
    %v4788 = vpack.c.b16 %v3316, %v3300
    %v4789 = vpack.c.b16 %v3317, %v3301
    %v4790 = vpack.c.b16 %v3318, %v3302
    %v4791 = vpack.c.b16 %v3319, %v3303
    %v4792 = vpack.c.b16 %v3320, %v3304
    %v4793 = vpack.c.b16 %v3321, %v3305
    %v4794 = vpack.c.b16 %v3322, %v3306
    %v4795 = vpack.c.b16 %v3323, %v3307
    %v4796 = vpack.c.b16 %v3324, %v3308
    %v4797 = vpack.c.b16 %v3325, %v3309
    %v4798 = vpack.c.b16 %v3326, %v3310
    %v4799 = vpack.c.b16 %v3327, %v3311
    %v4800 = vpack.c.b16 %v3328, %v3312
    %v4801 = vpack.c.b16 %v3329, %v3313
    %v4802 = vpack.c.b16 %v3330, %v3314
    %v4803 = vpack.c.b16 %v3347, %v3331
    %v4804 = vpack.c.b16 %v3348, %v3332
    %v4805 = vpack.c.b16 %v3349, %v3333
    %v4806 = vpack.c.b16 %v3350, %v3334
    %v4807 = vpack.c.b16 %v3351, %v3335
    %v4808 = vpack.c.b16 %v3352, %v3336
    %v4809 = vpack.c.b16 %v3353, %v3337
    %v4810 = vpack.c.b16 %v3354, %v3338
    %v4811 = vpack.c.b16 %v3355, %v3339
    %v4812 = vpack.c.b16 %v3356, %v3340
    %v4813 = vpack.c.b16 %v3357, %v3341
    %v4814 = vpack.c.b16 %v3358, %v3342
    %v4815 = vpack.c.b16 %v3359, %v3343
    %v4816 = vpack.c.b16 %v3360, %v3344
    %v4817 = vpack.c.b16 %v3361, %v3345
    %v4818 = vpack.c.b16 %v3362, %v3346
    %v4819 = vpack.c.b16 %v3379, %v3363
    %v4820 = vpack.c.b16 %v3380, %v3364
    %v4821 = vpack.c.b16 %v3381, %v3365
    %v4822 = vpack.c.b16 %v3382, %v3366
    %v4823 = vpack.c.b16 %v3383, %v3367
    %v4824 = vpack.c.b16 %v3384, %v3368
    %v4825 = vpack.c.b16 %v3385, %v3369
    %v4826 = vpack.c.b16 %v3386, %v3370
    %v4827 = vpack.c.b16 %v3387, %v3371
    %v4828 = vpack.c.b16 %v3388, %v3372
    %v4829 = vpack.c.b16 %v3389, %v3373
    %v4830 = vpack.c.b16 %v3390, %v3374
    %v4831 = vpack.c.b16 %v3391, %v3375
    %v4832 = vpack.c.b16 %v3392, %v3376
    %v4833 = vpack.c.b16 %v3393, %v3377
    %v4834 = vpack.c.b16 %v3394, %v3378
    %v4835 = vpack.c.b16 %v3411, %v3395
    %v4836 = vpack.c.b16 %v3412, %v3396
    %v4837 = vpack.c.b16 %v3413, %v3397
    %v4838 = vpack.c.b16 %v3414, %v3398
    %v4839 = vpack.c.b16 %v3415, %v3399
    %v4840 = vpack.c.b16 %v3416, %v3400
    %v4841 = vpack.c.b16 %v3417, %v3401
    %v4842 = vpack.c.b16 %v3418, %v3402
    %v4843 = vpack.c.b16 %v3419, %v3403
    %v4844 = vpack.c.b16 %v3420, %v3404
    %v4845 = vpack.c.b16 %v3421, %v3405
    %v4846 = vpack.c.b16 %v3422, %v3406
    %v4847 = vpack.c.b16 %v3423, %v3407
    %v4848 = vpack.c.b16 %v3424, %v3408
    %v4849 = vpack.c.b16 %v3425, %v3409
    %v4850 = vpack.c.b16 %v3426, %v3410
    %v4851 = vpack.c.b16 %v3443, %v3427
    %v4852 = vpack.c.b16 %v3444, %v3428
    %v4853 = vpack.c.b16 %v3445, %v3429
    %v4854 = vpack.c.b16 %v3446, %v3430
    %v4855 = vpack.c.b16 %v3447, %v3431
    %v4856 = vpack.c.b16 %v3448, %v3432
    %v4857 = vpack.c.b16 %v3449, %v3433
    %v4858 = vpack.c.b16 %v3450, %v3434
    %v4859 = vpack.c.b16 %v3451, %v3435
    %v4860 = vpack.c.b16 %v3452, %v3436
    %v4861 = vpack.c.b16 %v3453, %v3437
    %v4862 = vpack.c.b16 %v3454, %v3438
    %v4863 = vpack.c.b16 %v3455, %v3439
    %v4864 = vpack.c.b16 %v3456, %v3440
    %v4865 = vpack.c.b16 %v3457, %v3441
    %v4866 = vpack.c.b16 %v3458, %v3442
    %v4867 = vpack.c.b16 %v3475, %v3459
    %v4868 = vpack.c.b16 %v3476, %v3460
    %v4869 = vpack.c.b16 %v3477, %v3461
    %v4870 = vpack.c.b16 %v3478, %v3462
    %v4871 = vpack.c.b16 %v3479, %v3463
    %v4872 = vpack.c.b16 %v3480, %v3464
    %v4873 = vpack.c.b16 %v3481, %v3465
    %v4874 = vpack.c.b16 %v3482, %v3466
    %v4875 = vpack.c.b16 %v3483, %v3467
    %v4876 = vpack.c.b16 %v3484, %v3468
    %v4877 = vpack.c.b16 %v3485, %v3469
    %v4878 = vpack.c.b16 %v3486, %v3470
    %v4879 = vpack.c.b16 %v3487, %v3471
    %v4880 = vpack.c.b16 %v3488, %v3472
    %v4881 = vpack.c.b16 %v3489, %v3473
    %v4882 = vpack.c.b16 %v3490, %v3474
    %v4883 = vpack.c.b16 %v3507, %v3491
    %v4884 = vpack.c.b16 %v3508, %v3492
    %v4885 = vpack.c.b16 %v3509, %v3493
    %v4886 = vpack.c.b16 %v3510, %v3494
    %v4887 = vpack.c.b16 %v3511, %v3495
    %v4888 = vpack.c.b16 %v3512, %v3496
    %v4889 = vpack.c.b16 %v3513, %v3497
    %v4890 = vpack.c.b16 %v3514, %v3498
    %v4891 = vpack.c.b16 %v3515, %v3499
    %v4892 = vpack.c.b16 %v3516, %v3500
    %v4893 = vpack.c.b16 %v3517, %v3501
    %v4894 = vpack.c.b16 %v3518, %v3502
    %v4895 = vpack.c.b16 %v3519, %v3503
    %v4896 = vpack.c.b16 %v3520, %v3504
    %v4897 = vpack.c.b16 %v3521, %v3505
    %v4898 = vpack.c.b16 %v3522, %v3506
    %v4899 = vpack.c.b16 %v3539, %v3523
    %v4900 = vpack.c.b16 %v3540, %v3524
    %v4901 = vpack.c.b16 %v3541, %v3525
    %v4902 = vpack.c.b16 %v3542, %v3526
    %v4903 = vpack.c.b16 %v3543, %v3527
    %v4904 = vpack.c.b16 %v3544, %v3528
    %v4905 = vpack.c.b16 %v3545, %v3529
    %v4906 = vpack.c.b16 %v3546, %v3530
    %v4907 = vpack.c.b16 %v3547, %v3531
    %v4908 = vpack.c.b16 %v3548, %v3532
    %v4909 = vpack.c.b16 %v3549, %v3533
    %v4910 = vpack.c.b16 %v3550, %v3534
    %v4911 = vpack.c.b16 %v3551, %v3535
    %v4912 = vpack.c.b16 %v3552, %v3536
    %v4913 = vpack.c.b16 %v3553, %v3537
    %v4914 = vpack.c.b16 %v3554, %v3538
    %v4915 = vpack.c.b16 %v3571, %v3555
    %v4916 = vpack.c.b16 %v3572, %v3556
    %v4917 = vpack.c.b16 %v3573, %v3557
    %v4918 = vpack.c.b16 %v3574, %v3558
    %v4919 = vpack.c.b16 %v3575, %v3559
    %v4920 = vpack.c.b16 %v3576, %v3560
    %v4921 = vpack.c.b16 %v3577, %v3561
    %v4922 = vpack.c.b16 %v3578, %v3562
    %v4923 = vpack.c.b16 %v3579, %v3563
    %v4924 = vpack.c.b16 %v3580, %v3564
    %v4925 = vpack.c.b16 %v3581, %v3565
    %v4926 = vpack.c.b16 %v3582, %v3566
    %v4927 = vpack.c.b16 %v3583, %v3567
    %v4928 = vpack.c.b16 %v3584, %v3568
    %v4929 = vpack.c.b16 %v3585, %v3569
    %v4930 = vpack.c.b16 %v3586, %v3570
    %v4931 = vpack.c.b16 %v3603, %v3587
    %v4932 = vpack.c.b16 %v3604, %v3588
    %v4933 = vpack.c.b16 %v3605, %v3589
    %v4934 = vpack.c.b16 %v3606, %v3590
    %v4935 = vpack.c.b16 %v3607, %v3591
    %v4936 = vpack.c.b16 %v3608, %v3592
    %v4937 = vpack.c.b16 %v3609, %v3593
    %v4938 = vpack.c.b16 %v3610, %v3594
    %v4939 = vpack.c.b16 %v3611, %v3595
    %v4940 = vpack.c.b16 %v3612, %v3596
    %v4941 = vpack.c.b16 %v3613, %v3597
    %v4942 = vpack.c.b16 %v3614, %v3598
    %v4943 = vpack.c.b16 %v3615, %v3599
    %v4944 = vpack.c.b16 %v3616, %v3600
    %v4945 = vpack.c.b16 %v3617, %v3601
    %v4946 = vpack.c.b16 %v3618, %v3602
    %v4947 = vpack.c.b16 %v3635, %v3619
    %v4948 = vpack.c.b16 %v3636, %v3620
    %v4949 = vpack.c.b16 %v3637, %v3621
    %v4950 = vpack.c.b16 %v3638, %v3622
    %v4951 = vpack.c.b16 %v3639, %v3623
    %v4952 = vpack.c.b16 %v3640, %v3624
    %v4953 = vpack.c.b16 %v3641, %v3625
    %v4954 = vpack.c.b16 %v3642, %v3626
    %v4955 = vpack.c.b16 %v3643, %v3627
    %v4956 = vpack.c.b16 %v3644, %v3628
    %v4957 = vpack.c.b16 %v3645, %v3629
    %v4958 = vpack.c.b16 %v3646, %v3630
    %v4959 = vpack.c.b16 %v3647, %v3631
    %v4960 = vpack.c.b16 %v3648, %v3632
    %v4961 = vpack.c.b16 %v3649, %v3633
    %v4962 = vpack.c.b16 %v3650, %v3634
    %v4963 = vpack.c.b16 %v3667, %v3651
    %v4964 = vpack.c.b16 %v3668, %v3652
    %v4965 = vpack.c.b16 %v3669, %v3653
    %v4966 = vpack.c.b16 %v3670, %v3654
    %v4967 = vpack.c.b16 %v3671, %v3655
    %v4968 = vpack.c.b16 %v3672, %v3656
    %v4969 = vpack.c.b16 %v3673, %v3657
    %v4970 = vpack.c.b16 %v3674, %v3658
    %v4971 = vpack.c.b16 %v3675, %v3659
    %v4972 = vpack.c.b16 %v3676, %v3660
    %v4973 = vpack.c.b16 %v3677, %v3661
    %v4974 = vpack.c.b16 %v3678, %v3662
    %v4975 = vpack.c.b16 %v3679, %v3663
    %v4976 = vpack.c.b16 %v3680, %v3664
    %v4977 = vpack.c.b16 %v3681, %v3665
    %v4978 = vpack.c.b16 %v3682, %v3666
    %v4979 = vpack.c.b16 %v3699, %v3683
    %v4980 = vpack.c.b16 %v3700, %v3684
    %v4981 = vpack.c.b16 %v3701, %v3685
    %v4982 = vpack.c.b16 %v3702, %v3686
    %v4983 = vpack.c.b16 %v3703, %v3687
    %v4984 = vpack.c.b16 %v3704, %v3688
    %v4985 = vpack.c.b16 %v3705, %v3689
    %v4986 = vpack.c.b16 %v3706, %v3690
    %v4987 = vpack.c.b16 %v3707, %v3691
    %v4988 = vpack.c.b16 %v3708, %v3692
    %v4989 = vpack.c.b16 %v3709, %v3693
    %v4990 = vpack.c.b16 %v3710, %v3694
    %v4991 = vpack.c.b16 %v3711, %v3695
    %v4992 = vpack.c.b16 %v3712, %v3696
    %v4993 = vpack.c.b16 %v3713, %v3697
    %v4994 = vpack.c.b16 %v3714, %v3698
    %v4995 = vpack.c.b16 %v3731, %v3715
    %v4996 = vpack.c.b16 %v3732, %v3716
    %v4997 = vpack.c.b16 %v3733, %v3717
    %v4998 = vpack.c.b16 %v3734, %v3718
    %v4999 = vpack.c.b16 %v3735, %v3719
    %v5000 = vpack.c.b16 %v3736, %v3720
    %v5001 = vpack.c.b16 %v3737, %v3721
    %v5002 = vpack.c.b16 %v3738, %v3722
    %v5003 = vpack.c.b16 %v3739, %v3723
    %v5004 = vpack.c.b16 %v3740, %v3724
    %v5005 = vpack.c.b16 %v3741, %v3725
    %v5006 = vpack.c.b16 %v3742, %v3726
    %v5007 = vpack.c.b16 %v3743, %v3727
    %v5008 = vpack.c.b16 %v3744, %v3728
    %v5009 = vpack.c.b16 %v3745, %v3729
    %v5010 = vpack.c.b16 %v3746, %v3730
    %v5011 = vpack.c.b16 %v3763, %v3747
    %v5012 = vpack.c.b16 %v3764, %v3748
    %v5013 = vpack.c.b16 %v3765, %v3749
    %v5014 = vpack.c.b16 %v3766, %v3750
    %v5015 = vpack.c.b16 %v3767, %v3751
    %v5016 = vpack.c.b16 %v3768, %v3752
    %v5017 = vpack.c.b16 %v3769, %v3753
    %v5018 = vpack.c.b16 %v3770, %v3754
    %v5019 = vpack.c.b16 %v3771, %v3755
    %v5020 = vpack.c.b16 %v3772, %v3756
    %v5021 = vpack.c.b16 %v3773, %v3757
    %v5022 = vpack.c.b16 %v3774, %v3758
    %v5023 = vpack.c.b16 %v3775, %v3759
    %v5024 = vpack.c.b16 %v3776, %v3760
    %v5025 = vpack.c.b16 %v3777, %v3761
    %v5026 = vpack.c.b16 %v3778, %v3762
    %v5027 = vpack.c.b16 %v3795, %v3779
    %v5028 = vpack.c.b16 %v3796, %v3780
    %v5029 = vpack.c.b16 %v3797, %v3781
    %v5030 = vpack.c.b16 %v3798, %v3782
    %v5031 = vpack.c.b16 %v3799, %v3783
    %v5032 = vpack.c.b16 %v3800, %v3784
    %v5033 = vpack.c.b16 %v3801, %v3785
    %v5034 = vpack.c.b16 %v3802, %v3786
    %v5035 = vpack.c.b16 %v3803, %v3787
    %v5036 = vpack.c.b16 %v3804, %v3788
    %v5037 = vpack.c.b16 %v3805, %v3789
    %v5038 = vpack.c.b16 %v3806, %v3790
    %v5039 = vpack.c.b16 %v3807, %v3791
    %v5040 = vpack.c.b16 %v3808, %v3792
    %v5041 = vpack.c.b16 %v3809, %v3793
    %v5042 = vpack.c.b16 %v3810, %v3794
    %v5043 = vpack.c.b16 %v3827, %v3811
    %v5044 = vpack.c.b16 %v3828, %v3812
    %v5045 = vpack.c.b16 %v3829, %v3813
    %v5046 = vpack.c.b16 %v3830, %v3814
    %v5047 = vpack.c.b16 %v3831, %v3815
    %v5048 = vpack.c.b16 %v3832, %v3816
    %v5049 = vpack.c.b16 %v3833, %v3817
    %v5050 = vpack.c.b16 %v3834, %v3818
    %v5051 = vpack.c.b16 %v3835, %v3819
    %v5052 = vpack.c.b16 %v3836, %v3820
    %v5053 = vpack.c.b16 %v3837, %v3821
    %v5054 = vpack.c.b16 %v3838, %v3822
    %v5055 = vpack.c.b16 %v3839, %v3823
    %v5056 = vpack.c.b16 %v3840, %v3824
    %v5057 = vpack.c.b16 %v3841, %v3825
    %v5058 = vpack.c.b16 %v3842, %v3826
    %v5059 = vpack.c.b16 %v3859, %v3843
    %v5060 = vpack.c.b16 %v3860, %v3844
    %v5061 = vpack.c.b16 %v3861, %v3845
    %v5062 = vpack.c.b16 %v3862, %v3846
    %v5063 = vpack.c.b16 %v3863, %v3847
    %v5064 = vpack.c.b16 %v3864, %v3848
    %v5065 = vpack.c.b16 %v3865, %v3849
    %v5066 = vpack.c.b16 %v3866, %v3850
    %v5067 = vpack.c.b16 %v3867, %v3851
    %v5068 = vpack.c.b16 %v3868, %v3852
    %v5069 = vpack.c.b16 %v3869, %v3853
    %v5070 = vpack.c.b16 %v3870, %v3854
    %v5071 = vpack.c.b16 %v3871, %v3855
    %v5072 = vpack.c.b16 %v3872, %v3856
    %v5073 = vpack.c.b16 %v3873, %v3857
    %v5074 = vpack.c.b16 %v3874, %v3858
    %v5075 = vpack.c.b16 %v3891, %v3875
    %v5076 = vpack.c.b16 %v3892, %v3876
    %v5077 = vpack.c.b16 %v3893, %v3877
    %v5078 = vpack.c.b16 %v3894, %v3878
    %v5079 = vpack.c.b16 %v3895, %v3879
    %v5080 = vpack.c.b16 %v3896, %v3880
    %v5081 = vpack.c.b16 %v3897, %v3881
    %v5082 = vpack.c.b16 %v3898, %v3882
    %v5083 = vpack.c.b16 %v3899, %v3883
    %v5084 = vpack.c.b16 %v3900, %v3884
    %v5085 = vpack.c.b16 %v3901, %v3885
    %v5086 = vpack.c.b16 %v3902, %v3886
    %v5087 = vpack.c.b16 %v3903, %v3887
    %v5088 = vpack.c.b16 %v3904, %v3888
    %v5089 = vpack.c.b16 %v3905, %v3889
    %v5090 = vpack.c.b16 %v3906, %v3890
    %v5091 = vpack.c.b16 %v3923, %v3907
    %v5092 = vpack.c.b16 %v3924, %v3908
    %v5093 = vpack.c.b16 %v3925, %v3909
    %v5094 = vpack.c.b16 %v3926, %v3910
    %v5095 = vpack.c.b16 %v3927, %v3911
    %v5096 = vpack.c.b16 %v3928, %v3912
    %v5097 = vpack.c.b16 %v3929, %v3913
    %v5098 = vpack.c.b16 %v3930, %v3914
    %v5099 = vpack.c.b16 %v3931, %v3915
    %v5100 = vpack.c.b16 %v3932, %v3916
    %v5101 = vpack.c.b16 %v3933, %v3917
    %v5102 = vpack.c.b16 %v3934, %v3918
    %v5103 = vpack.c.b16 %v3935, %v3919
    %v5104 = vpack.c.b16 %v3936, %v3920
    %v5105 = vpack.c.b16 %v3937, %v3921
    %v5106 = vpack.c.b16 %v3938, %v3922
    %v5107 = vpack.c.b16 %v3955, %v3939
    %v5108 = vpack.c.b16 %v3956, %v3940
    %v5109 = vpack.c.b16 %v3957, %v3941
    %v5110 = vpack.c.b16 %v3958, %v3942
    %v5111 = vpack.c.b16 %v3959, %v3943
    %v5112 = vpack.c.b16 %v3960, %v3944
    %v5113 = vpack.c.b16 %v3961, %v3945
    %v5114 = vpack.c.b16 %v3962, %v3946
    %v5115 = vpack.c.b16 %v3963, %v3947
    %v5116 = vpack.c.b16 %v3964, %v3948
    %v5117 = vpack.c.b16 %v3965, %v3949
    %v5118 = vpack.c.b16 %v3966, %v3950
    %v5119 = vpack.c.b16 %v3967, %v3951
    %v5120 = vpack.c.b16 %v3968, %v3952
    %v5121 = vpack.c.b16 %v3969, %v3953
    %v5122 = vpack.c.b16 %v3970, %v3954
    %v5123 = vpack.c.b16 %v3987, %v3971
    %v5124 = vpack.c.b16 %v3988, %v3972
    %v5125 = vpack.c.b16 %v3989, %v3973
    %v5126 = vpack.c.b16 %v3990, %v3974
    %v5127 = vpack.c.b16 %v3991, %v3975
    %v5128 = vpack.c.b16 %v3992, %v3976
    %v5129 = vpack.c.b16 %v3993, %v3977
    %v5130 = vpack.c.b16 %v3994, %v3978
    %v5131 = vpack.c.b16 %v3995, %v3979
    %v5132 = vpack.c.b16 %v3996, %v3980
    %v5133 = vpack.c.b16 %v3997, %v3981
    %v5134 = vpack.c.b16 %v3998, %v3982
    %v5135 = vpack.c.b16 %v3999, %v3983
    %v5136 = vpack.c.b16 %v4000, %v3984
    %v5137 = vpack.c.b16 %v4001, %v3985
    %v5138 = vpack.c.b16 %v4002, %v3986
    %v5139 = vpack.c.b16 %v4019, %v4003
    %v5140 = vpack.c.b16 %v4020, %v4004
    %v5141 = vpack.c.b16 %v4021, %v4005
    %v5142 = vpack.c.b16 %v4022, %v4006
    %v5143 = vpack.c.b16 %v4023, %v4007
    %v5144 = vpack.c.b16 %v4024, %v4008
    %v5145 = vpack.c.b16 %v4025, %v4009
    %v5146 = vpack.c.b16 %v4026, %v4010
    %v5147 = vpack.c.b16 %v4027, %v4011
    %v5148 = vpack.c.b16 %v4028, %v4012
    %v5149 = vpack.c.b16 %v4029, %v4013
    %v5150 = vpack.c.b16 %v4030, %v4014
    %v5151 = vpack.c.b16 %v4031, %v4015
    %v5152 = vpack.c.b16 %v4032, %v4016
    %v5153 = vpack.c.b16 %v4033, %v4017
    %v5154 = vpack.c.b16 %v4034, %v4018
    %v5155 = vpack.c.b16 %v4051, %v4035
    %v5156 = vpack.c.b16 %v4052, %v4036
    %v5157 = vpack.c.b16 %v4053, %v4037
    %v5158 = vpack.c.b16 %v4054, %v4038
    %v5159 = vpack.c.b16 %v4055, %v4039
    %v5160 = vpack.c.b16 %v4056, %v4040
    %v5161 = vpack.c.b16 %v4057, %v4041
    %v5162 = vpack.c.b16 %v4058, %v4042
    %v5163 = vpack.c.b16 %v4059, %v4043
    %v5164 = vpack.c.b16 %v4060, %v4044
    %v5165 = vpack.c.b16 %v4061, %v4045
    %v5166 = vpack.c.b16 %v4062, %v4046
    %v5167 = vpack.c.b16 %v4063, %v4047
    %v5168 = vpack.c.b16 %v4064, %v4048
    %v5169 = vpack.c.b16 %v4065, %v4049
    %v5170 = vpack.c.b16 %v4066, %v4050
    %v5171 = vpack.c.b16 %v4083, %v4067
    %v5172 = vpack.c.b16 %v4084, %v4068
    %v5173 = vpack.c.b16 %v4085, %v4069
    %v5174 = vpack.c.b16 %v4086, %v4070
    %v5175 = vpack.c.b16 %v4087, %v4071
    %v5176 = vpack.c.b16 %v4088, %v4072
    %v5177 = vpack.c.b16 %v4089, %v4073
    %v5178 = vpack.c.b16 %v4090, %v4074
    %v5179 = vpack.c.b16 %v4091, %v4075
    %v5180 = vpack.c.b16 %v4092, %v4076
    %v5181 = vpack.c.b16 %v4093, %v4077
    %v5182 = vpack.c.b16 %v4094, %v4078
    %v5183 = vpack.c.b16 %v4095, %v4079
    %v5184 = vpack.c.b16 %v4096, %v4080
    %v5185 = vpack.c.b16 %v4097, %v4081
    %v5186 = vpack.c.b16 %v4098, %v4082
    %v5187 = vpack.c.b16 %v4115, %v4099
    %v5188 = vpack.c.b16 %v4116, %v4100
    %v5189 = vpack.c.b16 %v4117, %v4101
    %v5190 = vpack.c.b16 %v4118, %v4102
    %v5191 = vpack.c.b16 %v4119, %v4103
    %v5192 = vpack.c.b16 %v4120, %v4104
    %v5193 = vpack.c.b16 %v4121, %v4105
    %v5194 = vpack.c.b16 %v4122, %v4106
    %v5195 = vpack.c.b16 %v4123, %v4107
    %v5196 = vpack.c.b16 %v4124, %v4108
    %v5197 = vpack.c.b16 %v4125, %v4109
    %v5198 = vpack.c.b16 %v4126, %v4110
    %v5199 = vpack.c.b16 %v4127, %v4111
    %v5200 = vpack.c.b16 %v4128, %v4112
    %v5201 = vpack.c.b16 %v4129, %v4113
    %v5202 = vpack.c.b16 %v4130, %v4114
    %v5203 = vpack.c.b16 %v4147, %v4131
    %v5204 = vpack.c.b16 %v4148, %v4132
    %v5205 = vpack.c.b16 %v4149, %v4133
    %v5206 = vpack.c.b16 %v4150, %v4134
    %v5207 = vpack.c.b16 %v4151, %v4135
    %v5208 = vpack.c.b16 %v4152, %v4136
    %v5209 = vpack.c.b16 %v4153, %v4137
    %v5210 = vpack.c.b16 %v4154, %v4138
    %v5211 = vpack.c.b16 %v4155, %v4139
    %v5212 = vpack.c.b16 %v4156, %v4140
    %v5213 = vpack.c.b16 %v4157, %v4141
    %v5214 = vpack.c.b16 %v4158, %v4142
    %v5215 = vpack.c.b16 %v4159, %v4143
    %v5216 = vpack.c.b16 %v4160, %v4144
    %v5217 = vpack.c.b16 %v4161, %v4145
    %v5218 = vpack.c.b16 %v4162, %v4146
    %v5219 = vpack.c.b16 %v4179, %v4163
    %v5220 = vpack.c.b16 %v4180, %v4164
    %v5221 = vpack.c.b16 %v4181, %v4165
    %v5222 = vpack.c.b16 %v4182, %v4166
    %v5223 = vpack.c.b16 %v4183, %v4167
    %v5224 = vpack.c.b16 %v4184, %v4168
    %v5225 = vpack.c.b16 %v4185, %v4169
    %v5226 = vpack.c.b16 %v4186, %v4170
    %v5227 = vpack.c.b16 %v4187, %v4171
    %v5228 = vpack.c.b16 %v4188, %v4172
    %v5229 = vpack.c.b16 %v4189, %v4173
    %v5230 = vpack.c.b16 %v4190, %v4174
    %v5231 = vpack.c.b16 %v4191, %v4175
    %v5232 = vpack.c.b16 %v4192, %v4176
    %v5233 = vpack.c.b16 %v4193, %v4177
    %v5234 = vpack.c.b16 %v4194, %v4178
    %v5235 = vpack.c.b16 %v4211, %v4195
    %v5236 = vpack.c.b16 %v4212, %v4196
    %v5237 = vpack.c.b16 %v4213, %v4197
    %v5238 = vpack.c.b16 %v4214, %v4198
    %v5239 = vpack.c.b16 %v4215, %v4199
    %v5240 = vpack.c.b16 %v4216, %v4200
    %v5241 = vpack.c.b16 %v4217, %v4201
    %v5242 = vpack.c.b16 %v4218, %v4202
    %v5243 = vpack.c.b16 %v4219, %v4203
    %v5244 = vpack.c.b16 %v4220, %v4204
    %v5245 = vpack.c.b16 %v4221, %v4205
    %v5246 = vpack.c.b16 %v4222, %v4206
    %v5247 = vpack.c.b16 %v4223, %v4207
    %v5248 = vpack.c.b16 %v4224, %v4208
    %v5249 = vpack.c.b16 %v4225, %v4209
    %v5250 = vpack.c.b16 %v4226, %v4210
    %6275 = vmatpush.bf16.msra.mxu0 %v4339
    %6276 = vmatpush.bf16.msra.mxu0 %v4323
    %6277 = vmatpush.bf16.msra.mxu0 %v4307
    %6278 = vmatpush.bf16.msra.mxu0 %v4291
    %6279 = vmatpush.bf16.msra.mxu0 %v4275
    %6280 = vmatpush.bf16.msra.mxu0 %v4259
    %6281 = vmatpush.bf16.msra.mxu0 %v4243
    %6282 = vmatpush.bf16.msra.mxu0 %v4227
    %6283 = vmatmul.bf16.gmra.mxu0 %v1139
    %v6284 = vpop.f32.mrf.mxu0
    %v6285 = vadd.f32 0.0, %v6284
    %v6286 = vpop.f32.mrf.mxu0
    %6287 = vdwg.mxu0
    %6288 = vmatpush.bf16.msra.mxu0 %v4467
    %6289 = vmatpush.bf16.msra.mxu0 %v4451
    %6290 = vmatpush.bf16.msra.mxu0 %v4435
    %6291 = vmatpush.bf16.msra.mxu0 %v4419
    %6292 = vmatpush.bf16.msra.mxu0 %v4403
    %6293 = vmatpush.bf16.msra.mxu0 %v4387
    %6294 = vmatpush.bf16.msra.mxu0 %v4371
    %6295 = vmatpush.bf16.msra.mxu0 %v4355
    %6296 = vmatmul.bf16.gmra.mxu0 %v1140
    %v6297 = vpop.f32.mrf.mxu0
    %v6298 = vadd.f32 %v6285, %v6297
    %v6299 = vpop.f32.mrf.mxu0
    %6300 = vdwg.mxu0
    %6301 = vmatpush.bf16.msra.mxu0 %v4595
    %6302 = vmatpush.bf16.msra.mxu0 %v4579
    %6303 = vmatpush.bf16.msra.mxu0 %v4563
    %6304 = vmatpush.bf16.msra.mxu0 %v4547
    %6305 = vmatpush.bf16.msra.mxu0 %v4531
    %6306 = vmatpush.bf16.msra.mxu0 %v4515
    %6307 = vmatpush.bf16.msra.mxu0 %v4499
    %6308 = vmatpush.bf16.msra.mxu0 %v4483
    %6309 = vmatmul.bf16.gmra.mxu0 %v1141
    %v6310 = vpop.f32.mrf.mxu0
    %v6311 = vadd.f32 %v6298, %v6310
    %v6312 = vpop.f32.mrf.mxu0
    %6313 = vdwg.mxu0
    %6314 = vmatpush.bf16.msra.mxu0 %v4723
    %6315 = vmatpush.bf16.msra.mxu0 %v4707
    %6316 = vmatpush.bf16.msra.mxu0 %v4691
    %6317 = vmatpush.bf16.msra.mxu0 %v4675
    %6318 = vmatpush.bf16.msra.mxu0 %v4659
    %6319 = vmatpush.bf16.msra.mxu0 %v4643
    %6320 = vmatpush.bf16.msra.mxu0 %v4627
    %6321 = vmatpush.bf16.msra.mxu0 %v4611
    %6322 = vmatmul.bf16.gmra.mxu0 %v1142
    %v6323 = vpop.f32.mrf.mxu0
    %v6324 = vadd.f32 %v6311, %v6323
    %v6325 = vpop.f32.mrf.mxu0
    %6326 = vdwg.mxu0
    %6327 = vmatpush.bf16.msra.mxu0 %v4851
    %6328 = vmatpush.bf16.msra.mxu0 %v4835
    %6329 = vmatpush.bf16.msra.mxu0 %v4819
    %6330 = vmatpush.bf16.msra.mxu0 %v4803
    %6331 = vmatpush.bf16.msra.mxu0 %v4787
    %6332 = vmatpush.bf16.msra.mxu0 %v4771
    %6333 = vmatpush.bf16.msra.mxu0 %v4755
    %6334 = vmatpush.bf16.msra.mxu0 %v4739
    %6335 = vmatmul.bf16.gmra.mxu0 %v1143
    %v6336 = vpop.f32.mrf.mxu0
    %v6337 = vadd.f32 %v6324, %v6336
    %v6338 = vpop.f32.mrf.mxu0
    %6339 = vdwg.mxu0
    %6340 = vmatpush.bf16.msra.mxu0 %v4979
    %6341 = vmatpush.bf16.msra.mxu0 %v4963
    %6342 = vmatpush.bf16.msra.mxu0 %v4947
    %6343 = vmatpush.bf16.msra.mxu0 %v4931
    %6344 = vmatpush.bf16.msra.mxu0 %v4915
    %6345 = vmatpush.bf16.msra.mxu0 %v4899
    %6346 = vmatpush.bf16.msra.mxu0 %v4883
    %6347 = vmatpush.bf16.msra.mxu0 %v4867
    %6348 = vmatmul.bf16.gmra.mxu0 %v1144
    %v6349 = vpop.f32.mrf.mxu0
    %v6350 = vadd.f32 %v6337, %v6349
    %v6351 = vpop.f32.mrf.mxu0
    %6352 = vdwg.mxu0
    %6353 = vmatpush.bf16.msra.mxu0 %v5107
    %6354 = vmatpush.bf16.msra.mxu0 %v5091
    %6355 = vmatpush.bf16.msra.mxu0 %v5075
    %6356 = vmatpush.bf16.msra.mxu0 %v5059
    %6357 = vmatpush.bf16.msra.mxu0 %v5043
    %6358 = vmatpush.bf16.msra.mxu0 %v5027
    %6359 = vmatpush.bf16.msra.mxu0 %v5011
    %6360 = vmatpush.bf16.msra.mxu0 %v4995
    %6361 = vmatmul.bf16.gmra.mxu0 %v1145
    %v6362 = vpop.f32.mrf.mxu0
    %v6363 = vadd.f32 %v6350, %v6362
    %v6364 = vpop.f32.mrf.mxu0
    %6365 = vdwg.mxu0
    %6366 = vmatpush.bf16.msra.mxu0 %v5235
    %6367 = vmatpush.bf16.msra.mxu0 %v5219
    %6368 = vmatpush.bf16.msra.mxu0 %v5203
    %6369 = vmatpush.bf16.msra.mxu0 %v5187
    %6370 = vmatpush.bf16.msra.mxu0 %v5171
    %6371 = vmatpush.bf16.msra.mxu0 %v5155
    %6372 = vmatpush.bf16.msra.mxu0 %v5139
    %6373 = vmatpush.bf16.msra.mxu0 %v5123
    %6374 = vmatmul.bf16.gmra.mxu0 %v1146
    %v6375 = vpop.f32.mrf.mxu0
    %v6376 = vadd.f32 %v6363, %v6375
    %v6377 = vpop.f32.mrf.mxu0
    %6378 = vdwg.mxu0
    %6379 = vmatpush.bf16.msra.mxu0 %v4340
    %6380 = vmatpush.bf16.msra.mxu0 %v4324
    %6381 = vmatpush.bf16.msra.mxu0 %v4308
    %6382 = vmatpush.bf16.msra.mxu0 %v4292
    %6383 = vmatpush.bf16.msra.mxu0 %v4276
    %6384 = vmatpush.bf16.msra.mxu0 %v4260
    %6385 = vmatpush.bf16.msra.mxu0 %v4244
    %6386 = vmatpush.bf16.msra.mxu0 %v4228
    %6387 = vmatmul.bf16.gmra.mxu0 %v1139
    %v6388 = vpop.f32.mrf.mxu0
    %v6389 = vadd.f32 0.0, %v6388
    %v6390 = vpop.f32.mrf.mxu0
    %6391 = vdwg.mxu0
    %6392 = vmatpush.bf16.msra.mxu0 %v4468
    %6393 = vmatpush.bf16.msra.mxu0 %v4452
    %6394 = vmatpush.bf16.msra.mxu0 %v4436
    %6395 = vmatpush.bf16.msra.mxu0 %v4420
    %6396 = vmatpush.bf16.msra.mxu0 %v4404
    %6397 = vmatpush.bf16.msra.mxu0 %v4388
    %6398 = vmatpush.bf16.msra.mxu0 %v4372
    %6399 = vmatpush.bf16.msra.mxu0 %v4356
    %6400 = vmatmul.bf16.gmra.mxu0 %v1140
    %v6401 = vpop.f32.mrf.mxu0
    %v6402 = vadd.f32 %v6389, %v6401
    %v6403 = vpop.f32.mrf.mxu0
    %6404 = vdwg.mxu0
    %6405 = vmatpush.bf16.msra.mxu0 %v4596
    %6406 = vmatpush.bf16.msra.mxu0 %v4580
    %6407 = vmatpush.bf16.msra.mxu0 %v4564
    %6408 = vmatpush.bf16.msra.mxu0 %v4548
    %6409 = vmatpush.bf16.msra.mxu0 %v4532
    %6410 = vmatpush.bf16.msra.mxu0 %v4516
    %6411 = vmatpush.bf16.msra.mxu0 %v4500
    %6412 = vmatpush.bf16.msra.mxu0 %v4484
    %6413 = vmatmul.bf16.gmra.mxu0 %v1141
    %v6414 = vpop.f32.mrf.mxu0
    %v6415 = vadd.f32 %v6402, %v6414
    %v6416 = vpop.f32.mrf.mxu0
    %6417 = vdwg.mxu0
    %6418 = vmatpush.bf16.msra.mxu0 %v4724
    %6419 = vmatpush.bf16.msra.mxu0 %v4708
    %6420 = vmatpush.bf16.msra.mxu0 %v4692
    %6421 = vmatpush.bf16.msra.mxu0 %v4676
    %6422 = vmatpush.bf16.msra.mxu0 %v4660
    %6423 = vmatpush.bf16.msra.mxu0 %v4644
    %6424 = vmatpush.bf16.msra.mxu0 %v4628
    %6425 = vmatpush.bf16.msra.mxu0 %v4612
    %6426 = vmatmul.bf16.gmra.mxu0 %v1142
    %v6427 = vpop.f32.mrf.mxu0
    %v6428 = vadd.f32 %v6415, %v6427
    %v6429 = vpop.f32.mrf.mxu0
    %6430 = vdwg.mxu0
    %6431 = vmatpush.bf16.msra.mxu0 %v4852
    %6432 = vmatpush.bf16.msra.mxu0 %v4836
    %6433 = vmatpush.bf16.msra.mxu0 %v4820
    %6434 = vmatpush.bf16.msra.mxu0 %v4804
    %6435 = vmatpush.bf16.msra.mxu0 %v4788
    %6436 = vmatpush.bf16.msra.mxu0 %v4772
    %6437 = vmatpush.bf16.msra.mxu0 %v4756
    %6438 = vmatpush.bf16.msra.mxu0 %v4740
    %6439 = vmatmul.bf16.gmra.mxu0 %v1143
    %v6440 = vpop.f32.mrf.mxu0
    %v6441 = vadd.f32 %v6428, %v6440
    %v6442 = vpop.f32.mrf.mxu0
    %6443 = vdwg.mxu0
    %6444 = vmatpush.bf16.msra.mxu0 %v4980
    %6445 = vmatpush.bf16.msra.mxu0 %v4964
    %6446 = vmatpush.bf16.msra.mxu0 %v4948
    %6447 = vmatpush.bf16.msra.mxu0 %v4932
    %6448 = vmatpush.bf16.msra.mxu0 %v4916
    %6449 = vmatpush.bf16.msra.mxu0 %v4900
    %6450 = vmatpush.bf16.msra.mxu0 %v4884
    %6451 = vmatpush.bf16.msra.mxu0 %v4868
    %6452 = vmatmul.bf16.gmra.mxu0 %v1144
    %v6453 = vpop.f32.mrf.mxu0
    %v6454 = vadd.f32 %v6441, %v6453
    %v6455 = vpop.f32.mrf.mxu0
    %6456 = vdwg.mxu0
    %6457 = vmatpush.bf16.msra.mxu0 %v5108
    %6458 = vmatpush.bf16.msra.mxu0 %v5092
    %6459 = vmatpush.bf16.msra.mxu0 %v5076
    %6460 = vmatpush.bf16.msra.mxu0 %v5060
    %6461 = vmatpush.bf16.msra.mxu0 %v5044
    %6462 = vmatpush.bf16.msra.mxu0 %v5028
    %6463 = vmatpush.bf16.msra.mxu0 %v5012
    %6464 = vmatpush.bf16.msra.mxu0 %v4996
    %6465 = vmatmul.bf16.gmra.mxu0 %v1145
    %v6466 = vpop.f32.mrf.mxu0
    %v6467 = vadd.f32 %v6454, %v6466
    %v6468 = vpop.f32.mrf.mxu0
    %6469 = vdwg.mxu0
    %6470 = vmatpush.bf16.msra.mxu0 %v5236
    %6471 = vmatpush.bf16.msra.mxu0 %v5220
    %6472 = vmatpush.bf16.msra.mxu0 %v5204
    %6473 = vmatpush.bf16.msra.mxu0 %v5188
    %6474 = vmatpush.bf16.msra.mxu0 %v5172
    %6475 = vmatpush.bf16.msra.mxu0 %v5156
    %6476 = vmatpush.bf16.msra.mxu0 %v5140
    %6477 = vmatpush.bf16.msra.mxu0 %v5124
    %6478 = vmatmul.bf16.gmra.mxu0 %v1146
    %v6479 = vpop.f32.mrf.mxu0
    %v6480 = vadd.f32 %v6467, %v6479
    %v6481 = vpop.f32.mrf.mxu0
    %6482 = vdwg.mxu0
    %6483 = vmatpush.bf16.msra.mxu0 %v4341
    %6484 = vmatpush.bf16.msra.mxu0 %v4325
    %6485 = vmatpush.bf16.msra.mxu0 %v4309
    %6486 = vmatpush.bf16.msra.mxu0 %v4293
    %6487 = vmatpush.bf16.msra.mxu0 %v4277
    %6488 = vmatpush.bf16.msra.mxu0 %v4261
    %6489 = vmatpush.bf16.msra.mxu0 %v4245
    %6490 = vmatpush.bf16.msra.mxu0 %v4229
    %6491 = vmatmul.bf16.gmra.mxu0 %v1139
    %v6492 = vpop.f32.mrf.mxu0
    %v6493 = vadd.f32 0.0, %v6492
    %v6494 = vpop.f32.mrf.mxu0
    %6495 = vdwg.mxu0
    %6496 = vmatpush.bf16.msra.mxu0 %v4469
    %6497 = vmatpush.bf16.msra.mxu0 %v4453
    %6498 = vmatpush.bf16.msra.mxu0 %v4437
    %6499 = vmatpush.bf16.msra.mxu0 %v4421
    %6500 = vmatpush.bf16.msra.mxu0 %v4405
    %6501 = vmatpush.bf16.msra.mxu0 %v4389
    %6502 = vmatpush.bf16.msra.mxu0 %v4373
    %6503 = vmatpush.bf16.msra.mxu0 %v4357
    %6504 = vmatmul.bf16.gmra.mxu0 %v1140
    %v6505 = vpop.f32.mrf.mxu0
    %v6506 = vadd.f32 %v6493, %v6505
    %v6507 = vpop.f32.mrf.mxu0
    %6508 = vdwg.mxu0
    %6509 = vmatpush.bf16.msra.mxu0 %v4597
    %6510 = vmatpush.bf16.msra.mxu0 %v4581
    %6511 = vmatpush.bf16.msra.mxu0 %v4565
    %6512 = vmatpush.bf16.msra.mxu0 %v4549
    %6513 = vmatpush.bf16.msra.mxu0 %v4533
    %6514 = vmatpush.bf16.msra.mxu0 %v4517
    %6515 = vmatpush.bf16.msra.mxu0 %v4501
    %6516 = vmatpush.bf16.msra.mxu0 %v4485
    %6517 = vmatmul.bf16.gmra.mxu0 %v1141
    %v6518 = vpop.f32.mrf.mxu0
    %v6519 = vadd.f32 %v6506, %v6518
    %v6520 = vpop.f32.mrf.mxu0
    %6521 = vdwg.mxu0
    %6522 = vmatpush.bf16.msra.mxu0 %v4725
    %6523 = vmatpush.bf16.msra.mxu0 %v4709
    %6524 = vmatpush.bf16.msra.mxu0 %v4693
    %6525 = vmatpush.bf16.msra.mxu0 %v4677
    %6526 = vmatpush.bf16.msra.mxu0 %v4661
    %6527 = vmatpush.bf16.msra.mxu0 %v4645
    %6528 = vmatpush.bf16.msra.mxu0 %v4629
    %6529 = vmatpush.bf16.msra.mxu0 %v4613
    %6530 = vmatmul.bf16.gmra.mxu0 %v1142
    %v6531 = vpop.f32.mrf.mxu0
    %v6532 = vadd.f32 %v6519, %v6531
    %v6533 = vpop.f32.mrf.mxu0
    %6534 = vdwg.mxu0
    %6535 = vmatpush.bf16.msra.mxu0 %v4853
    %6536 = vmatpush.bf16.msra.mxu0 %v4837
    %6537 = vmatpush.bf16.msra.mxu0 %v4821
    %6538 = vmatpush.bf16.msra.mxu0 %v4805
    %6539 = vmatpush.bf16.msra.mxu0 %v4789
    %6540 = vmatpush.bf16.msra.mxu0 %v4773
    %6541 = vmatpush.bf16.msra.mxu0 %v4757
    %6542 = vmatpush.bf16.msra.mxu0 %v4741
    %6543 = vmatmul.bf16.gmra.mxu0 %v1143
    %v6544 = vpop.f32.mrf.mxu0
    %v6545 = vadd.f32 %v6532, %v6544
    %v6546 = vpop.f32.mrf.mxu0
    %6547 = vdwg.mxu0
    %6548 = vmatpush.bf16.msra.mxu0 %v4981
    %6549 = vmatpush.bf16.msra.mxu0 %v4965
    %6550 = vmatpush.bf16.msra.mxu0 %v4949
    %6551 = vmatpush.bf16.msra.mxu0 %v4933
    %6552 = vmatpush.bf16.msra.mxu0 %v4917
    %6553 = vmatpush.bf16.msra.mxu0 %v4901
    %6554 = vmatpush.bf16.msra.mxu0 %v4885
    %6555 = vmatpush.bf16.msra.mxu0 %v4869
    %6556 = vmatmul.bf16.gmra.mxu0 %v1144
    %v6557 = vpop.f32.mrf.mxu0
    %v6558 = vadd.f32 %v6545, %v6557
    %v6559 = vpop.f32.mrf.mxu0
    %6560 = vdwg.mxu0
    %6561 = vmatpush.bf16.msra.mxu0 %v5109
    %6562 = vmatpush.bf16.msra.mxu0 %v5093
    %6563 = vmatpush.bf16.msra.mxu0 %v5077
    %6564 = vmatpush.bf16.msra.mxu0 %v5061
    %6565 = vmatpush.bf16.msra.mxu0 %v5045
    %6566 = vmatpush.bf16.msra.mxu0 %v5029
    %6567 = vmatpush.bf16.msra.mxu0 %v5013
    %6568 = vmatpush.bf16.msra.mxu0 %v4997
    %6569 = vmatmul.bf16.gmra.mxu0 %v1145
    %v6570 = vpop.f32.mrf.mxu0
    %v6571 = vadd.f32 %v6558, %v6570
    %v6572 = vpop.f32.mrf.mxu0
    %6573 = vdwg.mxu0
    %6574 = vmatpush.bf16.msra.mxu0 %v5237
    %6575 = vmatpush.bf16.msra.mxu0 %v5221
    %6576 = vmatpush.bf16.msra.mxu0 %v5205
    %6577 = vmatpush.bf16.msra.mxu0 %v5189
    %6578 = vmatpush.bf16.msra.mxu0 %v5173
    %6579 = vmatpush.bf16.msra.mxu0 %v5157
    %6580 = vmatpush.bf16.msra.mxu0 %v5141
    %6581 = vmatpush.bf16.msra.mxu0 %v5125
    %6582 = vmatmul.bf16.gmra.mxu0 %v1146
    %v6583 = vpop.f32.mrf.mxu0
    %v6584 = vadd.f32 %v6571, %v6583
    %v6585 = vpop.f32.mrf.mxu0
    %6586 = vdwg.mxu0
    %6587 = vmatpush.bf16.msra.mxu0 %v4342
    %6588 = vmatpush.bf16.msra.mxu0 %v4326
    %6589 = vmatpush.bf16.msra.mxu0 %v4310
    %6590 = vmatpush.bf16.msra.mxu0 %v4294
    %6591 = vmatpush.bf16.msra.mxu0 %v4278
    %6592 = vmatpush.bf16.msra.mxu0 %v4262
    %6593 = vmatpush.bf16.msra.mxu0 %v4246
    %6594 = vmatpush.bf16.msra.mxu0 %v4230
    %6595 = vmatmul.bf16.gmra.mxu0 %v1139
    %v6596 = vpop.f32.mrf.mxu0
    %v6597 = vadd.f32 0.0, %v6596
    %v6598 = vpop.f32.mrf.mxu0
    %6599 = vdwg.mxu0
    %6600 = vmatpush.bf16.msra.mxu0 %v4470
    %6601 = vmatpush.bf16.msra.mxu0 %v4454
    %6602 = vmatpush.bf16.msra.mxu0 %v4438
    %6603 = vmatpush.bf16.msra.mxu0 %v4422
    %6604 = vmatpush.bf16.msra.mxu0 %v4406
    %6605 = vmatpush.bf16.msra.mxu0 %v4390
    %6606 = vmatpush.bf16.msra.mxu0 %v4374
    %6607 = vmatpush.bf16.msra.mxu0 %v4358
    %6608 = vmatmul.bf16.gmra.mxu0 %v1140
    %v6609 = vpop.f32.mrf.mxu0
    %v6610 = vadd.f32 %v6597, %v6609
    %v6611 = vpop.f32.mrf.mxu0
    %6612 = vdwg.mxu0
    %6613 = vmatpush.bf16.msra.mxu0 %v4598
    %6614 = vmatpush.bf16.msra.mxu0 %v4582
    %6615 = vmatpush.bf16.msra.mxu0 %v4566
    %6616 = vmatpush.bf16.msra.mxu0 %v4550
    %6617 = vmatpush.bf16.msra.mxu0 %v4534
    %6618 = vmatpush.bf16.msra.mxu0 %v4518
    %6619 = vmatpush.bf16.msra.mxu0 %v4502
    %6620 = vmatpush.bf16.msra.mxu0 %v4486
    %6621 = vmatmul.bf16.gmra.mxu0 %v1141
    %v6622 = vpop.f32.mrf.mxu0
    %v6623 = vadd.f32 %v6610, %v6622
    %v6624 = vpop.f32.mrf.mxu0
    %6625 = vdwg.mxu0
    %6626 = vmatpush.bf16.msra.mxu0 %v4726
    %6627 = vmatpush.bf16.msra.mxu0 %v4710
    %6628 = vmatpush.bf16.msra.mxu0 %v4694
    %6629 = vmatpush.bf16.msra.mxu0 %v4678
    %6630 = vmatpush.bf16.msra.mxu0 %v4662
    %6631 = vmatpush.bf16.msra.mxu0 %v4646
    %6632 = vmatpush.bf16.msra.mxu0 %v4630
    %6633 = vmatpush.bf16.msra.mxu0 %v4614
    %6634 = vmatmul.bf16.gmra.mxu0 %v1142
    %v6635 = vpop.f32.mrf.mxu0
    %v6636 = vadd.f32 %v6623, %v6635
    %v6637 = vpop.f32.mrf.mxu0
    %6638 = vdwg.mxu0
    %6639 = vmatpush.bf16.msra.mxu0 %v4854
    %6640 = vmatpush.bf16.msra.mxu0 %v4838
    %6641 = vmatpush.bf16.msra.mxu0 %v4822
    %6642 = vmatpush.bf16.msra.mxu0 %v4806
    %6643 = vmatpush.bf16.msra.mxu0 %v4790
    %6644 = vmatpush.bf16.msra.mxu0 %v4774
    %6645 = vmatpush.bf16.msra.mxu0 %v4758
    %6646 = vmatpush.bf16.msra.mxu0 %v4742
    %6647 = vmatmul.bf16.gmra.mxu0 %v1143
    %v6648 = vpop.f32.mrf.mxu0
    %v6649 = vadd.f32 %v6636, %v6648
    %v6650 = vpop.f32.mrf.mxu0
    %6651 = vdwg.mxu0
    %6652 = vmatpush.bf16.msra.mxu0 %v4982
    %6653 = vmatpush.bf16.msra.mxu0 %v4966
    %6654 = vmatpush.bf16.msra.mxu0 %v4950
    %6655 = vmatpush.bf16.msra.mxu0 %v4934
    %6656 = vmatpush.bf16.msra.mxu0 %v4918
    %6657 = vmatpush.bf16.msra.mxu0 %v4902
    %6658 = vmatpush.bf16.msra.mxu0 %v4886
    %6659 = vmatpush.bf16.msra.mxu0 %v4870
    %6660 = vmatmul.bf16.gmra.mxu0 %v1144
    %v6661 = vpop.f32.mrf.mxu0
    %v6662 = vadd.f32 %v6649, %v6661
    %v6663 = vpop.f32.mrf.mxu0
    %6664 = vdwg.mxu0
    %6665 = vmatpush.bf16.msra.mxu0 %v5110
    %6666 = vmatpush.bf16.msra.mxu0 %v5094
    %6667 = vmatpush.bf16.msra.mxu0 %v5078
    %6668 = vmatpush.bf16.msra.mxu0 %v5062
    %6669 = vmatpush.bf16.msra.mxu0 %v5046
    %6670 = vmatpush.bf16.msra.mxu0 %v5030
    %6671 = vmatpush.bf16.msra.mxu0 %v5014
    %6672 = vmatpush.bf16.msra.mxu0 %v4998
    %6673 = vmatmul.bf16.gmra.mxu0 %v1145
    %v6674 = vpop.f32.mrf.mxu0
    %v6675 = vadd.f32 %v6662, %v6674
    %v6676 = vpop.f32.mrf.mxu0
    %6677 = vdwg.mxu0
    %6678 = vmatpush.bf16.msra.mxu0 %v5238
    %6679 = vmatpush.bf16.msra.mxu0 %v5222
    %6680 = vmatpush.bf16.msra.mxu0 %v5206
    %6681 = vmatpush.bf16.msra.mxu0 %v5190
    %6682 = vmatpush.bf16.msra.mxu0 %v5174
    %6683 = vmatpush.bf16.msra.mxu0 %v5158
    %6684 = vmatpush.bf16.msra.mxu0 %v5142
    %6685 = vmatpush.bf16.msra.mxu0 %v5126
    %6686 = vmatmul.bf16.gmra.mxu0 %v1146
    %v6687 = vpop.f32.mrf.mxu0
    %v6688 = vadd.f32 %v6675, %v6687
    %v6689 = vpop.f32.mrf.mxu0
    %6690 = vdwg.mxu0
    %6691 = vmatpush.bf16.msra.mxu0 %v4343
    %6692 = vmatpush.bf16.msra.mxu0 %v4327
    %6693 = vmatpush.bf16.msra.mxu0 %v4311
    %6694 = vmatpush.bf16.msra.mxu0 %v4295
    %6695 = vmatpush.bf16.msra.mxu0 %v4279
    %6696 = vmatpush.bf16.msra.mxu0 %v4263
    %6697 = vmatpush.bf16.msra.mxu0 %v4247
    %6698 = vmatpush.bf16.msra.mxu0 %v4231
    %6699 = vmatmul.bf16.gmra.mxu0 %v1139
    %v6700 = vpop.f32.mrf.mxu0
    %v6701 = vadd.f32 0.0, %v6700
    %v6702 = vpop.f32.mrf.mxu0
    %6703 = vdwg.mxu0
    %6704 = vmatpush.bf16.msra.mxu0 %v4471
    %6705 = vmatpush.bf16.msra.mxu0 %v4455
    %6706 = vmatpush.bf16.msra.mxu0 %v4439
    %6707 = vmatpush.bf16.msra.mxu0 %v4423
    %6708 = vmatpush.bf16.msra.mxu0 %v4407
    %6709 = vmatpush.bf16.msra.mxu0 %v4391
    %6710 = vmatpush.bf16.msra.mxu0 %v4375
    %6711 = vmatpush.bf16.msra.mxu0 %v4359
    %6712 = vmatmul.bf16.gmra.mxu0 %v1140
    %v6713 = vpop.f32.mrf.mxu0
    %v6714 = vadd.f32 %v6701, %v6713
    %v6715 = vpop.f32.mrf.mxu0
    %6716 = vdwg.mxu0
    %6717 = vmatpush.bf16.msra.mxu0 %v4599
    %6718 = vmatpush.bf16.msra.mxu0 %v4583
    %6719 = vmatpush.bf16.msra.mxu0 %v4567
    %6720 = vmatpush.bf16.msra.mxu0 %v4551
    %6721 = vmatpush.bf16.msra.mxu0 %v4535
    %6722 = vmatpush.bf16.msra.mxu0 %v4519
    %6723 = vmatpush.bf16.msra.mxu0 %v4503
    %6724 = vmatpush.bf16.msra.mxu0 %v4487
    %6725 = vmatmul.bf16.gmra.mxu0 %v1141
    %v6726 = vpop.f32.mrf.mxu0
    %v6727 = vadd.f32 %v6714, %v6726
    %v6728 = vpop.f32.mrf.mxu0
    %6729 = vdwg.mxu0
    %6730 = vmatpush.bf16.msra.mxu0 %v4727
    %6731 = vmatpush.bf16.msra.mxu0 %v4711
    %6732 = vmatpush.bf16.msra.mxu0 %v4695
    %6733 = vmatpush.bf16.msra.mxu0 %v4679
    %6734 = vmatpush.bf16.msra.mxu0 %v4663
    %6735 = vmatpush.bf16.msra.mxu0 %v4647
    %6736 = vmatpush.bf16.msra.mxu0 %v4631
    %6737 = vmatpush.bf16.msra.mxu0 %v4615
    %6738 = vmatmul.bf16.gmra.mxu0 %v1142
    %v6739 = vpop.f32.mrf.mxu0
    %v6740 = vadd.f32 %v6727, %v6739
    %v6741 = vpop.f32.mrf.mxu0
    %6742 = vdwg.mxu0
    %6743 = vmatpush.bf16.msra.mxu0 %v4855
    %6744 = vmatpush.bf16.msra.mxu0 %v4839
    %6745 = vmatpush.bf16.msra.mxu0 %v4823
    %6746 = vmatpush.bf16.msra.mxu0 %v4807
    %6747 = vmatpush.bf16.msra.mxu0 %v4791
    %6748 = vmatpush.bf16.msra.mxu0 %v4775
    %6749 = vmatpush.bf16.msra.mxu0 %v4759
    %6750 = vmatpush.bf16.msra.mxu0 %v4743
    %6751 = vmatmul.bf16.gmra.mxu0 %v1143
    %v6752 = vpop.f32.mrf.mxu0
    %v6753 = vadd.f32 %v6740, %v6752
    %v6754 = vpop.f32.mrf.mxu0
    %6755 = vdwg.mxu0
    %6756 = vmatpush.bf16.msra.mxu0 %v4983
    %6757 = vmatpush.bf16.msra.mxu0 %v4967
    %6758 = vmatpush.bf16.msra.mxu0 %v4951
    %6759 = vmatpush.bf16.msra.mxu0 %v4935
    %6760 = vmatpush.bf16.msra.mxu0 %v4919
    %6761 = vmatpush.bf16.msra.mxu0 %v4903
    %6762 = vmatpush.bf16.msra.mxu0 %v4887
    %6763 = vmatpush.bf16.msra.mxu0 %v4871
    %6764 = vmatmul.bf16.gmra.mxu0 %v1144
    %v6765 = vpop.f32.mrf.mxu0
    %v6766 = vadd.f32 %v6753, %v6765
    %v6767 = vpop.f32.mrf.mxu0
    %6768 = vdwg.mxu0
    %6769 = vmatpush.bf16.msra.mxu0 %v5111
    %6770 = vmatpush.bf16.msra.mxu0 %v5095
    %6771 = vmatpush.bf16.msra.mxu0 %v5079
    %6772 = vmatpush.bf16.msra.mxu0 %v5063
    %6773 = vmatpush.bf16.msra.mxu0 %v5047
    %6774 = vmatpush.bf16.msra.mxu0 %v5031
    %6775 = vmatpush.bf16.msra.mxu0 %v5015
    %6776 = vmatpush.bf16.msra.mxu0 %v4999
    %6777 = vmatmul.bf16.gmra.mxu0 %v1145
    %v6778 = vpop.f32.mrf.mxu0
    %v6779 = vadd.f32 %v6766, %v6778
    %v6780 = vpop.f32.mrf.mxu0
    %6781 = vdwg.mxu0
    %6782 = vmatpush.bf16.msra.mxu0 %v5239
    %6783 = vmatpush.bf16.msra.mxu0 %v5223
    %6784 = vmatpush.bf16.msra.mxu0 %v5207
    %6785 = vmatpush.bf16.msra.mxu0 %v5191
    %6786 = vmatpush.bf16.msra.mxu0 %v5175
    %6787 = vmatpush.bf16.msra.mxu0 %v5159
    %6788 = vmatpush.bf16.msra.mxu0 %v5143
    %6789 = vmatpush.bf16.msra.mxu0 %v5127
    %6790 = vmatmul.bf16.gmra.mxu0 %v1146
    %v6791 = vpop.f32.mrf.mxu0
    %v6792 = vadd.f32 %v6779, %v6791
    %v6793 = vpop.f32.mrf.mxu0
    %6794 = vdwg.mxu0
    %6795 = vmatpush.bf16.msra.mxu0 %v4344
    %6796 = vmatpush.bf16.msra.mxu0 %v4328
    %6797 = vmatpush.bf16.msra.mxu0 %v4312
    %6798 = vmatpush.bf16.msra.mxu0 %v4296
    %6799 = vmatpush.bf16.msra.mxu0 %v4280
    %6800 = vmatpush.bf16.msra.mxu0 %v4264
    %6801 = vmatpush.bf16.msra.mxu0 %v4248
    %6802 = vmatpush.bf16.msra.mxu0 %v4232
    %6803 = vmatmul.bf16.gmra.mxu0 %v1139
    %v6804 = vpop.f32.mrf.mxu0
    %v6805 = vadd.f32 0.0, %v6804
    %v6806 = vpop.f32.mrf.mxu0
    %6807 = vdwg.mxu0
    %6808 = vmatpush.bf16.msra.mxu0 %v4472
    %6809 = vmatpush.bf16.msra.mxu0 %v4456
    %6810 = vmatpush.bf16.msra.mxu0 %v4440
    %6811 = vmatpush.bf16.msra.mxu0 %v4424
    %6812 = vmatpush.bf16.msra.mxu0 %v4408
    %6813 = vmatpush.bf16.msra.mxu0 %v4392
    %6814 = vmatpush.bf16.msra.mxu0 %v4376
    %6815 = vmatpush.bf16.msra.mxu0 %v4360
    %6816 = vmatmul.bf16.gmra.mxu0 %v1140
    %v6817 = vpop.f32.mrf.mxu0
    %v6818 = vadd.f32 %v6805, %v6817
    %v6819 = vpop.f32.mrf.mxu0
    %6820 = vdwg.mxu0
    %6821 = vmatpush.bf16.msra.mxu0 %v4600
    %6822 = vmatpush.bf16.msra.mxu0 %v4584
    %6823 = vmatpush.bf16.msra.mxu0 %v4568
    %6824 = vmatpush.bf16.msra.mxu0 %v4552
    %6825 = vmatpush.bf16.msra.mxu0 %v4536
    %6826 = vmatpush.bf16.msra.mxu0 %v4520
    %6827 = vmatpush.bf16.msra.mxu0 %v4504
    %6828 = vmatpush.bf16.msra.mxu0 %v4488
    %6829 = vmatmul.bf16.gmra.mxu0 %v1141
    %v6830 = vpop.f32.mrf.mxu0
    %v6831 = vadd.f32 %v6818, %v6830
    %v6832 = vpop.f32.mrf.mxu0
    %6833 = vdwg.mxu0
    %6834 = vmatpush.bf16.msra.mxu0 %v4728
    %6835 = vmatpush.bf16.msra.mxu0 %v4712
    %6836 = vmatpush.bf16.msra.mxu0 %v4696
    %6837 = vmatpush.bf16.msra.mxu0 %v4680
    %6838 = vmatpush.bf16.msra.mxu0 %v4664
    %6839 = vmatpush.bf16.msra.mxu0 %v4648
    %6840 = vmatpush.bf16.msra.mxu0 %v4632
    %6841 = vmatpush.bf16.msra.mxu0 %v4616
    %6842 = vmatmul.bf16.gmra.mxu0 %v1142
    %v6843 = vpop.f32.mrf.mxu0
    %v6844 = vadd.f32 %v6831, %v6843
    %v6845 = vpop.f32.mrf.mxu0
    %6846 = vdwg.mxu0
    %6847 = vmatpush.bf16.msra.mxu0 %v4856
    %6848 = vmatpush.bf16.msra.mxu0 %v4840
    %6849 = vmatpush.bf16.msra.mxu0 %v4824
    %6850 = vmatpush.bf16.msra.mxu0 %v4808
    %6851 = vmatpush.bf16.msra.mxu0 %v4792
    %6852 = vmatpush.bf16.msra.mxu0 %v4776
    %6853 = vmatpush.bf16.msra.mxu0 %v4760
    %6854 = vmatpush.bf16.msra.mxu0 %v4744
    %6855 = vmatmul.bf16.gmra.mxu0 %v1143
    %v6856 = vpop.f32.mrf.mxu0
    %v6857 = vadd.f32 %v6844, %v6856
    %v6858 = vpop.f32.mrf.mxu0
    %6859 = vdwg.mxu0
    %6860 = vmatpush.bf16.msra.mxu0 %v4984
    %6861 = vmatpush.bf16.msra.mxu0 %v4968
    %6862 = vmatpush.bf16.msra.mxu0 %v4952
    %6863 = vmatpush.bf16.msra.mxu0 %v4936
    %6864 = vmatpush.bf16.msra.mxu0 %v4920
    %6865 = vmatpush.bf16.msra.mxu0 %v4904
    %6866 = vmatpush.bf16.msra.mxu0 %v4888
    %6867 = vmatpush.bf16.msra.mxu0 %v4872
    %6868 = vmatmul.bf16.gmra.mxu0 %v1144
    %v6869 = vpop.f32.mrf.mxu0
    %v6870 = vadd.f32 %v6857, %v6869
    %v6871 = vpop.f32.mrf.mxu0
    %6872 = vdwg.mxu0
    %6873 = vmatpush.bf16.msra.mxu0 %v5112
    %6874 = vmatpush.bf16.msra.mxu0 %v5096
    %6875 = vmatpush.bf16.msra.mxu0 %v5080
    %6876 = vmatpush.bf16.msra.mxu0 %v5064
    %6877 = vmatpush.bf16.msra.mxu0 %v5048
    %6878 = vmatpush.bf16.msra.mxu0 %v5032
    %6879 = vmatpush.bf16.msra.mxu0 %v5016
    %6880 = vmatpush.bf16.msra.mxu0 %v5000
    %6881 = vmatmul.bf16.gmra.mxu0 %v1145
    %v6882 = vpop.f32.mrf.mxu0
    %v6883 = vadd.f32 %v6870, %v6882
    %v6884 = vpop.f32.mrf.mxu0
    %6885 = vdwg.mxu0
    %6886 = vmatpush.bf16.msra.mxu0 %v5240
    %6887 = vmatpush.bf16.msra.mxu0 %v5224
    %6888 = vmatpush.bf16.msra.mxu0 %v5208
    %6889 = vmatpush.bf16.msra.mxu0 %v5192
    %6890 = vmatpush.bf16.msra.mxu0 %v5176
    %6891 = vmatpush.bf16.msra.mxu0 %v5160
    %6892 = vmatpush.bf16.msra.mxu0 %v5144
    %6893 = vmatpush.bf16.msra.mxu0 %v5128
    %6894 = vmatmul.bf16.gmra.mxu0 %v1146
    %v6895 = vpop.f32.mrf.mxu0
    %v6896 = vadd.f32 %v6883, %v6895
    %v6897 = vpop.f32.mrf.mxu0
    %6898 = vdwg.mxu0
    %6899 = vmatpush.bf16.msra.mxu0 %v4345
    %6900 = vmatpush.bf16.msra.mxu0 %v4329
    %6901 = vmatpush.bf16.msra.mxu0 %v4313
    %6902 = vmatpush.bf16.msra.mxu0 %v4297
    %6903 = vmatpush.bf16.msra.mxu0 %v4281
    %6904 = vmatpush.bf16.msra.mxu0 %v4265
    %6905 = vmatpush.bf16.msra.mxu0 %v4249
    %6906 = vmatpush.bf16.msra.mxu0 %v4233
    %6907 = vmatmul.bf16.gmra.mxu0 %v1139
    %v6908 = vpop.f32.mrf.mxu0
    %v6909 = vadd.f32 0.0, %v6908
    %v6910 = vpop.f32.mrf.mxu0
    %6911 = vdwg.mxu0
    %6912 = vmatpush.bf16.msra.mxu0 %v4473
    %6913 = vmatpush.bf16.msra.mxu0 %v4457
    %6914 = vmatpush.bf16.msra.mxu0 %v4441
    %6915 = vmatpush.bf16.msra.mxu0 %v4425
    %6916 = vmatpush.bf16.msra.mxu0 %v4409
    %6917 = vmatpush.bf16.msra.mxu0 %v4393
    %6918 = vmatpush.bf16.msra.mxu0 %v4377
    %6919 = vmatpush.bf16.msra.mxu0 %v4361
    %6920 = vmatmul.bf16.gmra.mxu0 %v1140
    %v6921 = vpop.f32.mrf.mxu0
    %v6922 = vadd.f32 %v6909, %v6921
    %v6923 = vpop.f32.mrf.mxu0
    %6924 = vdwg.mxu0
    %6925 = vmatpush.bf16.msra.mxu0 %v4601
    %6926 = vmatpush.bf16.msra.mxu0 %v4585
    %6927 = vmatpush.bf16.msra.mxu0 %v4569
    %6928 = vmatpush.bf16.msra.mxu0 %v4553
    %6929 = vmatpush.bf16.msra.mxu0 %v4537
    %6930 = vmatpush.bf16.msra.mxu0 %v4521
    %6931 = vmatpush.bf16.msra.mxu0 %v4505
    %6932 = vmatpush.bf16.msra.mxu0 %v4489
    %6933 = vmatmul.bf16.gmra.mxu0 %v1141
    %v6934 = vpop.f32.mrf.mxu0
    %v6935 = vadd.f32 %v6922, %v6934
    %v6936 = vpop.f32.mrf.mxu0
    %6937 = vdwg.mxu0
    %6938 = vmatpush.bf16.msra.mxu0 %v4729
    %6939 = vmatpush.bf16.msra.mxu0 %v4713
    %6940 = vmatpush.bf16.msra.mxu0 %v4697
    %6941 = vmatpush.bf16.msra.mxu0 %v4681
    %6942 = vmatpush.bf16.msra.mxu0 %v4665
    %6943 = vmatpush.bf16.msra.mxu0 %v4649
    %6944 = vmatpush.bf16.msra.mxu0 %v4633
    %6945 = vmatpush.bf16.msra.mxu0 %v4617
    %6946 = vmatmul.bf16.gmra.mxu0 %v1142
    %v6947 = vpop.f32.mrf.mxu0
    %v6948 = vadd.f32 %v6935, %v6947
    %v6949 = vpop.f32.mrf.mxu0
    %6950 = vdwg.mxu0
    %6951 = vmatpush.bf16.msra.mxu0 %v4857
    %6952 = vmatpush.bf16.msra.mxu0 %v4841
    %6953 = vmatpush.bf16.msra.mxu0 %v4825
    %6954 = vmatpush.bf16.msra.mxu0 %v4809
    %6955 = vmatpush.bf16.msra.mxu0 %v4793
    %6956 = vmatpush.bf16.msra.mxu0 %v4777
    %6957 = vmatpush.bf16.msra.mxu0 %v4761
    %6958 = vmatpush.bf16.msra.mxu0 %v4745
    %6959 = vmatmul.bf16.gmra.mxu0 %v1143
    %v6960 = vpop.f32.mrf.mxu0
    %v6961 = vadd.f32 %v6948, %v6960
    %v6962 = vpop.f32.mrf.mxu0
    %6963 = vdwg.mxu0
    %6964 = vmatpush.bf16.msra.mxu0 %v4985
    %6965 = vmatpush.bf16.msra.mxu0 %v4969
    %6966 = vmatpush.bf16.msra.mxu0 %v4953
    %6967 = vmatpush.bf16.msra.mxu0 %v4937
    %6968 = vmatpush.bf16.msra.mxu0 %v4921
    %6969 = vmatpush.bf16.msra.mxu0 %v4905
    %6970 = vmatpush.bf16.msra.mxu0 %v4889
    %6971 = vmatpush.bf16.msra.mxu0 %v4873
    %6972 = vmatmul.bf16.gmra.mxu0 %v1144
    %v6973 = vpop.f32.mrf.mxu0
    %v6974 = vadd.f32 %v6961, %v6973
    %v6975 = vpop.f32.mrf.mxu0
    %6976 = vdwg.mxu0
    %6977 = vmatpush.bf16.msra.mxu0 %v5113
    %6978 = vmatpush.bf16.msra.mxu0 %v5097
    %6979 = vmatpush.bf16.msra.mxu0 %v5081
    %6980 = vmatpush.bf16.msra.mxu0 %v5065
    %6981 = vmatpush.bf16.msra.mxu0 %v5049
    %6982 = vmatpush.bf16.msra.mxu0 %v5033
    %6983 = vmatpush.bf16.msra.mxu0 %v5017
    %6984 = vmatpush.bf16.msra.mxu0 %v5001
    %6985 = vmatmul.bf16.gmra.mxu0 %v1145
    %v6986 = vpop.f32.mrf.mxu0
    %v6987 = vadd.f32 %v6974, %v6986
    %v6988 = vpop.f32.mrf.mxu0
    %6989 = vdwg.mxu0
    %6990 = vmatpush.bf16.msra.mxu0 %v5241
    %6991 = vmatpush.bf16.msra.mxu0 %v5225
    %6992 = vmatpush.bf16.msra.mxu0 %v5209
    %6993 = vmatpush.bf16.msra.mxu0 %v5193
    %6994 = vmatpush.bf16.msra.mxu0 %v5177
    %6995 = vmatpush.bf16.msra.mxu0 %v5161
    %6996 = vmatpush.bf16.msra.mxu0 %v5145
    %6997 = vmatpush.bf16.msra.mxu0 %v5129
    %6998 = vmatmul.bf16.gmra.mxu0 %v1146
    %v6999 = vpop.f32.mrf.mxu0
    %v7000 = vadd.f32 %v6987, %v6999
    %v7001 = vpop.f32.mrf.mxu0
    %7002 = vdwg.mxu0
    %7003 = vmatpush.bf16.msra.mxu0 %v4346
    %7004 = vmatpush.bf16.msra.mxu0 %v4330
    %7005 = vmatpush.bf16.msra.mxu0 %v4314
    %7006 = vmatpush.bf16.msra.mxu0 %v4298
    %7007 = vmatpush.bf16.msra.mxu0 %v4282
    %7008 = vmatpush.bf16.msra.mxu0 %v4266
    %7009 = vmatpush.bf16.msra.mxu0 %v4250
    %7010 = vmatpush.bf16.msra.mxu0 %v4234
    %7011 = vmatmul.bf16.gmra.mxu0 %v1139
    %v7012 = vpop.f32.mrf.mxu0
    %v7013 = vadd.f32 0.0, %v7012
    %v7014 = vpop.f32.mrf.mxu0
    %7015 = vdwg.mxu0
    %7016 = vmatpush.bf16.msra.mxu0 %v4474
    %7017 = vmatpush.bf16.msra.mxu0 %v4458
    %7018 = vmatpush.bf16.msra.mxu0 %v4442
    %7019 = vmatpush.bf16.msra.mxu0 %v4426
    %7020 = vmatpush.bf16.msra.mxu0 %v4410
    %7021 = vmatpush.bf16.msra.mxu0 %v4394
    %7022 = vmatpush.bf16.msra.mxu0 %v4378
    %7023 = vmatpush.bf16.msra.mxu0 %v4362
    %7024 = vmatmul.bf16.gmra.mxu0 %v1140
    %v7025 = vpop.f32.mrf.mxu0
    %v7026 = vadd.f32 %v7013, %v7025
    %v7027 = vpop.f32.mrf.mxu0
    %7028 = vdwg.mxu0
    %7029 = vmatpush.bf16.msra.mxu0 %v4602
    %7030 = vmatpush.bf16.msra.mxu0 %v4586
    %7031 = vmatpush.bf16.msra.mxu0 %v4570
    %7032 = vmatpush.bf16.msra.mxu0 %v4554
    %7033 = vmatpush.bf16.msra.mxu0 %v4538
    %7034 = vmatpush.bf16.msra.mxu0 %v4522
    %7035 = vmatpush.bf16.msra.mxu0 %v4506
    %7036 = vmatpush.bf16.msra.mxu0 %v4490
    %7037 = vmatmul.bf16.gmra.mxu0 %v1141
    %v7038 = vpop.f32.mrf.mxu0
    %v7039 = vadd.f32 %v7026, %v7038
    %v7040 = vpop.f32.mrf.mxu0
    %7041 = vdwg.mxu0
    %7042 = vmatpush.bf16.msra.mxu0 %v4730
    %7043 = vmatpush.bf16.msra.mxu0 %v4714
    %7044 = vmatpush.bf16.msra.mxu0 %v4698
    %7045 = vmatpush.bf16.msra.mxu0 %v4682
    %7046 = vmatpush.bf16.msra.mxu0 %v4666
    %7047 = vmatpush.bf16.msra.mxu0 %v4650
    %7048 = vmatpush.bf16.msra.mxu0 %v4634
    %7049 = vmatpush.bf16.msra.mxu0 %v4618
    %7050 = vmatmul.bf16.gmra.mxu0 %v1142
    %v7051 = vpop.f32.mrf.mxu0
    %v7052 = vadd.f32 %v7039, %v7051
    %v7053 = vpop.f32.mrf.mxu0
    %7054 = vdwg.mxu0
    %7055 = vmatpush.bf16.msra.mxu0 %v4858
    %7056 = vmatpush.bf16.msra.mxu0 %v4842
    %7057 = vmatpush.bf16.msra.mxu0 %v4826
    %7058 = vmatpush.bf16.msra.mxu0 %v4810
    %7059 = vmatpush.bf16.msra.mxu0 %v4794
    %7060 = vmatpush.bf16.msra.mxu0 %v4778
    %7061 = vmatpush.bf16.msra.mxu0 %v4762
    %7062 = vmatpush.bf16.msra.mxu0 %v4746
    %7063 = vmatmul.bf16.gmra.mxu0 %v1143
    %v7064 = vpop.f32.mrf.mxu0
    %v7065 = vadd.f32 %v7052, %v7064
    %v7066 = vpop.f32.mrf.mxu0
    %7067 = vdwg.mxu0
    %7068 = vmatpush.bf16.msra.mxu0 %v4986
    %7069 = vmatpush.bf16.msra.mxu0 %v4970
    %7070 = vmatpush.bf16.msra.mxu0 %v4954
    %7071 = vmatpush.bf16.msra.mxu0 %v4938
    %7072 = vmatpush.bf16.msra.mxu0 %v4922
    %7073 = vmatpush.bf16.msra.mxu0 %v4906
    %7074 = vmatpush.bf16.msra.mxu0 %v4890
    %7075 = vmatpush.bf16.msra.mxu0 %v4874
    %7076 = vmatmul.bf16.gmra.mxu0 %v1144
    %v7077 = vpop.f32.mrf.mxu0
    %v7078 = vadd.f32 %v7065, %v7077
    %v7079 = vpop.f32.mrf.mxu0
    %7080 = vdwg.mxu0
    %7081 = vmatpush.bf16.msra.mxu0 %v5114
    %7082 = vmatpush.bf16.msra.mxu0 %v5098
    %7083 = vmatpush.bf16.msra.mxu0 %v5082
    %7084 = vmatpush.bf16.msra.mxu0 %v5066
    %7085 = vmatpush.bf16.msra.mxu0 %v5050
    %7086 = vmatpush.bf16.msra.mxu0 %v5034
    %7087 = vmatpush.bf16.msra.mxu0 %v5018
    %7088 = vmatpush.bf16.msra.mxu0 %v5002
    %7089 = vmatmul.bf16.gmra.mxu0 %v1145
    %v7090 = vpop.f32.mrf.mxu0
    %v7091 = vadd.f32 %v7078, %v7090
    %v7092 = vpop.f32.mrf.mxu0
    %7093 = vdwg.mxu0
    %7094 = vmatpush.bf16.msra.mxu0 %v5242
    %7095 = vmatpush.bf16.msra.mxu0 %v5226
    %7096 = vmatpush.bf16.msra.mxu0 %v5210
    %7097 = vmatpush.bf16.msra.mxu0 %v5194
    %7098 = vmatpush.bf16.msra.mxu0 %v5178
    %7099 = vmatpush.bf16.msra.mxu0 %v5162
    %7100 = vmatpush.bf16.msra.mxu0 %v5146
    %7101 = vmatpush.bf16.msra.mxu0 %v5130
    %7102 = vmatmul.bf16.gmra.mxu0 %v1146
    %v7103 = vpop.f32.mrf.mxu0
    %v7104 = vadd.f32 %v7091, %v7103
    %v7105 = vpop.f32.mrf.mxu0
    %7106 = vdwg.mxu0
    %7107 = vmatpush.bf16.msra.mxu0 %v4347
    %7108 = vmatpush.bf16.msra.mxu0 %v4331
    %7109 = vmatpush.bf16.msra.mxu0 %v4315
    %7110 = vmatpush.bf16.msra.mxu0 %v4299
    %7111 = vmatpush.bf16.msra.mxu0 %v4283
    %7112 = vmatpush.bf16.msra.mxu0 %v4267
    %7113 = vmatpush.bf16.msra.mxu0 %v4251
    %7114 = vmatpush.bf16.msra.mxu0 %v4235
    %7115 = vmatmul.bf16.gmra.mxu0 %v1139
    %v7116 = vpop.f32.mrf.mxu0
    %v7117 = vadd.f32 0.0, %v7116
    %v7118 = vpop.f32.mrf.mxu0
    %7119 = vdwg.mxu0
    %7120 = vmatpush.bf16.msra.mxu0 %v4475
    %7121 = vmatpush.bf16.msra.mxu0 %v4459
    %7122 = vmatpush.bf16.msra.mxu0 %v4443
    %7123 = vmatpush.bf16.msra.mxu0 %v4427
    %7124 = vmatpush.bf16.msra.mxu0 %v4411
    %7125 = vmatpush.bf16.msra.mxu0 %v4395
    %7126 = vmatpush.bf16.msra.mxu0 %v4379
    %7127 = vmatpush.bf16.msra.mxu0 %v4363
    %7128 = vmatmul.bf16.gmra.mxu0 %v1140
    %v7129 = vpop.f32.mrf.mxu0
    %v7130 = vadd.f32 %v7117, %v7129
    %v7131 = vpop.f32.mrf.mxu0
    %7132 = vdwg.mxu0
    %7133 = vmatpush.bf16.msra.mxu0 %v4603
    %7134 = vmatpush.bf16.msra.mxu0 %v4587
    %7135 = vmatpush.bf16.msra.mxu0 %v4571
    %7136 = vmatpush.bf16.msra.mxu0 %v4555
    %7137 = vmatpush.bf16.msra.mxu0 %v4539
    %7138 = vmatpush.bf16.msra.mxu0 %v4523
    %7139 = vmatpush.bf16.msra.mxu0 %v4507
    %7140 = vmatpush.bf16.msra.mxu0 %v4491
    %7141 = vmatmul.bf16.gmra.mxu0 %v1141
    %v7142 = vpop.f32.mrf.mxu0
    %v7143 = vadd.f32 %v7130, %v7142
    %v7144 = vpop.f32.mrf.mxu0
    %7145 = vdwg.mxu0
    %7146 = vmatpush.bf16.msra.mxu0 %v4731
    %7147 = vmatpush.bf16.msra.mxu0 %v4715
    %7148 = vmatpush.bf16.msra.mxu0 %v4699
    %7149 = vmatpush.bf16.msra.mxu0 %v4683
    %7150 = vmatpush.bf16.msra.mxu0 %v4667
    %7151 = vmatpush.bf16.msra.mxu0 %v4651
    %7152 = vmatpush.bf16.msra.mxu0 %v4635
    %7153 = vmatpush.bf16.msra.mxu0 %v4619
    %7154 = vmatmul.bf16.gmra.mxu0 %v1142
    %v7155 = vpop.f32.mrf.mxu0
    %v7156 = vadd.f32 %v7143, %v7155
    %v7157 = vpop.f32.mrf.mxu0
    %7158 = vdwg.mxu0
    %7159 = vmatpush.bf16.msra.mxu0 %v4859
    %7160 = vmatpush.bf16.msra.mxu0 %v4843
    %7161 = vmatpush.bf16.msra.mxu0 %v4827
    %7162 = vmatpush.bf16.msra.mxu0 %v4811
    %7163 = vmatpush.bf16.msra.mxu0 %v4795
    %7164 = vmatpush.bf16.msra.mxu0 %v4779
    %7165 = vmatpush.bf16.msra.mxu0 %v4763
    %7166 = vmatpush.bf16.msra.mxu0 %v4747
    %7167 = vmatmul.bf16.gmra.mxu0 %v1143
    %v7168 = vpop.f32.mrf.mxu0
    %v7169 = vadd.f32 %v7156, %v7168
    %v7170 = vpop.f32.mrf.mxu0
    %7171 = vdwg.mxu0
    %7172 = vmatpush.bf16.msra.mxu0 %v4987
    %7173 = vmatpush.bf16.msra.mxu0 %v4971
    %7174 = vmatpush.bf16.msra.mxu0 %v4955
    %7175 = vmatpush.bf16.msra.mxu0 %v4939
    %7176 = vmatpush.bf16.msra.mxu0 %v4923
    %7177 = vmatpush.bf16.msra.mxu0 %v4907
    %7178 = vmatpush.bf16.msra.mxu0 %v4891
    %7179 = vmatpush.bf16.msra.mxu0 %v4875
    %7180 = vmatmul.bf16.gmra.mxu0 %v1144
    %v7181 = vpop.f32.mrf.mxu0
    %v7182 = vadd.f32 %v7169, %v7181
    %v7183 = vpop.f32.mrf.mxu0
    %7184 = vdwg.mxu0
    %7185 = vmatpush.bf16.msra.mxu0 %v5115
    %7186 = vmatpush.bf16.msra.mxu0 %v5099
    %7187 = vmatpush.bf16.msra.mxu0 %v5083
    %7188 = vmatpush.bf16.msra.mxu0 %v5067
    %7189 = vmatpush.bf16.msra.mxu0 %v5051
    %7190 = vmatpush.bf16.msra.mxu0 %v5035
    %7191 = vmatpush.bf16.msra.mxu0 %v5019
    %7192 = vmatpush.bf16.msra.mxu0 %v5003
    %7193 = vmatmul.bf16.gmra.mxu0 %v1145
    %v7194 = vpop.f32.mrf.mxu0
    %v7195 = vadd.f32 %v7182, %v7194
    %v7196 = vpop.f32.mrf.mxu0
    %7197 = vdwg.mxu0
    %7198 = vmatpush.bf16.msra.mxu0 %v5243
    %7199 = vmatpush.bf16.msra.mxu0 %v5227
    %7200 = vmatpush.bf16.msra.mxu0 %v5211
    %7201 = vmatpush.bf16.msra.mxu0 %v5195
    %7202 = vmatpush.bf16.msra.mxu0 %v5179
    %7203 = vmatpush.bf16.msra.mxu0 %v5163
    %7204 = vmatpush.bf16.msra.mxu0 %v5147
    %7205 = vmatpush.bf16.msra.mxu0 %v5131
    %7206 = vmatmul.bf16.gmra.mxu0 %v1146
    %v7207 = vpop.f32.mrf.mxu0
    %v7208 = vadd.f32 %v7195, %v7207
    %v7209 = vpop.f32.mrf.mxu0
    %7210 = vdwg.mxu0
    %7211 = vmatpush.bf16.msra.mxu0 %v4348
    %7212 = vmatpush.bf16.msra.mxu0 %v4332
    %7213 = vmatpush.bf16.msra.mxu0 %v4316
    %7214 = vmatpush.bf16.msra.mxu0 %v4300
    %7215 = vmatpush.bf16.msra.mxu0 %v4284
    %7216 = vmatpush.bf16.msra.mxu0 %v4268
    %7217 = vmatpush.bf16.msra.mxu0 %v4252
    %7218 = vmatpush.bf16.msra.mxu0 %v4236
    %7219 = vmatmul.bf16.gmra.mxu0 %v1139
    %v7220 = vpop.f32.mrf.mxu0
    %v7221 = vadd.f32 0.0, %v7220
    %v7222 = vpop.f32.mrf.mxu0
    %7223 = vdwg.mxu0
    %7224 = vmatpush.bf16.msra.mxu0 %v4476
    %7225 = vmatpush.bf16.msra.mxu0 %v4460
    %7226 = vmatpush.bf16.msra.mxu0 %v4444
    %7227 = vmatpush.bf16.msra.mxu0 %v4428
    %7228 = vmatpush.bf16.msra.mxu0 %v4412
    %7229 = vmatpush.bf16.msra.mxu0 %v4396
    %7230 = vmatpush.bf16.msra.mxu0 %v4380
    %7231 = vmatpush.bf16.msra.mxu0 %v4364
    %7232 = vmatmul.bf16.gmra.mxu0 %v1140
    %v7233 = vpop.f32.mrf.mxu0
    %v7234 = vadd.f32 %v7221, %v7233
    %v7235 = vpop.f32.mrf.mxu0
    %7236 = vdwg.mxu0
    %7237 = vmatpush.bf16.msra.mxu0 %v4604
    %7238 = vmatpush.bf16.msra.mxu0 %v4588
    %7239 = vmatpush.bf16.msra.mxu0 %v4572
    %7240 = vmatpush.bf16.msra.mxu0 %v4556
    %7241 = vmatpush.bf16.msra.mxu0 %v4540
    %7242 = vmatpush.bf16.msra.mxu0 %v4524
    %7243 = vmatpush.bf16.msra.mxu0 %v4508
    %7244 = vmatpush.bf16.msra.mxu0 %v4492
    %7245 = vmatmul.bf16.gmra.mxu0 %v1141
    %v7246 = vpop.f32.mrf.mxu0
    %v7247 = vadd.f32 %v7234, %v7246
    %v7248 = vpop.f32.mrf.mxu0
    %7249 = vdwg.mxu0
    %7250 = vmatpush.bf16.msra.mxu0 %v4732
    %7251 = vmatpush.bf16.msra.mxu0 %v4716
    %7252 = vmatpush.bf16.msra.mxu0 %v4700
    %7253 = vmatpush.bf16.msra.mxu0 %v4684
    %7254 = vmatpush.bf16.msra.mxu0 %v4668
    %7255 = vmatpush.bf16.msra.mxu0 %v4652
    %7256 = vmatpush.bf16.msra.mxu0 %v4636
    %7257 = vmatpush.bf16.msra.mxu0 %v4620
    %7258 = vmatmul.bf16.gmra.mxu0 %v1142
    %v7259 = vpop.f32.mrf.mxu0
    %v7260 = vadd.f32 %v7247, %v7259
    %v7261 = vpop.f32.mrf.mxu0
    %7262 = vdwg.mxu0
    %7263 = vmatpush.bf16.msra.mxu0 %v4860
    %7264 = vmatpush.bf16.msra.mxu0 %v4844
    %7265 = vmatpush.bf16.msra.mxu0 %v4828
    %7266 = vmatpush.bf16.msra.mxu0 %v4812
    %7267 = vmatpush.bf16.msra.mxu0 %v4796
    %7268 = vmatpush.bf16.msra.mxu0 %v4780
    %7269 = vmatpush.bf16.msra.mxu0 %v4764
    %7270 = vmatpush.bf16.msra.mxu0 %v4748
    %7271 = vmatmul.bf16.gmra.mxu0 %v1143
    %v7272 = vpop.f32.mrf.mxu0
    %v7273 = vadd.f32 %v7260, %v7272
    %v7274 = vpop.f32.mrf.mxu0
    %7275 = vdwg.mxu0
    %7276 = vmatpush.bf16.msra.mxu0 %v4988
    %7277 = vmatpush.bf16.msra.mxu0 %v4972
    %7278 = vmatpush.bf16.msra.mxu0 %v4956
    %7279 = vmatpush.bf16.msra.mxu0 %v4940
    %7280 = vmatpush.bf16.msra.mxu0 %v4924
    %7281 = vmatpush.bf16.msra.mxu0 %v4908
    %7282 = vmatpush.bf16.msra.mxu0 %v4892
    %7283 = vmatpush.bf16.msra.mxu0 %v4876
    %7284 = vmatmul.bf16.gmra.mxu0 %v1144
    %v7285 = vpop.f32.mrf.mxu0
    %v7286 = vadd.f32 %v7273, %v7285
    %v7287 = vpop.f32.mrf.mxu0
    %7288 = vdwg.mxu0
    %7289 = vmatpush.bf16.msra.mxu0 %v5116
    %7290 = vmatpush.bf16.msra.mxu0 %v5100
    %7291 = vmatpush.bf16.msra.mxu0 %v5084
    %7292 = vmatpush.bf16.msra.mxu0 %v5068
    %7293 = vmatpush.bf16.msra.mxu0 %v5052
    %7294 = vmatpush.bf16.msra.mxu0 %v5036
    %7295 = vmatpush.bf16.msra.mxu0 %v5020
    %7296 = vmatpush.bf16.msra.mxu0 %v5004
    %7297 = vmatmul.bf16.gmra.mxu0 %v1145
    %v7298 = vpop.f32.mrf.mxu0
    %v7299 = vadd.f32 %v7286, %v7298
    %v7300 = vpop.f32.mrf.mxu0
    %7301 = vdwg.mxu0
    %7302 = vmatpush.bf16.msra.mxu0 %v5244
    %7303 = vmatpush.bf16.msra.mxu0 %v5228
    %7304 = vmatpush.bf16.msra.mxu0 %v5212
    %7305 = vmatpush.bf16.msra.mxu0 %v5196
    %7306 = vmatpush.bf16.msra.mxu0 %v5180
    %7307 = vmatpush.bf16.msra.mxu0 %v5164
    %7308 = vmatpush.bf16.msra.mxu0 %v5148
    %7309 = vmatpush.bf16.msra.mxu0 %v5132
    %7310 = vmatmul.bf16.gmra.mxu0 %v1146
    %v7311 = vpop.f32.mrf.mxu0
    %v7312 = vadd.f32 %v7299, %v7311
    %v7313 = vpop.f32.mrf.mxu0
    %7314 = vdwg.mxu0
    %7315 = vmatpush.bf16.msra.mxu0 %v4349
    %7316 = vmatpush.bf16.msra.mxu0 %v4333
    %7317 = vmatpush.bf16.msra.mxu0 %v4317
    %7318 = vmatpush.bf16.msra.mxu0 %v4301
    %7319 = vmatpush.bf16.msra.mxu0 %v4285
    %7320 = vmatpush.bf16.msra.mxu0 %v4269
    %7321 = vmatpush.bf16.msra.mxu0 %v4253
    %7322 = vmatpush.bf16.msra.mxu0 %v4237
    %7323 = vmatmul.bf16.gmra.mxu0 %v1139
    %v7324 = vpop.f32.mrf.mxu0
    %v7325 = vadd.f32 0.0, %v7324
    %v7326 = vpop.f32.mrf.mxu0
    %7327 = vdwg.mxu0
    %7328 = vmatpush.bf16.msra.mxu0 %v4477
    %7329 = vmatpush.bf16.msra.mxu0 %v4461
    %7330 = vmatpush.bf16.msra.mxu0 %v4445
    %7331 = vmatpush.bf16.msra.mxu0 %v4429
    %7332 = vmatpush.bf16.msra.mxu0 %v4413
    %7333 = vmatpush.bf16.msra.mxu0 %v4397
    %7334 = vmatpush.bf16.msra.mxu0 %v4381
    %7335 = vmatpush.bf16.msra.mxu0 %v4365
    %7336 = vmatmul.bf16.gmra.mxu0 %v1140
    %v7337 = vpop.f32.mrf.mxu0
    %v7338 = vadd.f32 %v7325, %v7337
    %v7339 = vpop.f32.mrf.mxu0
    %7340 = vdwg.mxu0
    %7341 = vmatpush.bf16.msra.mxu0 %v4605
    %7342 = vmatpush.bf16.msra.mxu0 %v4589
    %7343 = vmatpush.bf16.msra.mxu0 %v4573
    %7344 = vmatpush.bf16.msra.mxu0 %v4557
    %7345 = vmatpush.bf16.msra.mxu0 %v4541
    %7346 = vmatpush.bf16.msra.mxu0 %v4525
    %7347 = vmatpush.bf16.msra.mxu0 %v4509
    %7348 = vmatpush.bf16.msra.mxu0 %v4493
    %7349 = vmatmul.bf16.gmra.mxu0 %v1141
    %v7350 = vpop.f32.mrf.mxu0
    %v7351 = vadd.f32 %v7338, %v7350
    %v7352 = vpop.f32.mrf.mxu0
    %7353 = vdwg.mxu0
    %7354 = vmatpush.bf16.msra.mxu0 %v4733
    %7355 = vmatpush.bf16.msra.mxu0 %v4717
    %7356 = vmatpush.bf16.msra.mxu0 %v4701
    %7357 = vmatpush.bf16.msra.mxu0 %v4685
    %7358 = vmatpush.bf16.msra.mxu0 %v4669
    %7359 = vmatpush.bf16.msra.mxu0 %v4653
    %7360 = vmatpush.bf16.msra.mxu0 %v4637
    %7361 = vmatpush.bf16.msra.mxu0 %v4621
    %7362 = vmatmul.bf16.gmra.mxu0 %v1142
    %v7363 = vpop.f32.mrf.mxu0
    %v7364 = vadd.f32 %v7351, %v7363
    %v7365 = vpop.f32.mrf.mxu0
    %7366 = vdwg.mxu0
    %7367 = vmatpush.bf16.msra.mxu0 %v4861
    %7368 = vmatpush.bf16.msra.mxu0 %v4845
    %7369 = vmatpush.bf16.msra.mxu0 %v4829
    %7370 = vmatpush.bf16.msra.mxu0 %v4813
    %7371 = vmatpush.bf16.msra.mxu0 %v4797
    %7372 = vmatpush.bf16.msra.mxu0 %v4781
    %7373 = vmatpush.bf16.msra.mxu0 %v4765
    %7374 = vmatpush.bf16.msra.mxu0 %v4749
    %7375 = vmatmul.bf16.gmra.mxu0 %v1143
    %v7376 = vpop.f32.mrf.mxu0
    %v7377 = vadd.f32 %v7364, %v7376
    %v7378 = vpop.f32.mrf.mxu0
    %7379 = vdwg.mxu0
    %7380 = vmatpush.bf16.msra.mxu0 %v4989
    %7381 = vmatpush.bf16.msra.mxu0 %v4973
    %7382 = vmatpush.bf16.msra.mxu0 %v4957
    %7383 = vmatpush.bf16.msra.mxu0 %v4941
    %7384 = vmatpush.bf16.msra.mxu0 %v4925
    %7385 = vmatpush.bf16.msra.mxu0 %v4909
    %7386 = vmatpush.bf16.msra.mxu0 %v4893
    %7387 = vmatpush.bf16.msra.mxu0 %v4877
    %7388 = vmatmul.bf16.gmra.mxu0 %v1144
    %v7389 = vpop.f32.mrf.mxu0
    %v7390 = vadd.f32 %v7377, %v7389
    %v7391 = vpop.f32.mrf.mxu0
    %7392 = vdwg.mxu0
    %7393 = vmatpush.bf16.msra.mxu0 %v5117
    %7394 = vmatpush.bf16.msra.mxu0 %v5101
    %7395 = vmatpush.bf16.msra.mxu0 %v5085
    %7396 = vmatpush.bf16.msra.mxu0 %v5069
    %7397 = vmatpush.bf16.msra.mxu0 %v5053
    %7398 = vmatpush.bf16.msra.mxu0 %v5037
    %7399 = vmatpush.bf16.msra.mxu0 %v5021
    %7400 = vmatpush.bf16.msra.mxu0 %v5005
    %7401 = vmatmul.bf16.gmra.mxu0 %v1145
    %v7402 = vpop.f32.mrf.mxu0
    %v7403 = vadd.f32 %v7390, %v7402
    %v7404 = vpop.f32.mrf.mxu0
    %7405 = vdwg.mxu0
    %7406 = vmatpush.bf16.msra.mxu0 %v5245
    %7407 = vmatpush.bf16.msra.mxu0 %v5229
    %7408 = vmatpush.bf16.msra.mxu0 %v5213
    %7409 = vmatpush.bf16.msra.mxu0 %v5197
    %7410 = vmatpush.bf16.msra.mxu0 %v5181
    %7411 = vmatpush.bf16.msra.mxu0 %v5165
    %7412 = vmatpush.bf16.msra.mxu0 %v5149
    %7413 = vmatpush.bf16.msra.mxu0 %v5133
    %7414 = vmatmul.bf16.gmra.mxu0 %v1146
    %v7415 = vpop.f32.mrf.mxu0
    %v7416 = vadd.f32 %v7403, %v7415
    %v7417 = vpop.f32.mrf.mxu0
    %7418 = vdwg.mxu0
    %7419 = vmatpush.bf16.msra.mxu0 %v4350
    %7420 = vmatpush.bf16.msra.mxu0 %v4334
    %7421 = vmatpush.bf16.msra.mxu0 %v4318
    %7422 = vmatpush.bf16.msra.mxu0 %v4302
    %7423 = vmatpush.bf16.msra.mxu0 %v4286
    %7424 = vmatpush.bf16.msra.mxu0 %v4270
    %7425 = vmatpush.bf16.msra.mxu0 %v4254
    %7426 = vmatpush.bf16.msra.mxu0 %v4238
    %7427 = vmatmul.bf16.gmra.mxu0 %v1139
    %v7428 = vpop.f32.mrf.mxu0
    %v7429 = vadd.f32 0.0, %v7428
    %v7430 = vpop.f32.mrf.mxu0
    %7431 = vdwg.mxu0
    %7432 = vmatpush.bf16.msra.mxu0 %v4478
    %7433 = vmatpush.bf16.msra.mxu0 %v4462
    %7434 = vmatpush.bf16.msra.mxu0 %v4446
    %7435 = vmatpush.bf16.msra.mxu0 %v4430
    %7436 = vmatpush.bf16.msra.mxu0 %v4414
    %7437 = vmatpush.bf16.msra.mxu0 %v4398
    %7438 = vmatpush.bf16.msra.mxu0 %v4382
    %7439 = vmatpush.bf16.msra.mxu0 %v4366
    %7440 = vmatmul.bf16.gmra.mxu0 %v1140
    %v7441 = vpop.f32.mrf.mxu0
    %v7442 = vadd.f32 %v7429, %v7441
    %v7443 = vpop.f32.mrf.mxu0
    %7444 = vdwg.mxu0
    %7445 = vmatpush.bf16.msra.mxu0 %v4606
    %7446 = vmatpush.bf16.msra.mxu0 %v4590
    %7447 = vmatpush.bf16.msra.mxu0 %v4574
    %7448 = vmatpush.bf16.msra.mxu0 %v4558
    %7449 = vmatpush.bf16.msra.mxu0 %v4542
    %7450 = vmatpush.bf16.msra.mxu0 %v4526
    %7451 = vmatpush.bf16.msra.mxu0 %v4510
    %7452 = vmatpush.bf16.msra.mxu0 %v4494
    %7453 = vmatmul.bf16.gmra.mxu0 %v1141
    %v7454 = vpop.f32.mrf.mxu0
    %v7455 = vadd.f32 %v7442, %v7454
    %v7456 = vpop.f32.mrf.mxu0
    %7457 = vdwg.mxu0
    %7458 = vmatpush.bf16.msra.mxu0 %v4734
    %7459 = vmatpush.bf16.msra.mxu0 %v4718
    %7460 = vmatpush.bf16.msra.mxu0 %v4702
    %7461 = vmatpush.bf16.msra.mxu0 %v4686
    %7462 = vmatpush.bf16.msra.mxu0 %v4670
    %7463 = vmatpush.bf16.msra.mxu0 %v4654
    %7464 = vmatpush.bf16.msra.mxu0 %v4638
    %7465 = vmatpush.bf16.msra.mxu0 %v4622
    %7466 = vmatmul.bf16.gmra.mxu0 %v1142
    %v7467 = vpop.f32.mrf.mxu0
    %v7468 = vadd.f32 %v7455, %v7467
    %v7469 = vpop.f32.mrf.mxu0
    %7470 = vdwg.mxu0
    %7471 = vmatpush.bf16.msra.mxu0 %v4862
    %7472 = vmatpush.bf16.msra.mxu0 %v4846
    %7473 = vmatpush.bf16.msra.mxu0 %v4830
    %7474 = vmatpush.bf16.msra.mxu0 %v4814
    %7475 = vmatpush.bf16.msra.mxu0 %v4798
    %7476 = vmatpush.bf16.msra.mxu0 %v4782
    %7477 = vmatpush.bf16.msra.mxu0 %v4766
    %7478 = vmatpush.bf16.msra.mxu0 %v4750
    %7479 = vmatmul.bf16.gmra.mxu0 %v1143
    %v7480 = vpop.f32.mrf.mxu0
    %v7481 = vadd.f32 %v7468, %v7480
    %v7482 = vpop.f32.mrf.mxu0
    %7483 = vdwg.mxu0
    %7484 = vmatpush.bf16.msra.mxu0 %v4990
    %7485 = vmatpush.bf16.msra.mxu0 %v4974
    %7486 = vmatpush.bf16.msra.mxu0 %v4958
    %7487 = vmatpush.bf16.msra.mxu0 %v4942
    %7488 = vmatpush.bf16.msra.mxu0 %v4926
    %7489 = vmatpush.bf16.msra.mxu0 %v4910
    %7490 = vmatpush.bf16.msra.mxu0 %v4894
    %7491 = vmatpush.bf16.msra.mxu0 %v4878
    %7492 = vmatmul.bf16.gmra.mxu0 %v1144
    %v7493 = vpop.f32.mrf.mxu0
    %v7494 = vadd.f32 %v7481, %v7493
    %v7495 = vpop.f32.mrf.mxu0
    %7496 = vdwg.mxu0
    %7497 = vmatpush.bf16.msra.mxu0 %v5118
    %7498 = vmatpush.bf16.msra.mxu0 %v5102
    %7499 = vmatpush.bf16.msra.mxu0 %v5086
    %7500 = vmatpush.bf16.msra.mxu0 %v5070
    %7501 = vmatpush.bf16.msra.mxu0 %v5054
    %7502 = vmatpush.bf16.msra.mxu0 %v5038
    %7503 = vmatpush.bf16.msra.mxu0 %v5022
    %7504 = vmatpush.bf16.msra.mxu0 %v5006
    %7505 = vmatmul.bf16.gmra.mxu0 %v1145
    %v7506 = vpop.f32.mrf.mxu0
    %v7507 = vadd.f32 %v7494, %v7506
    %v7508 = vpop.f32.mrf.mxu0
    %7509 = vdwg.mxu0
    %7510 = vmatpush.bf16.msra.mxu0 %v5246
    %7511 = vmatpush.bf16.msra.mxu0 %v5230
    %7512 = vmatpush.bf16.msra.mxu0 %v5214
    %7513 = vmatpush.bf16.msra.mxu0 %v5198
    %7514 = vmatpush.bf16.msra.mxu0 %v5182
    %7515 = vmatpush.bf16.msra.mxu0 %v5166
    %7516 = vmatpush.bf16.msra.mxu0 %v5150
    %7517 = vmatpush.bf16.msra.mxu0 %v5134
    %7518 = vmatmul.bf16.gmra.mxu0 %v1146
    %v7519 = vpop.f32.mrf.mxu0
    %v7520 = vadd.f32 %v7507, %v7519
    %v7521 = vpop.f32.mrf.mxu0
    %7522 = vdwg.mxu0
    %7523 = vmatpush.bf16.msra.mxu0 %v4351
    %7524 = vmatpush.bf16.msra.mxu0 %v4335
    %7525 = vmatpush.bf16.msra.mxu0 %v4319
    %7526 = vmatpush.bf16.msra.mxu0 %v4303
    %7527 = vmatpush.bf16.msra.mxu0 %v4287
    %7528 = vmatpush.bf16.msra.mxu0 %v4271
    %7529 = vmatpush.bf16.msra.mxu0 %v4255
    %7530 = vmatpush.bf16.msra.mxu0 %v4239
    %7531 = vmatmul.bf16.gmra.mxu0 %v1139
    %v7532 = vpop.f32.mrf.mxu0
    %v7533 = vadd.f32 0.0, %v7532
    %v7534 = vpop.f32.mrf.mxu0
    %7535 = vdwg.mxu0
    %7536 = vmatpush.bf16.msra.mxu0 %v4479
    %7537 = vmatpush.bf16.msra.mxu0 %v4463
    %7538 = vmatpush.bf16.msra.mxu0 %v4447
    %7539 = vmatpush.bf16.msra.mxu0 %v4431
    %7540 = vmatpush.bf16.msra.mxu0 %v4415
    %7541 = vmatpush.bf16.msra.mxu0 %v4399
    %7542 = vmatpush.bf16.msra.mxu0 %v4383
    %7543 = vmatpush.bf16.msra.mxu0 %v4367
    %7544 = vmatmul.bf16.gmra.mxu0 %v1140
    %v7545 = vpop.f32.mrf.mxu0
    %v7546 = vadd.f32 %v7533, %v7545
    %v7547 = vpop.f32.mrf.mxu0
    %7548 = vdwg.mxu0
    %7549 = vmatpush.bf16.msra.mxu0 %v4607
    %7550 = vmatpush.bf16.msra.mxu0 %v4591
    %7551 = vmatpush.bf16.msra.mxu0 %v4575
    %7552 = vmatpush.bf16.msra.mxu0 %v4559
    %7553 = vmatpush.bf16.msra.mxu0 %v4543
    %7554 = vmatpush.bf16.msra.mxu0 %v4527
    %7555 = vmatpush.bf16.msra.mxu0 %v4511
    %7556 = vmatpush.bf16.msra.mxu0 %v4495
    %7557 = vmatmul.bf16.gmra.mxu0 %v1141
    %v7558 = vpop.f32.mrf.mxu0
    %v7559 = vadd.f32 %v7546, %v7558
    %v7560 = vpop.f32.mrf.mxu0
    %7561 = vdwg.mxu0
    %7562 = vmatpush.bf16.msra.mxu0 %v4735
    %7563 = vmatpush.bf16.msra.mxu0 %v4719
    %7564 = vmatpush.bf16.msra.mxu0 %v4703
    %7565 = vmatpush.bf16.msra.mxu0 %v4687
    %7566 = vmatpush.bf16.msra.mxu0 %v4671
    %7567 = vmatpush.bf16.msra.mxu0 %v4655
    %7568 = vmatpush.bf16.msra.mxu0 %v4639
    %7569 = vmatpush.bf16.msra.mxu0 %v4623
    %7570 = vmatmul.bf16.gmra.mxu0 %v1142
    %v7571 = vpop.f32.mrf.mxu0
    %v7572 = vadd.f32 %v7559, %v7571
    %v7573 = vpop.f32.mrf.mxu0
    %7574 = vdwg.mxu0
    %7575 = vmatpush.bf16.msra.mxu0 %v4863
    %7576 = vmatpush.bf16.msra.mxu0 %v4847
    %7577 = vmatpush.bf16.msra.mxu0 %v4831
    %7578 = vmatpush.bf16.msra.mxu0 %v4815
    %7579 = vmatpush.bf16.msra.mxu0 %v4799
    %7580 = vmatpush.bf16.msra.mxu0 %v4783
    %7581 = vmatpush.bf16.msra.mxu0 %v4767
    %7582 = vmatpush.bf16.msra.mxu0 %v4751
    %7583 = vmatmul.bf16.gmra.mxu0 %v1143
    %v7584 = vpop.f32.mrf.mxu0
    %v7585 = vadd.f32 %v7572, %v7584
    %v7586 = vpop.f32.mrf.mxu0
    %7587 = vdwg.mxu0
    %7588 = vmatpush.bf16.msra.mxu0 %v4991
    %7589 = vmatpush.bf16.msra.mxu0 %v4975
    %7590 = vmatpush.bf16.msra.mxu0 %v4959
    %7591 = vmatpush.bf16.msra.mxu0 %v4943
    %7592 = vmatpush.bf16.msra.mxu0 %v4927
    %7593 = vmatpush.bf16.msra.mxu0 %v4911
    %7594 = vmatpush.bf16.msra.mxu0 %v4895
    %7595 = vmatpush.bf16.msra.mxu0 %v4879
    %7596 = vmatmul.bf16.gmra.mxu0 %v1144
    %v7597 = vpop.f32.mrf.mxu0
    %v7598 = vadd.f32 %v7585, %v7597
    %v7599 = vpop.f32.mrf.mxu0
    %7600 = vdwg.mxu0
    %7601 = vmatpush.bf16.msra.mxu0 %v5119
    %7602 = vmatpush.bf16.msra.mxu0 %v5103
    %7603 = vmatpush.bf16.msra.mxu0 %v5087
    %7604 = vmatpush.bf16.msra.mxu0 %v5071
    %7605 = vmatpush.bf16.msra.mxu0 %v5055
    %7606 = vmatpush.bf16.msra.mxu0 %v5039
    %7607 = vmatpush.bf16.msra.mxu0 %v5023
    %7608 = vmatpush.bf16.msra.mxu0 %v5007
    %7609 = vmatmul.bf16.gmra.mxu0 %v1145
    %v7610 = vpop.f32.mrf.mxu0
    %v7611 = vadd.f32 %v7598, %v7610
    %v7612 = vpop.f32.mrf.mxu0
    %7613 = vdwg.mxu0
    %7614 = vmatpush.bf16.msra.mxu0 %v5247
    %7615 = vmatpush.bf16.msra.mxu0 %v5231
    %7616 = vmatpush.bf16.msra.mxu0 %v5215
    %7617 = vmatpush.bf16.msra.mxu0 %v5199
    %7618 = vmatpush.bf16.msra.mxu0 %v5183
    %7619 = vmatpush.bf16.msra.mxu0 %v5167
    %7620 = vmatpush.bf16.msra.mxu0 %v5151
    %7621 = vmatpush.bf16.msra.mxu0 %v5135
    %7622 = vmatmul.bf16.gmra.mxu0 %v1146
    %v7623 = vpop.f32.mrf.mxu0
    %v7624 = vadd.f32 %v7611, %v7623
    %v7625 = vpop.f32.mrf.mxu0
    %7626 = vdwg.mxu0
    %7627 = vmatpush.bf16.msra.mxu0 %v4352
    %7628 = vmatpush.bf16.msra.mxu0 %v4336
    %7629 = vmatpush.bf16.msra.mxu0 %v4320
    %7630 = vmatpush.bf16.msra.mxu0 %v4304
    %7631 = vmatpush.bf16.msra.mxu0 %v4288
    %7632 = vmatpush.bf16.msra.mxu0 %v4272
    %7633 = vmatpush.bf16.msra.mxu0 %v4256
    %7634 = vmatpush.bf16.msra.mxu0 %v4240
    %7635 = vmatmul.bf16.gmra.mxu0 %v1139
    %v7636 = vpop.f32.mrf.mxu0
    %v7637 = vadd.f32 0.0, %v7636
    %v7638 = vpop.f32.mrf.mxu0
    %7639 = vdwg.mxu0
    %7640 = vmatpush.bf16.msra.mxu0 %v4480
    %7641 = vmatpush.bf16.msra.mxu0 %v4464
    %7642 = vmatpush.bf16.msra.mxu0 %v4448
    %7643 = vmatpush.bf16.msra.mxu0 %v4432
    %7644 = vmatpush.bf16.msra.mxu0 %v4416
    %7645 = vmatpush.bf16.msra.mxu0 %v4400
    %7646 = vmatpush.bf16.msra.mxu0 %v4384
    %7647 = vmatpush.bf16.msra.mxu0 %v4368
    %7648 = vmatmul.bf16.gmra.mxu0 %v1140
    %v7649 = vpop.f32.mrf.mxu0
    %v7650 = vadd.f32 %v7637, %v7649
    %v7651 = vpop.f32.mrf.mxu0
    %7652 = vdwg.mxu0
    %7653 = vmatpush.bf16.msra.mxu0 %v4608
    %7654 = vmatpush.bf16.msra.mxu0 %v4592
    %7655 = vmatpush.bf16.msra.mxu0 %v4576
    %7656 = vmatpush.bf16.msra.mxu0 %v4560
    %7657 = vmatpush.bf16.msra.mxu0 %v4544
    %7658 = vmatpush.bf16.msra.mxu0 %v4528
    %7659 = vmatpush.bf16.msra.mxu0 %v4512
    %7660 = vmatpush.bf16.msra.mxu0 %v4496
    %7661 = vmatmul.bf16.gmra.mxu0 %v1141
    %v7662 = vpop.f32.mrf.mxu0
    %v7663 = vadd.f32 %v7650, %v7662
    %v7664 = vpop.f32.mrf.mxu0
    %7665 = vdwg.mxu0
    %7666 = vmatpush.bf16.msra.mxu0 %v4736
    %7667 = vmatpush.bf16.msra.mxu0 %v4720
    %7668 = vmatpush.bf16.msra.mxu0 %v4704
    %7669 = vmatpush.bf16.msra.mxu0 %v4688
    %7670 = vmatpush.bf16.msra.mxu0 %v4672
    %7671 = vmatpush.bf16.msra.mxu0 %v4656
    %7672 = vmatpush.bf16.msra.mxu0 %v4640
    %7673 = vmatpush.bf16.msra.mxu0 %v4624
    %7674 = vmatmul.bf16.gmra.mxu0 %v1142
    %v7675 = vpop.f32.mrf.mxu0
    %v7676 = vadd.f32 %v7663, %v7675
    %v7677 = vpop.f32.mrf.mxu0
    %7678 = vdwg.mxu0
    %7679 = vmatpush.bf16.msra.mxu0 %v4864
    %7680 = vmatpush.bf16.msra.mxu0 %v4848
    %7681 = vmatpush.bf16.msra.mxu0 %v4832
    %7682 = vmatpush.bf16.msra.mxu0 %v4816
    %7683 = vmatpush.bf16.msra.mxu0 %v4800
    %7684 = vmatpush.bf16.msra.mxu0 %v4784
    %7685 = vmatpush.bf16.msra.mxu0 %v4768
    %7686 = vmatpush.bf16.msra.mxu0 %v4752
    %7687 = vmatmul.bf16.gmra.mxu0 %v1143
    %v7688 = vpop.f32.mrf.mxu0
    %v7689 = vadd.f32 %v7676, %v7688
    %v7690 = vpop.f32.mrf.mxu0
    %7691 = vdwg.mxu0
    %7692 = vmatpush.bf16.msra.mxu0 %v4992
    %7693 = vmatpush.bf16.msra.mxu0 %v4976
    %7694 = vmatpush.bf16.msra.mxu0 %v4960
    %7695 = vmatpush.bf16.msra.mxu0 %v4944
    %7696 = vmatpush.bf16.msra.mxu0 %v4928
    %7697 = vmatpush.bf16.msra.mxu0 %v4912
    %7698 = vmatpush.bf16.msra.mxu0 %v4896
    %7699 = vmatpush.bf16.msra.mxu0 %v4880
    %7700 = vmatmul.bf16.gmra.mxu0 %v1144
    %v7701 = vpop.f32.mrf.mxu0
    %v7702 = vadd.f32 %v7689, %v7701
    %v7703 = vpop.f32.mrf.mxu0
    %7704 = vdwg.mxu0
    %7705 = vmatpush.bf16.msra.mxu0 %v5120
    %7706 = vmatpush.bf16.msra.mxu0 %v5104
    %7707 = vmatpush.bf16.msra.mxu0 %v5088
    %7708 = vmatpush.bf16.msra.mxu0 %v5072
    %7709 = vmatpush.bf16.msra.mxu0 %v5056
    %7710 = vmatpush.bf16.msra.mxu0 %v5040
    %7711 = vmatpush.bf16.msra.mxu0 %v5024
    %7712 = vmatpush.bf16.msra.mxu0 %v5008
    %7713 = vmatmul.bf16.gmra.mxu0 %v1145
    %v7714 = vpop.f32.mrf.mxu0
    %v7715 = vadd.f32 %v7702, %v7714
    %v7716 = vpop.f32.mrf.mxu0
    %7717 = vdwg.mxu0
    %7718 = vmatpush.bf16.msra.mxu0 %v5248
    %7719 = vmatpush.bf16.msra.mxu0 %v5232
    %7720 = vmatpush.bf16.msra.mxu0 %v5216
    %7721 = vmatpush.bf16.msra.mxu0 %v5200
    %7722 = vmatpush.bf16.msra.mxu0 %v5184
    %7723 = vmatpush.bf16.msra.mxu0 %v5168
    %7724 = vmatpush.bf16.msra.mxu0 %v5152
    %7725 = vmatpush.bf16.msra.mxu0 %v5136
    %7726 = vmatmul.bf16.gmra.mxu0 %v1146
    %v7727 = vpop.f32.mrf.mxu0
    %v7728 = vadd.f32 %v7715, %v7727
    %v7729 = vpop.f32.mrf.mxu0
    %7730 = vdwg.mxu0
    %7731 = vmatpush.bf16.msra.mxu0 %v4353
    %7732 = vmatpush.bf16.msra.mxu0 %v4337
    %7733 = vmatpush.bf16.msra.mxu0 %v4321
    %7734 = vmatpush.bf16.msra.mxu0 %v4305
    %7735 = vmatpush.bf16.msra.mxu0 %v4289
    %7736 = vmatpush.bf16.msra.mxu0 %v4273
    %7737 = vmatpush.bf16.msra.mxu0 %v4257
    %7738 = vmatpush.bf16.msra.mxu0 %v4241
    %7739 = vmatmul.bf16.gmra.mxu0 %v1139
    %v7740 = vpop.f32.mrf.mxu0
    %v7741 = vadd.f32 0.0, %v7740
    %v7742 = vpop.f32.mrf.mxu0
    %7743 = vdwg.mxu0
    %7744 = vmatpush.bf16.msra.mxu0 %v4481
    %7745 = vmatpush.bf16.msra.mxu0 %v4465
    %7746 = vmatpush.bf16.msra.mxu0 %v4449
    %7747 = vmatpush.bf16.msra.mxu0 %v4433
    %7748 = vmatpush.bf16.msra.mxu0 %v4417
    %7749 = vmatpush.bf16.msra.mxu0 %v4401
    %7750 = vmatpush.bf16.msra.mxu0 %v4385
    %7751 = vmatpush.bf16.msra.mxu0 %v4369
    %7752 = vmatmul.bf16.gmra.mxu0 %v1140
    %v7753 = vpop.f32.mrf.mxu0
    %v7754 = vadd.f32 %v7741, %v7753
    %v7755 = vpop.f32.mrf.mxu0
    %7756 = vdwg.mxu0
    %7757 = vmatpush.bf16.msra.mxu0 %v4609
    %7758 = vmatpush.bf16.msra.mxu0 %v4593
    %7759 = vmatpush.bf16.msra.mxu0 %v4577
    %7760 = vmatpush.bf16.msra.mxu0 %v4561
    %7761 = vmatpush.bf16.msra.mxu0 %v4545
    %7762 = vmatpush.bf16.msra.mxu0 %v4529
    %7763 = vmatpush.bf16.msra.mxu0 %v4513
    %7764 = vmatpush.bf16.msra.mxu0 %v4497
    %7765 = vmatmul.bf16.gmra.mxu0 %v1141
    %v7766 = vpop.f32.mrf.mxu0
    %v7767 = vadd.f32 %v7754, %v7766
    %v7768 = vpop.f32.mrf.mxu0
    %7769 = vdwg.mxu0
    %7770 = vmatpush.bf16.msra.mxu0 %v4737
    %7771 = vmatpush.bf16.msra.mxu0 %v4721
    %7772 = vmatpush.bf16.msra.mxu0 %v4705
    %7773 = vmatpush.bf16.msra.mxu0 %v4689
    %7774 = vmatpush.bf16.msra.mxu0 %v4673
    %7775 = vmatpush.bf16.msra.mxu0 %v4657
    %7776 = vmatpush.bf16.msra.mxu0 %v4641
    %7777 = vmatpush.bf16.msra.mxu0 %v4625
    %7778 = vmatmul.bf16.gmra.mxu0 %v1142
    %v7779 = vpop.f32.mrf.mxu0
    %v7780 = vadd.f32 %v7767, %v7779
    %v7781 = vpop.f32.mrf.mxu0
    %7782 = vdwg.mxu0
    %7783 = vmatpush.bf16.msra.mxu0 %v4865
    %7784 = vmatpush.bf16.msra.mxu0 %v4849
    %7785 = vmatpush.bf16.msra.mxu0 %v4833
    %7786 = vmatpush.bf16.msra.mxu0 %v4817
    %7787 = vmatpush.bf16.msra.mxu0 %v4801
    %7788 = vmatpush.bf16.msra.mxu0 %v4785
    %7789 = vmatpush.bf16.msra.mxu0 %v4769
    %7790 = vmatpush.bf16.msra.mxu0 %v4753
    %7791 = vmatmul.bf16.gmra.mxu0 %v1143
    %v7792 = vpop.f32.mrf.mxu0
    %v7793 = vadd.f32 %v7780, %v7792
    %v7794 = vpop.f32.mrf.mxu0
    %7795 = vdwg.mxu0
    %7796 = vmatpush.bf16.msra.mxu0 %v4993
    %7797 = vmatpush.bf16.msra.mxu0 %v4977
    %7798 = vmatpush.bf16.msra.mxu0 %v4961
    %7799 = vmatpush.bf16.msra.mxu0 %v4945
    %7800 = vmatpush.bf16.msra.mxu0 %v4929
    %7801 = vmatpush.bf16.msra.mxu0 %v4913
    %7802 = vmatpush.bf16.msra.mxu0 %v4897
    %7803 = vmatpush.bf16.msra.mxu0 %v4881
    %7804 = vmatmul.bf16.gmra.mxu0 %v1144
    %v7805 = vpop.f32.mrf.mxu0
    %v7806 = vadd.f32 %v7793, %v7805
    %v7807 = vpop.f32.mrf.mxu0
    %7808 = vdwg.mxu0
    %7809 = vmatpush.bf16.msra.mxu0 %v5121
    %7810 = vmatpush.bf16.msra.mxu0 %v5105
    %7811 = vmatpush.bf16.msra.mxu0 %v5089
    %7812 = vmatpush.bf16.msra.mxu0 %v5073
    %7813 = vmatpush.bf16.msra.mxu0 %v5057
    %7814 = vmatpush.bf16.msra.mxu0 %v5041
    %7815 = vmatpush.bf16.msra.mxu0 %v5025
    %7816 = vmatpush.bf16.msra.mxu0 %v5009
    %7817 = vmatmul.bf16.gmra.mxu0 %v1145
    %v7818 = vpop.f32.mrf.mxu0
    %v7819 = vadd.f32 %v7806, %v7818
    %v7820 = vpop.f32.mrf.mxu0
    %7821 = vdwg.mxu0
    %7822 = vmatpush.bf16.msra.mxu0 %v5249
    %7823 = vmatpush.bf16.msra.mxu0 %v5233
    %7824 = vmatpush.bf16.msra.mxu0 %v5217
    %7825 = vmatpush.bf16.msra.mxu0 %v5201
    %7826 = vmatpush.bf16.msra.mxu0 %v5185
    %7827 = vmatpush.bf16.msra.mxu0 %v5169
    %7828 = vmatpush.bf16.msra.mxu0 %v5153
    %7829 = vmatpush.bf16.msra.mxu0 %v5137
    %7830 = vmatmul.bf16.gmra.mxu0 %v1146
    %v7831 = vpop.f32.mrf.mxu0
    %v7832 = vadd.f32 %v7819, %v7831
    %v7833 = vpop.f32.mrf.mxu0
    %7834 = vdwg.mxu0
    %7835 = vmatpush.bf16.msra.mxu0 %v4354
    %7836 = vmatpush.bf16.msra.mxu0 %v4338
    %7837 = vmatpush.bf16.msra.mxu0 %v4322
    %7838 = vmatpush.bf16.msra.mxu0 %v4306
    %7839 = vmatpush.bf16.msra.mxu0 %v4290
    %7840 = vmatpush.bf16.msra.mxu0 %v4274
    %7841 = vmatpush.bf16.msra.mxu0 %v4258
    %7842 = vmatpush.bf16.msra.mxu0 %v4242
    %7843 = vmatmul.bf16.gmra.mxu0 %v1139
    %v7844 = vpop.f32.mrf.mxu0
    %v7845 = vadd.f32 0.0, %v7844
    %v7846 = vpop.f32.mrf.mxu0
    %7847 = vdwg.mxu0
    %7848 = vmatpush.bf16.msra.mxu0 %v4482
    %7849 = vmatpush.bf16.msra.mxu0 %v4466
    %7850 = vmatpush.bf16.msra.mxu0 %v4450
    %7851 = vmatpush.bf16.msra.mxu0 %v4434
    %7852 = vmatpush.bf16.msra.mxu0 %v4418
    %7853 = vmatpush.bf16.msra.mxu0 %v4402
    %7854 = vmatpush.bf16.msra.mxu0 %v4386
    %7855 = vmatpush.bf16.msra.mxu0 %v4370
    %7856 = vmatmul.bf16.gmra.mxu0 %v1140
    %v7857 = vpop.f32.mrf.mxu0
    %v7858 = vadd.f32 %v7845, %v7857
    %v7859 = vpop.f32.mrf.mxu0
    %7860 = vdwg.mxu0
    %7861 = vmatpush.bf16.msra.mxu0 %v4610
    %7862 = vmatpush.bf16.msra.mxu0 %v4594
    %7863 = vmatpush.bf16.msra.mxu0 %v4578
    %7864 = vmatpush.bf16.msra.mxu0 %v4562
    %7865 = vmatpush.bf16.msra.mxu0 %v4546
    %7866 = vmatpush.bf16.msra.mxu0 %v4530
    %7867 = vmatpush.bf16.msra.mxu0 %v4514
    %7868 = vmatpush.bf16.msra.mxu0 %v4498
    %7869 = vmatmul.bf16.gmra.mxu0 %v1141
    %v7870 = vpop.f32.mrf.mxu0
    %v7871 = vadd.f32 %v7858, %v7870
    %v7872 = vpop.f32.mrf.mxu0
    %7873 = vdwg.mxu0
    %7874 = vmatpush.bf16.msra.mxu0 %v4738
    %7875 = vmatpush.bf16.msra.mxu0 %v4722
    %7876 = vmatpush.bf16.msra.mxu0 %v4706
    %7877 = vmatpush.bf16.msra.mxu0 %v4690
    %7878 = vmatpush.bf16.msra.mxu0 %v4674
    %7879 = vmatpush.bf16.msra.mxu0 %v4658
    %7880 = vmatpush.bf16.msra.mxu0 %v4642
    %7881 = vmatpush.bf16.msra.mxu0 %v4626
    %7882 = vmatmul.bf16.gmra.mxu0 %v1142
    %v7883 = vpop.f32.mrf.mxu0
    %v7884 = vadd.f32 %v7871, %v7883
    %v7885 = vpop.f32.mrf.mxu0
    %7886 = vdwg.mxu0
    %7887 = vmatpush.bf16.msra.mxu0 %v4866
    %7888 = vmatpush.bf16.msra.mxu0 %v4850
    %7889 = vmatpush.bf16.msra.mxu0 %v4834
    %7890 = vmatpush.bf16.msra.mxu0 %v4818
    %7891 = vmatpush.bf16.msra.mxu0 %v4802
    %7892 = vmatpush.bf16.msra.mxu0 %v4786
    %7893 = vmatpush.bf16.msra.mxu0 %v4770
    %7894 = vmatpush.bf16.msra.mxu0 %v4754
    %7895 = vmatmul.bf16.gmra.mxu0 %v1143
    %v7896 = vpop.f32.mrf.mxu0
    %v7897 = vadd.f32 %v7884, %v7896
    %v7898 = vpop.f32.mrf.mxu0
    %7899 = vdwg.mxu0
    %7900 = vmatpush.bf16.msra.mxu0 %v4994
    %7901 = vmatpush.bf16.msra.mxu0 %v4978
    %7902 = vmatpush.bf16.msra.mxu0 %v4962
    %7903 = vmatpush.bf16.msra.mxu0 %v4946
    %7904 = vmatpush.bf16.msra.mxu0 %v4930
    %7905 = vmatpush.bf16.msra.mxu0 %v4914
    %7906 = vmatpush.bf16.msra.mxu0 %v4898
    %7907 = vmatpush.bf16.msra.mxu0 %v4882
    %7908 = vmatmul.bf16.gmra.mxu0 %v1144
    %v7909 = vpop.f32.mrf.mxu0
    %v7910 = vadd.f32 %v7897, %v7909
    %v7911 = vpop.f32.mrf.mxu0
    %7912 = vdwg.mxu0
    %7913 = vmatpush.bf16.msra.mxu0 %v5122
    %7914 = vmatpush.bf16.msra.mxu0 %v5106
    %7915 = vmatpush.bf16.msra.mxu0 %v5090
    %7916 = vmatpush.bf16.msra.mxu0 %v5074
    %7917 = vmatpush.bf16.msra.mxu0 %v5058
    %7918 = vmatpush.bf16.msra.mxu0 %v5042
    %7919 = vmatpush.bf16.msra.mxu0 %v5026
    %7920 = vmatpush.bf16.msra.mxu0 %v5010
    %7921 = vmatmul.bf16.gmra.mxu0 %v1145
    %v7922 = vpop.f32.mrf.mxu0
    %v7923 = vadd.f32 %v7910, %v7922
    %v7924 = vpop.f32.mrf.mxu0
    %7925 = vdwg.mxu0
    %7926 = vmatpush.bf16.msra.mxu0 %v5250
    %7927 = vmatpush.bf16.msra.mxu0 %v5234
    %7928 = vmatpush.bf16.msra.mxu0 %v5218
    %7929 = vmatpush.bf16.msra.mxu0 %v5202
    %7930 = vmatpush.bf16.msra.mxu0 %v5186
    %7931 = vmatpush.bf16.msra.mxu0 %v5170
    %7932 = vmatpush.bf16.msra.mxu0 %v5154
    %7933 = vmatpush.bf16.msra.mxu0 %v5138
    %7934 = vmatmul.bf16.gmra.mxu0 %v1146
    %v7935 = vpop.f32.mrf.mxu0
    %v7936 = vadd.f32 %v7923, %v7935
    %v7937 = vpop.f32.mrf.mxu0
    %7938 = vdwg.mxu0
    %v7939 = vadd.f32 %v87, %v6376
    %v7940 = vadd.f32 %v88, %v6480
    %v7941 = vadd.f32 %v89, %v6584
    %v7942 = vadd.f32 %v90, %v6688
    %v7943 = vadd.f32 %v91, %v6792
    %v7944 = vadd.f32 %v92, %v6896
    %v7945 = vadd.f32 %v93, %v7000
    %v7946 = vadd.f32 %v94, %v7104
    %v7947 = vadd.f32 %v95, %v7208
    %v7948 = vadd.f32 %v96, %v7312
    %v7949 = vadd.f32 %v97, %v7416
    %v7950 = vadd.f32 %v98, %v7520
    %v7951 = vadd.f32 %v99, %v7624
    %v7952 = vadd.f32 %v100, %v7728
    %v7953 = vadd.f32 %v101, %v7832
    %v7954 = vadd.f32 %v102, %v7936
    %7955 = vst [vmem:[#allocation8] sm:$0xff] %v7939
    %7956 = vst [vmem:[#allocation8 + $0x8] sm:$0xff] %v7940
    %7957 = vst [vmem:[#allocation8 + $0x10] sm:$0xff] %v7941
    %7958 = vst [vmem:[#allocation8 + $0x18] sm:$0xff] %v7942
    %7959 = vst [vmem:[#allocation8 + $0x20] sm:$0xff] %v7943
    %7960 = vst [vmem:[#allocation8 + $0x28] sm:$0xff] %v7944
    %7961 = vst [vmem:[#allocation8 + $0x30] sm:$0xff] %v7945
    %7962 = vst [vmem:[#allocation8 + $0x38] sm:$0xff] %v7946
    %7963 = vst [vmem:[#allocation8 + $0x40] sm:$0xff] %v7947
    %7964 = vst [vmem:[#allocation8 + $0x48] sm:$0xff] %v7948
    %7965 = vst [vmem:[#allocation8 + $0x50] sm:$0xff] %v7949
    %7966 = vst [vmem:[#allocation8 + $0x58] sm:$0xff] %v7950
    %7967 = vst [vmem:[#allocation8 + $0x60] sm:$0xff] %v7951
    %7968 = vst [vmem:[#allocation8 + $0x68] sm:$0xff] %v7952
    %7969 = vst [vmem:[#allocation8 + $0x70] sm:$0xff] %v7953
    %7970 = vst [vmem:[#allocation8 + $0x78] sm:$0xff] %v7954
    // Predicated region
    $region30: #{tpu_custom_call.1} parent=1 // pred_check
      %p7971 = pneg %p58
    $region31: #{tpu_custom_call.1} parent=1 // pred_check_branch
      %7973 = sbr.rel (%p7971) target = $region33
    $region32: #{tpu_custom_call.1} parent=1 // pred_region
      %v7974 = vld [vmem:[#allocation8] sm:$0xff]
      %v7975 = vld [vmem:[#allocation8 + $0x8] sm:$0xff]
      %v7976 = vld [vmem:[#allocation8 + $0x10] sm:$0xff]
      %v7977 = vld [vmem:[#allocation8 + $0x18] sm:$0xff]
      %v7978 = vld [vmem:[#allocation8 + $0x20] sm:$0xff]
      %v7979 = vld [vmem:[#allocation8 + $0x28] sm:$0xff]
      %v7980 = vld [vmem:[#allocation8 + $0x30] sm:$0xff]
      %v7981 = vld [vmem:[#allocation8 + $0x38] sm:$0xff]
      %v7982 = vld [vmem:[#allocation8 + $0x40] sm:$0xff]
      %v7983 = vld [vmem:[#allocation8 + $0x48] sm:$0xff]
      %v7984 = vld [vmem:[#allocation8 + $0x50] sm:$0xff]
      %v7985 = vld [vmem:[#allocation8 + $0x58] sm:$0xff]
      %v7986 = vld [vmem:[#allocation8 + $0x60] sm:$0xff]
      %v7987 = vld [vmem:[#allocation8 + $0x68] sm:$0xff]
      %v7988 = vld [vmem:[#allocation8 + $0x70] sm:$0xff]
      %v7989 = vld [vmem:[#allocation8 + $0x78] sm:$0xff]
      %v7990 = vld [vmem:[#allocation7] sm:$0xff]
      %v7991 = vld [vmem:[#allocation7 + $0x8] sm:$0xff]
      %v7994 = vperm.slane %v7990, 0
      %v7995 = vperm.slane %v7990, 1
      %v7996 = vperm.slane %v7990, 2
      %v7997 = vperm.slane %v7990, 3
      %v7998 = vperm.slane %v7990, 4
      %v7999 = vperm.slane %v7990, 5
      %v8000 = vperm.slane %v7990, 6
      %v8001 = vperm.slane %v7990, 7
      %v8002 = vperm.slane %v7991, 0
      %v8003 = vperm.slane %v7991, 1
      %v8004 = vperm.slane %v7991, 2
      %v8005 = vperm.slane %v7991, 3
      %v8006 = vperm.slane %v7991, 4
      %v8007 = vperm.slane %v7991, 5
      %v8008 = vperm.slane %v7991, 6
      %v8009 = vperm.slane %v7991, 7
      %v8026 = vadd.f32 %v7974, %v7994
      %v8027 = vadd.f32 %v7975, %v7995
      %v8028 = vadd.f32 %v7976, %v7996
      %v8029 = vadd.f32 %v7977, %v7997
      %v8030 = vadd.f32 %v7978, %v7998
      %v8031 = vadd.f32 %v7979, %v7999
      %v8032 = vadd.f32 %v7980, %v8000
      %v8033 = vadd.f32 %v7981, %v8001
      %v8034 = vadd.f32 %v7982, %v8002
      %v8035 = vadd.f32 %v7983, %v8003
      %v8036 = vadd.f32 %v7984, %v8004
      %v8037 = vadd.f32 %v7985, %v8005
      %v8038 = vadd.f32 %v7986, %v8006
      %v8039 = vadd.f32 %v7987, %v8007
      %v8040 = vadd.f32 %v7988, %v8008
      %v8041 = vadd.f32 %v7989, %v8009
      %vm8042 = vcmp.gt.f32.partialorder %v8026, 0.0
      %vm8043 = vcmp.gt.f32.partialorder %v8027, 0.0
      %vm8044 = vcmp.gt.f32.partialorder %v8028, 0.0
      %vm8045 = vcmp.gt.f32.partialorder %v8029, 0.0
      %vm8046 = vcmp.gt.f32.partialorder %v8030, 0.0
      %vm8047 = vcmp.gt.f32.partialorder %v8031, 0.0
      %vm8048 = vcmp.gt.f32.partialorder %v8032, 0.0
      %vm8049 = vcmp.gt.f32.partialorder %v8033, 0.0
      %vm8050 = vcmp.gt.f32.partialorder %v8034, 0.0
      %vm8051 = vcmp.gt.f32.partialorder %v8035, 0.0
      %vm8052 = vcmp.gt.f32.partialorder %v8036, 0.0
      %vm8053 = vcmp.gt.f32.partialorder %v8037, 0.0
      %vm8054 = vcmp.gt.f32.partialorder %v8038, 0.0
      %vm8055 = vcmp.gt.f32.partialorder %v8039, 0.0
      %vm8056 = vcmp.gt.f32.partialorder %v8040, 0.0
      %vm8057 = vcmp.gt.f32.partialorder %v8041, 0.0
      %v8058 = vmul.f32 %v8026, 0.2
      %v8059 = vmul.f32 %v8027, 0.2
      %v8060 = vmul.f32 %v8028, 0.2
      %v8061 = vmul.f32 %v8029, 0.2
      %v8062 = vmul.f32 %v8030, 0.2
      %v8063 = vmul.f32 %v8031, 0.2
      %v8064 = vmul.f32 %v8032, 0.2
      %v8065 = vmul.f32 %v8033, 0.2
      %v8066 = vmul.f32 %v8034, 0.2
      %v8067 = vmul.f32 %v8035, 0.2
      %v8068 = vmul.f32 %v8036, 0.2
      %v8069 = vmul.f32 %v8037, 0.2
      %v8070 = vmul.f32 %v8038, 0.2
      %v8071 = vmul.f32 %v8039, 0.2
      %v8072 = vmul.f32 %v8040, 0.2
      %v8073 = vmul.f32 %v8041, 0.2
      %v8074 = vsel %vm8042, %v8026, %v8058
      %v8075 = vsel %vm8043, %v8027, %v8059
      %v8076 = vsel %vm8044, %v8028, %v8060
      %v8077 = vsel %vm8045, %v8029, %v8061
      %v8078 = vsel %vm8046, %v8030, %v8062
      %v8079 = vsel %vm8047, %v8031, %v8063
      %v8080 = vsel %vm8048, %v8032, %v8064
      %v8081 = vsel %vm8049, %v8033, %v8065
      %v8082 = vsel %vm8050, %v8034, %v8066
      %v8083 = vsel %vm8051, %v8035, %v8067
      %v8084 = vsel %vm8052, %v8036, %v8068
      %v8085 = vsel %vm8053, %v8037, %v8069
      %v8086 = vsel %vm8054, %v8038, %v8070
      %v8087 = vsel %vm8055, %v8039, %v8071
      %v8088 = vsel %vm8056, %v8040, %v8072
      %v8089 = vsel %vm8057, %v8041, %v8073
      %8090 = vst [vmem:[#allocation8] sm:$0xff] %v8074
      %8091 = vst [vmem:[#allocation8 + $0x8] sm:$0xff] %v8075
      %8092 = vst [vmem:[#allocation8 + $0x10] sm:$0xff] %v8076
      %8093 = vst [vmem:[#allocation8 + $0x18] sm:$0xff] %v8077
      %8094 = vst [vmem:[#allocation8 + $0x20] sm:$0xff] %v8078
      %8095 = vst [vmem:[#allocation8 + $0x28] sm:$0xff] %v8079
      %8096 = vst [vmem:[#allocation8 + $0x30] sm:$0xff] %v8080
      %8097 = vst [vmem:[#allocation8 + $0x38] sm:$0xff] %v8081
      %8098 = vst [vmem:[#allocation8 + $0x40] sm:$0xff] %v8082
      %8099 = vst [vmem:[#allocation8 + $0x48] sm:$0xff] %v8083
      %8100 = vst [vmem:[#allocation8 + $0x50] sm:$0xff] %v8084
      %8101 = vst [vmem:[#allocation8 + $0x58] sm:$0xff] %v8085
      %8102 = vst [vmem:[#allocation8 + $0x60] sm:$0xff] %v8086
      %8103 = vst [vmem:[#allocation8 + $0x68] sm:$0xff] %v8087
      %8104 = vst [vmem:[#allocation8 + $0x70] sm:$0xff] %v8088
      %8105 = vst [vmem:[#allocation8 + $0x78] sm:$0xff] %v8089
    $region33: #{tpu_custom_call.1} parent=1 // pred_fallthru
      _
    // Predicated region
    $region34: #{tpu_custom_call.1} parent=1 // pred_check
      _
    $region35: #{tpu_custom_call.1} parent=1 // pred_check_branch
      %8107 = sbr.rel (0) target = $region37
    $region36: #{tpu_custom_call.1} parent=1 // pred_region
      %8109 = vsyncadd [#allocation4], 0
      %s8111 = sshll.u32 [#allocation8], 4
      %s8112 = int_to_ptr.vmem [resolvable:$true] %s8111
      %s8113 = sshll.u32 %s3, 4
      %s8114 = int_to_ptr.hbm [resolvable:$true] %s8113
      %8116 = dma.vmem_to_hbm [thread:$0]  %s8112, 2048, %s8114, [#allocation4]
    $region37: #{tpu_custom_call.1} parent=1 // pred_fallthru
      _
    // Predicated region
    $region38: #{tpu_custom_call.1} parent=1 // pred_check
      _
    $region39: #{tpu_custom_call.1} parent=1 // pred_check_branch
      %8118 = sbr.rel (0) target = $region41
    $region40: #{tpu_custom_call.1} parent=1 // pred_region
      %8120 = dma.done [#allocation4], 2048
    $region41: #{tpu_custom_call.1} parent=1 // pred_fallthru
      _
    %8121 = vsyncpa [#allocation3], 1
    %8122 = vsyncpa [#allocation6], 1
    %8123 = vsyncpa [#allocation4], 1

</llo_original>
